<compile_context>
chip_gen: v5e
topology: v5e:2x2
jax: 0.10.0
libtpu: 0.0.40
codegen_flags: <defaults>
</compile_context>

<pallas_src>
import jax
import jax.numpy as jnp
from jax import lax
from jax.experimental import pallas as pl
from jax.experimental.pallas import tpu as pltpu

EPS = 1e-10          # UncurlNetW EPS added to mu
BN_EPS = 1e-5        # BatchNorm1d eps
NEG_MASK = -1e30     # softmax mask bias for padded latent columns
SUBLANES = 8         # sublane-replicated BN partial-sum tiles (keeps (8,128) blocks)
N_SUB = 2            # row sub-chunks inside the decode tile (EUP/MXU overlap)
OUT_DTYPE = jnp.bfloat16   # decode outputs; set to jnp.float32 for bit-parity runs


def _vmem_limit_bytes():
    # Generation-aware scoped-VMEM cap (~0.75x physical per-core VMEM).
    if jax.default_backend() != "tpu":
        return 48 * 1024 * 1024
    try:
        return int(pltpu.get_tpu_info().vmem_capacity_bytes) * 3 // 4
    except Exception:
        return 48 * 1024 * 1024


VMEM_LIMIT = _vmem_limit_bytes()


# ---------------------------------------------------------------------------
# Pass 1: fc1 pre-activation (x @ W1 + b1), batch-tiled, weights resident.
# Also emits per-tile BN partial sums in f32 and h_pre in bf16.
# ---------------------------------------------------------------------------
def fc1_kernel(x_ref, w1_ref, b1_ref, h_ref, sum_ref, sumsq_ref):
    h = jnp.dot(x_ref[...].astype(jnp.bfloat16), w1_ref[...],
                preferred_element_type=jnp.float32) + b1_ref[...]
    h_ref[...] = h.astype(jnp.bfloat16)
    s = jnp.sum(h, axis=0, keepdims=True)            # (1, H), exact f32
    ss = jnp.sum(h * h, axis=0, keepdims=True)       # (1, H), exact f32
    # Replicate across 8 sublanes so the partial-sum output block is (8, H)
    # (clean (8,128) tile); the wrapper divides the replication factor back out.
    sum_ref[...] = jnp.broadcast_to(s, sum_ref.shape)
    sumsq_ref[...] = jnp.broadcast_to(ss, sumsq_ref.shape)


# ---------------------------------------------------------------------------
# Pass 2: BN (folded scale/shift) -> ReLU -> fused [fc21|fc22] -> softmax ->
#         M-layer -> reparameterize -> WDecoder.  Batch-tiled; weights resident.
#         The tile is processed in N_SUB row sub-chunks to overlap EUP with MXU.
# ---------------------------------------------------------------------------
def decode_kernel(h_ref, scale_ref, shift_ref, wcat_ref, bcat_ref,
                  mt_ref, wd1_ref, bd1_ref, wd3_ref, bd3_ref, noise_ref,
                  out_ref, mu_ref, logvar_ref):
    kpad = mt_ref.shape[0]
    bt = h_ref.shape[0]
    rows = bt // N_SUB

    def chunk(c, carry):
        r0 = pl.multiple_of(c * rows, rows)

        # BatchNorm (full-batch stats pre-folded into scale/shift) + ReLU, f32.
        h = jnp.maximum(
            h_ref[pl.ds(r0, rows), :].astype(jnp.float32) * scale_ref[...]
            + shift_ref[...], 0.0)
        hb = h.astype(jnp.bfloat16)

        # Fused fc21 || fc22: one MXU matmul instead of two tiny ones.
        lc = (jnp.dot(hb, wcat_ref[...], preferred_element_type=jnp.float32)
              + bcat_ref[...])
        logits = lc[:, :kpad]          # padded latent columns carry a -1e30 bias
        logvar = lc[:, kpad:]

        # softmax over the (padded) latent dim; reciprocal on the EUP.
        logits = logits - jnp.max(logits, axis=-1, keepdims=True)
        e = jnp.exp(logits)
        w_soft = e * pl.reciprocal(jnp.sum(e, axis=-1, keepdims=True), approx=True)

        # m_layer: mu = W @ M^T + EPS (padded latent rows of M^T are zero).
        mu = jnp.dot(w_soft.astype(jnp.bfloat16), mt_ref[...],
                     preferred_element_type=jnp.float32) + EPS

        # reparameterize: z = eps * exp(0.5 * logvar) + mu (host-sampled eps).
        noise = noise_ref[pl.ds(r0, rows), :].astype(jnp.float32)
        z = noise * jnp.exp(0.5 * logvar) + mu

        # WDecoder: relu(fc_dec1) -> relu(fc_dec3)
        d1 = jnp.maximum(
            jnp.dot(z.astype(jnp.bfloat16), wd1_ref[...],
                    preferred_element_type=jnp.float32) + bd1_ref[...], 0.0)
        out = jnp.maximum(
            jnp.dot(d1.astype(jnp.bfloat16), wd3_ref[...],
                    preferred_element_type=jnp.float32) + bd3_ref[...], 0.0)

        out_ref[pl.ds(r0, rows), :] = out.astype(out_ref.dtype)
        mu_ref[pl.ds(r0, rows), :] = mu.astype(mu_ref.dtype)
        logvar_ref[pl.ds(r0, rows), :] = logvar.astype(logvar_ref.dtype)
        return carry

    lax.fori_loop(0, N_SUB, chunk, 0, unroll=True)


# ---------------------------------------------------------------------------
# Parameters: PyTorch-style U(+/-1/sqrt(fan_in)) init, pre-transposed to
# (in, out) and zero-padded to MXU/lane-friendly sizes at init time.
# ---------------------------------------------------------------------------
def init_params(key, genes, k, hidden_units=400, dec_hidden=400,
                hidden_pad=512, k_pad=128, dec_hidden_pad=512):
    def linear(kk, fan_in, fan_out):
        k1, k2 = jax.random.split(kk)
        bound = 1.0 / (fan_in ** 0.5)
        w = jax.random.uniform(k1, (fan_in, fan_out), jnp.float32, -bound, bound)
        b = jax.random.uniform(k2, (1, fan_out), jnp.float32, -bound, bound)
        return w, b

    keys = jax.random.split(key, 6)
    w1, b1 = linear(keys[0], genes, hidden_units)        # encoder.fc1
    w21, b21 = linear(keys[1], hidden_units, k)          # encoder.fc21
    w22, b22 = linear(keys[2], hidden_units, genes)      # encoder.fc22
    wd1, bd1 = linear(keys[3], genes, dec_hidden)        # decoder.fc_dec1
    wd3, bd3 = linear(keys[4], dec_hidden, genes)        # decoder.fc_dec3
    M = jax.random.uniform(keys[5], (genes, k), jnp.float32, 0.0, 1.0)  # genes x k

    hp = hidden_pad - hidden_units
    dp = dec_hidden_pad - dec_hidden
    kp = k_pad - k

    # fc1 / bn1, hidden 400 -> 512 (padded channels stay exactly zero end to end)
    w1p = jnp.pad(w1, ((0, 0), (0, hp)))
    b1p = jnp.pad(b1, ((0, 0), (0, hp)))
    gamma = jnp.ones((1, hidden_pad), jnp.float32)       # bn1.weight
    beta = jnp.zeros((1, hidden_pad), jnp.float32)       # bn1.bias

    # fused [fc21 | fc22]: fc21 padded to k_pad columns with zero weights and a
    # -1e30 bias so softmax over k_pad columns == softmax over the real k.
    wcat = jnp.concatenate([jnp.pad(w21, ((0, hp), (0, kp))),
                            jnp.pad(w22, ((0, hp), (0, 0)))], axis=1)
    bcat = jnp.concatenate([jnp.pad(b21, ((0, 0), (0, kp)), constant_values=NEG_MASK),
                            b22], axis=1)

    mT = jnp.pad(M.T, ((0, kp), (0, 0)))                 # (k_pad, genes); mu = W @ M^T

    # decoder hidden 400 -> 512 pad
    wd1p = jnp.pad(wd1, ((0, 0), (0, dp)))
    bd1p = jnp.pad(bd1, ((0, 0), (0, dp)))
    wd3p = jnp.pad(wd3, ((0, dp), (0, 0)))

    bf16 = jnp.bfloat16   # matmul operands in bf16, f32 accumulation
    return dict(w1=w1p.astype(bf16), b1=b1p, gamma=gamma, beta=beta,
                wcat=wcat.astype(bf16), bcat=bcat,
                mT=mT.astype(bf16),
                wd1=wd1p.astype(bf16), bd1=bd1p,
                wd3=wd3p.astype(bf16), bd3=bd3)


# ---------------------------------------------------------------------------
# Forward wrapper: two batch-tiled pallas_calls + a tiny XLA BN-stat reduction.
# ---------------------------------------------------------------------------
@jax.jit
def uncurlnet_forward(x, params, seed):
    """x: (B, genes) f32 counts; seed: int scalar for the reparam noise.
    Returns (decoded, mu, logvar), matching UncurlNetW.forward (bf16 outputs)."""
    B, genes = x.shape
    H = params["w1"].shape[1]
    KC = params["wcat"].shape[1]
    KPAD = params["mT"].shape[0]
    DH = params["wd1"].shape[1]

    # 128-row tiles: 4 grid steps at B=512 => >=2 steps per v7x TensorCore,
    # giving the batch-"parallel" software pipeline a steady state.
    bt = min(128, B)
    assert B % bt == 0, "batch must be a multiple of the batch tile"
    assert bt % (SUBLANES * N_SUB) == 0
    nbt = B // bt

    cparams = pltpu.CompilerParams(
        dimension_semantics=("parallel",),   # shard batch tiles over v7x's 2 cores
        vmem_limit_bytes=VMEM_LIMIT)

    # ---- pass 1: h_pre = x @ W1 + b1 (bf16 out) + BN partial sums (f32) ------
    h_bf16, bn_sum, bn_sumsq = pl.pallas_call(
        fc1_kernel,
        out_shape=(jax.ShapeDtypeStruct((B, H), jnp.bfloat16),
                   jax.ShapeDtypeStruct((nbt * SUBLANES, H), jnp.float32),
                   jax.ShapeDtypeStruct((nbt * SUBLANES, H), jnp.float32)),
        grid=(nbt,),
        in_specs=[pl.BlockSpec((bt, genes), lambda i: (i, 0)),
                  pl.BlockSpec((genes, H), lambda i: (0, 0)),
                  pl.BlockSpec((1, H), lambda i: (0, 0))],
        out_specs=(pl.BlockSpec((bt, H), lambda i: (i, 0)),
                   pl.BlockSpec((SUBLANES, H), lambda i: (i, 0)),
                   pl.BlockSpec((SUBLANES, H), lambda i: (i, 0))),
        compiler_params=cparams,
    )(x, params["w1"], params["b1"])

    # ---- full-batch BatchNorm1d statistics (training mode, biased variance) --
    # Reduced from the per-tile f32 partial sums (tiny (nbt*8, H) arrays), so
    # batch tiling never changes the normalization and h_pre is not re-read.
    denom = float(B) * float(SUBLANES)        # partials are sublane-replicated x8
    mean = jnp.sum(bn_sum, axis=0, keepdims=True) / denom
    ex2 = jnp.sum(bn_sumsq, axis=0, keepdims=True) / denom
    var = jnp.maximum(ex2 - mean * mean, 0.0)
    inv_std = lax.rsqrt(var + BN_EPS)
    bn_scale = params["gamma"] * inv_std
    bn_shift = params["beta"] - mean * bn_scale
    # NOTE: nn.BatchNorm1d running_mean/running_var updates are a training-loop
    # side effect, not part of this functional forward; `mean`/`var` are the
    # batch stats a caller would use to maintain them.

    # Host-sampled N(0,1) reparameterization noise (bf16 to halve its DMA).
    # TODO(synk): move back on-chip (pltpu.prng_seed + pltpu.stateful_normal)
    # once the runtime supports those primitives outside real-TPU lowering.
    noise = jax.random.normal(jax.random.PRNGKey(seed), (B, genes),
                              jnp.float32).astype(jnp.bfloat16)

    row = lambda i: (i, 0)      # batch-tiled operands
    rep = lambda i: (0, 0)      # same block every step -> stays resident in VMEM

    in_specs = [
        pl.BlockSpec((bt, H), row),           # h_pre tile (bf16)
        pl.BlockSpec((1, H), rep),            # folded BN scale
        pl.BlockSpec((1, H), rep),            # folded BN shift
        pl.BlockSpec((H, KC), rep),           # [W21 | W22]
        pl.BlockSpec((1, KC), rep),           # [b21 | b22]
        pl.BlockSpec((KPAD, genes), rep),     # M^T
        pl.BlockSpec((genes, DH), rep),       # Wd1
        pl.BlockSpec((1, DH), rep),           # bd1
        pl.BlockSpec((DH, genes), rep),       # Wd3
        pl.BlockSpec((1, genes), rep),        # bd3
        pl.BlockSpec((bt, genes), row),       # noise tile (bf16)
    ]

    # TODO(synk): for production gene counts (~10k-20k) add a genes-axis grid
    # (K-tiles for the W1/Wd1 contractions, N-tiles for W22/Wd3/M^T outputs) so
    # the resident weights fit v7x's 64 MiB VMEM; unnecessary at these shapes.
    out, mu, logvar = pl.pallas_call(
        decode_kernel,
        out_shape=(jax.ShapeDtypeStruct((B, genes), OUT_DTYPE),
                   jax.ShapeDtypeStruct((B, genes), OUT_DTYPE),
                   jax.ShapeDtypeStruct((B, genes), OUT_DTYPE)),
        grid=(nbt,),
        in_specs=in_specs,
        out_specs=(pl.BlockSpec((bt, genes), row),
                   pl.BlockSpec((bt, genes), row),
                   pl.BlockSpec((bt, genes), row)),
        compiler_params=cparams,
    )(h_bf16, bn_scale, bn_shift, params["wcat"], params["bcat"],
      params["mT"], params["wd1"], params["bd1"], params["wd3"], params["bd3"],
      noise)
    return out, mu, logvar


if __name__ == "__main__":
    # Small but MXU-friendly shapes: batch 512 (four 128-row tiles), genes=256,
    # k=8 (padded to 128 in-init), hidden=400 (padded to 512 in-init).
    B, GENES, K, HIDDEN = 512, 256, 8, 400

    key = jax.random.PRNGKey(0)
    k_params, k_x = jax.random.split(key)

    params = init_params(k_params, GENES, K, hidden_units=HIDDEN)
    # count-like (Poisson) gene-expression data, as UNCURL expects
    x = jax.random.poisson(k_x, 5.0, (B, GENES)).astype(jnp.float32)

    out, mu, logvar = jax.block_until_ready(uncurlnet_forward(x, params, 42))

    assert out.shape == (B, GENES) and mu.shape == (B, GENES) and logvar.shape == (B, GENES)
    assert bool(jnp.all(jnp.isfinite(out.astype(jnp.float32)))) and bool(jnp.all(out >= 0.0))
    assert bool(jnp.all(jnp.isfinite(logvar.astype(jnp.float32))))
    assert bool(jnp.all(mu > 0.0))   # softmax(W) @ nonneg M^T + EPS > 0
    print("KERNEL_OK")
</pallas_src>

<mosaic_0001>
module attributes {stable_mosaic.version = 11 : i64} {
  func.func @fc1_kernel(%arg0: i32, %arg1: memref<128x256xf32, #tpu.memory_space<vmem>>, %arg2: memref<256x512xbf16, #tpu.memory_space<vmem>>, %arg3: memref<1x512xf32, #tpu.memory_space<vmem>>, %arg4: memref<128x512xbf16, #tpu.memory_space<vmem>>, %arg5: memref<8x512xf32, #tpu.memory_space<vmem>>, %arg6: memref<8x512xf32, #tpu.memory_space<vmem>>) attributes {dimension_semantics = [#tpu.dimension_semantics<parallel>], iteration_bounds = array<i64: 4>, scalar_prefetch = 0 : i64, scratch_operands = 0 : i64, tpu.core_type = #tpu.core_type<tc>, window_params = [{transform_indices = @transform_0, window_bounds = array<i64: 128, 256>}, {pipeline_mode = #tpu.pipeline_mode<synchronous>, transform_indices = @transform_1, window_bounds = array<i64: 256, 512>}, {pipeline_mode = #tpu.pipeline_mode<synchronous>, transform_indices = @transform_2, window_bounds = array<i64: 1, 512>}, {transform_indices = @transform_3, window_bounds = array<i64: 128, 512>}, {transform_indices = @transform_4, window_bounds = array<i64: 8, 512>}, {transform_indices = @transform_5, window_bounds = array<i64: 8, 512>}]} {
    %c0 = arith.constant 0 : index
    %c0_0 = arith.constant 0 : index
    %0 = vector.load %arg1[%c0, %c0_0] : memref<128x256xf32, #tpu.memory_space<vmem>>, vector<128x256xf32>
    %1 = arith.truncf %0 : vector<128x256xf32> to vector<128x256xbf16>
    %c0_1 = arith.constant 0 : index
    %c0_2 = arith.constant 0 : index
    %2 = vector.load %arg2[%c0_1, %c0_2] : memref<256x512xbf16, #tpu.memory_space<vmem>>, vector<256x512xbf16>
    %cst = arith.constant dense<0.000000e+00> : vector<128x512xf32>
    %3 = tpu.matmul %1, %2, %cst {dimension_numbers = #tpu.dot_dimension_numbers<[1], [0], [0], [1], [0, 0, 1, 1], [], []>} : vector<128x256xbf16>, vector<256x512xbf16>, vector<128x512xf32> -> vector<128x512xf32>
    %c0_3 = arith.constant 0 : index
    %c0_4 = arith.constant 0 : index
    %4 = vector.load %arg3[%c0_3, %c0_4] : memref<1x512xf32, #tpu.memory_space<vmem>>, vector<1x512xf32>
    %5 = vector.broadcast %4 : vector<1x512xf32> to vector<128x512xf32>
    %6 = arith.addf %3, %5 : vector<128x512xf32>
    %7 = arith.truncf %6 : vector<128x512xf32> to vector<128x512xbf16>
    %c0_5 = arith.constant 0 : index
    %c0_6 = arith.constant 0 : index
    %8 = vector.load %arg4[%c0_5, %c0_6] : memref<128x512xbf16, #tpu.memory_space<vmem>>, vector<128x512xbf16>
    tpu.vector_store %arg4[%c0_5, %c0_6], %7 {strides = array<i32>} : memref<128x512xbf16, #tpu.memory_space<vmem>>, vector<128x512xbf16>,
    %cst_7 = arith.constant dense<0.000000e+00> : vector<512xf32>
    %9 = vector.multi_reduction <add>, %6, %cst_7 [0] : vector<128x512xf32> to vector<512xf32>
    %10 = vector.shape_cast %9 : vector<512xf32> to vector<1x512xf32>
    %11 = arith.mulf %6, %6 : vector<128x512xf32>
    %cst_8 = arith.constant dense<0.000000e+00> : vector<512xf32>
    %12 = vector.multi_reduction <add>, %11, %cst_8 [0] : vector<128x512xf32> to vector<512xf32>
    %13 = vector.shape_cast %12 : vector<512xf32> to vector<1x512xf32>
    %14 = vector.shape_cast %10 : vector<1x512xf32> to vector<1x512xf32>
    %15 = vector.broadcast %14 : vector<1x512xf32> to vector<8x512xf32>
    %c0_9 = arith.constant 0 : index
    %c0_10 = arith.constant 0 : index
    %16 = vector.load %arg5[%c0_9, %c0_10] : memref<8x512xf32, #tpu.memory_space<vmem>>, vector<8x512xf32>
    tpu.vector_store %arg5[%c0_9, %c0_10], %15 {strides = array<i32>} : memref<8x512xf32, #tpu.memory_space<vmem>>, vector<8x512xf32>,
    %17 = vector.shape_cast %13 : vector<1x512xf32> to vector<1x512xf32>
    %18 = vector.broadcast %17 : vector<1x512xf32> to vector<8x512xf32>
    %c0_11 = arith.constant 0 : index
    %c0_12 = arith.constant 0 : index
    %19 = vector.load %arg6[%c0_11, %c0_12] : memref<8x512xf32, #tpu.memory_space<vmem>>, vector<8x512xf32>
    tpu.vector_store %arg6[%c0_11, %c0_12], %18 {strides = array<i32>} : memref<8x512xf32, #tpu.memory_space<vmem>>, vector<8x512xf32>,
    return
  }
  func.func @transform_0(%arg0: i32) -> (i32, i32) {
    %c0_i32 = arith.constant 0 : i32
    %c0_i32_0 = arith.constant 0 : i32
    return %arg0, %c0_i32 : i32, i32
  }
  func.func @transform_1(%arg0: i32) -> (i32, i32) {
    %c0_i32 = arith.constant 0 : i32
    %c0_i32_0 = arith.constant 0 : i32
    %c0_i32_1 = arith.constant 0 : i32
    return %c0_i32, %c0_i32_0 : i32, i32
  }
  func.func @transform_2(%arg0: i32) -> (i32, i32) {
    %c0_i32 = arith.constant 0 : i32
    %c0_i32_0 = arith.constant 0 : i32
    %c0_i32_1 = arith.constant 0 : i32
    return %c0_i32, %c0_i32_0 : i32, i32
  }
  func.func @transform_3(%arg0: i32) -> (i32, i32) {
    %c0_i32 = arith.constant 0 : i32
    %c0_i32_0 = arith.constant 0 : i32
    return %arg0, %c0_i32 : i32, i32
  }
  func.func @transform_4(%arg0: i32) -> (i32, i32) {
    %c0_i32 = arith.constant 0 : i32
    %c0_i32_0 = arith.constant 0 : i32
    return %arg0, %c0_i32 : i32, i32
  }
  func.func @transform_5(%arg0: i32) -> (i32, i32) {
    %c0_i32 = arith.constant 0 : i32
    %c0_i32_0 = arith.constant 0 : i32
    return %arg0, %c0_i32 : i32, i32
  }
}

module attributes {stable_mosaic.version = 11 : i64} {
  func.func @decode_kernel(%arg0: i32, %arg1: memref<128x512xbf16, #tpu.memory_space<vmem>>, %arg2: memref<1x512xf32, #tpu.memory_space<vmem>>, %arg3: memref<1x512xf32, #tpu.memory_space<vmem>>, %arg4: memref<512x384xbf16, #tpu.memory_space<vmem>>, %arg5: memref<1x384xf32, #tpu.memory_space<vmem>>, %arg6: memref<128x256xbf16, #tpu.memory_space<vmem>>, %arg7: memref<256x512xbf16, #tpu.memory_space<vmem>>, %arg8: memref<1x512xf32, #tpu.memory_space<vmem>>, %arg9: memref<512x256xbf16, #tpu.memory_space<vmem>>, %arg10: memref<1x256xf32, #tpu.memory_space<vmem>>, %arg11: memref<128x256xbf16, #tpu.memory_space<vmem>>, %arg12: memref<128x256xbf16, #tpu.memory_space<vmem>>, %arg13: memref<128x256xbf16, #tpu.memory_space<vmem>>, %arg14: memref<128x256xbf16, #tpu.memory_space<vmem>>) attributes {dimension_semantics = [#tpu.dimension_semantics<parallel>], iteration_bounds = array<i64: 4>, scalar_prefetch = 0 : i64, scratch_operands = 0 : i64, tpu.core_type = #tpu.core_type<tc>, window_params = [{transform_indices = @transform_0, window_bounds = array<i64: 128, 512>}, {pipeline_mode = #tpu.pipeline_mode<synchronous>, transform_indices = @transform_1, window_bounds = array<i64: 1, 512>}, {pipeline_mode = #tpu.pipeline_mode<synchronous>, transform_indices = @transform_2, window_bounds = array<i64: 1, 512>}, {pipeline_mode = #tpu.pipeline_mode<synchronous>, transform_indices = @transform_3, window_bounds = array<i64: 512, 384>}, {pipeline_mode = #tpu.pipeline_mode<synchronous>, transform_indices = @transform_4, window_bounds = array<i64: 1, 384>}, {pipeline_mode = #tpu.pipeline_mode<synchronous>, transform_indices = @transform_5, window_bounds = array<i64: 128, 256>}, {pipeline_mode = #tpu.pipeline_mode<synchronous>, transform_indices = @transform_6, window_bounds = array<i64: 256, 512>}, {pipeline_mode = #tpu.pipeline_mode<synchronous>, transform_indices = @transform_7, window_bounds = array<i64: 1, 512>}, {pipeline_mode = #tpu.pipeline_mode<synchronous>, transform_indices = @transform_8, window_bounds = array<i64: 512, 256>}, {pipeline_mode = #tpu.pipeline_mode<synchronous>, transform_indices = @transform_9, window_bounds = array<i64: 1, 256>}, {transform_indices = @transform_10, window_bounds = array<i64: 128, 256>}, {transform_indices = @transform_11, window_bounds = array<i64: 128, 256>}, {transform_indices = @transform_12, window_bounds = array<i64: 128, 256>}, {transform_indices = @transform_13, window_bounds = array<i64: 128, 256>}]} {
    %c0_i32 = arith.constant 0 : i32
    %c64_i32 = arith.constant 64 : i32
    %0 = arith.muli %c0_i32, %c64_i32 : i32
    %1 = tpu.assume_multiple %0, 64 : i32
    %2 = arith.index_cast %1 : i32 to index
    %c0 = arith.constant 0 : index
    %3 = vector.load %arg1[%2, %c0] : memref<128x512xbf16, #tpu.memory_space<vmem>>, vector<64x512xbf16>
    %4 = arith.extf %3 : vector<64x512xbf16> to vector<64x512xf32>
    %c0_0 = arith.constant 0 : index
    %c0_1 = arith.constant 0 : index
    %5 = vector.load %arg2[%c0_0, %c0_1] : memref<1x512xf32, #tpu.memory_space<vmem>>, vector<1x512xf32>
    %6 = vector.broadcast %5 : vector<1x512xf32> to vector<64x512xf32>
    %7 = arith.mulf %4, %6 : vector<64x512xf32>
    %c0_2 = arith.constant 0 : index
    %c0_3 = arith.constant 0 : index
    %8 = vector.load %arg3[%c0_2, %c0_3] : memref<1x512xf32, #tpu.memory_space<vmem>>, vector<1x512xf32>
    %9 = vector.broadcast %8 : vector<1x512xf32> to vector<64x512xf32>
    %10 = arith.addf %7, %9 : vector<64x512xf32>
    %cst = arith.constant 0.000000e+00 : f32
    %11 = vector.broadcast %cst : f32 to vector<64x512xf32>
    %12 = arith.maximumf %10, %11 : vector<64x512xf32>
    %13 = arith.truncf %12 : vector<64x512xf32> to vector<64x512xbf16>
    %c0_4 = arith.constant 0 : index
    %c0_5 = arith.constant 0 : index
    %14 = vector.load %arg4[%c0_4, %c0_5] : memref<512x384xbf16, #tpu.memory_space<vmem>>, vector<512x384xbf16>
    %cst_6 = arith.constant dense<0.000000e+00> : vector<64x384xf32>
    %15 = tpu.matmul %13, %14, %cst_6 {dimension_numbers = #tpu.dot_dimension_numbers<[1], [0], [0], [1], [0, 0, 1, 1], [], []>} : vector<64x512xbf16>, vector<512x384xbf16>, vector<64x384xf32> -> vector<64x384xf32>
    %c0_7 = arith.constant 0 : index
    %c0_8 = arith.constant 0 : index
    %16 = vector.load %arg5[%c0_7, %c0_8] : memref<1x384xf32, #tpu.memory_space<vmem>>, vector<1x384xf32>
    %17 = vector.broadcast %16 : vector<1x384xf32> to vector<64x384xf32>
    %18 = arith.addf %15, %17 : vector<64x384xf32>
    %19 = vector.extract_strided_slice %18 {offsets = [0, 0], sizes = [64, 128], strides = [1, 1]} : vector<64x384xf32> to vector<64x128xf32>
    %20 = vector.extract_strided_slice %18 {offsets = [0, 128], sizes = [64, 256], strides = [1, 1]} : vector<64x384xf32> to vector<64x256xf32>
    %cst_9 = arith.constant dense<0xFF800000> : vector<64xf32>
    %21 = vector.multi_reduction <maximumf>, %19, %cst_9 [1] : vector<64x128xf32> to vector<64xf32>
    %22 = vector.shape_cast %21 : vector<64xf32> to vector<64x1xf32>
    %23 = vector.broadcast %22 : vector<64x1xf32> to vector<64x128xf32>
    %24 = arith.subf %19, %23 : vector<64x128xf32>
    %25 = math.exp %24 : vector<64x128xf32>
    %cst_10 = arith.constant dense<0.000000e+00> : vector<64xf32>
    %26 = vector.multi_reduction <add>, %25, %cst_10 [1] : vector<64x128xf32> to vector<64xf32>
    %27 = vector.shape_cast %26 : vector<64xf32> to vector<64x1xf32>
    %28 = tpu.reciprocal %27 {approx = true} : vector<64x1xf32> -> vector<64x1xf32>
    %29 = vector.broadcast %28 : vector<64x1xf32> to vector<64x128xf32>
    %30 = arith.mulf %25, %29 : vector<64x128xf32>
    %31 = arith.truncf %30 : vector<64x128xf32> to vector<64x128xbf16>
    %c0_11 = arith.constant 0 : index
    %c0_12 = arith.constant 0 : index
    %32 = vector.load %arg6[%c0_11, %c0_12] : memref<128x256xbf16, #tpu.memory_space<vmem>>, vector<128x256xbf16>
    %cst_13 = arith.constant dense<0.000000e+00> : vector<64x256xf32>
    %33 = tpu.matmul %31, %32, %cst_13 {dimension_numbers = #tpu.dot_dimension_numbers<[1], [0], [0], [1], [0, 0, 1, 1], [], []>} : vector<64x128xbf16>, vector<128x256xbf16>, vector<64x256xf32> -> vector<64x256xf32>
    %cst_14 = arith.constant 1.000000e-10 : f32
    %34 = vector.broadcast %cst_14 : f32 to vector<64x256xf32>
    %35 = arith.addf %33, %34 : vector<64x256xf32>
    %36 = arith.index_cast %1 : i32 to index
    %c0_15 = arith.constant 0 : index
    %37 = vector.load %arg11[%36, %c0_15] : memref<128x256xbf16, #tpu.memory_space<vmem>>, vector<64x256xbf16>
    %38 = arith.extf %37 : vector<64x256xbf16> to vector<64x256xf32>
    %cst_16 = arith.constant 5.000000e-01 : f32
    %39 = vector.broadcast %cst_16 : f32 to vector<64x256xf32>
    %40 = arith.mulf %39, %20 : vector<64x256xf32>
    %41 = math.exp %40 : vector<64x256xf32>
    %42 = arith.mulf %38, %41 : vector<64x256xf32>
    %43 = arith.addf %42, %35 : vector<64x256xf32>
    %44 = arith.truncf %43 : vector<64x256xf32> to vector<64x256xbf16>
    %c0_17 = arith.constant 0 : index
    %c0_18 = arith.constant 0 : index
    %45 = vector.load %arg7[%c0_17, %c0_18] : memref<256x512xbf16, #tpu.memory_space<vmem>>, vector<256x512xbf16>
    %cst_19 = arith.constant dense<0.000000e+00> : vector<64x512xf32>
    %46 = tpu.matmul %44, %45, %cst_19 {dimension_numbers = #tpu.dot_dimension_numbers<[1], [0], [0], [1], [0, 0, 1, 1], [], []>} : vector<64x256xbf16>, vector<256x512xbf16>, vector<64x512xf32> -> vector<64x512xf32>
    %c0_20 = arith.constant 0 : index
    %c0_21 = arith.constant 0 : index
    %47 = vector.load %arg8[%c0_20, %c0_21] : memref<1x512xf32, #tpu.memory_space<vmem>>, vector<1x512xf32>
    %48 = vector.broadcast %47 : vector<1x512xf32> to vector<64x512xf32>
    %49 = arith.addf %46, %48 : vector<64x512xf32>
    %cst_22 = arith.constant 0.000000e+00 : f32
    %50 = vector.broadcast %cst_22 : f32 to vector<64x512xf32>
    %51 = arith.maximumf %49, %50 : vector<64x512xf32>
    %52 = arith.truncf %51 : vector<64x512xf32> to vector<64x512xbf16>
    %c0_23 = arith.constant 0 : index
    %c0_24 = arith.constant 0 : index
    %53 = vector.load %arg9[%c0_23, %c0_24] : memref<512x256xbf16, #tpu.memory_space<vmem>>, vector<512x256xbf16>
    %cst_25 = arith.constant dense<0.000000e+00> : vector<64x256xf32>
    %54 = tpu.matmul %52, %53, %cst_25 {dimension_numbers = #tpu.dot_dimension_numbers<[1], [0], [0], [1], [0, 0, 1, 1], [], []>} : vector<64x512xbf16>, vector<512x256xbf16>, vector<64x256xf32> -> vector<64x256xf32>
    %c0_26 = arith.constant 0 : index
    %c0_27 = arith.constant 0 : index
    %55 = vector.load %arg10[%c0_26, %c0_27] : memref<1x256xf32, #tpu.memory_space<vmem>>, vector<1x256xf32>
    %56 = vector.broadcast %55 : vector<1x256xf32> to vector<64x256xf32>
    %57 = arith.addf %54, %56 : vector<64x256xf32>
    %cst_28 = arith.constant 0.000000e+00 : f32
    %58 = vector.broadcast %cst_28 : f32 to vector<64x256xf32>
    %59 = arith.maximumf %57, %58 : vector<64x256xf32>
    %60 = arith.truncf %59 : vector<64x256xf32> to vector<64x256xbf16>
    %61 = arith.index_cast %1 : i32 to index
    %c0_29 = arith.constant 0 : index
    %62 = vector.load %arg12[%61, %c0_29] : memref<128x256xbf16, #tpu.memory_space<vmem>>, vector<64x256xbf16>
    tpu.vector_store %arg12[%61, %c0_29], %60 {strides = array<i32>} : memref<128x256xbf16, #tpu.memory_space<vmem>>, vector<64x256xbf16>,
    %63 = arith.truncf %35 : vector<64x256xf32> to vector<64x256xbf16>
    %64 = arith.index_cast %1 : i32 to index
    %c0_30 = arith.constant 0 : index
    %65 = vector.load %arg13[%64, %c0_30] : memref<128x256xbf16, #tpu.memory_space<vmem>>, vector<64x256xbf16>
    tpu.vector_store %arg13[%64, %c0_30], %63 {strides = array<i32>} : memref<128x256xbf16, #tpu.memory_space<vmem>>, vector<64x256xbf16>,
    %66 = arith.truncf %20 : vector<64x256xf32> to vector<64x256xbf16>
    %67 = arith.index_cast %1 : i32 to index
    %c0_31 = arith.constant 0 : index
    %68 = vector.load %arg14[%67, %c0_31] : memref<128x256xbf16, #tpu.memory_space<vmem>>, vector<64x256xbf16>
    tpu.vector_store %arg14[%67, %c0_31], %66 {strides = array<i32>} : memref<128x256xbf16, #tpu.memory_space<vmem>>, vector<64x256xbf16>,
    %c1_i32 = arith.constant 1 : i32
    %c64_i32_32 = arith.constant 64 : i32
    %69 = arith.muli %c1_i32, %c64_i32_32 : i32
    %70 = tpu.assume_multiple %69, 64 : i32
    %71 = arith.index_cast %70 : i32 to index
    %c0_33 = arith.constant 0 : index
    %72 = vector.load %arg1[%71, %c0_33] : memref<128x512xbf16, #tpu.memory_space<vmem>>, vector<64x512xbf16>
    %73 = arith.extf %72 : vector<64x512xbf16> to vector<64x512xf32>
    %c0_34 = arith.constant 0 : index
    %c0_35 = arith.constant 0 : index
    %74 = vector.load %arg2[%c0_34, %c0_35] : memref<1x512xf32, #tpu.memory_space<vmem>>, vector<1x512xf32>
    %75 = vector.broadcast %74 : vector<1x512xf32> to vector<64x512xf32>
    %76 = arith.mulf %73, %75 : vector<64x512xf32>
    %c0_36 = arith.constant 0 : index
    %c0_37 = arith.constant 0 : index
    %77 = vector.load %arg3[%c0_36, %c0_37] : memref<1x512xf32, #tpu.memory_space<vmem>>, vector<1x512xf32>
    %78 = vector.broadcast %77 : vector<1x512xf32> to vector<64x512xf32>
    %79 = arith.addf %76, %78 : vector<64x512xf32>
    %cst_38 = arith.constant 0.000000e+00 : f32
    %80 = vector.broadcast %cst_38 : f32 to vector<64x512xf32>
    %81 = arith.maximumf %79, %80 : vector<64x512xf32>
    %82 = arith.truncf %81 : vector<64x512xf32> to vector<64x512xbf16>
    %c0_39 = arith.constant 0 : index
    %c0_40 = arith.constant 0 : index
    %83 = vector.load %arg4[%c0_39, %c0_40] : memref<512x384xbf16, #tpu.memory_space<vmem>>, vector<512x384xbf16>
    %cst_41 = arith.constant dense<0.000000e+00> : vector<64x384xf32>
    %84 = tpu.matmul %82, %83, %cst_41 {dimension_numbers = #tpu.dot_dimension_numbers<[1], [0], [0], [1], [0, 0, 1, 1], [], []>} : vector<64x512xbf16>, vector<512x384xbf16>, vector<64x384xf32> -> vector<64x384xf32>
    %c0_42 = arith.constant 0 : index
    %c0_43 = arith.constant 0 : index
    %85 = vector.load %arg5[%c0_42, %c0_43] : memref<1x384xf32, #tpu.memory_space<vmem>>, vector<1x384xf32>
    %86 = vector.broadcast %85 : vector<1x384xf32> to vector<64x384xf32>
    %87 = arith.addf %84, %86 : vector<64x384xf32>
    %88 = vector.extract_strided_slice %87 {offsets = [0, 0], sizes = [64, 128], strides = [1, 1]} : vector<64x384xf32> to vector<64x128xf32>
    %89 = vector.extract_strided_slice %87 {offsets = [0, 128], sizes = [64, 256], strides = [1, 1]} : vector<64x384xf32> to vector<64x256xf32>
    %cst_44 = arith.constant dense<0xFF800000> : vector<64xf32>
    %90 = vector.multi_reduction <maximumf>, %88, %cst_44 [1] : vector<64x128xf32> to vector<64xf32>
    %91 = vector.shape_cast %90 : vector<64xf32> to vector<64x1xf32>
    %92 = vector.broadcast %91 : vector<64x1xf32> to vector<64x128xf32>
    %93 = arith.subf %88, %92 : vector<64x128xf32>
    %94 = math.exp %93 : vector<64x128xf32>
    %cst_45 = arith.constant dense<0.000000e+00> : vector<64xf32>
    %95 = vector.multi_reduction <add>, %94, %cst_45 [1] : vector<64x128xf32> to vector<64xf32>
    %96 = vector.shape_cast %95 : vector<64xf32> to vector<64x1xf32>
    %97 = tpu.reciprocal %96 {approx = true} : vector<64x1xf32> -> vector<64x1xf32>
    %98 = vector.broadcast %97 : vector<64x1xf32> to vector<64x128xf32>
    %99 = arith.mulf %94, %98 : vector<64x128xf32>
    %100 = arith.truncf %99 : vector<64x128xf32> to vector<64x128xbf16>
    %c0_46 = arith.constant 0 : index
    %c0_47 = arith.constant 0 : index
    %101 = vector.load %arg6[%c0_46, %c0_47] : memref<128x256xbf16, #tpu.memory_space<vmem>>, vector<128x256xbf16>
    %cst_48 = arith.constant dense<0.000000e+00> : vector<64x256xf32>
    %102 = tpu.matmul %100, %101, %cst_48 {dimension_numbers = #tpu.dot_dimension_numbers<[1], [0], [0], [1], [0, 0, 1, 1], [], []>} : vector<64x128xbf16>, vector<128x256xbf16>, vector<64x256xf32> -> vector<64x256xf32>
    %cst_49 = arith.constant 1.000000e-10 : f32
    %103 = vector.broadcast %cst_49 : f32 to vector<64x256xf32>
    %104 = arith.addf %102, %103 : vector<64x256xf32>
    %105 = arith.index_cast %70 : i32 to index
    %c0_50 = arith.constant 0 : index
    %106 = vector.load %arg11[%105, %c0_50] : memref<128x256xbf16, #tpu.memory_space<vmem>>, vector<64x256xbf16>
    %107 = arith.extf %106 : vector<64x256xbf16> to vector<64x256xf32>
    %cst_51 = arith.constant 5.000000e-01 : f32
    %108 = vector.broadcast %cst_51 : f32 to vector<64x256xf32>
    %109 = arith.mulf %108, %89 : vector<64x256xf32>
    %110 = math.exp %109 : vector<64x256xf32>
    %111 = arith.mulf %107, %110 : vector<64x256xf32>
    %112 = arith.addf %111, %104 : vector<64x256xf32>
    %113 = arith.truncf %112 : vector<64x256xf32> to vector<64x256xbf16>
    %c0_52 = arith.constant 0 : index
    %c0_53 = arith.constant 0 : index
    %114 = vector.load %arg7[%c0_52, %c0_53] : memref<256x512xbf16, #tpu.memory_space<vmem>>, vector<256x512xbf16>
    %cst_54 = arith.constant dense<0.000000e+00> : vector<64x512xf32>
    %115 = tpu.matmul %113, %114, %cst_54 {dimension_numbers = #tpu.dot_dimension_numbers<[1], [0], [0], [1], [0, 0, 1, 1], [], []>} : vector<64x256xbf16>, vector<256x512xbf16>, vector<64x512xf32> -> vector<64x512xf32>
    %c0_55 = arith.constant 0 : index
    %c0_56 = arith.constant 0 : index
    %116 = vector.load %arg8[%c0_55, %c0_56] : memref<1x512xf32, #tpu.memory_space<vmem>>, vector<1x512xf32>
    %117 = vector.broadcast %116 : vector<1x512xf32> to vector<64x512xf32>
    %118 = arith.addf %115, %117 : vector<64x512xf32>
    %cst_57 = arith.constant 0.000000e+00 : f32
    %119 = vector.broadcast %cst_57 : f32 to vector<64x512xf32>
    %120 = arith.maximumf %118, %119 : vector<64x512xf32>
    %121 = arith.truncf %120 : vector<64x512xf32> to vector<64x512xbf16>
    %c0_58 = arith.constant 0 : index
    %c0_59 = arith.constant 0 : index
    %122 = vector.load %arg9[%c0_58, %c0_59] : memref<512x256xbf16, #tpu.memory_space<vmem>>, vector<512x256xbf16>
    %cst_60 = arith.constant dense<0.000000e+00> : vector<64x256xf32>
    %123 = tpu.matmul %121, %122, %cst_60 {dimension_numbers = #tpu.dot_dimension_numbers<[1], [0], [0], [1], [0, 0, 1, 1], [], []>} : vector<64x512xbf16>, vector<512x256xbf16>, vector<64x256xf32> -> vector<64x256xf32>
    %c0_61 = arith.constant 0 : index
    %c0_62 = arith.constant 0 : index
    %124 = vector.load %arg10[%c0_61, %c0_62] : memref<1x256xf32, #tpu.memory_space<vmem>>, vector<1x256xf32>
    %125 = vector.broadcast %124 : vector<1x256xf32> to vector<64x256xf32>
    %126 = arith.addf %123, %125 : vector<64x256xf32>
    %cst_63 = arith.constant 0.000000e+00 : f32
    %127 = vector.broadcast %cst_63 : f32 to vector<64x256xf32>
    %128 = arith.maximumf %126, %127 : vector<64x256xf32>
    %129 = arith.truncf %128 : vector<64x256xf32> to vector<64x256xbf16>
    %130 = arith.index_cast %70 : i32 to index
    %c0_64 = arith.constant 0 : index
    %131 = vector.load %arg12[%130, %c0_64] : memref<128x256xbf16, #tpu.memory_space<vmem>>, vector<64x256xbf16>
    tpu.vector_store %arg12[%130, %c0_64], %129 {strides = array<i32>} : memref<128x256xbf16, #tpu.memory_space<vmem>>, vector<64x256xbf16>,
    %132 = arith.truncf %104 : vector<64x256xf32> to vector<64x256xbf16>
    %133 = arith.index_cast %70 : i32 to index
    %c0_65 = arith.constant 0 : index
    %134 = vector.load %arg13[%133, %c0_65] : memref<128x256xbf16, #tpu.memory_space<vmem>>, vector<64x256xbf16>
    tpu.vector_store %arg13[%133, %c0_65], %132 {strides = array<i32>} : memref<128x256xbf16, #tpu.memory_space<vmem>>, vector<64x256xbf16>,
    %135 = arith.truncf %89 : vector<64x256xf32> to vector<64x256xbf16>
    %136 = arith.index_cast %70 : i32 to index
    %c0_66 = arith.constant 0 : index
    %137 = vector.load %arg14[%136, %c0_66] : memref<128x256xbf16, #tpu.memory_space<vmem>>, vector<64x256xbf16>
    tpu.vector_store %arg14[%136, %c0_66], %135 {strides = array<i32>} : memref<128x256xbf16, #tpu.memory_space<vmem>>, vector<64x256xbf16>,
    %c2_i32 = arith.constant 2 : i32
    return
  }
  func.func @transform_0(%arg0: i32) -> (i32, i32) {
    %c0_i32 = arith.constant 0 : i32
    %c0_i32_0 = arith.constant 0 : i32
    return %arg0, %c0_i32 : i32, i32
  }
  func.func @transform_1(%arg0: i32) -> (i32, i32) {
    %c0_i32 = arith.constant 0 : i32
    %c0_i32_0 = arith.constant 0 : i32
    %c0_i32_1 = arith.constant 0 : i32
    return %c0_i32, %c0_i32_0 : i32, i32
  }
  func.func @transform_2(%arg0: i32) -> (i32, i32) {
    %c0_i32 = arith.constant 0 : i32
    %c0_i32_0 = arith.constant 0 : i32
    %c0_i32_1 = arith.constant 0 : i32
    return %c0_i32, %c0_i32_0 : i32, i32
  }
  func.func @transform_3(%arg0: i32) -> (i32, i32) {
    %c0_i32 = arith.constant 0 : i32
    %c0_i32_0 = arith.constant 0 : i32
    %c0_i32_1 = arith.constant 0 : i32
    return %c0_i32, %c0_i32_0 : i32, i32
  }
  func.func @transform_4(%arg0: i32) -> (i32, i32) {
    %c0_i32 = arith.constant 0 : i32
    %c0_i32_0 = arith.constant 0 : i32
    %c0_i32_1 = arith.constant 0 : i32
    return %c0_i32, %c0_i32_0 : i32, i32
  }
  func.func @transform_5(%arg0: i32) -> (i32, i32) {
    %c0_i32 = arith.constant 0 : i32
    %c0_i32_0 = arith.constant 0 : i32
    %c0_i32_1 = arith.constant 0 : i32
    return %c0_i32, %c0_i32_0 : i32, i32
  }
  func.func @transform_6(%arg0: i32) -> (i32, i32) {
    %c0_i32 = arith.constant 0 : i32
    %c0_i32_0 = arith.constant 0 : i32
    %c0_i32_1 = arith.constant 0 : i32
    return %c0_i32, %c0_i32_0 : i32, i32
  }
  func.func @transform_7(%arg0: i32) -> (i32, i32) {
    %c0_i32 = arith.constant 0 : i32
    %c0_i32_0 = arith.constant 0 : i32
    %c0_i32_1 = arith.constant 0 : i32
    return %c0_i32, %c0_i32_0 : i32, i32
  }
  func.func @transform_8(%arg0: i32) -> (i32, i32) {
    %c0_i32 = arith.constant 0 : i32
    %c0_i32_0 = arith.constant 0 : i32
    %c0_i32_1 = arith.constant 0 : i32
    return %c0_i32, %c0_i32_0 : i32, i32
  }
  func.func @transform_9(%arg0: i32) -> (i32, i32) {
    %c0_i32 = arith.constant 0 : i32
    %c0_i32_0 = arith.constant 0 : i32
    %c0_i32_1 = arith.constant 0 : i32
    return %c0_i32, %c0_i32_0 : i32, i32
  }
  func.func @transform_10(%arg0: i32) -> (i32, i32) {
    %c0_i32 = arith.constant 0 : i32
    %c0_i32_0 = arith.constant 0 : i32
    return %arg0, %c0_i32 : i32, i32
  }
  func.func @transform_11(%arg0: i32) -> (i32, i32) {
    %c0_i32 = arith.constant 0 : i32
    %c0_i32_0 = arith.constant 0 : i32
    return %arg0, %c0_i32 : i32, i32
  }
  func.func @transform_12(%arg0: i32) -> (i32, i32) {
    %c0_i32 = arith.constant 0 : i32
    %c0_i32_0 = arith.constant 0 : i32
    return %arg0, %c0_i32 : i32, i32
  }
  func.func @transform_13(%arg0: i32) -> (i32, i32) {
    %c0_i32 = arith.constant 0 : i32
    %c0_i32_0 = arith.constant 0 : i32
    return %arg0, %c0_i32 : i32, i32
  }
}

</mosaic_0001>

<llo_original>
// kernel: uncurlnet_forward.2
$region0: #{uncurlnet_forward.2}
  #allocation0 [shape = 'u32[]', space=smem, size = 0x4, offset = 0x4, fixed_abs, tag = 'smem constant byte address 0x4 - core index']
  #allocation1 [shape = 'u32[72,128]{1,0:T(1,128)}', space=vmem, size = 0x9000, scoped, tag = 'internal scratch']
  %s0 = inlined_call_operand.hbm [shape: f32[512,256], index: 0, kind: input, shape index: {}]
  %s1 = inlined_call_operand.hbm [shape: bf16[256,512], index: 1, kind: input, shape index: {}]
  %s2 = inlined_call_operand.hbm [shape: f32[1,512], index: 2, kind: input, shape index: {}]
  %s3 = inlined_call_operand.vmem [shape: bf16[512,512], index: 3, kind: output, shape index: {0}]
  %s4 = inlined_call_operand.vmem [shape: f32[32,512], index: 4, kind: output, shape index: {1}]
  %s5 = inlined_call_operand.vmem [shape: f32[32,512], index: 5, kind: output, shape index: {2}]
  %6 = xla_tuple %s3, %s4, %s5
  %s7 = sld [smem:[#allocation0]]
  $region73: #{uncurlnet_forward.2} parent=0
    _
  %s9 = ssub.s32 1, %s7
  %s10 = scalar_select 0, %s9, %s7
  $region1: #{uncurlnet_forward.2} parent=0
    #allocation2 [shape = 'u8[262144]{0}', space=vmem, size = 0x40000, scoped, tag = 'input window, operand 0']
    #allocation3 [shape = 's32[2]{0}', space=sflag, size = 0x8, scoped, tag = 'scoped memory for uncurlnet_forward.2']
    #allocation4 [shape = 'u8[262144]{0}', space=vmem, size = 0x40000, scoped, tag = 'input window, operand 1, single buffered']
    #allocation5 [shape = 's32[1]{0}', space=sflag, size = 0x4, scoped, tag = 'scoped memory for uncurlnet_forward.2']
    #allocation6 [shape = 'u8[2048]{0}', space=vmem, size = 0x800, scoped, tag = 'input window, operand 2, single buffered']
    %11 = vsyncpa [#allocation3], 0
    %s12 = scalar_lea.sflag [#allocation3], 1
    %13 = vsyncpa %s12, 0
    %14 = vsyncpa [#allocation5], 0
    loop: start=0, step=1, limit=6
    $region2: #{uncurlnet_forward.2} parent=1 // loop_pre_header
      _
    $region3: #{uncurlnet_forward.2} parent=1 // loop_header
      %s16 = sphi 0, %s20
      %p17 = scmp.ge.s32.totalorder %s16, 6
      %s26 = sphi 0, %s28
      %s29 = sphi 0, %s26
      %s30 = sphi 0, %s29
      %s46 = sphi 0, %s30
      %s50 = sphi 0, %s50
      %s52 = sphi 0, %s50
      %s53 = sphi 0, %s52
      %s67 = sphi 0, %s53
      %s71 = sphi 0, %s71
      %s73 = sphi 0, %s71
      %s74 = sphi 0, %s73
      %s88 = sphi 0, %s74
      %s94 = sphi 0, %s96
      %s97 = sphi 0, %s94
      %s98 = sphi 0, %s97
      %s114 = sphi 0, %s98
      %s120 = sphi 0, %s122
      %s123 = sphi 0, %s120
      %s124 = sphi 0, %s123
      %s140 = sphi 0, %s124
      %s146 = sphi 0, %s148
      %s149 = sphi 0, %s146
      %s150 = sphi 0, %s149
      %s166 = sphi 0, %s150
    $region4: #{uncurlnet_forward.2} parent=1 // loop_header_branch
      %19 = sbr.rel (%p17) target = $region8
    $region5: #{uncurlnet_forward.2} parent=1 // loop_body
      %s21 = ssub.s32 %s16, 1
      %s22 = ssub.s32 %s16, 2
      %s23 = sadd.s32 %s16, 1
      %s24 = ssub.s32 %s16, %s23
      %p25 = scmp.eq.s32.totalorder %s24, 0
      %s27 = sadd.s32 %s26, 1
      %s28 = scalar_select %p25, %s26, %s27
      %p31 = pneg %p25
      %p32 = scmp.eq.s32.totalorder %s16, 3
      %p33 = por %p31, %p32
      %p34 = scmp.ne.s32.totalorder %s26, %s29
      %p35 = scmp.eq.s32.totalorder %s16, 0
      %p36 = por %p34, %p35
      %p37 = scmp.ne.s32.totalorder %s26, %s29
      %p38 = scmp.eq.s32.totalorder %s21, 3
      %p39 = por %p37, %p38
      %p40 = scmp.ne.s32.totalorder %s29, %s30
      %p41 = scmp.eq.s32.totalorder %s21, 0
      %p42 = por %p40, %p41
      %p43 = scmp.ne.s32.totalorder %s29, %s30
      %p44 = scmp.eq.s32.totalorder %s22, 3
      %p45 = por %p43, %p44
      %p47 = scmp.ne.s32.totalorder %s30, %s46
      %p48 = scmp.eq.s32.totalorder %s22, 0
      %p49 = por %p47, %p48
      %s51 = sadd.s32 %s50, 1
      %p54 = scmp.eq.s32.totalorder %s16, 3
      %p55 = scmp.ne.s32.totalorder %s50, %s52
      %p56 = scmp.eq.s32.totalorder %s16, 0
      %p57 = por %p55, %p56
      %p58 = scmp.ne.s32.totalorder %s50, %s52
      %p59 = scmp.eq.s32.totalorder %s21, 3
      %p60 = por %p58, %p59
      %p61 = scmp.ne.s32.totalorder %s52, %s53
      %p62 = scmp.eq.s32.totalorder %s21, 0
      %p63 = por %p61, %p62
      %p64 = scmp.ne.s32.totalorder %s52, %s53
      %p65 = scmp.eq.s32.totalorder %s22, 3
      %p66 = por %p64, %p65
      %p68 = scmp.ne.s32.totalorder %s53, %s67
      %p69 = scmp.eq.s32.totalorder %s22, 0
      %p70 = por %p68, %p69
      %s72 = sadd.s32 %s71, 1
      %p75 = scmp.eq.s32.totalorder %s16, 3
      %p76 = scmp.ne.s32.totalorder %s71, %s73
      %p77 = scmp.eq.s32.totalorder %s16, 0
      %p78 = por %p76, %p77
      %p79 = scmp.ne.s32.totalorder %s71, %s73
      %p80 = scmp.eq.s32.totalorder %s21, 3
      %p81 = por %p79, %p80
      %p82 = scmp.ne.s32.totalorder %s73, %s74
      %p83 = scmp.eq.s32.totalorder %s21, 0
      %p84 = por %p82, %p83
      %p85 = scmp.ne.s32.totalorder %s73, %s74
      %p86 = scmp.eq.s32.totalorder %s22, 3
      %p87 = por %p85, %p86
      %p89 = scmp.ne.s32.totalorder %s74, %s88
      %p90 = scmp.eq.s32.totalorder %s22, 0
      %p91 = por %p89, %p90
      %s92 = ssub.s32 %s16, %s23
      %p93 = scmp.eq.s32.totalorder %s92, 0
      %s95 = sadd.s32 %s94, 1
      %s96 = scalar_select %p93, %s94, %s95
      %p99 = pneg %p93
      %p100 = scmp.eq.s32.totalorder %s16, 3
      %p101 = por %p99, %p100
      %p102 = scmp.ne.s32.totalorder %s94, %s97
      %p103 = scmp.eq.s32.totalorder %s16, 0
      %p104 = por %p102, %p103
      %p105 = scmp.ne.s32.totalorder %s94, %s97
      %p106 = scmp.eq.s32.totalorder %s21, 3
      %p107 = por %p105, %p106
      %p108 = scmp.ne.s32.totalorder %s97, %s98
      %p109 = scmp.eq.s32.totalorder %s21, 0
      %p110 = por %p108, %p109
      %p111 = scmp.ne.s32.totalorder %s97, %s98
      %p112 = scmp.eq.s32.totalorder %s22, 3
      %p113 = por %p111, %p112
      %p115 = scmp.ne.s32.totalorder %s98, %s114
      %p116 = scmp.eq.s32.totalorder %s22, 0
      %p117 = por %p115, %p116
      %s118 = ssub.s32 %s16, %s23
      %p119 = scmp.eq.s32.totalorder %s118, 0
      %s121 = sadd.s32 %s120, 1
      %s122 = scalar_select %p119, %s120, %s121
      %p125 = pneg %p119
      %p126 = scmp.eq.s32.totalorder %s16, 3
      %p127 = por %p125, %p126
      %p128 = scmp.ne.s32.totalorder %s120, %s123
      %p129 = scmp.eq.s32.totalorder %s16, 0
      %p130 = por %p128, %p129
      %p131 = scmp.ne.s32.totalorder %s120, %s123
      %p132 = scmp.eq.s32.totalorder %s21, 3
      %p133 = por %p131, %p132
      %p134 = scmp.ne.s32.totalorder %s123, %s124
      %p135 = scmp.eq.s32.totalorder %s21, 0
      %p136 = por %p134, %p135
      %p137 = scmp.ne.s32.totalorder %s123, %s124
      %p138 = scmp.eq.s32.totalorder %s22, 3
      %p139 = por %p137, %p138
      %p141 = scmp.ne.s32.totalorder %s124, %s140
      %p142 = scmp.eq.s32.totalorder %s22, 0
      %p143 = por %p141, %p142
      %s144 = ssub.s32 %s16, %s23
      %p145 = scmp.eq.s32.totalorder %s144, 0
      %s147 = sadd.s32 %s146, 1
      %s148 = scalar_select %p145, %s146, %s147
      %p151 = pneg %p145
      %p152 = scmp.eq.s32.totalorder %s16, 3
      %p153 = por %p151, %p152
      %p154 = scmp.ne.s32.totalorder %s146, %s149
      %p155 = scmp.eq.s32.totalorder %s16, 0
      %p156 = por %p154, %p155
      %p157 = scmp.ne.s32.totalorder %s146, %s149
      %p158 = scmp.eq.s32.totalorder %s21, 3
      %p159 = por %p157, %p158
      %p160 = scmp.ne.s32.totalorder %s149, %s150
      %p161 = scmp.eq.s32.totalorder %s21, 0
      %p162 = por %p160, %p161
      %p163 = scmp.ne.s32.totalorder %s149, %s150
      %p164 = scmp.eq.s32.totalorder %s22, 3
      %p165 = por %p163, %p164
      %p167 = scmp.ne.s32.totalorder %s150, %s166
      %p168 = scmp.eq.s32.totalorder %s22, 0
      %p169 = por %p167, %p168
      %p170 = scmp.le.s32.totalorder 1, %s16
      %p171 = scmp.lt.s32.totalorder %s16, 5
      %p172 = pnand %p170, %p171
      %p173 = pneg %p172
      // Predicated region
      $region9: #{uncurlnet_forward.2} parent=5 // pred_check
        _
      $region10: #{uncurlnet_forward.2} parent=5 // pred_check_branch
        %175 = sbr.rel (%p172) target = $region12
      $region11: #{uncurlnet_forward.2} parent=5 // pred_region
        %s176 = ssub.s32 %s16, 1
        // Predicated region
        $region13: #{uncurlnet_forward.2} parent=11 // pred_check
          %p177 = pneg %p63
        $region14: #{uncurlnet_forward.2} parent=11 // pred_check_branch
          %179 = sbr.rel (%p177) target = $region16
        $region15: #{uncurlnet_forward.2} parent=11 // pred_region
          %181 = vsyncadd [#allocation5], 0
          %s182 = sshll.u32 %s1, 4
          %s183 = int_to_ptr.hbm [resolvable:$true] %s182
          %s184 = sshll.u32 [#allocation4], 4
          %s185 = int_to_ptr.vmem [resolvable:$true] %s184
          %190 = dma.hbm_to_vmem [thread:$0]  %s183, 8192, %s185, [#allocation5], 256, 256, 16
        $region16: #{uncurlnet_forward.2} parent=11 // pred_fallthru
          _
        // Predicated region
        $region17: #{uncurlnet_forward.2} parent=11 // pred_check
          %p191 = pneg %p84
        $region18: #{uncurlnet_forward.2} parent=11 // pred_check_branch
          %193 = sbr.rel (%p191) target = $region20
        $region19: #{uncurlnet_forward.2} parent=11 // pred_region
          %195 = vsyncadd [#allocation5], 0
          %s197 = sshll.u32 %s2, 4
          %s198 = int_to_ptr.hbm [resolvable:$true] %s197
          %s199 = sshll.u32 [#allocation6], 4
          %s200 = int_to_ptr.vmem [resolvable:$true] %s199
          %202 = dma.hbm_to_vmem [thread:$0]  %s198, 64, %s200, [#allocation5]
        $region20: #{uncurlnet_forward.2} parent=11 // pred_fallthru
          _
      $region12: #{uncurlnet_forward.2} parent=5 // pred_fallthru
        _
      %p203 = scmp.lt.s32.totalorder %s16, 4
      // Predicated region
      $region21: #{uncurlnet_forward.2} parent=5 // pred_check
        %p204 = pneg %p203
      $region22: #{uncurlnet_forward.2} parent=5 // pred_check_branch
        %206 = sbr.rel (%p204) target = $region24
      $region23: #{uncurlnet_forward.2} parent=5 // pred_region
        // Predicated region
        $region25: #{uncurlnet_forward.2} parent=23 // pred_check
          %p207 = pneg %p36
        $region26: #{uncurlnet_forward.2} parent=23 // pred_check_branch
          %209 = sbr.rel (%p207) target = $region28
        $region27: #{uncurlnet_forward.2} parent=23 // pred_region
          %s210 = sand.u32 %s26, 1
          %s211 = scalar_lea.sflag [#allocation3], %s210
          %s212 = sand.u32 %s26, 1
          %s213 = smul.addr %s212, 256
          %s214 = scalar_lea.vmem [#allocation2], %s213
          %s215 = smul.u32 16, %s16
          %217 = vsyncadd %s211, 0
          %s218 = smul.addr %s215, 2
          %s219 = smul.addr %s218, 8
          %s220 = scalar_lea.hbm %s0, %s219
          %s221 = sshll.u32 %s220, 4
          %s222 = int_to_ptr.hbm [resolvable:$true] %s221
          %s223 = sshll.u32 %s214, 4
          %s224 = int_to_ptr.vmem [resolvable:$true] %s223
          %229 = dma.hbm_to_vmem [thread:$0]  %s222, 4096, %s224, %s211, 256, 256, 16
        $region28: #{uncurlnet_forward.2} parent=23 // pred_fallthru
          _
      $region24: #{uncurlnet_forward.2} parent=5 // pred_fallthru
        _
      %p230 = scmp.le.s32.totalorder 1, %s16
      %p231 = scmp.lt.s32.totalorder %s16, 5
      %p232 = pnand %p230, %p231
      %p233 = pneg %p232
      // Predicated region
      $region29: #{uncurlnet_forward.2} parent=5 // pred_check
        _
      $region30: #{uncurlnet_forward.2} parent=5 // pred_check_branch
        %235 = sbr.rel (%p232) target = $region32
      $region31: #{uncurlnet_forward.2} parent=5 // pred_region
        %s236 = ssub.s32 %s16, 1
        %s237 = sand.u32 %s29, 1
        %s238 = scalar_lea.sflag [#allocation3], %s237
        %s239 = sand.u32 %s29, 1
        %s240 = smul.addr %s239, 256
        %s241 = scalar_lea.vmem [#allocation2], %s240
        // Predicated region
        $region33: #{uncurlnet_forward.2} parent=31 // pred_check
          %p242 = pneg %p42
        $region34: #{uncurlnet_forward.2} parent=31 // pred_check_branch
          %244 = sbr.rel (%p242) target = $region36
        $region35: #{uncurlnet_forward.2} parent=31 // pred_region
          %246 = dma.done %s238, 4096
        $region36: #{uncurlnet_forward.2} parent=31 // pred_fallthru
          _
        // Predicated region
        $region37: #{uncurlnet_forward.2} parent=31 // pred_check
          %p247 = pneg %p63
        $region38: #{uncurlnet_forward.2} parent=31 // pred_check_branch
          %249 = sbr.rel (%p247) target = $region40
        $region39: #{uncurlnet_forward.2} parent=31 // pred_region
          %251 = dma.done [#allocation5], 8192
        $region40: #{uncurlnet_forward.2} parent=31 // pred_fallthru
          _
        // Predicated region
        $region41: #{uncurlnet_forward.2} parent=31 // pred_check
          %p252 = pneg %p84
        $region42: #{uncurlnet_forward.2} parent=31 // pred_check_branch
          %254 = sbr.rel (%p252) target = $region44
        $region43: #{uncurlnet_forward.2} parent=31 // pred_region
          %256 = dma.done [#allocation5], 64
        $region44: #{uncurlnet_forward.2} parent=31 // pred_fallthru
          _
        %s257 = sand.u32 %s29, 1
        %s258 = scalar_lea.sflag [#allocation3], %s257
        %s259 = sand.u32 %s29, 1
        %s260 = smul.addr %s259, 256
        %s261 = scalar_lea.vmem [#allocation2], %s260
        %p262 = pneg %p42
        %p263 = pneg %p39
        %p264 = pneg %p63
        %p265 = pneg %p60
        %p266 = pneg %p84
        %p267 = pneg %p81
        %p268 = pneg %p110
        %p269 = pneg %p107
        %s270 = smul.u32 16, %s21
        %p271 = scmp.lt.s32.totalorder %s270, 63
        %s272 = scalar_select %p271, %s270, 63
        %s273 = smul.addr %s272, 4
        %s274 = smul.addr %s273, 4
        %s275 = scalar_lea.vmem %s3, %s274
        %p276 = pneg %p136
        %p277 = pneg %p133
        %p278 = scmp.lt.s32.totalorder %s21, 3
        %s279 = scalar_select %p278, %s21, 3
        %s280 = smul.addr %s279, 4
        %s281 = smul.addr %s280, 8
        %s282 = scalar_lea.vmem %s4, %s281
        %p283 = pneg %p162
        %p284 = pneg %p159
        %p285 = scmp.lt.s32.totalorder %s21, 3
        %s286 = scalar_select %p285, %s21, 3
        %s287 = smul.addr %s286, 4
        %s288 = smul.addr %s287, 8
        %s289 = scalar_lea.vmem %s5, %s288
        %s290 = smul.u32 16, %s21
        %s291 = smul.u32 16, %s21
        %p292 = scmp.lt.s32.totalorder %s291, 63
        %s293 = scalar_select %p292, %s291, 63
        %s294 = smul.addr %s293, 4
        %s295 = smul.addr %s294, 4
        %s296 = scalar_lea.vmem %s3, %s295
        %s297 = smul.u32 16, %s21
        %p298 = scmp.lt.s32.totalorder %s21, 3
        %s299 = scalar_select %p298, %s21, 3
        %s300 = smul.addr %s299, 4
        %s301 = smul.addr %s300, 8
        %s302 = scalar_lea.vmem %s4, %s301
        %p303 = scmp.lt.s32.totalorder %s21, 3
        %s304 = scalar_select %p303, %s21, 3
        %s305 = smul.addr %s304, 4
        %s306 = smul.addr %s305, 8
        %s307 = scalar_lea.vmem %s5, %s306
        %v308 = vld [vmem:[%s241] sm:$0xff]
        %v309 = vld [vmem:[%s241 + $0x8] sm:$0xff]
        %v310 = vld [vmem:[%s241 + $0x10] sm:$0xff]
        %v311 = vld [vmem:[%s241 + $0x18] sm:$0xff]
        %v312 = vld [vmem:[%s241 + $0x20] sm:$0xff]
        %v313 = vld [vmem:[%s241 + $0x28] sm:$0xff]
        %v314 = vld [vmem:[%s241 + $0x30] sm:$0xff]
        %v315 = vld [vmem:[%s241 + $0x38] sm:$0xff]
        %v316 = vld [vmem:[%s241 + $0x40] sm:$0xff]
        %v317 = vld [vmem:[%s241 + $0x48] sm:$0xff]
        %v318 = vld [vmem:[%s241 + $0x50] sm:$0xff]
        %v319 = vld [vmem:[%s241 + $0x58] sm:$0xff]
        %v320 = vld [vmem:[%s241 + $0x60] sm:$0xff]
        %v321 = vld [vmem:[%s241 + $0x68] sm:$0xff]
        %v322 = vld [vmem:[%s241 + $0x70] sm:$0xff]
        %v323 = vld [vmem:[%s241 + $0x78] sm:$0xff]
        %v324 = vld [vmem:[%s241 + $0x80] sm:$0xff]
        %v325 = vld [vmem:[%s241 + $0x88] sm:$0xff]
        %v326 = vld [vmem:[%s241 + $0x90] sm:$0xff]
        %v327 = vld [vmem:[%s241 + $0x98] sm:$0xff]
        %v328 = vld [vmem:[%s241 + $0xa0] sm:$0xff]
        %v329 = vld [vmem:[%s241 + $0xa8] sm:$0xff]
        %v330 = vld [vmem:[%s241 + $0xb0] sm:$0xff]
        %v331 = vld [vmem:[%s241 + $0xb8] sm:$0xff]
        %v332 = vld [vmem:[%s241 + $0xc0] sm:$0xff]
        %v333 = vld [vmem:[%s241 + $0xc8] sm:$0xff]
        %v334 = vld [vmem:[%s241 + $0xd0] sm:$0xff]
        %v335 = vld [vmem:[%s241 + $0xd8] sm:$0xff]
        %v336 = vld [vmem:[%s241 + $0xe0] sm:$0xff]
        %v337 = vld [vmem:[%s241 + $0xe8] sm:$0xff]
        %v338 = vld [vmem:[%s241 + $0xf0] sm:$0xff]
        %v339 = vld [vmem:[%s241 + $0xf8] sm:$0xff]
        %v340 = vpack.c.bf16 %v310, %v308
        %v341 = vpack.c.bf16 %v311, %v309
        %v342 = vpack.c.bf16 %v314, %v312
        %v343 = vpack.c.bf16 %v315, %v313
        %v344 = vpack.c.bf16 %v318, %v316
        %v345 = vpack.c.bf16 %v319, %v317
        %v346 = vpack.c.bf16 %v322, %v320
        %v347 = vpack.c.bf16 %v323, %v321
        %v348 = vpack.c.bf16 %v326, %v324
        %v349 = vpack.c.bf16 %v327, %v325
        %v350 = vpack.c.bf16 %v330, %v328
        %v351 = vpack.c.bf16 %v331, %v329
        %v352 = vpack.c.bf16 %v334, %v332
        %v353 = vpack.c.bf16 %v335, %v333
        %v354 = vpack.c.bf16 %v338, %v336
        %v355 = vpack.c.bf16 %v339, %v337
        %v356 = vld [vmem:[#allocation4] sm:$0xff]
        %v357 = vld [vmem:[#allocation4 + $0x8] sm:$0xff]
        %v358 = vld [vmem:[#allocation4 + $0x10] sm:$0xff]
        %v359 = vld [vmem:[#allocation4 + $0x18] sm:$0xff]
        %v360 = vld [vmem:[#allocation4 + $0x20] sm:$0xff]
        %v361 = vld [vmem:[#allocation4 + $0x28] sm:$0xff]
        %v362 = vld [vmem:[#allocation4 + $0x30] sm:$0xff]
        %v363 = vld [vmem:[#allocation4 + $0x38] sm:$0xff]
        %v364 = vld [vmem:[#allocation4 + $0x40] sm:$0xff]
        %v365 = vld [vmem:[#allocation4 + $0x48] sm:$0xff]
        %v366 = vld [vmem:[#allocation4 + $0x50] sm:$0xff]
        %v367 = vld [vmem:[#allocation4 + $0x58] sm:$0xff]
        %v368 = vld [vmem:[#allocation4 + $0x60] sm:$0xff]
        %v369 = vld [vmem:[#allocation4 + $0x68] sm:$0xff]
        %v370 = vld [vmem:[#allocation4 + $0x70] sm:$0xff]
        %v371 = vld [vmem:[#allocation4 + $0x78] sm:$0xff]
        %v372 = vld [vmem:[#allocation4 + $0x80] sm:$0xff]
        %v373 = vld [vmem:[#allocation4 + $0x88] sm:$0xff]
        %v374 = vld [vmem:[#allocation4 + $0x90] sm:$0xff]
        %v375 = vld [vmem:[#allocation4 + $0x98] sm:$0xff]
        %v376 = vld [vmem:[#allocation4 + $0xa0] sm:$0xff]
        %v377 = vld [vmem:[#allocation4 + $0xa8] sm:$0xff]
        %v378 = vld [vmem:[#allocation4 + $0xb0] sm:$0xff]
        %v379 = vld [vmem:[#allocation4 + $0xb8] sm:$0xff]
        %v380 = vld [vmem:[#allocation4 + $0xc0] sm:$0xff]
        %v381 = vld [vmem:[#allocation4 + $0xc8] sm:$0xff]
        %v382 = vld [vmem:[#allocation4 + $0xd0] sm:$0xff]
        %v383 = vld [vmem:[#allocation4 + $0xd8] sm:$0xff]
        %v384 = vld [vmem:[#allocation4 + $0xe0] sm:$0xff]
        %v385 = vld [vmem:[#allocation4 + $0xe8] sm:$0xff]
        %v386 = vld [vmem:[#allocation4 + $0xf0] sm:$0xff]
        %v387 = vld [vmem:[#allocation4 + $0xf8] sm:$0xff]
        %v388 = vld [vmem:[#allocation4 + $0x100] sm:$0xff]
        %v389 = vld [vmem:[#allocation4 + $0x108] sm:$0xff]
        %v390 = vld [vmem:[#allocation4 + $0x110] sm:$0xff]
        %v391 = vld [vmem:[#allocation4 + $0x118] sm:$0xff]
        %v392 = vld [vmem:[#allocation4 + $0x120] sm:$0xff]
        %v393 = vld [vmem:[#allocation4 + $0x128] sm:$0xff]
        %v394 = vld [vmem:[#allocation4 + $0x130] sm:$0xff]
        %v395 = vld [vmem:[#allocation4 + $0x138] sm:$0xff]
        %v396 = vld [vmem:[#allocation4 + $0x140] sm:$0xff]
        %v397 = vld [vmem:[#allocation4 + $0x148] sm:$0xff]
        %v398 = vld [vmem:[#allocation4 + $0x150] sm:$0xff]
        %v399 = vld [vmem:[#allocation4 + $0x158] sm:$0xff]
        %v400 = vld [vmem:[#allocation4 + $0x160] sm:$0xff]
        %v401 = vld [vmem:[#allocation4 + $0x168] sm:$0xff]
        %v402 = vld [vmem:[#allocation4 + $0x170] sm:$0xff]
        %v403 = vld [vmem:[#allocation4 + $0x178] sm:$0xff]
        %v404 = vld [vmem:[#allocation4 + $0x180] sm:$0xff]
        %v405 = vld [vmem:[#allocation4 + $0x188] sm:$0xff]
        %v406 = vld [vmem:[#allocation4 + $0x190] sm:$0xff]
        %v407 = vld [vmem:[#allocation4 + $0x198] sm:$0xff]
        %v408 = vld [vmem:[#allocation4 + $0x1a0] sm:$0xff]
        %v409 = vld [vmem:[#allocation4 + $0x1a8] sm:$0xff]
        %v410 = vld [vmem:[#allocation4 + $0x1b0] sm:$0xff]
        %v411 = vld [vmem:[#allocation4 + $0x1b8] sm:$0xff]
        %v412 = vld [vmem:[#allocation4 + $0x1c0] sm:$0xff]
        %v413 = vld [vmem:[#allocation4 + $0x1c8] sm:$0xff]
        %v414 = vld [vmem:[#allocation4 + $0x1d0] sm:$0xff]
        %v415 = vld [vmem:[#allocation4 + $0x1d8] sm:$0xff]
        %v416 = vld [vmem:[#allocation4 + $0x1e0] sm:$0xff]
        %v417 = vld [vmem:[#allocation4 + $0x1e8] sm:$0xff]
        %v418 = vld [vmem:[#allocation4 + $0x1f0] sm:$0xff]
        %v419 = vld [vmem:[#allocation4 + $0x1f8] sm:$0xff]
        %v420 = vld [vmem:[#allocation6] sm:$0xf]
        %v422 = vperm.slane %v420, 0
        %v423 = vperm.slane %v420, 1
        %v424 = vperm.slane %v420, 2
        %v425 = vperm.slane %v420, 3
        %v494 = vunpack.c.l.b16 %v356
        %v495 = vunpack.c.h.b16 %v356
        %v496 = vunpack.c.l.b16 %v357
        %v497 = vunpack.c.h.b16 %v357
        %v498 = vunpack.c.l.b16 %v358
        %v499 = vunpack.c.h.b16 %v358
        %v500 = vunpack.c.l.b16 %v359
        %v501 = vunpack.c.h.b16 %v359
        %v502 = vunpack.c.l.b16 %v360
        %v503 = vunpack.c.h.b16 %v360
        %v504 = vunpack.c.l.b16 %v361
        %v505 = vunpack.c.h.b16 %v361
        %v506 = vunpack.c.l.b16 %v362
        %v507 = vunpack.c.h.b16 %v362
        %v508 = vunpack.c.l.b16 %v363
        %v509 = vunpack.c.h.b16 %v363
        %v510 = vunpack.c.l.b16 %v364
        %v511 = vunpack.c.h.b16 %v364
        %v512 = vunpack.c.l.b16 %v365
        %v513 = vunpack.c.h.b16 %v365
        %v514 = vunpack.c.l.b16 %v366
        %v515 = vunpack.c.h.b16 %v366
        %v516 = vunpack.c.l.b16 %v367
        %v517 = vunpack.c.h.b16 %v367
        %v518 = vunpack.c.l.b16 %v368
        %v519 = vunpack.c.h.b16 %v368
        %v520 = vunpack.c.l.b16 %v369
        %v521 = vunpack.c.h.b16 %v369
        %v522 = vunpack.c.l.b16 %v370
        %v523 = vunpack.c.h.b16 %v370
        %v524 = vunpack.c.l.b16 %v371
        %v525 = vunpack.c.h.b16 %v371
        %v526 = vunpack.c.l.b16 %v372
        %v527 = vunpack.c.h.b16 %v372
        %v528 = vunpack.c.l.b16 %v373
        %v529 = vunpack.c.h.b16 %v373
        %v530 = vunpack.c.l.b16 %v374
        %v531 = vunpack.c.h.b16 %v374
        %v532 = vunpack.c.l.b16 %v375
        %v533 = vunpack.c.h.b16 %v375
        %v534 = vunpack.c.l.b16 %v376
        %v535 = vunpack.c.h.b16 %v376
        %v536 = vunpack.c.l.b16 %v377
        %v537 = vunpack.c.h.b16 %v377
        %v538 = vunpack.c.l.b16 %v378
        %v539 = vunpack.c.h.b16 %v378
        %v540 = vunpack.c.l.b16 %v379
        %v541 = vunpack.c.h.b16 %v379
        %v542 = vunpack.c.l.b16 %v380
        %v543 = vunpack.c.h.b16 %v380
        %v544 = vunpack.c.l.b16 %v381
        %v545 = vunpack.c.h.b16 %v381
        %v546 = vunpack.c.l.b16 %v382
        %v547 = vunpack.c.h.b16 %v382
        %v548 = vunpack.c.l.b16 %v383
        %v549 = vunpack.c.h.b16 %v383
        %v550 = vunpack.c.l.b16 %v384
        %v551 = vunpack.c.h.b16 %v384
        %v552 = vunpack.c.l.b16 %v385
        %v553 = vunpack.c.h.b16 %v385
        %v554 = vunpack.c.l.b16 %v386
        %v555 = vunpack.c.h.b16 %v386
        %v556 = vunpack.c.l.b16 %v387
        %v557 = vunpack.c.h.b16 %v387
        %v558 = vunpack.c.l.b16 %v388
        %v559 = vunpack.c.h.b16 %v388
        %v560 = vunpack.c.l.b16 %v389
        %v561 = vunpack.c.h.b16 %v389
        %v562 = vunpack.c.l.b16 %v390
        %v563 = vunpack.c.h.b16 %v390
        %v564 = vunpack.c.l.b16 %v391
        %v565 = vunpack.c.h.b16 %v391
        %v566 = vunpack.c.l.b16 %v392
        %v567 = vunpack.c.h.b16 %v392
        %v568 = vunpack.c.l.b16 %v393
        %v569 = vunpack.c.h.b16 %v393
        %v570 = vunpack.c.l.b16 %v394
        %v571 = vunpack.c.h.b16 %v394
        %v572 = vunpack.c.l.b16 %v395
        %v573 = vunpack.c.h.b16 %v395
        %v574 = vunpack.c.l.b16 %v396
        %v575 = vunpack.c.h.b16 %v396
        %v576 = vunpack.c.l.b16 %v397
        %v577 = vunpack.c.h.b16 %v397
        %v578 = vunpack.c.l.b16 %v398
        %v579 = vunpack.c.h.b16 %v398
        %v580 = vunpack.c.l.b16 %v399
        %v581 = vunpack.c.h.b16 %v399
        %v582 = vunpack.c.l.b16 %v400
        %v583 = vunpack.c.h.b16 %v400
        %v584 = vunpack.c.l.b16 %v401
        %v585 = vunpack.c.h.b16 %v401
        %v586 = vunpack.c.l.b16 %v402
        %v587 = vunpack.c.h.b16 %v402
        %v588 = vunpack.c.l.b16 %v403
        %v589 = vunpack.c.h.b16 %v403
        %v590 = vunpack.c.l.b16 %v404
        %v591 = vunpack.c.h.b16 %v404
        %v592 = vunpack.c.l.b16 %v405
        %v593 = vunpack.c.h.b16 %v405
        %v594 = vunpack.c.l.b16 %v406
        %v595 = vunpack.c.h.b16 %v406
        %v596 = vunpack.c.l.b16 %v407
        %v597 = vunpack.c.h.b16 %v407
        %v598 = vunpack.c.l.b16 %v408
        %v599 = vunpack.c.h.b16 %v408
        %v600 = vunpack.c.l.b16 %v409
        %v601 = vunpack.c.h.b16 %v409
        %v602 = vunpack.c.l.b16 %v410
        %v603 = vunpack.c.h.b16 %v410
        %v604 = vunpack.c.l.b16 %v411
        %v605 = vunpack.c.h.b16 %v411
        %v606 = vunpack.c.l.b16 %v412
        %v607 = vunpack.c.h.b16 %v412
        %v608 = vunpack.c.l.b16 %v413
        %v609 = vunpack.c.h.b16 %v413
        %v610 = vunpack.c.l.b16 %v414
        %v611 = vunpack.c.h.b16 %v414
        %v612 = vunpack.c.l.b16 %v415
        %v613 = vunpack.c.h.b16 %v415
        %v614 = vunpack.c.l.b16 %v416
        %v615 = vunpack.c.h.b16 %v416
        %v616 = vunpack.c.l.b16 %v417
        %v617 = vunpack.c.h.b16 %v417
        %v618 = vunpack.c.l.b16 %v418
        %v619 = vunpack.c.h.b16 %v418
        %v620 = vunpack.c.l.b16 %v419
        %v621 = vunpack.c.h.b16 %v419
        %v622 = vpack.c.b16 %v498, %v494
        %v623 = vpack.c.b16 %v499, %v495
        %v624 = vpack.c.b16 %v500, %v496
        %v625 = vpack.c.b16 %v501, %v497
        %v626 = vpack.c.b16 %v506, %v502
        %v627 = vpack.c.b16 %v507, %v503
        %v628 = vpack.c.b16 %v508, %v504
        %v629 = vpack.c.b16 %v509, %v505
        %v630 = vpack.c.b16 %v514, %v510
        %v631 = vpack.c.b16 %v515, %v511
        %v632 = vpack.c.b16 %v516, %v512
        %v633 = vpack.c.b16 %v517, %v513
        %v634 = vpack.c.b16 %v522, %v518
        %v635 = vpack.c.b16 %v523, %v519
        %v636 = vpack.c.b16 %v524, %v520
        %v637 = vpack.c.b16 %v525, %v521
        %v638 = vpack.c.b16 %v530, %v526
        %v639 = vpack.c.b16 %v531, %v527
        %v640 = vpack.c.b16 %v532, %v528
        %v641 = vpack.c.b16 %v533, %v529
        %v642 = vpack.c.b16 %v538, %v534
        %v643 = vpack.c.b16 %v539, %v535
        %v644 = vpack.c.b16 %v540, %v536
        %v645 = vpack.c.b16 %v541, %v537
        %v646 = vpack.c.b16 %v546, %v542
        %v647 = vpack.c.b16 %v547, %v543
        %v648 = vpack.c.b16 %v548, %v544
        %v649 = vpack.c.b16 %v549, %v545
        %v650 = vpack.c.b16 %v554, %v550
        %v651 = vpack.c.b16 %v555, %v551
        %v652 = vpack.c.b16 %v556, %v552
        %v653 = vpack.c.b16 %v557, %v553
        %v654 = vpack.c.b16 %v562, %v558
        %v655 = vpack.c.b16 %v563, %v559
        %v656 = vpack.c.b16 %v564, %v560
        %v657 = vpack.c.b16 %v565, %v561
        %v658 = vpack.c.b16 %v570, %v566
        %v659 = vpack.c.b16 %v571, %v567
        %v660 = vpack.c.b16 %v572, %v568
        %v661 = vpack.c.b16 %v573, %v569
        %v662 = vpack.c.b16 %v578, %v574
        %v663 = vpack.c.b16 %v579, %v575
        %v664 = vpack.c.b16 %v580, %v576
        %v665 = vpack.c.b16 %v581, %v577
        %v666 = vpack.c.b16 %v586, %v582
        %v667 = vpack.c.b16 %v587, %v583
        %v668 = vpack.c.b16 %v588, %v584
        %v669 = vpack.c.b16 %v589, %v585
        %v670 = vpack.c.b16 %v594, %v590
        %v671 = vpack.c.b16 %v595, %v591
        %v672 = vpack.c.b16 %v596, %v592
        %v673 = vpack.c.b16 %v597, %v593
        %v674 = vpack.c.b16 %v602, %v598
        %v675 = vpack.c.b16 %v603, %v599
        %v676 = vpack.c.b16 %v604, %v600
        %v677 = vpack.c.b16 %v605, %v601
        %v678 = vpack.c.b16 %v610, %v606
        %v679 = vpack.c.b16 %v611, %v607
        %v680 = vpack.c.b16 %v612, %v608
        %v681 = vpack.c.b16 %v613, %v609
        %v682 = vpack.c.b16 %v618, %v614
        %v683 = vpack.c.b16 %v619, %v615
        %v684 = vpack.c.b16 %v620, %v616
        %v685 = vpack.c.b16 %v621, %v617
        %750 = vmatpush.bf16.msra.mxu0 %v650
        %751 = vmatpush.bf16.msra.mxu0 %v646
        %752 = vmatpush.bf16.msra.mxu0 %v642
        %753 = vmatpush.bf16.msra.mxu0 %v638
        %754 = vmatpush.bf16.msra.mxu0 %v634
        %755 = vmatpush.bf16.msra.mxu0 %v630
        %756 = vmatpush.bf16.msra.mxu0 %v626
        %757 = vmatpush.bf16.msra.mxu0 %v622
        %758 = vmatmul.bf16.gmra.mxu0 %v340
        %v759 = vpop.f32.mrf.mxu0
        %v760 = vadd.f32 %v422, %v759
        %v761 = vpop.f32.mrf.mxu0
        %v762 = vadd.f32 %v422, %v761
        %763 = vmatmul.bf16.gmra.mxu0 %v342
        %v764 = vpop.f32.mrf.mxu0
        %v765 = vadd.f32 %v422, %v764
        %v766 = vpop.f32.mrf.mxu0
        %v767 = vadd.f32 %v422, %v766
        %768 = vmatmul.bf16.gmra.mxu0 %v344
        %v769 = vpop.f32.mrf.mxu0
        %v770 = vadd.f32 %v422, %v769
        %v771 = vpop.f32.mrf.mxu0
        %v772 = vadd.f32 %v422, %v771
        %773 = vmatmul.bf16.gmra.mxu0 %v346
        %v774 = vpop.f32.mrf.mxu0
        %v775 = vadd.f32 %v422, %v774
        %v776 = vpop.f32.mrf.mxu0
        %v777 = vadd.f32 %v422, %v776
        %778 = vmatmul.bf16.gmra.mxu0 %v348
        %v779 = vpop.f32.mrf.mxu0
        %v780 = vadd.f32 %v422, %v779
        %v781 = vpop.f32.mrf.mxu0
        %v782 = vadd.f32 %v422, %v781
        %783 = vmatmul.bf16.gmra.mxu0 %v350
        %v784 = vpop.f32.mrf.mxu0
        %v785 = vadd.f32 %v422, %v784
        %v786 = vpop.f32.mrf.mxu0
        %v787 = vadd.f32 %v422, %v786
        %788 = vmatmul.bf16.gmra.mxu0 %v352
        %v789 = vpop.f32.mrf.mxu0
        %v790 = vadd.f32 %v422, %v789
        %v791 = vpop.f32.mrf.mxu0
        %v792 = vadd.f32 %v422, %v791
        %793 = vmatmul.bf16.gmra.mxu0 %v354
        %v794 = vpop.f32.mrf.mxu0
        %v795 = vadd.f32 %v422, %v794
        %v796 = vpop.f32.mrf.mxu0
        %v797 = vadd.f32 %v422, %v796
        %798 = vdwg.mxu0
        %799 = vmatpush.bf16.msra.mxu0 %v682
        %800 = vmatpush.bf16.msra.mxu0 %v678
        %801 = vmatpush.bf16.msra.mxu0 %v674
        %802 = vmatpush.bf16.msra.mxu0 %v670
        %803 = vmatpush.bf16.msra.mxu0 %v666
        %804 = vmatpush.bf16.msra.mxu0 %v662
        %805 = vmatpush.bf16.msra.mxu0 %v658
        %806 = vmatpush.bf16.msra.mxu0 %v654
        %807 = vmatmul.bf16.gmra.mxu0 %v341
        %v808 = vpop.f32.mrf.mxu0
        %v809 = vadd.f32 %v760, %v808
        %v810 = vpop.f32.mrf.mxu0
        %v811 = vadd.f32 %v762, %v810
        %812 = vmatmul.bf16.gmra.mxu0 %v343
        %v813 = vpop.f32.mrf.mxu0
        %v814 = vadd.f32 %v765, %v813
        %v815 = vpop.f32.mrf.mxu0
        %v816 = vadd.f32 %v767, %v815
        %817 = vmatmul.bf16.gmra.mxu0 %v345
        %v818 = vpop.f32.mrf.mxu0
        %v819 = vadd.f32 %v770, %v818
        %v820 = vpop.f32.mrf.mxu0
        %v821 = vadd.f32 %v772, %v820
        %822 = vmatmul.bf16.gmra.mxu0 %v347
        %v823 = vpop.f32.mrf.mxu0
        %v824 = vadd.f32 %v775, %v823
        %v825 = vpop.f32.mrf.mxu0
        %v826 = vadd.f32 %v777, %v825
        %827 = vmatmul.bf16.gmra.mxu0 %v349
        %v828 = vpop.f32.mrf.mxu0
        %v829 = vadd.f32 %v780, %v828
        %v830 = vpop.f32.mrf.mxu0
        %v831 = vadd.f32 %v782, %v830
        %832 = vmatmul.bf16.gmra.mxu0 %v351
        %v833 = vpop.f32.mrf.mxu0
        %v834 = vadd.f32 %v785, %v833
        %v835 = vpop.f32.mrf.mxu0
        %v836 = vadd.f32 %v787, %v835
        %837 = vmatmul.bf16.gmra.mxu0 %v353
        %v838 = vpop.f32.mrf.mxu0
        %v839 = vadd.f32 %v790, %v838
        %v840 = vpop.f32.mrf.mxu0
        %v841 = vadd.f32 %v792, %v840
        %842 = vmatmul.bf16.gmra.mxu0 %v355
        %v843 = vpop.f32.mrf.mxu0
        %v844 = vadd.f32 %v795, %v843
        %v845 = vpop.f32.mrf.mxu0
        %v846 = vadd.f32 %v797, %v845
        %847 = vdwg.mxu0
        %848 = vmatpush.bf16.msra.mxu0 %v651
        %849 = vmatpush.bf16.msra.mxu0 %v647
        %850 = vmatpush.bf16.msra.mxu0 %v643
        %851 = vmatpush.bf16.msra.mxu0 %v639
        %852 = vmatpush.bf16.msra.mxu0 %v635
        %853 = vmatpush.bf16.msra.mxu0 %v631
        %854 = vmatpush.bf16.msra.mxu0 %v627
        %855 = vmatpush.bf16.msra.mxu0 %v623
        %856 = vmatmul.bf16.gmra.mxu0 %v340
        %v857 = vpop.f32.mrf.mxu0
        %v858 = vadd.f32 %v423, %v857
        %v859 = vpop.f32.mrf.mxu0
        %v860 = vadd.f32 %v423, %v859
        %861 = vmatmul.bf16.gmra.mxu0 %v342
        %v862 = vpop.f32.mrf.mxu0
        %v863 = vadd.f32 %v423, %v862
        %v864 = vpop.f32.mrf.mxu0
        %v865 = vadd.f32 %v423, %v864
        %866 = vmatmul.bf16.gmra.mxu0 %v344
        %v867 = vpop.f32.mrf.mxu0
        %v868 = vadd.f32 %v423, %v867
        %v869 = vpop.f32.mrf.mxu0
        %v870 = vadd.f32 %v423, %v869
        %871 = vmatmul.bf16.gmra.mxu0 %v346
        %v872 = vpop.f32.mrf.mxu0
        %v873 = vadd.f32 %v423, %v872
        %v874 = vpop.f32.mrf.mxu0
        %v875 = vadd.f32 %v423, %v874
        %876 = vmatmul.bf16.gmra.mxu0 %v348
        %v877 = vpop.f32.mrf.mxu0
        %v878 = vadd.f32 %v423, %v877
        %v879 = vpop.f32.mrf.mxu0
        %v880 = vadd.f32 %v423, %v879
        %881 = vmatmul.bf16.gmra.mxu0 %v350
        %v882 = vpop.f32.mrf.mxu0
        %v883 = vadd.f32 %v423, %v882
        %v884 = vpop.f32.mrf.mxu0
        %v885 = vadd.f32 %v423, %v884
        %886 = vmatmul.bf16.gmra.mxu0 %v352
        %v887 = vpop.f32.mrf.mxu0
        %v888 = vadd.f32 %v423, %v887
        %v889 = vpop.f32.mrf.mxu0
        %v890 = vadd.f32 %v423, %v889
        %891 = vmatmul.bf16.gmra.mxu0 %v354
        %v892 = vpop.f32.mrf.mxu0
        %v893 = vadd.f32 %v423, %v892
        %v894 = vpop.f32.mrf.mxu0
        %v895 = vadd.f32 %v423, %v894
        %896 = vdwg.mxu0
        %897 = vmatpush.bf16.msra.mxu0 %v683
        %898 = vmatpush.bf16.msra.mxu0 %v679
        %899 = vmatpush.bf16.msra.mxu0 %v675
        %900 = vmatpush.bf16.msra.mxu0 %v671
        %901 = vmatpush.bf16.msra.mxu0 %v667
        %902 = vmatpush.bf16.msra.mxu0 %v663
        %903 = vmatpush.bf16.msra.mxu0 %v659
        %904 = vmatpush.bf16.msra.mxu0 %v655
        %905 = vmatmul.bf16.gmra.mxu0 %v341
        %v906 = vpop.f32.mrf.mxu0
        %v907 = vadd.f32 %v858, %v906
        %v908 = vpop.f32.mrf.mxu0
        %v909 = vadd.f32 %v860, %v908
        %910 = vmatmul.bf16.gmra.mxu0 %v343
        %v911 = vpop.f32.mrf.mxu0
        %v912 = vadd.f32 %v863, %v911
        %v913 = vpop.f32.mrf.mxu0
        %v914 = vadd.f32 %v865, %v913
        %915 = vmatmul.bf16.gmra.mxu0 %v345
        %v916 = vpop.f32.mrf.mxu0
        %v917 = vadd.f32 %v868, %v916
        %v918 = vpop.f32.mrf.mxu0
        %v919 = vadd.f32 %v870, %v918
        %920 = vmatmul.bf16.gmra.mxu0 %v347
        %v921 = vpop.f32.mrf.mxu0
        %v922 = vadd.f32 %v873, %v921
        %v923 = vpop.f32.mrf.mxu0
        %v924 = vadd.f32 %v875, %v923
        %925 = vmatmul.bf16.gmra.mxu0 %v349
        %v926 = vpop.f32.mrf.mxu0
        %v927 = vadd.f32 %v878, %v926
        %v928 = vpop.f32.mrf.mxu0
        %v929 = vadd.f32 %v880, %v928
        %930 = vmatmul.bf16.gmra.mxu0 %v351
        %v931 = vpop.f32.mrf.mxu0
        %v932 = vadd.f32 %v883, %v931
        %v933 = vpop.f32.mrf.mxu0
        %v934 = vadd.f32 %v885, %v933
        %935 = vmatmul.bf16.gmra.mxu0 %v353
        %v936 = vpop.f32.mrf.mxu0
        %v937 = vadd.f32 %v888, %v936
        %v938 = vpop.f32.mrf.mxu0
        %v939 = vadd.f32 %v890, %v938
        %940 = vmatmul.bf16.gmra.mxu0 %v355
        %v941 = vpop.f32.mrf.mxu0
        %v942 = vadd.f32 %v893, %v941
        %v943 = vpop.f32.mrf.mxu0
        %v944 = vadd.f32 %v895, %v943
        %945 = vdwg.mxu0
        %946 = vmatpush.bf16.msra.mxu0 %v652
        %947 = vmatpush.bf16.msra.mxu0 %v648
        %948 = vmatpush.bf16.msra.mxu0 %v644
        %949 = vmatpush.bf16.msra.mxu0 %v640
        %950 = vmatpush.bf16.msra.mxu0 %v636
        %951 = vmatpush.bf16.msra.mxu0 %v632
        %952 = vmatpush.bf16.msra.mxu0 %v628
        %953 = vmatpush.bf16.msra.mxu0 %v624
        %954 = vmatmul.bf16.gmra.mxu0 %v340
        %v955 = vpop.f32.mrf.mxu0
        %v956 = vadd.f32 %v424, %v955
        %v957 = vpop.f32.mrf.mxu0
        %v958 = vadd.f32 %v424, %v957
        %959 = vmatmul.bf16.gmra.mxu0 %v342
        %v960 = vpop.f32.mrf.mxu0
        %v961 = vadd.f32 %v424, %v960
        %v962 = vpop.f32.mrf.mxu0
        %v963 = vadd.f32 %v424, %v962
        %964 = vmatmul.bf16.gmra.mxu0 %v344
        %v965 = vpop.f32.mrf.mxu0
        %v966 = vadd.f32 %v424, %v965
        %v967 = vpop.f32.mrf.mxu0
        %v968 = vadd.f32 %v424, %v967
        %969 = vmatmul.bf16.gmra.mxu0 %v346
        %v970 = vpop.f32.mrf.mxu0
        %v971 = vadd.f32 %v424, %v970
        %v972 = vpop.f32.mrf.mxu0
        %v973 = vadd.f32 %v424, %v972
        %974 = vmatmul.bf16.gmra.mxu0 %v348
        %v975 = vpop.f32.mrf.mxu0
        %v976 = vadd.f32 %v424, %v975
        %v977 = vpop.f32.mrf.mxu0
        %v978 = vadd.f32 %v424, %v977
        %979 = vmatmul.bf16.gmra.mxu0 %v350
        %v980 = vpop.f32.mrf.mxu0
        %v981 = vadd.f32 %v424, %v980
        %v982 = vpop.f32.mrf.mxu0
        %v983 = vadd.f32 %v424, %v982
        %984 = vmatmul.bf16.gmra.mxu0 %v352
        %v985 = vpop.f32.mrf.mxu0
        %v986 = vadd.f32 %v424, %v985
        %v987 = vpop.f32.mrf.mxu0
        %v988 = vadd.f32 %v424, %v987
        %989 = vmatmul.bf16.gmra.mxu0 %v354
        %v990 = vpop.f32.mrf.mxu0
        %v991 = vadd.f32 %v424, %v990
        %v992 = vpop.f32.mrf.mxu0
        %v993 = vadd.f32 %v424, %v992
        %994 = vdwg.mxu0
        %995 = vmatpush.bf16.msra.mxu0 %v684
        %996 = vmatpush.bf16.msra.mxu0 %v680
        %997 = vmatpush.bf16.msra.mxu0 %v676
        %998 = vmatpush.bf16.msra.mxu0 %v672
        %999 = vmatpush.bf16.msra.mxu0 %v668
        %1000 = vmatpush.bf16.msra.mxu0 %v664
        %1001 = vmatpush.bf16.msra.mxu0 %v660
        %1002 = vmatpush.bf16.msra.mxu0 %v656
        %1003 = vmatmul.bf16.gmra.mxu0 %v341
        %v1004 = vpop.f32.mrf.mxu0
        %v1005 = vadd.f32 %v956, %v1004
        %v1006 = vpop.f32.mrf.mxu0
        %v1007 = vadd.f32 %v958, %v1006
        %1008 = vmatmul.bf16.gmra.mxu0 %v343
        %v1009 = vpop.f32.mrf.mxu0
        %v1010 = vadd.f32 %v961, %v1009
        %v1011 = vpop.f32.mrf.mxu0
        %v1012 = vadd.f32 %v963, %v1011
        %1013 = vmatmul.bf16.gmra.mxu0 %v345
        %v1014 = vpop.f32.mrf.mxu0
        %v1015 = vadd.f32 %v966, %v1014
        %v1016 = vpop.f32.mrf.mxu0
        %v1017 = vadd.f32 %v968, %v1016
        %1018 = vmatmul.bf16.gmra.mxu0 %v347
        %v1019 = vpop.f32.mrf.mxu0
        %v1020 = vadd.f32 %v971, %v1019
        %v1021 = vpop.f32.mrf.mxu0
        %v1022 = vadd.f32 %v973, %v1021
        %1023 = vmatmul.bf16.gmra.mxu0 %v349
        %v1024 = vpop.f32.mrf.mxu0
        %v1025 = vadd.f32 %v976, %v1024
        %v1026 = vpop.f32.mrf.mxu0
        %v1027 = vadd.f32 %v978, %v1026
        %1028 = vmatmul.bf16.gmra.mxu0 %v351
        %v1029 = vpop.f32.mrf.mxu0
        %v1030 = vadd.f32 %v981, %v1029
        %v1031 = vpop.f32.mrf.mxu0
        %v1032 = vadd.f32 %v983, %v1031
        %1033 = vmatmul.bf16.gmra.mxu0 %v353
        %v1034 = vpop.f32.mrf.mxu0
        %v1035 = vadd.f32 %v986, %v1034
        %v1036 = vpop.f32.mrf.mxu0
        %v1037 = vadd.f32 %v988, %v1036
        %1038 = vmatmul.bf16.gmra.mxu0 %v355
        %v1039 = vpop.f32.mrf.mxu0
        %v1040 = vadd.f32 %v991, %v1039
        %v1041 = vpop.f32.mrf.mxu0
        %v1042 = vadd.f32 %v993, %v1041
        %1043 = vdwg.mxu0
        %1044 = vmatpush.bf16.msra.mxu0 %v653
        %1045 = vmatpush.bf16.msra.mxu0 %v649
        %1046 = vmatpush.bf16.msra.mxu0 %v645
        %1047 = vmatpush.bf16.msra.mxu0 %v641
        %1048 = vmatpush.bf16.msra.mxu0 %v637
        %1049 = vmatpush.bf16.msra.mxu0 %v633
        %1050 = vmatpush.bf16.msra.mxu0 %v629
        %1051 = vmatpush.bf16.msra.mxu0 %v625
        %1052 = vmatmul.bf16.gmra.mxu0 %v340
        %v1053 = vpop.f32.mrf.mxu0
        %v1054 = vadd.f32 %v425, %v1053
        %v1055 = vpop.f32.mrf.mxu0
        %v1056 = vadd.f32 %v425, %v1055
        %1057 = vmatmul.bf16.gmra.mxu0 %v342
        %v1058 = vpop.f32.mrf.mxu0
        %v1059 = vadd.f32 %v425, %v1058
        %v1060 = vpop.f32.mrf.mxu0
        %v1061 = vadd.f32 %v425, %v1060
        %1062 = vmatmul.bf16.gmra.mxu0 %v344
        %v1063 = vpop.f32.mrf.mxu0
        %v1064 = vadd.f32 %v425, %v1063
        %v1065 = vpop.f32.mrf.mxu0
        %v1066 = vadd.f32 %v425, %v1065
        %1067 = vmatmul.bf16.gmra.mxu0 %v346
        %v1068 = vpop.f32.mrf.mxu0
        %v1069 = vadd.f32 %v425, %v1068
        %v1070 = vpop.f32.mrf.mxu0
        %v1071 = vadd.f32 %v425, %v1070
        %1072 = vmatmul.bf16.gmra.mxu0 %v348
        %v1073 = vpop.f32.mrf.mxu0
        %v1074 = vadd.f32 %v425, %v1073
        %v1075 = vpop.f32.mrf.mxu0
        %v1076 = vadd.f32 %v425, %v1075
        %1077 = vmatmul.bf16.gmra.mxu0 %v350
        %v1078 = vpop.f32.mrf.mxu0
        %v1079 = vadd.f32 %v425, %v1078
        %v1080 = vpop.f32.mrf.mxu0
        %v1081 = vadd.f32 %v425, %v1080
        %1082 = vmatmul.bf16.gmra.mxu0 %v352
        %v1083 = vpop.f32.mrf.mxu0
        %v1084 = vadd.f32 %v425, %v1083
        %v1085 = vpop.f32.mrf.mxu0
        %v1086 = vadd.f32 %v425, %v1085
        %1087 = vmatmul.bf16.gmra.mxu0 %v354
        %v1088 = vpop.f32.mrf.mxu0
        %v1089 = vadd.f32 %v425, %v1088
        %v1090 = vpop.f32.mrf.mxu0
        %v1091 = vadd.f32 %v425, %v1090
        %1092 = vdwg.mxu0
        %1093 = vmatpush.bf16.msra.mxu0 %v685
        %1094 = vmatpush.bf16.msra.mxu0 %v681
        %1095 = vmatpush.bf16.msra.mxu0 %v677
        %1096 = vmatpush.bf16.msra.mxu0 %v673
        %1097 = vmatpush.bf16.msra.mxu0 %v669
        %1098 = vmatpush.bf16.msra.mxu0 %v665
        %1099 = vmatpush.bf16.msra.mxu0 %v661
        %1100 = vmatpush.bf16.msra.mxu0 %v657
        %1101 = vmatmul.bf16.gmra.mxu0 %v341
        %v1102 = vpop.f32.mrf.mxu0
        %v1103 = vadd.f32 %v1054, %v1102
        %v1104 = vpop.f32.mrf.mxu0
        %v1105 = vadd.f32 %v1056, %v1104
        %1106 = vmatmul.bf16.gmra.mxu0 %v343
        %v1107 = vpop.f32.mrf.mxu0
        %v1108 = vadd.f32 %v1059, %v1107
        %v1109 = vpop.f32.mrf.mxu0
        %v1110 = vadd.f32 %v1061, %v1109
        %1111 = vmatmul.bf16.gmra.mxu0 %v345
        %v1112 = vpop.f32.mrf.mxu0
        %v1113 = vadd.f32 %v1064, %v1112
        %v1114 = vpop.f32.mrf.mxu0
        %v1115 = vadd.f32 %v1066, %v1114
        %1116 = vmatmul.bf16.gmra.mxu0 %v347
        %v1117 = vpop.f32.mrf.mxu0
        %v1118 = vadd.f32 %v1069, %v1117
        %v1119 = vpop.f32.mrf.mxu0
        %v1120 = vadd.f32 %v1071, %v1119
        %1121 = vmatmul.bf16.gmra.mxu0 %v349
        %v1122 = vpop.f32.mrf.mxu0
        %v1123 = vadd.f32 %v1074, %v1122
        %v1124 = vpop.f32.mrf.mxu0
        %v1125 = vadd.f32 %v1076, %v1124
        %1126 = vmatmul.bf16.gmra.mxu0 %v351
        %v1127 = vpop.f32.mrf.mxu0
        %v1128 = vadd.f32 %v1079, %v1127
        %v1129 = vpop.f32.mrf.mxu0
        %v1130 = vadd.f32 %v1081, %v1129
        %1131 = vmatmul.bf16.gmra.mxu0 %v353
        %v1132 = vpop.f32.mrf.mxu0
        %v1133 = vadd.f32 %v1084, %v1132
        %v1134 = vpop.f32.mrf.mxu0
        %v1135 = vadd.f32 %v1086, %v1134
        %1136 = vmatmul.bf16.gmra.mxu0 %v355
        %v1137 = vpop.f32.mrf.mxu0
        %v1138 = vadd.f32 %v1089, %v1137
        %v1139 = vpop.f32.mrf.mxu0
        %v1140 = vadd.f32 %v1091, %v1139
        %1141 = vdwg.mxu0
        %v1142 = vpack.c.bf16 %v907, %v809
        %v1143 = vpack.c.bf16 %v1103, %v1005
        %v1144 = vpack.c.bf16 %v909, %v811
        %v1145 = vpack.c.bf16 %v1105, %v1007
        %v1146 = vpack.c.bf16 %v912, %v814
        %v1147 = vpack.c.bf16 %v1108, %v1010
        %v1148 = vpack.c.bf16 %v914, %v816
        %v1149 = vpack.c.bf16 %v1110, %v1012
        %v1150 = vpack.c.bf16 %v917, %v819
        %v1151 = vpack.c.bf16 %v1113, %v1015
        %v1152 = vpack.c.bf16 %v919, %v821
        %v1153 = vpack.c.bf16 %v1115, %v1017
        %v1154 = vpack.c.bf16 %v922, %v824
        %v1155 = vpack.c.bf16 %v1118, %v1020
        %v1156 = vpack.c.bf16 %v924, %v826
        %v1157 = vpack.c.bf16 %v1120, %v1022
        %v1158 = vpack.c.bf16 %v927, %v829
        %v1159 = vpack.c.bf16 %v1123, %v1025
        %v1160 = vpack.c.bf16 %v929, %v831
        %v1161 = vpack.c.bf16 %v1125, %v1027
        %v1162 = vpack.c.bf16 %v932, %v834
        %v1163 = vpack.c.bf16 %v1128, %v1030
        %v1164 = vpack.c.bf16 %v934, %v836
        %v1165 = vpack.c.bf16 %v1130, %v1032
        %v1166 = vpack.c.bf16 %v937, %v839
        %v1167 = vpack.c.bf16 %v1133, %v1035
        %v1168 = vpack.c.bf16 %v939, %v841
        %v1169 = vpack.c.bf16 %v1135, %v1037
        %v1170 = vpack.c.bf16 %v942, %v844
        %v1171 = vpack.c.bf16 %v1138, %v1040
        %v1172 = vpack.c.bf16 %v944, %v846
        %v1173 = vpack.c.bf16 %v1140, %v1042
        %1174 = vst [vmem:[%s296] sm:$0xff] %v1142
        %1175 = vst [vmem:[%s296 + $0x8] sm:$0xff] %v1143
        %1176 = vst [vmem:[%s296 + $0x10] sm:$0xff] %v1144
        %1177 = vst [vmem:[%s296 + $0x18] sm:$0xff] %v1145
        %1178 = vst [vmem:[%s296 + $0x20] sm:$0xff] %v1146
        %1179 = vst [vmem:[%s296 + $0x28] sm:$0xff] %v1147
        %1180 = vst [vmem:[%s296 + $0x30] sm:$0xff] %v1148
        %1181 = vst [vmem:[%s296 + $0x38] sm:$0xff] %v1149
        %1182 = vst [vmem:[%s296 + $0x40] sm:$0xff] %v1150
        %1183 = vst [vmem:[%s296 + $0x48] sm:$0xff] %v1151
        %1184 = vst [vmem:[%s296 + $0x50] sm:$0xff] %v1152
        %1185 = vst [vmem:[%s296 + $0x58] sm:$0xff] %v1153
        %1186 = vst [vmem:[%s296 + $0x60] sm:$0xff] %v1154
        %1187 = vst [vmem:[%s296 + $0x68] sm:$0xff] %v1155
        %1188 = vst [vmem:[%s296 + $0x70] sm:$0xff] %v1156
        %1189 = vst [vmem:[%s296 + $0x78] sm:$0xff] %v1157
        %1190 = vst [vmem:[%s296 + $0x80] sm:$0xff] %v1158
        %1191 = vst [vmem:[%s296 + $0x88] sm:$0xff] %v1159
        %1192 = vst [vmem:[%s296 + $0x90] sm:$0xff] %v1160
        %1193 = vst [vmem:[%s296 + $0x98] sm:$0xff] %v1161
        %1194 = vst [vmem:[%s296 + $0xa0] sm:$0xff] %v1162
        %1195 = vst [vmem:[%s296 + $0xa8] sm:$0xff] %v1163
        %1196 = vst [vmem:[%s296 + $0xb0] sm:$0xff] %v1164
        %1197 = vst [vmem:[%s296 + $0xb8] sm:$0xff] %v1165
        %1198 = vst [vmem:[%s296 + $0xc0] sm:$0xff] %v1166
        %1199 = vst [vmem:[%s296 + $0xc8] sm:$0xff] %v1167
        %1200 = vst [vmem:[%s296 + $0xd0] sm:$0xff] %v1168
        %1201 = vst [vmem:[%s296 + $0xd8] sm:$0xff] %v1169
        %1202 = vst [vmem:[%s296 + $0xe0] sm:$0xff] %v1170
        %1203 = vst [vmem:[%s296 + $0xe8] sm:$0xff] %v1171
        %1204 = vst [vmem:[%s296 + $0xf0] sm:$0xff] %v1172
        %1205 = vst [vmem:[%s296 + $0xf8] sm:$0xff] %v1173
        %v1206 = vadd.f32 %v809, %v811
        %v1207 = vadd.f32 %v1206, %v814
        %v1208 = vadd.f32 %v1207, %v816
        %v1209 = vadd.f32 %v1208, %v819
        %v1210 = vadd.f32 %v1209, %v821
        %v1211 = vadd.f32 %v1210, %v824
        %v1212 = vadd.f32 %v1211, %v826
        %v1213 = vadd.f32 %v1212, %v829
        %v1214 = vadd.f32 %v1213, %v831
        %v1215 = vadd.f32 %v1214, %v834
        %v1216 = vadd.f32 %v1215, %v836
        %v1217 = vadd.f32 %v1216, %v839
        %v1218 = vadd.f32 %v1217, %v841
        %v1219 = vadd.f32 %v1218, %v844
        %v1220 = vadd.f32 %v1219, %v846
        %v1221 = vrot.slane %v1220, 4
        %v1222 = vadd.f32 %v1220, %v1221
        %v1223 = vrot.slane %v1222, 2
        %v1224 = vadd.f32 %v1222, %v1223
        %v1225 = vrot.slane %v1224, 1
        %v1226 = vadd.f32 %v1224, %v1225
        %v1227 = vadd.f32 %v907, %v909
        %v1228 = vadd.f32 %v1227, %v912
        %v1229 = vadd.f32 %v1228, %v914
        %v1230 = vadd.f32 %v1229, %v917
        %v1231 = vadd.f32 %v1230, %v919
        %v1232 = vadd.f32 %v1231, %v922
        %v1233 = vadd.f32 %v1232, %v924
        %v1234 = vadd.f32 %v1233, %v927
        %v1235 = vadd.f32 %v1234, %v929
        %v1236 = vadd.f32 %v1235, %v932
        %v1237 = vadd.f32 %v1236, %v934
        %v1238 = vadd.f32 %v1237, %v937
        %v1239 = vadd.f32 %v1238, %v939
        %v1240 = vadd.f32 %v1239, %v942
        %v1241 = vadd.f32 %v1240, %v944
        %v1242 = vrot.slane %v1241, 4
        %v1243 = vadd.f32 %v1241, %v1242
        %v1244 = vrot.slane %v1243, 2
        %v1245 = vadd.f32 %v1243, %v1244
        %v1246 = vrot.slane %v1245, 1
        %v1247 = vadd.f32 %v1245, %v1246
        %v1248 = vadd.f32 %v1005, %v1007
        %v1249 = vadd.f32 %v1248, %v1010
        %v1250 = vadd.f32 %v1249, %v1012
        %v1251 = vadd.f32 %v1250, %v1015
        %v1252 = vadd.f32 %v1251, %v1017
        %v1253 = vadd.f32 %v1252, %v1020
        %v1254 = vadd.f32 %v1253, %v1022
        %v1255 = vadd.f32 %v1254, %v1025
        %v1256 = vadd.f32 %v1255, %v1027
        %v1257 = vadd.f32 %v1256, %v1030
        %v1258 = vadd.f32 %v1257, %v1032
        %v1259 = vadd.f32 %v1258, %v1035
        %v1260 = vadd.f32 %v1259, %v1037
        %v1261 = vadd.f32 %v1260, %v1040
        %v1262 = vadd.f32 %v1261, %v1042
        %v1263 = vrot.slane %v1262, 4
        %v1264 = vadd.f32 %v1262, %v1263
        %v1265 = vrot.slane %v1264, 2
        %v1266 = vadd.f32 %v1264, %v1265
        %v1267 = vrot.slane %v1266, 1
        %v1268 = vadd.f32 %v1266, %v1267
        %v1269 = vadd.f32 %v1103, %v1105
        %v1270 = vadd.f32 %v1269, %v1108
        %v1271 = vadd.f32 %v1270, %v1110
        %v1272 = vadd.f32 %v1271, %v1113
        %v1273 = vadd.f32 %v1272, %v1115
        %v1274 = vadd.f32 %v1273, %v1118
        %v1275 = vadd.f32 %v1274, %v1120
        %v1276 = vadd.f32 %v1275, %v1123
        %v1277 = vadd.f32 %v1276, %v1125
        %v1278 = vadd.f32 %v1277, %v1128
        %v1279 = vadd.f32 %v1278, %v1130
        %v1280 = vadd.f32 %v1279, %v1133
        %v1281 = vadd.f32 %v1280, %v1135
        %v1282 = vadd.f32 %v1281, %v1138
        %v1283 = vadd.f32 %v1282, %v1140
        %v1284 = vrot.slane %v1283, 4
        %v1285 = vadd.f32 %v1283, %v1284
        %v1286 = vrot.slane %v1285, 2
        %v1287 = vadd.f32 %v1285, %v1286
        %v1288 = vrot.slane %v1287, 1
        %v1289 = vadd.f32 %v1287, %v1288
        %v1290 = vmul.f32 %v809, %v809
        %v1291 = vmul.f32 %v907, %v907
        %v1292 = vmul.f32 %v1005, %v1005
        %v1293 = vmul.f32 %v1103, %v1103
        %v1294 = vmul.f32 %v811, %v811
        %v1295 = vmul.f32 %v909, %v909
        %v1296 = vmul.f32 %v1007, %v1007
        %v1297 = vmul.f32 %v1105, %v1105
        %v1298 = vmul.f32 %v814, %v814
        %v1299 = vmul.f32 %v912, %v912
        %v1300 = vmul.f32 %v1010, %v1010
        %v1301 = vmul.f32 %v1108, %v1108
        %v1302 = vmul.f32 %v816, %v816
        %v1303 = vmul.f32 %v914, %v914
        %v1304 = vmul.f32 %v1012, %v1012
        %v1305 = vmul.f32 %v1110, %v1110
        %v1306 = vmul.f32 %v819, %v819
        %v1307 = vmul.f32 %v917, %v917
        %v1308 = vmul.f32 %v1015, %v1015
        %v1309 = vmul.f32 %v1113, %v1113
        %v1310 = vmul.f32 %v821, %v821
        %v1311 = vmul.f32 %v919, %v919
        %v1312 = vmul.f32 %v1017, %v1017
        %v1313 = vmul.f32 %v1115, %v1115
        %v1314 = vmul.f32 %v824, %v824
        %v1315 = vmul.f32 %v922, %v922
        %v1316 = vmul.f32 %v1020, %v1020
        %v1317 = vmul.f32 %v1118, %v1118
        %v1318 = vmul.f32 %v826, %v826
        %v1319 = vmul.f32 %v924, %v924
        %v1320 = vmul.f32 %v1022, %v1022
        %v1321 = vmul.f32 %v1120, %v1120
        %v1322 = vmul.f32 %v829, %v829
        %v1323 = vmul.f32 %v927, %v927
        %v1324 = vmul.f32 %v1025, %v1025
        %v1325 = vmul.f32 %v1123, %v1123
        %v1326 = vmul.f32 %v831, %v831
        %v1327 = vmul.f32 %v929, %v929
        %v1328 = vmul.f32 %v1027, %v1027
        %v1329 = vmul.f32 %v1125, %v1125
        %v1330 = vmul.f32 %v834, %v834
        %v1331 = vmul.f32 %v932, %v932
        %v1332 = vmul.f32 %v1030, %v1030
        %v1333 = vmul.f32 %v1128, %v1128
        %v1334 = vmul.f32 %v836, %v836
        %v1335 = vmul.f32 %v934, %v934
        %v1336 = vmul.f32 %v1032, %v1032
        %v1337 = vmul.f32 %v1130, %v1130
        %v1338 = vmul.f32 %v839, %v839
        %v1339 = vmul.f32 %v937, %v937
        %v1340 = vmul.f32 %v1035, %v1035
        %v1341 = vmul.f32 %v1133, %v1133
        %v1342 = vmul.f32 %v841, %v841
        %v1343 = vmul.f32 %v939, %v939
        %v1344 = vmul.f32 %v1037, %v1037
        %v1345 = vmul.f32 %v1135, %v1135
        %v1346 = vmul.f32 %v844, %v844
        %v1347 = vmul.f32 %v942, %v942
        %v1348 = vmul.f32 %v1040, %v1040
        %v1349 = vmul.f32 %v1138, %v1138
        %v1350 = vmul.f32 %v846, %v846
        %v1351 = vmul.f32 %v944, %v944
        %v1352 = vmul.f32 %v1042, %v1042
        %v1353 = vmul.f32 %v1140, %v1140
        %v1354 = vadd.f32 %v1290, %v1294
        %v1355 = vadd.f32 %v1354, %v1298
        %v1356 = vadd.f32 %v1355, %v1302
        %v1357 = vadd.f32 %v1356, %v1306
        %v1358 = vadd.f32 %v1357, %v1310
        %v1359 = vadd.f32 %v1358, %v1314
        %v1360 = vadd.f32 %v1359, %v1318
        %v1361 = vadd.f32 %v1360, %v1322
        %v1362 = vadd.f32 %v1361, %v1326
        %v1363 = vadd.f32 %v1362, %v1330
        %v1364 = vadd.f32 %v1363, %v1334
        %v1365 = vadd.f32 %v1364, %v1338
        %v1366 = vadd.f32 %v1365, %v1342
        %v1367 = vadd.f32 %v1366, %v1346
        %v1368 = vadd.f32 %v1367, %v1350
        %v1369 = vrot.slane %v1368, 4
        %v1370 = vadd.f32 %v1368, %v1369
        %v1371 = vrot.slane %v1370, 2
        %v1372 = vadd.f32 %v1370, %v1371
        %v1373 = vrot.slane %v1372, 1
        %v1374 = vadd.f32 %v1372, %v1373
        %v1375 = vadd.f32 %v1291, %v1295
        %v1376 = vadd.f32 %v1375, %v1299
        %v1377 = vadd.f32 %v1376, %v1303
        %v1378 = vadd.f32 %v1377, %v1307
        %v1379 = vadd.f32 %v1378, %v1311
        %v1380 = vadd.f32 %v1379, %v1315
        %v1381 = vadd.f32 %v1380, %v1319
        %v1382 = vadd.f32 %v1381, %v1323
        %v1383 = vadd.f32 %v1382, %v1327
        %v1384 = vadd.f32 %v1383, %v1331
        %v1385 = vadd.f32 %v1384, %v1335
        %v1386 = vadd.f32 %v1385, %v1339
        %v1387 = vadd.f32 %v1386, %v1343
        %v1388 = vadd.f32 %v1387, %v1347
        %v1389 = vadd.f32 %v1388, %v1351
        %v1390 = vrot.slane %v1389, 4
        %v1391 = vadd.f32 %v1389, %v1390
        %v1392 = vrot.slane %v1391, 2
        %v1393 = vadd.f32 %v1391, %v1392
        %v1394 = vrot.slane %v1393, 1
        %v1395 = vadd.f32 %v1393, %v1394
        %v1396 = vadd.f32 %v1292, %v1296
        %v1397 = vadd.f32 %v1396, %v1300
        %v1398 = vadd.f32 %v1397, %v1304
        %v1399 = vadd.f32 %v1398, %v1308
        %v1400 = vadd.f32 %v1399, %v1312
        %v1401 = vadd.f32 %v1400, %v1316
        %v1402 = vadd.f32 %v1401, %v1320
        %v1403 = vadd.f32 %v1402, %v1324
        %v1404 = vadd.f32 %v1403, %v1328
        %v1405 = vadd.f32 %v1404, %v1332
        %v1406 = vadd.f32 %v1405, %v1336
        %v1407 = vadd.f32 %v1406, %v1340
        %v1408 = vadd.f32 %v1407, %v1344
        %v1409 = vadd.f32 %v1408, %v1348
        %v1410 = vadd.f32 %v1409, %v1352
        %v1411 = vrot.slane %v1410, 4
        %v1412 = vadd.f32 %v1410, %v1411
        %v1413 = vrot.slane %v1412, 2
        %v1414 = vadd.f32 %v1412, %v1413
        %v1415 = vrot.slane %v1414, 1
        %v1416 = vadd.f32 %v1414, %v1415
        %v1417 = vadd.f32 %v1293, %v1297
        %v1418 = vadd.f32 %v1417, %v1301
        %v1419 = vadd.f32 %v1418, %v1305
        %v1420 = vadd.f32 %v1419, %v1309
        %v1421 = vadd.f32 %v1420, %v1313
        %v1422 = vadd.f32 %v1421, %v1317
        %v1423 = vadd.f32 %v1422, %v1321
        %v1424 = vadd.f32 %v1423, %v1325
        %v1425 = vadd.f32 %v1424, %v1329
        %v1426 = vadd.f32 %v1425, %v1333
        %v1427 = vadd.f32 %v1426, %v1337
        %v1428 = vadd.f32 %v1427, %v1341
        %v1429 = vadd.f32 %v1428, %v1345
        %v1430 = vadd.f32 %v1429, %v1349
        %v1431 = vadd.f32 %v1430, %v1353
        %v1432 = vrot.slane %v1431, 4
        %v1433 = vadd.f32 %v1431, %v1432
        %v1434 = vrot.slane %v1433, 2
        %v1435 = vadd.f32 %v1433, %v1434
        %v1436 = vrot.slane %v1435, 1
        %v1437 = vadd.f32 %v1435, %v1436
        %1438 = vst [vmem:[%s302] sm:$0xff] %v1226
        %1439 = vst [vmem:[%s302 + $0x8] sm:$0xff] %v1247
        %1440 = vst [vmem:[%s302 + $0x10] sm:$0xff] %v1268
        %1441 = vst [vmem:[%s302 + $0x18] sm:$0xff] %v1289
        %1442 = vst [vmem:[%s307] sm:$0xff] %v1374
        %1443 = vst [vmem:[%s307 + $0x8] sm:$0xff] %v1395
        %1444 = vst [vmem:[%s307 + $0x10] sm:$0xff] %v1416
        %1445 = vst [vmem:[%s307 + $0x18] sm:$0xff] %v1437
        %s1446 = smul.u32 16, %s21
        %p1447 = scmp.lt.s32.totalorder %s1446, 63
        %s1448 = scalar_select %p1447, %s1446, 63
        %s1449 = smul.addr %s1448, 4
        %s1450 = smul.addr %s1449, 4
        %s1451 = scalar_lea.vmem %s3, %s1450
        %p1452 = scmp.lt.s32.totalorder %s21, 3
        %s1453 = scalar_select %p1452, %s21, 3
        %s1454 = smul.addr %s1453, 4
        %s1455 = smul.addr %s1454, 8
        %s1456 = scalar_lea.vmem %s4, %s1455
        %p1457 = scmp.lt.s32.totalorder %s21, 3
        %s1458 = scalar_select %p1457, %s21, 3
        %s1459 = smul.addr %s1458, 4
        %s1460 = smul.addr %s1459, 8
        %s1461 = scalar_lea.vmem %s5, %s1460
        // Predicated region
        $region45: #{uncurlnet_forward.2} parent=31 // pred_check
          %p1462 = pneg %p107
        $region46: #{uncurlnet_forward.2} parent=31 // pred_check_branch
          %1464 = sbr.rel (%p1462) target = $region48
        $region47: #{uncurlnet_forward.2} parent=31 // pred_region
          %s1465 = smul.u32 16, %s21
        $region48: #{uncurlnet_forward.2} parent=31 // pred_fallthru
          _
        // Predicated region
        $region49: #{uncurlnet_forward.2} parent=31 // pred_check
          %p1466 = pneg %p133
        $region50: #{uncurlnet_forward.2} parent=31 // pred_check_branch
          %1468 = sbr.rel (%p1466) target = $region52
        $region51: #{uncurlnet_forward.2} parent=31 // pred_region
          _
        $region52: #{uncurlnet_forward.2} parent=31 // pred_fallthru
          _
        // Predicated region
        $region53: #{uncurlnet_forward.2} parent=31 // pred_check
          %p1469 = pneg %p159
        $region54: #{uncurlnet_forward.2} parent=31 // pred_check_branch
          %1471 = sbr.rel (%p1469) target = $region56
        $region55: #{uncurlnet_forward.2} parent=31 // pred_region
          _
        $region56: #{uncurlnet_forward.2} parent=31 // pred_fallthru
          _
      $region32: #{uncurlnet_forward.2} parent=5 // pred_fallthru
        _
      %p1472 = scmp.le.s32.totalorder 2, %s16
      // Predicated region
      $region57: #{uncurlnet_forward.2} parent=5 // pred_check
        %p1473 = pneg %p1472
      $region58: #{uncurlnet_forward.2} parent=5 // pred_check_branch
        %1475 = sbr.rel (%p1473) target = $region60
      $region59: #{uncurlnet_forward.2} parent=5 // pred_region
        %s1476 = ssub.s32 %s16, 2
        // Predicated region
        $region61: #{uncurlnet_forward.2} parent=59 // pred_check
          %p1477 = pneg %p113
        $region62: #{uncurlnet_forward.2} parent=59 // pred_check_branch
          %1479 = sbr.rel (%p1477) target = $region64
        $region63: #{uncurlnet_forward.2} parent=59 // pred_region
          %s1480 = smul.u32 16, %s22
          %p1481 = scmp.lt.s32.totalorder %s1480, 63
          %s1482 = scalar_select %p1481, %s1480, 63
          %s1483 = smul.addr %s1482, 4
          %s1484 = smul.addr %s1483, 4
          %s1485 = scalar_lea.vmem %s3, %s1484
        $region64: #{uncurlnet_forward.2} parent=59 // pred_fallthru
          _
        // Predicated region
        $region65: #{uncurlnet_forward.2} parent=59 // pred_check
          %p1486 = pneg %p139
        $region66: #{uncurlnet_forward.2} parent=59 // pred_check_branch
          %1488 = sbr.rel (%p1486) target = $region68
        $region67: #{uncurlnet_forward.2} parent=59 // pred_region
          %p1489 = scmp.lt.s32.totalorder %s22, 3
          %s1490 = scalar_select %p1489, %s22, 3
          %s1491 = smul.addr %s1490, 4
          %s1492 = smul.addr %s1491, 8
          %s1493 = scalar_lea.vmem %s4, %s1492
        $region68: #{uncurlnet_forward.2} parent=59 // pred_fallthru
          _
        // Predicated region
        $region69: #{uncurlnet_forward.2} parent=59 // pred_check
          %p1494 = pneg %p165
        $region70: #{uncurlnet_forward.2} parent=59 // pred_check_branch
          %1496 = sbr.rel (%p1494) target = $region72
        $region71: #{uncurlnet_forward.2} parent=59 // pred_region
          %p1497 = scmp.lt.s32.totalorder %s22, 3
          %s1498 = scalar_select %p1497, %s22, 3
          %s1499 = smul.addr %s1498, 4
          %s1500 = smul.addr %s1499, 8
          %s1501 = scalar_lea.vmem %s5, %s1500
        $region72: #{uncurlnet_forward.2} parent=59 // pred_fallthru
          _
      $region60: #{uncurlnet_forward.2} parent=5 // pred_fallthru
        _
    $region6: #{uncurlnet_forward.2} parent=1 // loop_footer
      %s20 = sadd.s32 1, %s16
    $region7: #{uncurlnet_forward.2} parent=1 // loop_footer_branch
      %15 = sbr.rel target = $region3
    $region8: #{uncurlnet_forward.2} parent=1 // loop_exit
      _
    %1502 = vsyncpa [#allocation3], 1
    %s1503 = scalar_lea.sflag [#allocation3], 1
    %1504 = vsyncpa %s1503, 1
    %1505 = vsyncpa [#allocation5], 1

// kernel: uncurlnet_forward.3
$region0: #{uncurlnet_forward.3}
  #allocation0 [shape = 'u32[]', space=smem, size = 0x4, offset = 0x4, fixed_abs, tag = 'smem constant byte address 0x4 - core index']
  #allocation1 [shape = 'u32[72,128]{1,0:T(1,128)}', space=vmem, size = 0x9000, scoped, tag = 'internal scratch']
  %s0 = inlined_call_operand.vmem [shape: bf16[512,512], index: 0, kind: input, shape index: {}]
  %s1 = inlined_call_operand.vmem [shape: f32[1,512], index: 1, kind: input, shape index: {}]
  %s2 = inlined_call_operand.vmem [shape: f32[1,512], index: 2, kind: input, shape index: {}]
  %s3 = inlined_call_operand.vmem [shape: bf16[512,384], index: 3, kind: input, shape index: {}]
  %s4 = inlined_call_operand.vmem [shape: f32[1,384], index: 4, kind: input, shape index: {}]
  %s5 = inlined_call_operand.hbm [shape: bf16[128,256], index: 5, kind: input, shape index: {}]
  %s6 = inlined_call_operand.hbm [shape: bf16[256,512], index: 6, kind: input, shape index: {}]
  %s7 = inlined_call_operand.vmem [shape: f32[1,512], index: 7, kind: input, shape index: {}]
  %s8 = inlined_call_operand.hbm [shape: bf16[512,256], index: 8, kind: input, shape index: {}]
  %s9 = inlined_call_operand.vmem [shape: f32[1,256], index: 9, kind: input, shape index: {}]
  %s10 = inlined_call_operand.vmem [shape: bf16[512,256], index: 10, kind: input, shape index: {}]
  %s11 = inlined_call_operand.hbm [shape: bf16[512,256], index: 11, kind: output, shape index: {0}]
  %s12 = inlined_call_operand.hbm [shape: bf16[512,256], index: 12, kind: output, shape index: {1}]
  %s13 = inlined_call_operand.hbm [shape: bf16[512,256], index: 13, kind: output, shape index: {2}]
  %14 = xla_tuple %s11, %s12, %s13
  %s15 = sld [smem:[#allocation0]]
  $region105: #{uncurlnet_forward.3} parent=0
    _
  %s17 = ssub.s32 1, %s15
  %s18 = scalar_select 0, %s17, %s15
  $region1: #{uncurlnet_forward.3} parent=0
    #allocation2 [shape = 'u8[65536]{0}', space=vmem, size = 0x10000, scoped, tag = 'input window, operand 5, single buffered']
    #allocation3 [shape = 's32[2]{0}', space=sflag, size = 0x8, scoped, tag = 'scoped memory for uncurlnet_forward.3']
    #allocation4 [shape = 's32[2]{0}', space=sflag, size = 0x8, scoped, tag = 'scoped memory for uncurlnet_forward.3']
    #allocation5 [shape = 'u8[262144]{0}', space=vmem, size = 0x40000, scoped, tag = 'input window, operand 6, single buffered']
    #allocation6 [shape = 's32[1]{0}', space=sflag, size = 0x4, scoped, tag = 'scoped memory for uncurlnet_forward.3']
    #allocation7 [shape = 'u8[262144]{0}', space=vmem, size = 0x40000, scoped, tag = 'input window, operand 8, single buffered']
    #allocation8 [shape = 'u8[131072]{0}', space=vmem, size = 0x20000, scoped, tag = 'output window, operand 0']
    #allocation9 [shape = 'u8[131072]{0}', space=vmem, size = 0x20000, scoped, tag = 'output window, operand 1']
    #allocation10 [shape = 's32[2]{0}', space=sflag, size = 0x8, scoped, tag = 'scoped memory for uncurlnet_forward.3']
    #allocation11 [shape = 'u8[131072]{0}', space=vmem, size = 0x20000, scoped, tag = 'output window, operand 2']
    %19 = vsyncpa [#allocation3], 0
    %20 = vsyncpa [#allocation6], 0
    %21 = vsyncpa [#allocation4], 0
    %s22 = scalar_lea.sflag [#allocation4], 1
    %23 = vsyncpa %s22, 0
    %24 = vsyncpa [#allocation10], 0
    %s25 = scalar_lea.sflag [#allocation10], 1
    %26 = vsyncpa %s25, 0
    loop: start=0, step=1, limit=6
    $region2: #{uncurlnet_forward.3} parent=1 // loop_pre_header
      _
    $region3: #{uncurlnet_forward.3} parent=1 // loop_header
      %s28 = sphi 0, %s32
      %p29 = scmp.ge.s32.totalorder %s28, 6
      %s38 = sphi 0, %s40
      %s41 = sphi 0, %s38
      %s42 = sphi 0, %s41
      %s58 = sphi 0, %s42
      %s62 = sphi 0, %s62
      %s64 = sphi 0, %s62
      %s65 = sphi 0, %s64
      %s79 = sphi 0, %s65
      %s83 = sphi 0, %s83
      %s85 = sphi 0, %s83
      %s86 = sphi 0, %s85
      %s100 = sphi 0, %s86
      %s104 = sphi 0, %s104
      %s106 = sphi 0, %s104
      %s107 = sphi 0, %s106
      %s121 = sphi 0, %s107
      %s125 = sphi 0, %s125
      %s127 = sphi 0, %s125
      %s128 = sphi 0, %s127
      %s142 = sphi 0, %s128
      %s146 = sphi 0, %s146
      %s148 = sphi 0, %s146
      %s149 = sphi 0, %s148
      %s163 = sphi 0, %s149
      %s167 = sphi 0, %s167
      %s169 = sphi 0, %s167
      %s170 = sphi 0, %s169
      %s184 = sphi 0, %s170
      %s188 = sphi 0, %s188
      %s190 = sphi 0, %s188
      %s191 = sphi 0, %s190
      %s205 = sphi 0, %s191
      %s209 = sphi 0, %s209
      %s211 = sphi 0, %s209
      %s212 = sphi 0, %s211
      %s226 = sphi 0, %s212
      %s230 = sphi 0, %s230
      %s232 = sphi 0, %s230
      %s233 = sphi 0, %s232
      %s247 = sphi 0, %s233
      %s253 = sphi 0, %s255
      %s256 = sphi 0, %s253
      %s257 = sphi 0, %s256
      %s273 = sphi 0, %s257
      %s279 = sphi 0, %s281
      %s282 = sphi 0, %s279
      %s283 = sphi 0, %s282
      %s299 = sphi 0, %s283
      %s305 = sphi 0, %s307
      %s308 = sphi 0, %s305
      %s309 = sphi 0, %s308
      %s325 = sphi 0, %s309
      %s331 = sphi 0, %s333
      %s334 = sphi 0, %s331
      %s335 = sphi 0, %s334
      %s351 = sphi 0, %s335
    $region4: #{uncurlnet_forward.3} parent=1 // loop_header_branch
      %31 = sbr.rel (%p29) target = $region8
    $region5: #{uncurlnet_forward.3} parent=1 // loop_body
      %s33 = ssub.s32 %s28, 1
      %s34 = ssub.s32 %s28, 2
      %s35 = sadd.s32 %s28, 1
      %s36 = ssub.s32 %s28, %s35
      %p37 = scmp.eq.s32.totalorder %s36, 0
      %s39 = sadd.s32 %s38, 1
      %s40 = scalar_select %p37, %s38, %s39
      %p43 = pneg %p37
      %p44 = scmp.eq.s32.totalorder %s28, 3
      %p45 = por %p43, %p44
      %p46 = scmp.ne.s32.totalorder %s38, %s41
      %p47 = scmp.eq.s32.totalorder %s28, 0
      %p48 = por %p46, %p47
      %p49 = scmp.ne.s32.totalorder %s38, %s41
      %p50 = scmp.eq.s32.totalorder %s33, 3
      %p51 = por %p49, %p50
      %p52 = scmp.ne.s32.totalorder %s41, %s42
      %p53 = scmp.eq.s32.totalorder %s33, 0
      %p54 = por %p52, %p53
      %p55 = scmp.ne.s32.totalorder %s41, %s42
      %p56 = scmp.eq.s32.totalorder %s34, 3
      %p57 = por %p55, %p56
      %p59 = scmp.ne.s32.totalorder %s42, %s58
      %p60 = scmp.eq.s32.totalorder %s34, 0
      %p61 = por %p59, %p60
      %s63 = sadd.s32 %s62, 1
      %p66 = scmp.eq.s32.totalorder %s28, 3
      %p67 = scmp.ne.s32.totalorder %s62, %s64
      %p68 = scmp.eq.s32.totalorder %s28, 0
      %p69 = por %p67, %p68
      %p70 = scmp.ne.s32.totalorder %s62, %s64
      %p71 = scmp.eq.s32.totalorder %s33, 3
      %p72 = por %p70, %p71
      %p73 = scmp.ne.s32.totalorder %s64, %s65
      %p74 = scmp.eq.s32.totalorder %s33, 0
      %p75 = por %p73, %p74
      %p76 = scmp.ne.s32.totalorder %s64, %s65
      %p77 = scmp.eq.s32.totalorder %s34, 3
      %p78 = por %p76, %p77
      %p80 = scmp.ne.s32.totalorder %s65, %s79
      %p81 = scmp.eq.s32.totalorder %s34, 0
      %p82 = por %p80, %p81
      %s84 = sadd.s32 %s83, 1
      %p87 = scmp.eq.s32.totalorder %s28, 3
      %p88 = scmp.ne.s32.totalorder %s83, %s85
      %p89 = scmp.eq.s32.totalorder %s28, 0
      %p90 = por %p88, %p89
      %p91 = scmp.ne.s32.totalorder %s83, %s85
      %p92 = scmp.eq.s32.totalorder %s33, 3
      %p93 = por %p91, %p92
      %p94 = scmp.ne.s32.totalorder %s85, %s86
      %p95 = scmp.eq.s32.totalorder %s33, 0
      %p96 = por %p94, %p95
      %p97 = scmp.ne.s32.totalorder %s85, %s86
      %p98 = scmp.eq.s32.totalorder %s34, 3
      %p99 = por %p97, %p98
      %p101 = scmp.ne.s32.totalorder %s86, %s100
      %p102 = scmp.eq.s32.totalorder %s34, 0
      %p103 = por %p101, %p102
      %s105 = sadd.s32 %s104, 1
      %p108 = scmp.eq.s32.totalorder %s28, 3
      %p109 = scmp.ne.s32.totalorder %s104, %s106
      %p110 = scmp.eq.s32.totalorder %s28, 0
      %p111 = por %p109, %p110
      %p112 = scmp.ne.s32.totalorder %s104, %s106
      %p113 = scmp.eq.s32.totalorder %s33, 3
      %p114 = por %p112, %p113
      %p115 = scmp.ne.s32.totalorder %s106, %s107
      %p116 = scmp.eq.s32.totalorder %s33, 0
      %p117 = por %p115, %p116
      %p118 = scmp.ne.s32.totalorder %s106, %s107
      %p119 = scmp.eq.s32.totalorder %s34, 3
      %p120 = por %p118, %p119
      %p122 = scmp.ne.s32.totalorder %s107, %s121
      %p123 = scmp.eq.s32.totalorder %s34, 0
      %p124 = por %p122, %p123
      %s126 = sadd.s32 %s125, 1
      %p129 = scmp.eq.s32.totalorder %s28, 3
      %p130 = scmp.ne.s32.totalorder %s125, %s127
      %p131 = scmp.eq.s32.totalorder %s28, 0
      %p132 = por %p130, %p131
      %p133 = scmp.ne.s32.totalorder %s125, %s127
      %p134 = scmp.eq.s32.totalorder %s33, 3
      %p135 = por %p133, %p134
      %p136 = scmp.ne.s32.totalorder %s127, %s128
      %p137 = scmp.eq.s32.totalorder %s33, 0
      %p138 = por %p136, %p137
      %p139 = scmp.ne.s32.totalorder %s127, %s128
      %p140 = scmp.eq.s32.totalorder %s34, 3
      %p141 = por %p139, %p140
      %p143 = scmp.ne.s32.totalorder %s128, %s142
      %p144 = scmp.eq.s32.totalorder %s34, 0
      %p145 = por %p143, %p144
      %s147 = sadd.s32 %s146, 1
      %p150 = scmp.eq.s32.totalorder %s28, 3
      %p151 = scmp.ne.s32.totalorder %s146, %s148
      %p152 = scmp.eq.s32.totalorder %s28, 0
      %p153 = por %p151, %p152
      %p154 = scmp.ne.s32.totalorder %s146, %s148
      %p155 = scmp.eq.s32.totalorder %s33, 3
      %p156 = por %p154, %p155
      %p157 = scmp.ne.s32.totalorder %s148, %s149
      %p158 = scmp.eq.s32.totalorder %s33, 0
      %p159 = por %p157, %p158
      %p160 = scmp.ne.s32.totalorder %s148, %s149
      %p161 = scmp.eq.s32.totalorder %s34, 3
      %p162 = por %p160, %p161
      %p164 = scmp.ne.s32.totalorder %s149, %s163
      %p165 = scmp.eq.s32.totalorder %s34, 0
      %p166 = por %p164, %p165
      %s168 = sadd.s32 %s167, 1
      %p171 = scmp.eq.s32.totalorder %s28, 3
      %p172 = scmp.ne.s32.totalorder %s167, %s169
      %p173 = scmp.eq.s32.totalorder %s28, 0
      %p174 = por %p172, %p173
      %p175 = scmp.ne.s32.totalorder %s167, %s169
      %p176 = scmp.eq.s32.totalorder %s33, 3
      %p177 = por %p175, %p176
      %p178 = scmp.ne.s32.totalorder %s169, %s170
      %p179 = scmp.eq.s32.totalorder %s33, 0
      %p180 = por %p178, %p179
      %p181 = scmp.ne.s32.totalorder %s169, %s170
      %p182 = scmp.eq.s32.totalorder %s34, 3
      %p183 = por %p181, %p182
      %p185 = scmp.ne.s32.totalorder %s170, %s184
      %p186 = scmp.eq.s32.totalorder %s34, 0
      %p187 = por %p185, %p186
      %s189 = sadd.s32 %s188, 1
      %p192 = scmp.eq.s32.totalorder %s28, 3
      %p193 = scmp.ne.s32.totalorder %s188, %s190
      %p194 = scmp.eq.s32.totalorder %s28, 0
      %p195 = por %p193, %p194
      %p196 = scmp.ne.s32.totalorder %s188, %s190
      %p197 = scmp.eq.s32.totalorder %s33, 3
      %p198 = por %p196, %p197
      %p199 = scmp.ne.s32.totalorder %s190, %s191
      %p200 = scmp.eq.s32.totalorder %s33, 0
      %p201 = por %p199, %p200
      %p202 = scmp.ne.s32.totalorder %s190, %s191
      %p203 = scmp.eq.s32.totalorder %s34, 3
      %p204 = por %p202, %p203
      %p206 = scmp.ne.s32.totalorder %s191, %s205
      %p207 = scmp.eq.s32.totalorder %s34, 0
      %p208 = por %p206, %p207
      %s210 = sadd.s32 %s209, 1
      %p213 = scmp.eq.s32.totalorder %s28, 3
      %p214 = scmp.ne.s32.totalorder %s209, %s211
      %p215 = scmp.eq.s32.totalorder %s28, 0
      %p216 = por %p214, %p215
      %p217 = scmp.ne.s32.totalorder %s209, %s211
      %p218 = scmp.eq.s32.totalorder %s33, 3
      %p219 = por %p217, %p218
      %p220 = scmp.ne.s32.totalorder %s211, %s212
      %p221 = scmp.eq.s32.totalorder %s33, 0
      %p222 = por %p220, %p221
      %p223 = scmp.ne.s32.totalorder %s211, %s212
      %p224 = scmp.eq.s32.totalorder %s34, 3
      %p225 = por %p223, %p224
      %p227 = scmp.ne.s32.totalorder %s212, %s226
      %p228 = scmp.eq.s32.totalorder %s34, 0
      %p229 = por %p227, %p228
      %s231 = sadd.s32 %s230, 1
      %p234 = scmp.eq.s32.totalorder %s28, 3
      %p235 = scmp.ne.s32.totalorder %s230, %s232
      %p236 = scmp.eq.s32.totalorder %s28, 0
      %p237 = por %p235, %p236
      %p238 = scmp.ne.s32.totalorder %s230, %s232
      %p239 = scmp.eq.s32.totalorder %s33, 3
      %p240 = por %p238, %p239
      %p241 = scmp.ne.s32.totalorder %s232, %s233
      %p242 = scmp.eq.s32.totalorder %s33, 0
      %p243 = por %p241, %p242
      %p244 = scmp.ne.s32.totalorder %s232, %s233
      %p245 = scmp.eq.s32.totalorder %s34, 3
      %p246 = por %p244, %p245
      %p248 = scmp.ne.s32.totalorder %s233, %s247
      %p249 = scmp.eq.s32.totalorder %s34, 0
      %p250 = por %p248, %p249
      %s251 = ssub.s32 %s28, %s35
      %p252 = scmp.eq.s32.totalorder %s251, 0
      %s254 = sadd.s32 %s253, 1
      %s255 = scalar_select %p252, %s253, %s254
      %p258 = pneg %p252
      %p259 = scmp.eq.s32.totalorder %s28, 3
      %p260 = por %p258, %p259
      %p261 = scmp.ne.s32.totalorder %s253, %s256
      %p262 = scmp.eq.s32.totalorder %s28, 0
      %p263 = por %p261, %p262
      %p264 = scmp.ne.s32.totalorder %s253, %s256
      %p265 = scmp.eq.s32.totalorder %s33, 3
      %p266 = por %p264, %p265
      %p267 = scmp.ne.s32.totalorder %s256, %s257
      %p268 = scmp.eq.s32.totalorder %s33, 0
      %p269 = por %p267, %p268
      %p270 = scmp.ne.s32.totalorder %s256, %s257
      %p271 = scmp.eq.s32.totalorder %s34, 3
      %p272 = por %p270, %p271
      %p274 = scmp.ne.s32.totalorder %s257, %s273
      %p275 = scmp.eq.s32.totalorder %s34, 0
      %p276 = por %p274, %p275
      %s277 = ssub.s32 %s28, %s35
      %p278 = scmp.eq.s32.totalorder %s277, 0
      %s280 = sadd.s32 %s279, 1
      %s281 = scalar_select %p278, %s279, %s280
      %p284 = pneg %p278
      %p285 = scmp.eq.s32.totalorder %s28, 3
      %p286 = por %p284, %p285
      %p287 = scmp.ne.s32.totalorder %s279, %s282
      %p288 = scmp.eq.s32.totalorder %s28, 0
      %p289 = por %p287, %p288
      %p290 = scmp.ne.s32.totalorder %s279, %s282
      %p291 = scmp.eq.s32.totalorder %s33, 3
      %p292 = por %p290, %p291
      %p293 = scmp.ne.s32.totalorder %s282, %s283
      %p294 = scmp.eq.s32.totalorder %s33, 0
      %p295 = por %p293, %p294
      %p296 = scmp.ne.s32.totalorder %s282, %s283
      %p297 = scmp.eq.s32.totalorder %s34, 3
      %p298 = por %p296, %p297
      %p300 = scmp.ne.s32.totalorder %s283, %s299
      %p301 = scmp.eq.s32.totalorder %s34, 0
      %p302 = por %p300, %p301
      %s303 = ssub.s32 %s28, %s35
      %p304 = scmp.eq.s32.totalorder %s303, 0
      %s306 = sadd.s32 %s305, 1
      %s307 = scalar_select %p304, %s305, %s306
      %p310 = pneg %p304
      %p311 = scmp.eq.s32.totalorder %s28, 3
      %p312 = por %p310, %p311
      %p313 = scmp.ne.s32.totalorder %s305, %s308
      %p314 = scmp.eq.s32.totalorder %s28, 0
      %p315 = por %p313, %p314
      %p316 = scmp.ne.s32.totalorder %s305, %s308
      %p317 = scmp.eq.s32.totalorder %s33, 3
      %p318 = por %p316, %p317
      %p319 = scmp.ne.s32.totalorder %s308, %s309
      %p320 = scmp.eq.s32.totalorder %s33, 0
      %p321 = por %p319, %p320
      %p322 = scmp.ne.s32.totalorder %s308, %s309
      %p323 = scmp.eq.s32.totalorder %s34, 3
      %p324 = por %p322, %p323
      %p326 = scmp.ne.s32.totalorder %s309, %s325
      %p327 = scmp.eq.s32.totalorder %s34, 0
      %p328 = por %p326, %p327
      %s329 = ssub.s32 %s28, %s35
      %p330 = scmp.eq.s32.totalorder %s329, 0
      %s332 = sadd.s32 %s331, 1
      %s333 = scalar_select %p330, %s331, %s332
      %p336 = pneg %p330
      %p337 = scmp.eq.s32.totalorder %s28, 3
      %p338 = por %p336, %p337
      %p339 = scmp.ne.s32.totalorder %s331, %s334
      %p340 = scmp.eq.s32.totalorder %s28, 0
      %p341 = por %p339, %p340
      %p342 = scmp.ne.s32.totalorder %s331, %s334
      %p343 = scmp.eq.s32.totalorder %s33, 3
      %p344 = por %p342, %p343
      %p345 = scmp.ne.s32.totalorder %s334, %s335
      %p346 = scmp.eq.s32.totalorder %s33, 0
      %p347 = por %p345, %p346
      %p348 = scmp.ne.s32.totalorder %s334, %s335
      %p349 = scmp.eq.s32.totalorder %s34, 3
      %p350 = por %p348, %p349
      %p352 = scmp.ne.s32.totalorder %s335, %s351
      %p353 = scmp.eq.s32.totalorder %s34, 0
      %p354 = por %p352, %p353
      %p355 = scmp.le.s32.totalorder 1, %s28
      %p356 = scmp.lt.s32.totalorder %s28, 5
      %p357 = pnand %p355, %p356
      %p358 = pneg %p357
      // Predicated region
      $region9: #{uncurlnet_forward.3} parent=5 // pred_check
        _
      $region10: #{uncurlnet_forward.3} parent=5 // pred_check_branch
        %360 = sbr.rel (%p357) target = $region12
      $region11: #{uncurlnet_forward.3} parent=5 // pred_region
        %s361 = ssub.s32 %s28, 1
        // Predicated region
        $region13: #{uncurlnet_forward.3} parent=11 // pred_check
          %p362 = pneg %p75
        $region14: #{uncurlnet_forward.3} parent=11 // pred_check_branch
          %364 = sbr.rel (%p362) target = $region16
        $region15: #{uncurlnet_forward.3} parent=11 // pred_region
          _
        $region16: #{uncurlnet_forward.3} parent=11 // pred_fallthru
          _
        // Predicated region
        $region17: #{uncurlnet_forward.3} parent=11 // pred_check
          %p365 = pneg %p96
        $region18: #{uncurlnet_forward.3} parent=11 // pred_check_branch
          %367 = sbr.rel (%p365) target = $region20
        $region19: #{uncurlnet_forward.3} parent=11 // pred_region
          _
        $region20: #{uncurlnet_forward.3} parent=11 // pred_fallthru
          _
        // Predicated region
        $region21: #{uncurlnet_forward.3} parent=11 // pred_check
          %p368 = pneg %p117
        $region22: #{uncurlnet_forward.3} parent=11 // pred_check_branch
          %370 = sbr.rel (%p368) target = $region24
        $region23: #{uncurlnet_forward.3} parent=11 // pred_region
          _
        $region24: #{uncurlnet_forward.3} parent=11 // pred_fallthru
          _
        // Predicated region
        $region25: #{uncurlnet_forward.3} parent=11 // pred_check
          %p371 = pneg %p138
        $region26: #{uncurlnet_forward.3} parent=11 // pred_check_branch
          %373 = sbr.rel (%p371) target = $region28
        $region27: #{uncurlnet_forward.3} parent=11 // pred_region
          _
        $region28: #{uncurlnet_forward.3} parent=11 // pred_fallthru
          _
        // Predicated region
        $region29: #{uncurlnet_forward.3} parent=11 // pred_check
          %p374 = pneg %p159
        $region30: #{uncurlnet_forward.3} parent=11 // pred_check_branch
          %376 = sbr.rel (%p374) target = $region32
        $region31: #{uncurlnet_forward.3} parent=11 // pred_region
          %378 = vsyncadd [#allocation3], 0
          %s379 = sshll.u32 %s5, 4
          %s380 = int_to_ptr.hbm [resolvable:$true] %s379
          %s381 = sshll.u32 [#allocation2], 4
          %s382 = int_to_ptr.vmem [resolvable:$true] %s381
          %387 = dma.hbm_to_vmem [thread:$0]  %s380, 2048, %s382, [#allocation3], 128, 128, 8
        $region32: #{uncurlnet_forward.3} parent=11 // pred_fallthru
          _
        // Predicated region
        $region33: #{uncurlnet_forward.3} parent=11 // pred_check
          %p388 = pneg %p180
        $region34: #{uncurlnet_forward.3} parent=11 // pred_check_branch
          %390 = sbr.rel (%p388) target = $region36
        $region35: #{uncurlnet_forward.3} parent=11 // pred_region
          %392 = vsyncadd [#allocation6], 0
          %s393 = sshll.u32 %s6, 4
          %s394 = int_to_ptr.hbm [resolvable:$true] %s393
          %s395 = sshll.u32 [#allocation5], 4
          %s396 = int_to_ptr.vmem [resolvable:$true] %s395
          %401 = dma.hbm_to_vmem [thread:$0]  %s394, 8192, %s396, [#allocation6], 256, 256, 16
        $region36: #{uncurlnet_forward.3} parent=11 // pred_fallthru
          _
        // Predicated region
        $region37: #{uncurlnet_forward.3} parent=11 // pred_check
          %p402 = pneg %p201
        $region38: #{uncurlnet_forward.3} parent=11 // pred_check_branch
          %404 = sbr.rel (%p402) target = $region40
        $region39: #{uncurlnet_forward.3} parent=11 // pred_region
          _
        $region40: #{uncurlnet_forward.3} parent=11 // pred_fallthru
          _
        // Predicated region
        $region41: #{uncurlnet_forward.3} parent=11 // pred_check
          %p405 = pneg %p222
        $region42: #{uncurlnet_forward.3} parent=11 // pred_check_branch
          %407 = sbr.rel (%p405) target = $region44
        $region43: #{uncurlnet_forward.3} parent=11 // pred_region
          %409 = vsyncadd [#allocation6], 0
          %s410 = sshll.u32 %s8, 4
          %s411 = int_to_ptr.hbm [resolvable:$true] %s410
          %s412 = sshll.u32 [#allocation7], 4
          %s413 = int_to_ptr.vmem [resolvable:$true] %s412
          %418 = dma.hbm_to_vmem [thread:$0]  %s411, 8192, %s413, [#allocation6], 128, 128, 8
        $region44: #{uncurlnet_forward.3} parent=11 // pred_fallthru
          _
        // Predicated region
        $region45: #{uncurlnet_forward.3} parent=11 // pred_check
          %p419 = pneg %p243
        $region46: #{uncurlnet_forward.3} parent=11 // pred_check_branch
          %421 = sbr.rel (%p419) target = $region48
        $region47: #{uncurlnet_forward.3} parent=11 // pred_region
          _
        $region48: #{uncurlnet_forward.3} parent=11 // pred_fallthru
          _
      $region12: #{uncurlnet_forward.3} parent=5 // pred_fallthru
        _
      %p422 = scmp.lt.s32.totalorder %s28, 4
      // Predicated region
      $region49: #{uncurlnet_forward.3} parent=5 // pred_check
        %p423 = pneg %p422
      $region50: #{uncurlnet_forward.3} parent=5 // pred_check_branch
        %425 = sbr.rel (%p423) target = $region52
      $region51: #{uncurlnet_forward.3} parent=5 // pred_region
        // Predicated region
        $region53: #{uncurlnet_forward.3} parent=51 // pred_check
          %p426 = pneg %p48
        $region54: #{uncurlnet_forward.3} parent=51 // pred_check_branch
          %428 = sbr.rel (%p426) target = $region56
        $region55: #{uncurlnet_forward.3} parent=51 // pred_region
          %s429 = smul.u32 16, %s28
          %p430 = scmp.lt.s32.totalorder %s429, 63
          %s431 = scalar_select %p430, %s429, 63
          %s432 = smul.addr %s431, 4
          %s433 = smul.addr %s432, 4
          %s434 = scalar_lea.vmem %s0, %s433
          %s435 = smul.u32 16, %s28
        $region56: #{uncurlnet_forward.3} parent=51 // pred_fallthru
          _
        // Predicated region
        $region57: #{uncurlnet_forward.3} parent=51 // pred_check
          %p436 = pneg %p263
        $region58: #{uncurlnet_forward.3} parent=51 // pred_check_branch
          %438 = sbr.rel (%p436) target = $region60
        $region59: #{uncurlnet_forward.3} parent=51 // pred_region
          %s439 = smul.u32 16, %s28
          %p440 = scmp.lt.s32.totalorder %s439, 63
          %s441 = scalar_select %p440, %s439, 63
          %s442 = smul.addr %s441, 2
          %s443 = smul.addr %s442, 4
          %s444 = scalar_lea.vmem %s10, %s443
          %s445 = smul.u32 16, %s28
        $region60: #{uncurlnet_forward.3} parent=51 // pred_fallthru
          _
      $region52: #{uncurlnet_forward.3} parent=5 // pred_fallthru
        _
      %p446 = scmp.le.s32.totalorder 1, %s28
      %p447 = scmp.lt.s32.totalorder %s28, 5
      %p448 = pnand %p446, %p447
      %p449 = pneg %p448
      // Predicated region
      $region61: #{uncurlnet_forward.3} parent=5 // pred_check
        _
      $region62: #{uncurlnet_forward.3} parent=5 // pred_check_branch
        %451 = sbr.rel (%p448) target = $region64
      $region63: #{uncurlnet_forward.3} parent=5 // pred_region
        %s452 = ssub.s32 %s28, 1
        // Predicated region
        $region65: #{uncurlnet_forward.3} parent=63 // pred_check
          %p453 = pneg %p159
        $region66: #{uncurlnet_forward.3} parent=63 // pred_check_branch
          %455 = sbr.rel (%p453) target = $region68
        $region67: #{uncurlnet_forward.3} parent=63 // pred_region
          %457 = dma.done [#allocation3], 2048
        $region68: #{uncurlnet_forward.3} parent=63 // pred_fallthru
          _
        // Predicated region
        $region69: #{uncurlnet_forward.3} parent=63 // pred_check
          %p458 = pneg %p180
        $region70: #{uncurlnet_forward.3} parent=63 // pred_check_branch
          %460 = sbr.rel (%p458) target = $region72
        $region71: #{uncurlnet_forward.3} parent=63 // pred_region
          %462 = dma.done [#allocation6], 8192
        $region72: #{uncurlnet_forward.3} parent=63 // pred_fallthru
          _
        // Predicated region
        $region73: #{uncurlnet_forward.3} parent=63 // pred_check
          %p463 = pneg %p222
        $region74: #{uncurlnet_forward.3} parent=63 // pred_check_branch
          %465 = sbr.rel (%p463) target = $region76
        $region75: #{uncurlnet_forward.3} parent=63 // pred_region
          %467 = dma.done [#allocation6], 8192
        $region76: #{uncurlnet_forward.3} parent=63 // pred_fallthru
          _
        %s468 = smul.u32 16, %s33
        %p469 = scmp.lt.s32.totalorder %s468, 63
        %s470 = scalar_select %p469, %s468, 63
        %s471 = smul.addr %s470, 4
        %s472 = smul.addr %s471, 4
        %s473 = scalar_lea.vmem %s0, %s472
        %p474 = pneg %p54
        %p475 = pneg %p51
        %p476 = pneg %p75
        %p477 = pneg %p72
        %p478 = pneg %p96
        %p479 = pneg %p93
        %p480 = pneg %p117
        %p481 = pneg %p114
        %p482 = pneg %p138
        %p483 = pneg %p135
        %p484 = pneg %p159
        %p485 = pneg %p156
        %p486 = pneg %p180
        %p487 = pneg %p177
        %p488 = pneg %p201
        %p489 = pneg %p198
        %p490 = pneg %p222
        %p491 = pneg %p219
        %p492 = pneg %p243
        %p493 = pneg %p240
        %s494 = smul.u32 16, %s33
        %p495 = scmp.lt.s32.totalorder %s494, 63
        %s496 = scalar_select %p495, %s494, 63
        %s497 = smul.addr %s496, 2
        %s498 = smul.addr %s497, 4
        %s499 = scalar_lea.vmem %s10, %s498
        %p500 = pneg %p269
        %p501 = pneg %p266
        %p502 = pneg %p295
        %p503 = pneg %p292
        %s504 = sand.u32 %s282, 1
        %s505 = scalar_lea.sflag [#allocation4], %s504
        %s506 = sand.u32 %s282, 1
        %s507 = smul.addr %s506, 128
        %s508 = scalar_lea.vmem [#allocation8], %s507
        %p509 = pneg %p321
        %p510 = pneg %p318
        %s511 = sand.u32 %s33, 1
        %s512 = scalar_lea.sflag [#allocation10], %s511
        %s513 = sand.u32 %s308, 1
        %s514 = smul.addr %s513, 128
        %s515 = scalar_lea.vmem [#allocation9], %s514
        %p516 = pneg %p347
        %p517 = pneg %p344
        %s518 = sand.u32 %s33, 1
        %s519 = scalar_lea.sflag [#allocation10], %s518
        %s520 = sand.u32 %s334, 1
        %s521 = smul.addr %s520, 128
        %s522 = scalar_lea.vmem [#allocation11], %s521
        %s523 = smul.u32 16, %s33
        %p524 = scmp.lt.s32.totalorder %s523, 63
        %s525 = scalar_select %p524, %s523, 63
        %s526 = smul.addr %s525, 4
        %s527 = smul.addr %s526, 4
        %s528 = scalar_lea.vmem %s0, %s527
        %s529 = smul.u32 16, %s33
        %s530 = smul.u32 16, %s33
        %p531 = scmp.lt.s32.totalorder %s530, 63
        %s532 = scalar_select %p531, %s530, 63
        %s533 = smul.addr %s532, 2
        %s534 = smul.addr %s533, 4
        %s535 = scalar_lea.vmem %s10, %s534
        %s536 = smul.u32 16, %s33
        %s537 = smul.u32 16, %s33
        %s538 = smul.u32 16, %s33
        %s539 = smul.u32 16, %s33
        %s540 = smul.u32 0, 4
        %s541 = smul.addr %s540, 4
        %s542 = scalar_lea.vmem %s528, %s541
        %v543 = vld [vmem:[%s542] sm:$0xff]
        %v544 = vld [vmem:[%s542 + $0x8] sm:$0xff]
        %v545 = vld [vmem:[%s542 + $0x10] sm:$0xff]
        %v546 = vld [vmem:[%s542 + $0x18] sm:$0xff]
        %v547 = vld [vmem:[%s542 + $0x20] sm:$0xff]
        %v548 = vld [vmem:[%s542 + $0x28] sm:$0xff]
        %v549 = vld [vmem:[%s542 + $0x30] sm:$0xff]
        %v550 = vld [vmem:[%s542 + $0x38] sm:$0xff]
        %v551 = vld [vmem:[%s542 + $0x40] sm:$0xff]
        %v552 = vld [vmem:[%s542 + $0x48] sm:$0xff]
        %v553 = vld [vmem:[%s542 + $0x50] sm:$0xff]
        %v554 = vld [vmem:[%s542 + $0x58] sm:$0xff]
        %v555 = vld [vmem:[%s542 + $0x60] sm:$0xff]
        %v556 = vld [vmem:[%s542 + $0x68] sm:$0xff]
        %v557 = vld [vmem:[%s542 + $0x70] sm:$0xff]
        %v558 = vld [vmem:[%s542 + $0x78] sm:$0xff]
        %v559 = vunpack.c.l.bf16 %v543
        %v560 = vunpack.c.h.bf16 %v543
        %v561 = vunpack.c.l.bf16 %v544
        %v562 = vunpack.c.h.bf16 %v544
        %v563 = vunpack.c.l.bf16 %v545
        %v564 = vunpack.c.h.bf16 %v545
        %v565 = vunpack.c.l.bf16 %v546
        %v566 = vunpack.c.h.bf16 %v546
        %v567 = vunpack.c.l.bf16 %v547
        %v568 = vunpack.c.h.bf16 %v547
        %v569 = vunpack.c.l.bf16 %v548
        %v570 = vunpack.c.h.bf16 %v548
        %v571 = vunpack.c.l.bf16 %v549
        %v572 = vunpack.c.h.bf16 %v549
        %v573 = vunpack.c.l.bf16 %v550
        %v574 = vunpack.c.h.bf16 %v550
        %v575 = vunpack.c.l.bf16 %v551
        %v576 = vunpack.c.h.bf16 %v551
        %v577 = vunpack.c.l.bf16 %v552
        %v578 = vunpack.c.h.bf16 %v552
        %v579 = vunpack.c.l.bf16 %v553
        %v580 = vunpack.c.h.bf16 %v553
        %v581 = vunpack.c.l.bf16 %v554
        %v582 = vunpack.c.h.bf16 %v554
        %v583 = vunpack.c.l.bf16 %v555
        %v584 = vunpack.c.h.bf16 %v555
        %v585 = vunpack.c.l.bf16 %v556
        %v586 = vunpack.c.h.bf16 %v556
        %v587 = vunpack.c.l.bf16 %v557
        %v588 = vunpack.c.h.bf16 %v557
        %v589 = vunpack.c.l.bf16 %v558
        %v590 = vunpack.c.h.bf16 %v558
        %v591 = vld [vmem:[%s1] sm:$0xf]
        %v593 = vperm.slane %v591, 0
        %v594 = vperm.slane %v591, 1
        %v595 = vperm.slane %v591, 2
        %v596 = vperm.slane %v591, 3
        %v601 = vmul.f32 %v559, %v593
        %v602 = vmul.f32 %v560, %v594
        %v603 = vmul.f32 %v561, %v595
        %v604 = vmul.f32 %v562, %v596
        %v605 = vmul.f32 %v563, %v593
        %v606 = vmul.f32 %v564, %v594
        %v607 = vmul.f32 %v565, %v595
        %v608 = vmul.f32 %v566, %v596
        %v609 = vmul.f32 %v567, %v593
        %v610 = vmul.f32 %v568, %v594
        %v611 = vmul.f32 %v569, %v595
        %v612 = vmul.f32 %v570, %v596
        %v613 = vmul.f32 %v571, %v593
        %v614 = vmul.f32 %v572, %v594
        %v615 = vmul.f32 %v573, %v595
        %v616 = vmul.f32 %v574, %v596
        %v617 = vmul.f32 %v575, %v593
        %v618 = vmul.f32 %v576, %v594
        %v619 = vmul.f32 %v577, %v595
        %v620 = vmul.f32 %v578, %v596
        %v621 = vmul.f32 %v579, %v593
        %v622 = vmul.f32 %v580, %v594
        %v623 = vmul.f32 %v581, %v595
        %v624 = vmul.f32 %v582, %v596
        %v625 = vmul.f32 %v583, %v593
        %v626 = vmul.f32 %v584, %v594
        %v627 = vmul.f32 %v585, %v595
        %v628 = vmul.f32 %v586, %v596
        %v629 = vmul.f32 %v587, %v593
        %v630 = vmul.f32 %v588, %v594
        %v631 = vmul.f32 %v589, %v595
        %v632 = vmul.f32 %v590, %v596
        %v633 = vld [vmem:[%s2] sm:$0xf]
        %v635 = vperm.slane %v633, 0
        %v636 = vperm.slane %v633, 1
        %v637 = vperm.slane %v633, 2
        %v638 = vperm.slane %v633, 3
        %v643 = vadd.f32 %v601, %v635
        %v644 = vadd.f32 %v602, %v636
        %v645 = vadd.f32 %v603, %v637
        %v646 = vadd.f32 %v604, %v638
        %v647 = vadd.f32 %v605, %v635
        %v648 = vadd.f32 %v606, %v636
        %v649 = vadd.f32 %v607, %v637
        %v650 = vadd.f32 %v608, %v638
        %v651 = vadd.f32 %v609, %v635
        %v652 = vadd.f32 %v610, %v636
        %v653 = vadd.f32 %v611, %v637
        %v654 = vadd.f32 %v612, %v638
        %v655 = vadd.f32 %v613, %v635
        %v656 = vadd.f32 %v614, %v636
        %v657 = vadd.f32 %v615, %v637
        %v658 = vadd.f32 %v616, %v638
        %v659 = vadd.f32 %v617, %v635
        %v660 = vadd.f32 %v618, %v636
        %v661 = vadd.f32 %v619, %v637
        %v662 = vadd.f32 %v620, %v638
        %v663 = vadd.f32 %v621, %v635
        %v664 = vadd.f32 %v622, %v636
        %v665 = vadd.f32 %v623, %v637
        %v666 = vadd.f32 %v624, %v638
        %v667 = vadd.f32 %v625, %v635
        %v668 = vadd.f32 %v626, %v636
        %v669 = vadd.f32 %v627, %v637
        %v670 = vadd.f32 %v628, %v638
        %v671 = vadd.f32 %v629, %v635
        %v672 = vadd.f32 %v630, %v636
        %v673 = vadd.f32 %v631, %v637
        %v674 = vadd.f32 %v632, %v638
        %v675 = vmax.f32 %v643, 0.0
        %v676 = vmax.f32 %v644, 0.0
        %v677 = vmax.f32 %v645, 0.0
        %v678 = vmax.f32 %v646, 0.0
        %v679 = vmax.f32 %v647, 0.0
        %v680 = vmax.f32 %v648, 0.0
        %v681 = vmax.f32 %v649, 0.0
        %v682 = vmax.f32 %v650, 0.0
        %v683 = vmax.f32 %v651, 0.0
        %v684 = vmax.f32 %v652, 0.0
        %v685 = vmax.f32 %v653, 0.0
        %v686 = vmax.f32 %v654, 0.0
        %v687 = vmax.f32 %v655, 0.0
        %v688 = vmax.f32 %v656, 0.0
        %v689 = vmax.f32 %v657, 0.0
        %v690 = vmax.f32 %v658, 0.0
        %v691 = vmax.f32 %v659, 0.0
        %v692 = vmax.f32 %v660, 0.0
        %v693 = vmax.f32 %v661, 0.0
        %v694 = vmax.f32 %v662, 0.0
        %v695 = vmax.f32 %v663, 0.0
        %v696 = vmax.f32 %v664, 0.0
        %v697 = vmax.f32 %v665, 0.0
        %v698 = vmax.f32 %v666, 0.0
        %v699 = vmax.f32 %v667, 0.0
        %v700 = vmax.f32 %v668, 0.0
        %v701 = vmax.f32 %v669, 0.0
        %v702 = vmax.f32 %v670, 0.0
        %v703 = vmax.f32 %v671, 0.0
        %v704 = vmax.f32 %v672, 0.0
        %v705 = vmax.f32 %v673, 0.0
        %v706 = vmax.f32 %v674, 0.0
        %v707 = vpack.c.bf16 %v679, %v675
        %v708 = vpack.c.bf16 %v680, %v676
        %v709 = vpack.c.bf16 %v681, %v677
        %v710 = vpack.c.bf16 %v682, %v678
        %v711 = vpack.c.bf16 %v687, %v683
        %v712 = vpack.c.bf16 %v688, %v684
        %v713 = vpack.c.bf16 %v689, %v685
        %v714 = vpack.c.bf16 %v690, %v686
        %v715 = vpack.c.bf16 %v695, %v691
        %v716 = vpack.c.bf16 %v696, %v692
        %v717 = vpack.c.bf16 %v697, %v693
        %v718 = vpack.c.bf16 %v698, %v694
        %v719 = vpack.c.bf16 %v703, %v699
        %v720 = vpack.c.bf16 %v704, %v700
        %v721 = vpack.c.bf16 %v705, %v701
        %v722 = vpack.c.bf16 %v706, %v702
        %v723 = vld [vmem:[%s3] sm:$0xff]
        %v724 = vld [vmem:[%s3 + $0x8] sm:$0xf]
        %v725 = vld [vmem:[%s3 + $0xc] sm:$0xff]
        %v726 = vld [vmem:[%s3 + $0x14] sm:$0xf]
        %v727 = vld [vmem:[%s3 + $0x18] sm:$0xff]
        %v728 = vld [vmem:[%s3 + $0x20] sm:$0xf]
        %v729 = vld [vmem:[%s3 + $0x24] sm:$0xff]
        %v730 = vld [vmem:[%s3 + $0x2c] sm:$0xf]
        %v731 = vld [vmem:[%s3 + $0x30] sm:$0xff]
        %v732 = vld [vmem:[%s3 + $0x38] sm:$0xf]
        %v733 = vld [vmem:[%s3 + $0x3c] sm:$0xff]
        %v734 = vld [vmem:[%s3 + $0x44] sm:$0xf]
        %v735 = vld [vmem:[%s3 + $0x48] sm:$0xff]
        %v736 = vld [vmem:[%s3 + $0x50] sm:$0xf]
        %v737 = vld [vmem:[%s3 + $0x54] sm:$0xff]
        %v738 = vld [vmem:[%s3 + $0x5c] sm:$0xf]
        %v739 = vld [vmem:[%s3 + $0x60] sm:$0xff]
        %v740 = vld [vmem:[%s3 + $0x68] sm:$0xf]
        %v741 = vld [vmem:[%s3 + $0x6c] sm:$0xff]
        %v742 = vld [vmem:[%s3 + $0x74] sm:$0xf]
        %v743 = vld [vmem:[%s3 + $0x78] sm:$0xff]
        %v744 = vld [vmem:[%s3 + $0x80] sm:$0xf]
        %v745 = vld [vmem:[%s3 + $0x84] sm:$0xff]
        %v746 = vld [vmem:[%s3 + $0x8c] sm:$0xf]
        %v747 = vld [vmem:[%s3 + $0x90] sm:$0xff]
        %v748 = vld [vmem:[%s3 + $0x98] sm:$0xf]
        %v749 = vld [vmem:[%s3 + $0x9c] sm:$0xff]
        %v750 = vld [vmem:[%s3 + $0xa4] sm:$0xf]
        %v751 = vld [vmem:[%s3 + $0xa8] sm:$0xff]
        %v752 = vld [vmem:[%s3 + $0xb0] sm:$0xf]
        %v753 = vld [vmem:[%s3 + $0xb4] sm:$0xff]
        %v754 = vld [vmem:[%s3 + $0xbc] sm:$0xf]
        %v755 = vld [vmem:[%s3 + $0xc0] sm:$0xff]
        %v756 = vld [vmem:[%s3 + $0xc8] sm:$0xf]
        %v757 = vld [vmem:[%s3 + $0xcc] sm:$0xff]
        %v758 = vld [vmem:[%s3 + $0xd4] sm:$0xf]
        %v759 = vld [vmem:[%s3 + $0xd8] sm:$0xff]
        %v760 = vld [vmem:[%s3 + $0xe0] sm:$0xf]
        %v761 = vld [vmem:[%s3 + $0xe4] sm:$0xff]
        %v762 = vld [vmem:[%s3 + $0xec] sm:$0xf]
        %v763 = vld [vmem:[%s3 + $0xf0] sm:$0xff]
        %v764 = vld [vmem:[%s3 + $0xf8] sm:$0xf]
        %v765 = vld [vmem:[%s3 + $0xfc] sm:$0xff]
        %v766 = vld [vmem:[%s3 + $0x104] sm:$0xf]
        %v767 = vld [vmem:[%s3 + $0x108] sm:$0xff]
        %v768 = vld [vmem:[%s3 + $0x110] sm:$0xf]
        %v769 = vld [vmem:[%s3 + $0x114] sm:$0xff]
        %v770 = vld [vmem:[%s3 + $0x11c] sm:$0xf]
        %v771 = vld [vmem:[%s3 + $0x120] sm:$0xff]
        %v772 = vld [vmem:[%s3 + $0x128] sm:$0xf]
        %v773 = vld [vmem:[%s3 + $0x12c] sm:$0xff]
        %v774 = vld [vmem:[%s3 + $0x134] sm:$0xf]
        %v775 = vld [vmem:[%s3 + $0x138] sm:$0xff]
        %v776 = vld [vmem:[%s3 + $0x140] sm:$0xf]
        %v777 = vld [vmem:[%s3 + $0x144] sm:$0xff]
        %v778 = vld [vmem:[%s3 + $0x14c] sm:$0xf]
        %v779 = vld [vmem:[%s3 + $0x150] sm:$0xff]
        %v780 = vld [vmem:[%s3 + $0x158] sm:$0xf]
        %v781 = vld [vmem:[%s3 + $0x15c] sm:$0xff]
        %v782 = vld [vmem:[%s3 + $0x164] sm:$0xf]
        %v783 = vld [vmem:[%s3 + $0x168] sm:$0xff]
        %v784 = vld [vmem:[%s3 + $0x170] sm:$0xf]
        %v785 = vld [vmem:[%s3 + $0x174] sm:$0xff]
        %v786 = vld [vmem:[%s3 + $0x17c] sm:$0xf]
        %v787 = vld [vmem:[%s3 + $0x180] sm:$0xff]
        %v788 = vld [vmem:[%s3 + $0x188] sm:$0xf]
        %v789 = vld [vmem:[%s3 + $0x18c] sm:$0xff]
        %v790 = vld [vmem:[%s3 + $0x194] sm:$0xf]
        %v791 = vld [vmem:[%s3 + $0x198] sm:$0xff]
        %v792 = vld [vmem:[%s3 + $0x1a0] sm:$0xf]
        %v793 = vld [vmem:[%s3 + $0x1a4] sm:$0xff]
        %v794 = vld [vmem:[%s3 + $0x1ac] sm:$0xf]
        %v795 = vld [vmem:[%s3 + $0x1b0] sm:$0xff]
        %v796 = vld [vmem:[%s3 + $0x1b8] sm:$0xf]
        %v797 = vld [vmem:[%s3 + $0x1bc] sm:$0xff]
        %v798 = vld [vmem:[%s3 + $0x1c4] sm:$0xf]
        %v799 = vld [vmem:[%s3 + $0x1c8] sm:$0xff]
        %v800 = vld [vmem:[%s3 + $0x1d0] sm:$0xf]
        %v801 = vld [vmem:[%s3 + $0x1d4] sm:$0xff]
        %v802 = vld [vmem:[%s3 + $0x1dc] sm:$0xf]
        %v803 = vld [vmem:[%s3 + $0x1e0] sm:$0xff]
        %v804 = vld [vmem:[%s3 + $0x1e8] sm:$0xf]
        %v805 = vld [vmem:[%s3 + $0x1ec] sm:$0xff]
        %v806 = vld [vmem:[%s3 + $0x1f4] sm:$0xf]
        %v807 = vld [vmem:[%s3 + $0x1f8] sm:$0xff]
        %v808 = vld [vmem:[%s3 + $0x200] sm:$0xf]
        %v809 = vld [vmem:[%s3 + $0x204] sm:$0xff]
        %v810 = vld [vmem:[%s3 + $0x20c] sm:$0xf]
        %v811 = vld [vmem:[%s3 + $0x210] sm:$0xff]
        %v812 = vld [vmem:[%s3 + $0x218] sm:$0xf]
        %v813 = vld [vmem:[%s3 + $0x21c] sm:$0xff]
        %v814 = vld [vmem:[%s3 + $0x224] sm:$0xf]
        %v815 = vld [vmem:[%s3 + $0x228] sm:$0xff]
        %v816 = vld [vmem:[%s3 + $0x230] sm:$0xf]
        %v817 = vld [vmem:[%s3 + $0x234] sm:$0xff]
        %v818 = vld [vmem:[%s3 + $0x23c] sm:$0xf]
        %v819 = vld [vmem:[%s3 + $0x240] sm:$0xff]
        %v820 = vld [vmem:[%s3 + $0x248] sm:$0xf]
        %v821 = vld [vmem:[%s3 + $0x24c] sm:$0xff]
        %v822 = vld [vmem:[%s3 + $0x254] sm:$0xf]
        %v823 = vld [vmem:[%s3 + $0x258] sm:$0xff]
        %v824 = vld [vmem:[%s3 + $0x260] sm:$0xf]
        %v825 = vld [vmem:[%s3 + $0x264] sm:$0xff]
        %v826 = vld [vmem:[%s3 + $0x26c] sm:$0xf]
        %v827 = vld [vmem:[%s3 + $0x270] sm:$0xff]
        %v828 = vld [vmem:[%s3 + $0x278] sm:$0xf]
        %v829 = vld [vmem:[%s3 + $0x27c] sm:$0xff]
        %v830 = vld [vmem:[%s3 + $0x284] sm:$0xf]
        %v831 = vld [vmem:[%s3 + $0x288] sm:$0xff]
        %v832 = vld [vmem:[%s3 + $0x290] sm:$0xf]
        %v833 = vld [vmem:[%s3 + $0x294] sm:$0xff]
        %v834 = vld [vmem:[%s3 + $0x29c] sm:$0xf]
        %v835 = vld [vmem:[%s3 + $0x2a0] sm:$0xff]
        %v836 = vld [vmem:[%s3 + $0x2a8] sm:$0xf]
        %v837 = vld [vmem:[%s3 + $0x2ac] sm:$0xff]
        %v838 = vld [vmem:[%s3 + $0x2b4] sm:$0xf]
        %v839 = vld [vmem:[%s3 + $0x2b8] sm:$0xff]
        %v840 = vld [vmem:[%s3 + $0x2c0] sm:$0xf]
        %v841 = vld [vmem:[%s3 + $0x2c4] sm:$0xff]
        %v842 = vld [vmem:[%s3 + $0x2cc] sm:$0xf]
        %v843 = vld [vmem:[%s3 + $0x2d0] sm:$0xff]
        %v844 = vld [vmem:[%s3 + $0x2d8] sm:$0xf]
        %v845 = vld [vmem:[%s3 + $0x2dc] sm:$0xff]
        %v846 = vld [vmem:[%s3 + $0x2e4] sm:$0xf]
        %v847 = vld [vmem:[%s3 + $0x2e8] sm:$0xff]
        %v848 = vld [vmem:[%s3 + $0x2f0] sm:$0xf]
        %v849 = vld [vmem:[%s3 + $0x2f4] sm:$0xff]
        %v850 = vld [vmem:[%s3 + $0x2fc] sm:$0xf]
        %v851 = vld [vmem:[%s4] sm:$0x7]
        %v853 = vperm.slane %v851, 0
        %v854 = vperm.slane %v851, 1
        %v855 = vperm.slane %v851, 2
        %v987 = vunpack.c.l.b16 %v723
        %v988 = vunpack.c.h.b16 %v723
        %v989 = vunpack.c.l.b16 %v724
        %v990 = vunpack.c.l.b16 %v725
        %v991 = vunpack.c.h.b16 %v725
        %v992 = vunpack.c.l.b16 %v726
        %v993 = vunpack.c.l.b16 %v727
        %v994 = vunpack.c.h.b16 %v727
        %v995 = vunpack.c.l.b16 %v728
        %v996 = vunpack.c.l.b16 %v729
        %v997 = vunpack.c.h.b16 %v729
        %v998 = vunpack.c.l.b16 %v730
        %v999 = vunpack.c.l.b16 %v731
        %v1000 = vunpack.c.h.b16 %v731
        %v1001 = vunpack.c.l.b16 %v732
        %v1002 = vunpack.c.l.b16 %v733
        %v1003 = vunpack.c.h.b16 %v733
        %v1004 = vunpack.c.l.b16 %v734
        %v1005 = vunpack.c.l.b16 %v735
        %v1006 = vunpack.c.h.b16 %v735
        %v1007 = vunpack.c.l.b16 %v736
        %v1008 = vunpack.c.l.b16 %v737
        %v1009 = vunpack.c.h.b16 %v737
        %v1010 = vunpack.c.l.b16 %v738
        %v1011 = vunpack.c.l.b16 %v739
        %v1012 = vunpack.c.h.b16 %v739
        %v1013 = vunpack.c.l.b16 %v740
        %v1014 = vunpack.c.l.b16 %v741
        %v1015 = vunpack.c.h.b16 %v741
        %v1016 = vunpack.c.l.b16 %v742
        %v1017 = vunpack.c.l.b16 %v743
        %v1018 = vunpack.c.h.b16 %v743
        %v1019 = vunpack.c.l.b16 %v744
        %v1020 = vunpack.c.l.b16 %v745
        %v1021 = vunpack.c.h.b16 %v745
        %v1022 = vunpack.c.l.b16 %v746
        %v1023 = vunpack.c.l.b16 %v747
        %v1024 = vunpack.c.h.b16 %v747
        %v1025 = vunpack.c.l.b16 %v748
        %v1026 = vunpack.c.l.b16 %v749
        %v1027 = vunpack.c.h.b16 %v749
        %v1028 = vunpack.c.l.b16 %v750
        %v1029 = vunpack.c.l.b16 %v751
        %v1030 = vunpack.c.h.b16 %v751
        %v1031 = vunpack.c.l.b16 %v752
        %v1032 = vunpack.c.l.b16 %v753
        %v1033 = vunpack.c.h.b16 %v753
        %v1034 = vunpack.c.l.b16 %v754
        %v1035 = vunpack.c.l.b16 %v755
        %v1036 = vunpack.c.h.b16 %v755
        %v1037 = vunpack.c.l.b16 %v756
        %v1038 = vunpack.c.l.b16 %v757
        %v1039 = vunpack.c.h.b16 %v757
        %v1040 = vunpack.c.l.b16 %v758
        %v1041 = vunpack.c.l.b16 %v759
        %v1042 = vunpack.c.h.b16 %v759
        %v1043 = vunpack.c.l.b16 %v760
        %v1044 = vunpack.c.l.b16 %v761
        %v1045 = vunpack.c.h.b16 %v761
        %v1046 = vunpack.c.l.b16 %v762
        %v1047 = vunpack.c.l.b16 %v763
        %v1048 = vunpack.c.h.b16 %v763
        %v1049 = vunpack.c.l.b16 %v764
        %v1050 = vunpack.c.l.b16 %v765
        %v1051 = vunpack.c.h.b16 %v765
        %v1052 = vunpack.c.l.b16 %v766
        %v1053 = vunpack.c.l.b16 %v767
        %v1054 = vunpack.c.h.b16 %v767
        %v1055 = vunpack.c.l.b16 %v768
        %v1056 = vunpack.c.l.b16 %v769
        %v1057 = vunpack.c.h.b16 %v769
        %v1058 = vunpack.c.l.b16 %v770
        %v1059 = vunpack.c.l.b16 %v771
        %v1060 = vunpack.c.h.b16 %v771
        %v1061 = vunpack.c.l.b16 %v772
        %v1062 = vunpack.c.l.b16 %v773
        %v1063 = vunpack.c.h.b16 %v773
        %v1064 = vunpack.c.l.b16 %v774
        %v1065 = vunpack.c.l.b16 %v775
        %v1066 = vunpack.c.h.b16 %v775
        %v1067 = vunpack.c.l.b16 %v776
        %v1068 = vunpack.c.l.b16 %v777
        %v1069 = vunpack.c.h.b16 %v777
        %v1070 = vunpack.c.l.b16 %v778
        %v1071 = vunpack.c.l.b16 %v779
        %v1072 = vunpack.c.h.b16 %v779
        %v1073 = vunpack.c.l.b16 %v780
        %v1074 = vunpack.c.l.b16 %v781
        %v1075 = vunpack.c.h.b16 %v781
        %v1076 = vunpack.c.l.b16 %v782
        %v1077 = vunpack.c.l.b16 %v783
        %v1078 = vunpack.c.h.b16 %v783
        %v1079 = vunpack.c.l.b16 %v784
        %v1080 = vunpack.c.l.b16 %v785
        %v1081 = vunpack.c.h.b16 %v785
        %v1082 = vunpack.c.l.b16 %v786
        %v1083 = vunpack.c.l.b16 %v787
        %v1084 = vunpack.c.h.b16 %v787
        %v1085 = vunpack.c.l.b16 %v788
        %v1086 = vunpack.c.l.b16 %v789
        %v1087 = vunpack.c.h.b16 %v789
        %v1088 = vunpack.c.l.b16 %v790
        %v1089 = vunpack.c.l.b16 %v791
        %v1090 = vunpack.c.h.b16 %v791
        %v1091 = vunpack.c.l.b16 %v792
        %v1092 = vunpack.c.l.b16 %v793
        %v1093 = vunpack.c.h.b16 %v793
        %v1094 = vunpack.c.l.b16 %v794
        %v1095 = vunpack.c.l.b16 %v795
        %v1096 = vunpack.c.h.b16 %v795
        %v1097 = vunpack.c.l.b16 %v796
        %v1098 = vunpack.c.l.b16 %v797
        %v1099 = vunpack.c.h.b16 %v797
        %v1100 = vunpack.c.l.b16 %v798
        %v1101 = vunpack.c.l.b16 %v799
        %v1102 = vunpack.c.h.b16 %v799
        %v1103 = vunpack.c.l.b16 %v800
        %v1104 = vunpack.c.l.b16 %v801
        %v1105 = vunpack.c.h.b16 %v801
        %v1106 = vunpack.c.l.b16 %v802
        %v1107 = vunpack.c.l.b16 %v803
        %v1108 = vunpack.c.h.b16 %v803
        %v1109 = vunpack.c.l.b16 %v804
        %v1110 = vunpack.c.l.b16 %v805
        %v1111 = vunpack.c.h.b16 %v805
        %v1112 = vunpack.c.l.b16 %v806
        %v1113 = vunpack.c.l.b16 %v807
        %v1114 = vunpack.c.h.b16 %v807
        %v1115 = vunpack.c.l.b16 %v808
        %v1116 = vunpack.c.l.b16 %v809
        %v1117 = vunpack.c.h.b16 %v809
        %v1118 = vunpack.c.l.b16 %v810
        %v1119 = vunpack.c.l.b16 %v811
        %v1120 = vunpack.c.h.b16 %v811
        %v1121 = vunpack.c.l.b16 %v812
        %v1122 = vunpack.c.l.b16 %v813
        %v1123 = vunpack.c.h.b16 %v813
        %v1124 = vunpack.c.l.b16 %v814
        %v1125 = vunpack.c.l.b16 %v815
        %v1126 = vunpack.c.h.b16 %v815
        %v1127 = vunpack.c.l.b16 %v816
        %v1128 = vunpack.c.l.b16 %v817
        %v1129 = vunpack.c.h.b16 %v817
        %v1130 = vunpack.c.l.b16 %v818
        %v1131 = vunpack.c.l.b16 %v819
        %v1132 = vunpack.c.h.b16 %v819
        %v1133 = vunpack.c.l.b16 %v820
        %v1134 = vunpack.c.l.b16 %v821
        %v1135 = vunpack.c.h.b16 %v821
        %v1136 = vunpack.c.l.b16 %v822
        %v1137 = vunpack.c.l.b16 %v823
        %v1138 = vunpack.c.h.b16 %v823
        %v1139 = vunpack.c.l.b16 %v824
        %v1140 = vunpack.c.l.b16 %v825
        %v1141 = vunpack.c.h.b16 %v825
        %v1142 = vunpack.c.l.b16 %v826
        %v1143 = vunpack.c.l.b16 %v827
        %v1144 = vunpack.c.h.b16 %v827
        %v1145 = vunpack.c.l.b16 %v828
        %v1146 = vunpack.c.l.b16 %v829
        %v1147 = vunpack.c.h.b16 %v829
        %v1148 = vunpack.c.l.b16 %v830
        %v1149 = vunpack.c.l.b16 %v831
        %v1150 = vunpack.c.h.b16 %v831
        %v1151 = vunpack.c.l.b16 %v832
        %v1152 = vunpack.c.l.b16 %v833
        %v1153 = vunpack.c.h.b16 %v833
        %v1154 = vunpack.c.l.b16 %v834
        %v1155 = vunpack.c.l.b16 %v835
        %v1156 = vunpack.c.h.b16 %v835
        %v1157 = vunpack.c.l.b16 %v836
        %v1158 = vunpack.c.l.b16 %v837
        %v1159 = vunpack.c.h.b16 %v837
        %v1160 = vunpack.c.l.b16 %v838
        %v1161 = vunpack.c.l.b16 %v839
        %v1162 = vunpack.c.h.b16 %v839
        %v1163 = vunpack.c.l.b16 %v840
        %v1164 = vunpack.c.l.b16 %v841
        %v1165 = vunpack.c.h.b16 %v841
        %v1166 = vunpack.c.l.b16 %v842
        %v1167 = vunpack.c.l.b16 %v843
        %v1168 = vunpack.c.h.b16 %v843
        %v1169 = vunpack.c.l.b16 %v844
        %v1170 = vunpack.c.l.b16 %v845
        %v1171 = vunpack.c.h.b16 %v845
        %v1172 = vunpack.c.l.b16 %v846
        %v1173 = vunpack.c.l.b16 %v847
        %v1174 = vunpack.c.h.b16 %v847
        %v1175 = vunpack.c.l.b16 %v848
        %v1176 = vunpack.c.l.b16 %v849
        %v1177 = vunpack.c.h.b16 %v849
        %v1178 = vunpack.c.l.b16 %v850
        %v1179 = vpack.c.b16 %v990, %v987
        %v1180 = vpack.c.b16 %v991, %v988
        %v1181 = vpack.c.b16 %v992, %v989
        %v1182 = vpack.c.b16 %v996, %v993
        %v1183 = vpack.c.b16 %v997, %v994
        %v1184 = vpack.c.b16 %v998, %v995
        %v1185 = vpack.c.b16 %v1002, %v999
        %v1186 = vpack.c.b16 %v1003, %v1000
        %v1187 = vpack.c.b16 %v1004, %v1001
        %v1188 = vpack.c.b16 %v1008, %v1005
        %v1189 = vpack.c.b16 %v1009, %v1006
        %v1190 = vpack.c.b16 %v1010, %v1007
        %v1191 = vpack.c.b16 %v1014, %v1011
        %v1192 = vpack.c.b16 %v1015, %v1012
        %v1193 = vpack.c.b16 %v1016, %v1013
        %v1194 = vpack.c.b16 %v1020, %v1017
        %v1195 = vpack.c.b16 %v1021, %v1018
        %v1196 = vpack.c.b16 %v1022, %v1019
        %v1197 = vpack.c.b16 %v1026, %v1023
        %v1198 = vpack.c.b16 %v1027, %v1024
        %v1199 = vpack.c.b16 %v1028, %v1025
        %v1200 = vpack.c.b16 %v1032, %v1029
        %v1201 = vpack.c.b16 %v1033, %v1030
        %v1202 = vpack.c.b16 %v1034, %v1031
        %v1203 = vpack.c.b16 %v1038, %v1035
        %v1204 = vpack.c.b16 %v1039, %v1036
        %v1205 = vpack.c.b16 %v1040, %v1037
        %v1206 = vpack.c.b16 %v1044, %v1041
        %v1207 = vpack.c.b16 %v1045, %v1042
        %v1208 = vpack.c.b16 %v1046, %v1043
        %v1209 = vpack.c.b16 %v1050, %v1047
        %v1210 = vpack.c.b16 %v1051, %v1048
        %v1211 = vpack.c.b16 %v1052, %v1049
        %v1212 = vpack.c.b16 %v1056, %v1053
        %v1213 = vpack.c.b16 %v1057, %v1054
        %v1214 = vpack.c.b16 %v1058, %v1055
        %v1215 = vpack.c.b16 %v1062, %v1059
        %v1216 = vpack.c.b16 %v1063, %v1060
        %v1217 = vpack.c.b16 %v1064, %v1061
        %v1218 = vpack.c.b16 %v1068, %v1065
        %v1219 = vpack.c.b16 %v1069, %v1066
        %v1220 = vpack.c.b16 %v1070, %v1067
        %v1221 = vpack.c.b16 %v1074, %v1071
        %v1222 = vpack.c.b16 %v1075, %v1072
        %v1223 = vpack.c.b16 %v1076, %v1073
        %v1224 = vpack.c.b16 %v1080, %v1077
        %v1225 = vpack.c.b16 %v1081, %v1078
        %v1226 = vpack.c.b16 %v1082, %v1079
        %v1227 = vpack.c.b16 %v1086, %v1083
        %v1228 = vpack.c.b16 %v1087, %v1084
        %v1229 = vpack.c.b16 %v1088, %v1085
        %v1230 = vpack.c.b16 %v1092, %v1089
        %v1231 = vpack.c.b16 %v1093, %v1090
        %v1232 = vpack.c.b16 %v1094, %v1091
        %v1233 = vpack.c.b16 %v1098, %v1095
        %v1234 = vpack.c.b16 %v1099, %v1096
        %v1235 = vpack.c.b16 %v1100, %v1097
        %v1236 = vpack.c.b16 %v1104, %v1101
        %v1237 = vpack.c.b16 %v1105, %v1102
        %v1238 = vpack.c.b16 %v1106, %v1103
        %v1239 = vpack.c.b16 %v1110, %v1107
        %v1240 = vpack.c.b16 %v1111, %v1108
        %v1241 = vpack.c.b16 %v1112, %v1109
        %v1242 = vpack.c.b16 %v1116, %v1113
        %v1243 = vpack.c.b16 %v1117, %v1114
        %v1244 = vpack.c.b16 %v1118, %v1115
        %v1245 = vpack.c.b16 %v1122, %v1119
        %v1246 = vpack.c.b16 %v1123, %v1120
        %v1247 = vpack.c.b16 %v1124, %v1121
        %v1248 = vpack.c.b16 %v1128, %v1125
        %v1249 = vpack.c.b16 %v1129, %v1126
        %v1250 = vpack.c.b16 %v1130, %v1127
        %v1251 = vpack.c.b16 %v1134, %v1131
        %v1252 = vpack.c.b16 %v1135, %v1132
        %v1253 = vpack.c.b16 %v1136, %v1133
        %v1254 = vpack.c.b16 %v1140, %v1137
        %v1255 = vpack.c.b16 %v1141, %v1138
        %v1256 = vpack.c.b16 %v1142, %v1139
        %v1257 = vpack.c.b16 %v1146, %v1143
        %v1258 = vpack.c.b16 %v1147, %v1144
        %v1259 = vpack.c.b16 %v1148, %v1145
        %v1260 = vpack.c.b16 %v1152, %v1149
        %v1261 = vpack.c.b16 %v1153, %v1150
        %v1262 = vpack.c.b16 %v1154, %v1151
        %v1263 = vpack.c.b16 %v1158, %v1155
        %v1264 = vpack.c.b16 %v1159, %v1156
        %v1265 = vpack.c.b16 %v1160, %v1157
        %v1266 = vpack.c.b16 %v1164, %v1161
        %v1267 = vpack.c.b16 %v1165, %v1162
        %v1268 = vpack.c.b16 %v1166, %v1163
        %v1269 = vpack.c.b16 %v1170, %v1167
        %v1270 = vpack.c.b16 %v1171, %v1168
        %v1271 = vpack.c.b16 %v1172, %v1169
        %v1272 = vpack.c.b16 %v1176, %v1173
        %v1273 = vpack.c.b16 %v1177, %v1174
        %v1274 = vpack.c.b16 %v1178, %v1175
        %1371 = vmatpush.bf16.msra.mxu0 %v1200
        %1372 = vmatpush.bf16.msra.mxu0 %v1197
        %1373 = vmatpush.bf16.msra.mxu0 %v1194
        %1374 = vmatpush.bf16.msra.mxu0 %v1191
        %1375 = vmatpush.bf16.msra.mxu0 %v1188
        %1376 = vmatpush.bf16.msra.mxu0 %v1185
        %1377 = vmatpush.bf16.msra.mxu0 %v1182
        %1378 = vmatpush.bf16.msra.mxu0 %v1179
        %1379 = vmatmul.bf16.gmra.mxu0 %v707
        %v1380 = vpop.f32.mrf.mxu0
        %v1381 = vadd.f32 %v853, %v1380
        %v1382 = vpop.f32.mrf.mxu0
        %v1383 = vadd.f32 %v853, %v1382
        %1384 = vmatmul.bf16.gmra.mxu0 %v711
        %v1385 = vpop.f32.mrf.mxu0
        %v1386 = vadd.f32 %v853, %v1385
        %v1387 = vpop.f32.mrf.mxu0
        %v1388 = vadd.f32 %v853, %v1387
        %1389 = vmatmul.bf16.gmra.mxu0 %v715
        %v1390 = vpop.f32.mrf.mxu0
        %v1391 = vadd.f32 %v853, %v1390
        %v1392 = vpop.f32.mrf.mxu0
        %v1393 = vadd.f32 %v853, %v1392
        %1394 = vmatmul.bf16.gmra.mxu0 %v719
        %v1395 = vpop.f32.mrf.mxu0
        %v1396 = vadd.f32 %v853, %v1395
        %v1397 = vpop.f32.mrf.mxu0
        %v1398 = vadd.f32 %v853, %v1397
        %1399 = vdwg.mxu0
        %1400 = vmatpush.bf16.msra.mxu0 %v1224
        %1401 = vmatpush.bf16.msra.mxu0 %v1221
        %1402 = vmatpush.bf16.msra.mxu0 %v1218
        %1403 = vmatpush.bf16.msra.mxu0 %v1215
        %1404 = vmatpush.bf16.msra.mxu0 %v1212
        %1405 = vmatpush.bf16.msra.mxu0 %v1209
        %1406 = vmatpush.bf16.msra.mxu0 %v1206
        %1407 = vmatpush.bf16.msra.mxu0 %v1203
        %1408 = vmatmul.bf16.gmra.mxu0 %v708
        %v1409 = vpop.f32.mrf.mxu0
        %v1410 = vadd.f32 %v1381, %v1409
        %v1411 = vpop.f32.mrf.mxu0
        %v1412 = vadd.f32 %v1383, %v1411
        %1413 = vmatmul.bf16.gmra.mxu0 %v712
        %v1414 = vpop.f32.mrf.mxu0
        %v1415 = vadd.f32 %v1386, %v1414
        %v1416 = vpop.f32.mrf.mxu0
        %v1417 = vadd.f32 %v1388, %v1416
        %1418 = vmatmul.bf16.gmra.mxu0 %v716
        %v1419 = vpop.f32.mrf.mxu0
        %v1420 = vadd.f32 %v1391, %v1419
        %v1421 = vpop.f32.mrf.mxu0
        %v1422 = vadd.f32 %v1393, %v1421
        %1423 = vmatmul.bf16.gmra.mxu0 %v720
        %v1424 = vpop.f32.mrf.mxu0
        %v1425 = vadd.f32 %v1396, %v1424
        %v1426 = vpop.f32.mrf.mxu0
        %v1427 = vadd.f32 %v1398, %v1426
        %1428 = vdwg.mxu0
        %1429 = vmatpush.bf16.msra.mxu0 %v1248
        %1430 = vmatpush.bf16.msra.mxu0 %v1245
        %1431 = vmatpush.bf16.msra.mxu0 %v1242
        %1432 = vmatpush.bf16.msra.mxu0 %v1239
        %1433 = vmatpush.bf16.msra.mxu0 %v1236
        %1434 = vmatpush.bf16.msra.mxu0 %v1233
        %1435 = vmatpush.bf16.msra.mxu0 %v1230
        %1436 = vmatpush.bf16.msra.mxu0 %v1227
        %1437 = vmatmul.bf16.gmra.mxu0 %v709
        %v1438 = vpop.f32.mrf.mxu0
        %v1439 = vadd.f32 %v1410, %v1438
        %v1440 = vpop.f32.mrf.mxu0
        %v1441 = vadd.f32 %v1412, %v1440
        %1442 = vmatmul.bf16.gmra.mxu0 %v713
        %v1443 = vpop.f32.mrf.mxu0
        %v1444 = vadd.f32 %v1415, %v1443
        %v1445 = vpop.f32.mrf.mxu0
        %v1446 = vadd.f32 %v1417, %v1445
        %1447 = vmatmul.bf16.gmra.mxu0 %v717
        %v1448 = vpop.f32.mrf.mxu0
        %v1449 = vadd.f32 %v1420, %v1448
        %v1450 = vpop.f32.mrf.mxu0
        %v1451 = vadd.f32 %v1422, %v1450
        %1452 = vmatmul.bf16.gmra.mxu0 %v721
        %v1453 = vpop.f32.mrf.mxu0
        %v1454 = vadd.f32 %v1425, %v1453
        %v1455 = vpop.f32.mrf.mxu0
        %v1456 = vadd.f32 %v1427, %v1455
        %1457 = vdwg.mxu0
        %1458 = vmatpush.bf16.msra.mxu0 %v1272
        %1459 = vmatpush.bf16.msra.mxu0 %v1269
        %1460 = vmatpush.bf16.msra.mxu0 %v1266
        %1461 = vmatpush.bf16.msra.mxu0 %v1263
        %1462 = vmatpush.bf16.msra.mxu0 %v1260
        %1463 = vmatpush.bf16.msra.mxu0 %v1257
        %1464 = vmatpush.bf16.msra.mxu0 %v1254
        %1465 = vmatpush.bf16.msra.mxu0 %v1251
        %1466 = vmatmul.bf16.gmra.mxu0 %v710
        %v1467 = vpop.f32.mrf.mxu0
        %v1468 = vadd.f32 %v1439, %v1467
        %v1469 = vpop.f32.mrf.mxu0
        %v1470 = vadd.f32 %v1441, %v1469
        %1471 = vmatmul.bf16.gmra.mxu0 %v714
        %v1472 = vpop.f32.mrf.mxu0
        %v1473 = vadd.f32 %v1444, %v1472
        %v1474 = vpop.f32.mrf.mxu0
        %v1475 = vadd.f32 %v1446, %v1474
        %1476 = vmatmul.bf16.gmra.mxu0 %v718
        %v1477 = vpop.f32.mrf.mxu0
        %v1478 = vadd.f32 %v1449, %v1477
        %v1479 = vpop.f32.mrf.mxu0
        %v1480 = vadd.f32 %v1451, %v1479
        %1481 = vmatmul.bf16.gmra.mxu0 %v722
        %v1482 = vpop.f32.mrf.mxu0
        %v1483 = vadd.f32 %v1454, %v1482
        %v1484 = vpop.f32.mrf.mxu0
        %v1485 = vadd.f32 %v1456, %v1484
        %1486 = vdwg.mxu0
        %1487 = vmatpush.bf16.msra.mxu0 %v1201
        %1488 = vmatpush.bf16.msra.mxu0 %v1198
        %1489 = vmatpush.bf16.msra.mxu0 %v1195
        %1490 = vmatpush.bf16.msra.mxu0 %v1192
        %1491 = vmatpush.bf16.msra.mxu0 %v1189
        %1492 = vmatpush.bf16.msra.mxu0 %v1186
        %1493 = vmatpush.bf16.msra.mxu0 %v1183
        %1494 = vmatpush.bf16.msra.mxu0 %v1180
        %1495 = vmatmul.bf16.gmra.mxu0 %v707
        %v1496 = vpop.f32.mrf.mxu0
        %v1497 = vadd.f32 %v854, %v1496
        %v1498 = vpop.f32.mrf.mxu0
        %v1499 = vadd.f32 %v854, %v1498
        %1500 = vmatmul.bf16.gmra.mxu0 %v711
        %v1501 = vpop.f32.mrf.mxu0
        %v1502 = vadd.f32 %v854, %v1501
        %v1503 = vpop.f32.mrf.mxu0
        %v1504 = vadd.f32 %v854, %v1503
        %1505 = vmatmul.bf16.gmra.mxu0 %v715
        %v1506 = vpop.f32.mrf.mxu0
        %v1507 = vadd.f32 %v854, %v1506
        %v1508 = vpop.f32.mrf.mxu0
        %v1509 = vadd.f32 %v854, %v1508
        %1510 = vmatmul.bf16.gmra.mxu0 %v719
        %v1511 = vpop.f32.mrf.mxu0
        %v1512 = vadd.f32 %v854, %v1511
        %v1513 = vpop.f32.mrf.mxu0
        %v1514 = vadd.f32 %v854, %v1513
        %1515 = vdwg.mxu0
        %1516 = vmatpush.bf16.msra.mxu0 %v1225
        %1517 = vmatpush.bf16.msra.mxu0 %v1222
        %1518 = vmatpush.bf16.msra.mxu0 %v1219
        %1519 = vmatpush.bf16.msra.mxu0 %v1216
        %1520 = vmatpush.bf16.msra.mxu0 %v1213
        %1521 = vmatpush.bf16.msra.mxu0 %v1210
        %1522 = vmatpush.bf16.msra.mxu0 %v1207
        %1523 = vmatpush.bf16.msra.mxu0 %v1204
        %1524 = vmatmul.bf16.gmra.mxu0 %v708
        %v1525 = vpop.f32.mrf.mxu0
        %v1526 = vadd.f32 %v1497, %v1525
        %v1527 = vpop.f32.mrf.mxu0
        %v1528 = vadd.f32 %v1499, %v1527
        %1529 = vmatmul.bf16.gmra.mxu0 %v712
        %v1530 = vpop.f32.mrf.mxu0
        %v1531 = vadd.f32 %v1502, %v1530
        %v1532 = vpop.f32.mrf.mxu0
        %v1533 = vadd.f32 %v1504, %v1532
        %1534 = vmatmul.bf16.gmra.mxu0 %v716
        %v1535 = vpop.f32.mrf.mxu0
        %v1536 = vadd.f32 %v1507, %v1535
        %v1537 = vpop.f32.mrf.mxu0
        %v1538 = vadd.f32 %v1509, %v1537
        %1539 = vmatmul.bf16.gmra.mxu0 %v720
        %v1540 = vpop.f32.mrf.mxu0
        %v1541 = vadd.f32 %v1512, %v1540
        %v1542 = vpop.f32.mrf.mxu0
        %v1543 = vadd.f32 %v1514, %v1542
        %1544 = vdwg.mxu0
        %1545 = vmatpush.bf16.msra.mxu0 %v1249
        %1546 = vmatpush.bf16.msra.mxu0 %v1246
        %1547 = vmatpush.bf16.msra.mxu0 %v1243
        %1548 = vmatpush.bf16.msra.mxu0 %v1240
        %1549 = vmatpush.bf16.msra.mxu0 %v1237
        %1550 = vmatpush.bf16.msra.mxu0 %v1234
        %1551 = vmatpush.bf16.msra.mxu0 %v1231
        %1552 = vmatpush.bf16.msra.mxu0 %v1228
        %1553 = vmatmul.bf16.gmra.mxu0 %v709
        %v1554 = vpop.f32.mrf.mxu0
        %v1555 = vadd.f32 %v1526, %v1554
        %v1556 = vpop.f32.mrf.mxu0
        %v1557 = vadd.f32 %v1528, %v1556
        %1558 = vmatmul.bf16.gmra.mxu0 %v713
        %v1559 = vpop.f32.mrf.mxu0
        %v1560 = vadd.f32 %v1531, %v1559
        %v1561 = vpop.f32.mrf.mxu0
        %v1562 = vadd.f32 %v1533, %v1561
        %1563 = vmatmul.bf16.gmra.mxu0 %v717
        %v1564 = vpop.f32.mrf.mxu0
        %v1565 = vadd.f32 %v1536, %v1564
        %v1566 = vpop.f32.mrf.mxu0
        %v1567 = vadd.f32 %v1538, %v1566
        %1568 = vmatmul.bf16.gmra.mxu0 %v721
        %v1569 = vpop.f32.mrf.mxu0
        %v1570 = vadd.f32 %v1541, %v1569
        %v1571 = vpop.f32.mrf.mxu0
        %v1572 = vadd.f32 %v1543, %v1571
        %1573 = vdwg.mxu0
        %1574 = vmatpush.bf16.msra.mxu0 %v1273
        %1575 = vmatpush.bf16.msra.mxu0 %v1270
        %1576 = vmatpush.bf16.msra.mxu0 %v1267
        %1577 = vmatpush.bf16.msra.mxu0 %v1264
        %1578 = vmatpush.bf16.msra.mxu0 %v1261
        %1579 = vmatpush.bf16.msra.mxu0 %v1258
        %1580 = vmatpush.bf16.msra.mxu0 %v1255
        %1581 = vmatpush.bf16.msra.mxu0 %v1252
        %1582 = vmatmul.bf16.gmra.mxu0 %v710
        %v1583 = vpop.f32.mrf.mxu0
        %v1584 = vadd.f32 %v1555, %v1583
        %v1585 = vpop.f32.mrf.mxu0
        %v1586 = vadd.f32 %v1557, %v1585
        %1587 = vmatmul.bf16.gmra.mxu0 %v714
        %v1588 = vpop.f32.mrf.mxu0
        %v1589 = vadd.f32 %v1560, %v1588
        %v1590 = vpop.f32.mrf.mxu0
        %v1591 = vadd.f32 %v1562, %v1590
        %1592 = vmatmul.bf16.gmra.mxu0 %v718
        %v1593 = vpop.f32.mrf.mxu0
        %v1594 = vadd.f32 %v1565, %v1593
        %v1595 = vpop.f32.mrf.mxu0
        %v1596 = vadd.f32 %v1567, %v1595
        %1597 = vmatmul.bf16.gmra.mxu0 %v722
        %v1598 = vpop.f32.mrf.mxu0
        %v1599 = vadd.f32 %v1570, %v1598
        %v1600 = vpop.f32.mrf.mxu0
        %v1601 = vadd.f32 %v1572, %v1600
        %1602 = vdwg.mxu0
        %1603 = vmatpush.bf16.msra.mxu0 %v1202
        %1604 = vmatpush.bf16.msra.mxu0 %v1199
        %1605 = vmatpush.bf16.msra.mxu0 %v1196
        %1606 = vmatpush.bf16.msra.mxu0 %v1193
        %1607 = vmatpush.bf16.msra.mxu0 %v1190
        %1608 = vmatpush.bf16.msra.mxu0 %v1187
        %1609 = vmatpush.bf16.msra.mxu0 %v1184
        %1610 = vmatpush.bf16.msra.mxu0 %v1181
        %1611 = vmatmul.bf16.gmra.mxu0 %v707
        %v1612 = vpop.f32.mrf.mxu0
        %v1613 = vadd.f32 %v855, %v1612
        %v1614 = vpop.f32.mrf.mxu0
        %v1615 = vadd.f32 %v855, %v1614
        %1616 = vmatmul.bf16.gmra.mxu0 %v711
        %v1617 = vpop.f32.mrf.mxu0
        %v1618 = vadd.f32 %v855, %v1617
        %v1619 = vpop.f32.mrf.mxu0
        %v1620 = vadd.f32 %v855, %v1619
        %1621 = vmatmul.bf16.gmra.mxu0 %v715
        %v1622 = vpop.f32.mrf.mxu0
        %v1623 = vadd.f32 %v855, %v1622
        %v1624 = vpop.f32.mrf.mxu0
        %v1625 = vadd.f32 %v855, %v1624
        %1626 = vmatmul.bf16.gmra.mxu0 %v719
        %v1627 = vpop.f32.mrf.mxu0
        %v1628 = vadd.f32 %v855, %v1627
        %v1629 = vpop.f32.mrf.mxu0
        %v1630 = vadd.f32 %v855, %v1629
        %1631 = vdwg.mxu0
        %1632 = vmatpush.bf16.msra.mxu0 %v1226
        %1633 = vmatpush.bf16.msra.mxu0 %v1223
        %1634 = vmatpush.bf16.msra.mxu0 %v1220
        %1635 = vmatpush.bf16.msra.mxu0 %v1217
        %1636 = vmatpush.bf16.msra.mxu0 %v1214
        %1637 = vmatpush.bf16.msra.mxu0 %v1211
        %1638 = vmatpush.bf16.msra.mxu0 %v1208
        %1639 = vmatpush.bf16.msra.mxu0 %v1205
        %1640 = vmatmul.bf16.gmra.mxu0 %v708
        %v1641 = vpop.f32.mrf.mxu0
        %v1642 = vadd.f32 %v1613, %v1641
        %v1643 = vpop.f32.mrf.mxu0
        %v1644 = vadd.f32 %v1615, %v1643
        %1645 = vmatmul.bf16.gmra.mxu0 %v712
        %v1646 = vpop.f32.mrf.mxu0
        %v1647 = vadd.f32 %v1618, %v1646
        %v1648 = vpop.f32.mrf.mxu0
        %v1649 = vadd.f32 %v1620, %v1648
        %1650 = vmatmul.bf16.gmra.mxu0 %v716
        %v1651 = vpop.f32.mrf.mxu0
        %v1652 = vadd.f32 %v1623, %v1651
        %v1653 = vpop.f32.mrf.mxu0
        %v1654 = vadd.f32 %v1625, %v1653
        %1655 = vmatmul.bf16.gmra.mxu0 %v720
        %v1656 = vpop.f32.mrf.mxu0
        %v1657 = vadd.f32 %v1628, %v1656
        %v1658 = vpop.f32.mrf.mxu0
        %v1659 = vadd.f32 %v1630, %v1658
        %1660 = vdwg.mxu0
        %1661 = vmatpush.bf16.msra.mxu0 %v1250
        %1662 = vmatpush.bf16.msra.mxu0 %v1247
        %1663 = vmatpush.bf16.msra.mxu0 %v1244
        %1664 = vmatpush.bf16.msra.mxu0 %v1241
        %1665 = vmatpush.bf16.msra.mxu0 %v1238
        %1666 = vmatpush.bf16.msra.mxu0 %v1235
        %1667 = vmatpush.bf16.msra.mxu0 %v1232
        %1668 = vmatpush.bf16.msra.mxu0 %v1229
        %1669 = vmatmul.bf16.gmra.mxu0 %v709
        %v1670 = vpop.f32.mrf.mxu0
        %v1671 = vadd.f32 %v1642, %v1670
        %v1672 = vpop.f32.mrf.mxu0
        %v1673 = vadd.f32 %v1644, %v1672
        %1674 = vmatmul.bf16.gmra.mxu0 %v713
        %v1675 = vpop.f32.mrf.mxu0
        %v1676 = vadd.f32 %v1647, %v1675
        %v1677 = vpop.f32.mrf.mxu0
        %v1678 = vadd.f32 %v1649, %v1677
        %1679 = vmatmul.bf16.gmra.mxu0 %v717
        %v1680 = vpop.f32.mrf.mxu0
        %v1681 = vadd.f32 %v1652, %v1680
        %v1682 = vpop.f32.mrf.mxu0
        %v1683 = vadd.f32 %v1654, %v1682
        %1684 = vmatmul.bf16.gmra.mxu0 %v721
        %v1685 = vpop.f32.mrf.mxu0
        %v1686 = vadd.f32 %v1657, %v1685
        %v1687 = vpop.f32.mrf.mxu0
        %v1688 = vadd.f32 %v1659, %v1687
        %1689 = vdwg.mxu0
        %1690 = vmatpush.bf16.msra.mxu0 %v1274
        %1691 = vmatpush.bf16.msra.mxu0 %v1271
        %1692 = vmatpush.bf16.msra.mxu0 %v1268
        %1693 = vmatpush.bf16.msra.mxu0 %v1265
        %1694 = vmatpush.bf16.msra.mxu0 %v1262
        %1695 = vmatpush.bf16.msra.mxu0 %v1259
        %1696 = vmatpush.bf16.msra.mxu0 %v1256
        %1697 = vmatpush.bf16.msra.mxu0 %v1253
        %1698 = vmatmul.bf16.gmra.mxu0 %v710
        %v1699 = vpop.f32.mrf.mxu0
        %v1700 = vadd.f32 %v1671, %v1699
        %v1701 = vpop.f32.mrf.mxu0
        %v1702 = vadd.f32 %v1673, %v1701
        %1703 = vmatmul.bf16.gmra.mxu0 %v714
        %v1704 = vpop.f32.mrf.mxu0
        %v1705 = vadd.f32 %v1676, %v1704
        %v1706 = vpop.f32.mrf.mxu0
        %v1707 = vadd.f32 %v1678, %v1706
        %1708 = vmatmul.bf16.gmra.mxu0 %v718
        %v1709 = vpop.f32.mrf.mxu0
        %v1710 = vadd.f32 %v1681, %v1709
        %v1711 = vpop.f32.mrf.mxu0
        %v1712 = vadd.f32 %v1683, %v1711
        %1713 = vmatmul.bf16.gmra.mxu0 %v722
        %v1714 = vpop.f32.mrf.mxu0
        %v1715 = vadd.f32 %v1686, %v1714
        %v1716 = vpop.f32.mrf.mxu0
        %v1717 = vadd.f32 %v1688, %v1716
        %1718 = vdwg.mxu0
        %1719 = vmax.xlane.f32.xlu0 %v1468
        %v1720 = vpop.xlane.xlu0 %1719
        %1721 = vmax.xlane.f32.xlu0 %v1470
        %v1722 = vpop.xlane.xlu0 %1721
        %1723 = vmax.xlane.f32.xlu0 %v1473
        %v1724 = vpop.xlane.xlu0 %1723
        %1725 = vmax.xlane.f32.xlu0 %v1475
        %v1726 = vpop.xlane.xlu0 %1725
        %1727 = vmax.xlane.f32.xlu0 %v1478
        %v1728 = vpop.xlane.xlu0 %1727
        %1729 = vmax.xlane.f32.xlu0 %v1480
        %v1730 = vpop.xlane.xlu0 %1729
        %1731 = vmax.xlane.f32.xlu0 %v1483
        %v1732 = vpop.xlane.xlu0 %1731
        %1733 = vmax.xlane.f32.xlu0 %v1485
        %v1734 = vpop.xlane.xlu0 %1733
        %v1735 = vsub.f32 %v1468, %v1720
        %v1736 = vsub.f32 %v1470, %v1722
        %v1737 = vsub.f32 %v1473, %v1724
        %v1738 = vsub.f32 %v1475, %v1726
        %v1739 = vsub.f32 %v1478, %v1728
        %v1740 = vsub.f32 %v1480, %v1730
        %v1741 = vsub.f32 %v1483, %v1732
        %v1742 = vsub.f32 %v1485, %v1734
        %v1743 = vmul.f32 %v1735, 1.442695
        %v1744 = vpow.pop %v1743
        %v1745 = vmul.f32 %v1736, 1.442695
        %v1746 = vpow.pop %v1745
        %v1747 = vmul.f32 %v1737, 1.442695
        %v1748 = vpow.pop %v1747
        %v1749 = vmul.f32 %v1738, 1.442695
        %v1750 = vpow.pop %v1749
        %v1751 = vmul.f32 %v1739, 1.442695
        %v1752 = vpow.pop %v1751
        %v1753 = vmul.f32 %v1740, 1.442695
        %v1754 = vpow.pop %v1753
        %v1755 = vmul.f32 %v1741, 1.442695
        %v1756 = vpow.pop %v1755
        %v1757 = vmul.f32 %v1742, 1.442695
        %v1758 = vpow.pop %v1757
        %1759 = vadd.xlane.f32.xlu0 %v1744
        %v1760 = vpop.xlane.xlu0 %1759
        %1761 = vadd.xlane.f32.xlu0 %v1746
        %v1762 = vpop.xlane.xlu0 %1761
        %1763 = vadd.xlane.f32.xlu0 %v1748
        %v1764 = vpop.xlane.xlu0 %1763
        %1765 = vadd.xlane.f32.xlu0 %v1750
        %v1766 = vpop.xlane.xlu0 %1765
        %1767 = vadd.xlane.f32.xlu0 %v1752
        %v1768 = vpop.xlane.xlu0 %1767
        %1769 = vadd.xlane.f32.xlu0 %v1754
        %v1770 = vpop.xlane.xlu0 %1769
        %1771 = vadd.xlane.f32.xlu0 %v1756
        %v1772 = vpop.xlane.xlu0 %1771
        %1773 = vadd.xlane.f32.xlu0 %v1758
        %v1774 = vpop.xlane.xlu0 %1773
        %v1775 = vrcp.pop %v1760
        %v1776 = vrcp.pop %v1762
        %v1777 = vrcp.pop %v1764
        %v1778 = vrcp.pop %v1766
        %v1779 = vrcp.pop %v1768
        %v1780 = vrcp.pop %v1770
        %v1781 = vrcp.pop %v1772
        %v1782 = vrcp.pop %v1774
        %v1783 = vmul.f32 %v1744, %v1775
        %v1784 = vmul.f32 %v1746, %v1776
        %v1785 = vmul.f32 %v1748, %v1777
        %v1786 = vmul.f32 %v1750, %v1778
        %v1787 = vmul.f32 %v1752, %v1779
        %v1788 = vmul.f32 %v1754, %v1780
        %v1789 = vmul.f32 %v1756, %v1781
        %v1790 = vmul.f32 %v1758, %v1782
        %v1791 = vpack.c.bf16 %v1784, %v1783
        %v1792 = vpack.c.bf16 %v1786, %v1785
        %v1793 = vpack.c.bf16 %v1788, %v1787
        %v1794 = vpack.c.bf16 %v1790, %v1789
        %v1795 = vld [vmem:[#allocation2] sm:$0xff]
        %v1796 = vld [vmem:[#allocation2 + $0x8] sm:$0xff]
        %v1797 = vld [vmem:[#allocation2 + $0x10] sm:$0xff]
        %v1798 = vld [vmem:[#allocation2 + $0x18] sm:$0xff]
        %v1799 = vld [vmem:[#allocation2 + $0x20] sm:$0xff]
        %v1800 = vld [vmem:[#allocation2 + $0x28] sm:$0xff]
        %v1801 = vld [vmem:[#allocation2 + $0x30] sm:$0xff]
        %v1802 = vld [vmem:[#allocation2 + $0x38] sm:$0xff]
        %v1803 = vld [vmem:[#allocation2 + $0x40] sm:$0xff]
        %v1804 = vld [vmem:[#allocation2 + $0x48] sm:$0xff]
        %v1805 = vld [vmem:[#allocation2 + $0x50] sm:$0xff]
        %v1806 = vld [vmem:[#allocation2 + $0x58] sm:$0xff]
        %v1807 = vld [vmem:[#allocation2 + $0x60] sm:$0xff]
        %v1808 = vld [vmem:[#allocation2 + $0x68] sm:$0xff]
        %v1809 = vld [vmem:[#allocation2 + $0x70] sm:$0xff]
        %v1810 = vld [vmem:[#allocation2 + $0x78] sm:$0xff]
        %v1827 = vunpack.c.l.b16 %v1795
        %v1828 = vunpack.c.h.b16 %v1795
        %v1829 = vunpack.c.l.b16 %v1796
        %v1830 = vunpack.c.h.b16 %v1796
        %v1831 = vunpack.c.l.b16 %v1797
        %v1832 = vunpack.c.h.b16 %v1797
        %v1833 = vunpack.c.l.b16 %v1798
        %v1834 = vunpack.c.h.b16 %v1798
        %v1835 = vunpack.c.l.b16 %v1799
        %v1836 = vunpack.c.h.b16 %v1799
        %v1837 = vunpack.c.l.b16 %v1800
        %v1838 = vunpack.c.h.b16 %v1800
        %v1839 = vunpack.c.l.b16 %v1801
        %v1840 = vunpack.c.h.b16 %v1801
        %v1841 = vunpack.c.l.b16 %v1802
        %v1842 = vunpack.c.h.b16 %v1802
        %v1843 = vunpack.c.l.b16 %v1803
        %v1844 = vunpack.c.h.b16 %v1803
        %v1845 = vunpack.c.l.b16 %v1804
        %v1846 = vunpack.c.h.b16 %v1804
        %v1847 = vunpack.c.l.b16 %v1805
        %v1848 = vunpack.c.h.b16 %v1805
        %v1849 = vunpack.c.l.b16 %v1806
        %v1850 = vunpack.c.h.b16 %v1806
        %v1851 = vunpack.c.l.b16 %v1807
        %v1852 = vunpack.c.h.b16 %v1807
        %v1853 = vunpack.c.l.b16 %v1808
        %v1854 = vunpack.c.h.b16 %v1808
        %v1855 = vunpack.c.l.b16 %v1809
        %v1856 = vunpack.c.h.b16 %v1809
        %v1857 = vunpack.c.l.b16 %v1810
        %v1858 = vunpack.c.h.b16 %v1810
        %v1859 = vpack.c.b16 %v1829, %v1827
        %v1860 = vpack.c.b16 %v1830, %v1828
        %v1861 = vpack.c.b16 %v1833, %v1831
        %v1862 = vpack.c.b16 %v1834, %v1832
        %v1863 = vpack.c.b16 %v1837, %v1835
        %v1864 = vpack.c.b16 %v1838, %v1836
        %v1865 = vpack.c.b16 %v1841, %v1839
        %v1866 = vpack.c.b16 %v1842, %v1840
        %v1867 = vpack.c.b16 %v1845, %v1843
        %v1868 = vpack.c.b16 %v1846, %v1844
        %v1869 = vpack.c.b16 %v1849, %v1847
        %v1870 = vpack.c.b16 %v1850, %v1848
        %v1871 = vpack.c.b16 %v1853, %v1851
        %v1872 = vpack.c.b16 %v1854, %v1852
        %v1873 = vpack.c.b16 %v1857, %v1855
        %v1874 = vpack.c.b16 %v1858, %v1856
        %1891 = vmatpush.bf16.msra.mxu0 %v1873
        %1892 = vmatpush.bf16.msra.mxu0 %v1871
        %1893 = vmatpush.bf16.msra.mxu0 %v1869
        %1894 = vmatpush.bf16.msra.mxu0 %v1867
        %1895 = vmatpush.bf16.msra.mxu0 %v1865
        %1896 = vmatpush.bf16.msra.mxu0 %v1863
        %1897 = vmatpush.bf16.msra.mxu0 %v1861
        %1898 = vmatpush.bf16.msra.mxu0 %v1859
        %1899 = vmatmul.bf16.gmra.mxu0 %v1791
        %v1900 = vpop.f32.mrf.mxu0
        %v1901 = vadd.f32 1e-10, %v1900
        %v1902 = vpop.f32.mrf.mxu0
        %v1903 = vadd.f32 1e-10, %v1902
        %1904 = vmatmul.bf16.gmra.mxu0 %v1792
        %v1905 = vpop.f32.mrf.mxu0
        %v1906 = vadd.f32 1e-10, %v1905
        %v1907 = vpop.f32.mrf.mxu0
        %v1908 = vadd.f32 1e-10, %v1907
        %1909 = vmatmul.bf16.gmra.mxu0 %v1793
        %v1910 = vpop.f32.mrf.mxu0
        %v1911 = vadd.f32 1e-10, %v1910
        %v1912 = vpop.f32.mrf.mxu0
        %v1913 = vadd.f32 1e-10, %v1912
        %1914 = vmatmul.bf16.gmra.mxu0 %v1794
        %v1915 = vpop.f32.mrf.mxu0
        %v1916 = vadd.f32 1e-10, %v1915
        %v1917 = vpop.f32.mrf.mxu0
        %v1918 = vadd.f32 1e-10, %v1917
        %1919 = vdwg.mxu0
        %1920 = vmatpush.bf16.msra.mxu0 %v1874
        %1921 = vmatpush.bf16.msra.mxu0 %v1872
        %1922 = vmatpush.bf16.msra.mxu0 %v1870
        %1923 = vmatpush.bf16.msra.mxu0 %v1868
        %1924 = vmatpush.bf16.msra.mxu0 %v1866
        %1925 = vmatpush.bf16.msra.mxu0 %v1864
        %1926 = vmatpush.bf16.msra.mxu0 %v1862
        %1927 = vmatpush.bf16.msra.mxu0 %v1860
        %1928 = vmatmul.bf16.gmra.mxu0 %v1791
        %v1929 = vpop.f32.mrf.mxu0
        %v1930 = vadd.f32 1e-10, %v1929
        %v1931 = vpop.f32.mrf.mxu0
        %v1932 = vadd.f32 1e-10, %v1931
        %1933 = vmatmul.bf16.gmra.mxu0 %v1792
        %v1934 = vpop.f32.mrf.mxu0
        %v1935 = vadd.f32 1e-10, %v1934
        %v1936 = vpop.f32.mrf.mxu0
        %v1937 = vadd.f32 1e-10, %v1936
        %1938 = vmatmul.bf16.gmra.mxu0 %v1793
        %v1939 = vpop.f32.mrf.mxu0
        %v1940 = vadd.f32 1e-10, %v1939
        %v1941 = vpop.f32.mrf.mxu0
        %v1942 = vadd.f32 1e-10, %v1941
        %1943 = vmatmul.bf16.gmra.mxu0 %v1794
        %v1944 = vpop.f32.mrf.mxu0
        %v1945 = vadd.f32 1e-10, %v1944
        %v1946 = vpop.f32.mrf.mxu0
        %v1947 = vadd.f32 1e-10, %v1946
        %1948 = vdwg.mxu0
        %s1949 = smul.u32 0, 2
        %s1950 = smul.addr %s1949, 4
        %s1951 = scalar_lea.vmem %s535, %s1950
        %v1952 = vld [vmem:[%s1951] sm:$0xff]
        %v1953 = vld [vmem:[%s1951 + $0x8] sm:$0xff]
        %v1954 = vld [vmem:[%s1951 + $0x10] sm:$0xff]
        %v1955 = vld [vmem:[%s1951 + $0x18] sm:$0xff]
        %v1956 = vld [vmem:[%s1951 + $0x20] sm:$0xff]
        %v1957 = vld [vmem:[%s1951 + $0x28] sm:$0xff]
        %v1958 = vld [vmem:[%s1951 + $0x30] sm:$0xff]
        %v1959 = vld [vmem:[%s1951 + $0x38] sm:$0xff]
        %v1960 = vunpack.c.l.bf16 %v1952
        %v1961 = vunpack.c.h.bf16 %v1952
        %v1962 = vunpack.c.l.bf16 %v1953
        %v1963 = vunpack.c.h.bf16 %v1953
        %v1964 = vunpack.c.l.bf16 %v1954
        %v1965 = vunpack.c.h.bf16 %v1954
        %v1966 = vunpack.c.l.bf16 %v1955
        %v1967 = vunpack.c.h.bf16 %v1955
        %v1968 = vunpack.c.l.bf16 %v1956
        %v1969 = vunpack.c.h.bf16 %v1956
        %v1970 = vunpack.c.l.bf16 %v1957
        %v1971 = vunpack.c.h.bf16 %v1957
        %v1972 = vunpack.c.l.bf16 %v1958
        %v1973 = vunpack.c.h.bf16 %v1958
        %v1974 = vunpack.c.l.bf16 %v1959
        %v1975 = vunpack.c.h.bf16 %v1959
        %v1976 = vmul.f32 %v1584, 0.5
        %v1977 = vmul.f32 %v1700, 0.5
        %v1978 = vmul.f32 %v1586, 0.5
        %v1979 = vmul.f32 %v1702, 0.5
        %v1980 = vmul.f32 %v1589, 0.5
        %v1981 = vmul.f32 %v1705, 0.5
        %v1982 = vmul.f32 %v1591, 0.5
        %v1983 = vmul.f32 %v1707, 0.5
        %v1984 = vmul.f32 %v1594, 0.5
        %v1985 = vmul.f32 %v1710, 0.5
        %v1986 = vmul.f32 %v1596, 0.5
        %v1987 = vmul.f32 %v1712, 0.5
        %v1988 = vmul.f32 %v1599, 0.5
        %v1989 = vmul.f32 %v1715, 0.5
        %v1990 = vmul.f32 %v1601, 0.5
        %v1991 = vmul.f32 %v1717, 0.5
        %v1992 = vmul.f32 %v1976, 1.442695
        %v1993 = vpow.pop %v1992
        %v1994 = vmul.f32 %v1977, 1.442695
        %v1995 = vpow.pop %v1994
        %v1996 = vmul.f32 %v1978, 1.442695
        %v1997 = vpow.pop %v1996
        %v1998 = vmul.f32 %v1979, 1.442695
        %v1999 = vpow.pop %v1998
        %v2000 = vmul.f32 %v1980, 1.442695
        %v2001 = vpow.pop %v2000
        %v2002 = vmul.f32 %v1981, 1.442695
        %v2003 = vpow.pop %v2002
        %v2004 = vmul.f32 %v1982, 1.442695
        %v2005 = vpow.pop %v2004
        %v2006 = vmul.f32 %v1983, 1.442695
        %v2007 = vpow.pop %v2006
        %v2008 = vmul.f32 %v1984, 1.442695
        %v2009 = vpow.pop %v2008
        %v2010 = vmul.f32 %v1985, 1.442695
        %v2011 = vpow.pop %v2010
        %v2012 = vmul.f32 %v1986, 1.442695
        %v2013 = vpow.pop %v2012
        %v2014 = vmul.f32 %v1987, 1.442695
        %v2015 = vpow.pop %v2014
        %v2016 = vmul.f32 %v1988, 1.442695
        %v2017 = vpow.pop %v2016
        %v2018 = vmul.f32 %v1989, 1.442695
        %v2019 = vpow.pop %v2018
        %v2020 = vmul.f32 %v1990, 1.442695
        %v2021 = vpow.pop %v2020
        %v2022 = vmul.f32 %v1991, 1.442695
        %v2023 = vpow.pop %v2022
        %v2024 = vmul.f32 %v1960, %v1993
        %v2025 = vmul.f32 %v1961, %v1995
        %v2026 = vmul.f32 %v1962, %v1997
        %v2027 = vmul.f32 %v1963, %v1999
        %v2028 = vmul.f32 %v1964, %v2001
        %v2029 = vmul.f32 %v1965, %v2003
        %v2030 = vmul.f32 %v1966, %v2005
        %v2031 = vmul.f32 %v1967, %v2007
        %v2032 = vmul.f32 %v1968, %v2009
        %v2033 = vmul.f32 %v1969, %v2011
        %v2034 = vmul.f32 %v1970, %v2013
        %v2035 = vmul.f32 %v1971, %v2015
        %v2036 = vmul.f32 %v1972, %v2017
        %v2037 = vmul.f32 %v1973, %v2019
        %v2038 = vmul.f32 %v1974, %v2021
        %v2039 = vmul.f32 %v1975, %v2023
        %v2040 = vadd.f32 %v2024, %v1901
        %v2041 = vadd.f32 %v2025, %v1930
        %v2042 = vadd.f32 %v2026, %v1903
        %v2043 = vadd.f32 %v2027, %v1932
        %v2044 = vadd.f32 %v2028, %v1906
        %v2045 = vadd.f32 %v2029, %v1935
        %v2046 = vadd.f32 %v2030, %v1908
        %v2047 = vadd.f32 %v2031, %v1937
        %v2048 = vadd.f32 %v2032, %v1911
        %v2049 = vadd.f32 %v2033, %v1940
        %v2050 = vadd.f32 %v2034, %v1913
        %v2051 = vadd.f32 %v2035, %v1942
        %v2052 = vadd.f32 %v2036, %v1916
        %v2053 = vadd.f32 %v2037, %v1945
        %v2054 = vadd.f32 %v2038, %v1918
        %v2055 = vadd.f32 %v2039, %v1947
        %v2056 = vpack.c.bf16 %v2042, %v2040
        %v2057 = vpack.c.bf16 %v2043, %v2041
        %v2058 = vpack.c.bf16 %v2046, %v2044
        %v2059 = vpack.c.bf16 %v2047, %v2045
        %v2060 = vpack.c.bf16 %v2050, %v2048
        %v2061 = vpack.c.bf16 %v2051, %v2049
        %v2062 = vpack.c.bf16 %v2054, %v2052
        %v2063 = vpack.c.bf16 %v2055, %v2053
        %v2064 = vld [vmem:[#allocation5] sm:$0xff]
        %v2065 = vld [vmem:[#allocation5 + $0x8] sm:$0xff]
        %v2066 = vld [vmem:[#allocation5 + $0x10] sm:$0xff]
        %v2067 = vld [vmem:[#allocation5 + $0x18] sm:$0xff]
        %v2068 = vld [vmem:[#allocation5 + $0x20] sm:$0xff]
        %v2069 = vld [vmem:[#allocation5 + $0x28] sm:$0xff]
        %v2070 = vld [vmem:[#allocation5 + $0x30] sm:$0xff]
        %v2071 = vld [vmem:[#allocation5 + $0x38] sm:$0xff]
        %v2072 = vld [vmem:[#allocation5 + $0x40] sm:$0xff]
        %v2073 = vld [vmem:[#allocation5 + $0x48] sm:$0xff]
        %v2074 = vld [vmem:[#allocation5 + $0x50] sm:$0xff]
        %v2075 = vld [vmem:[#allocation5 + $0x58] sm:$0xff]
        %v2076 = vld [vmem:[#allocation5 + $0x60] sm:$0xff]
        %v2077 = vld [vmem:[#allocation5 + $0x68] sm:$0xff]
        %v2078 = vld [vmem:[#allocation5 + $0x70] sm:$0xff]
        %v2079 = vld [vmem:[#allocation5 + $0x78] sm:$0xff]
        %v2080 = vld [vmem:[#allocation5 + $0x80] sm:$0xff]
        %v2081 = vld [vmem:[#allocation5 + $0x88] sm:$0xff]
        %v2082 = vld [vmem:[#allocation5 + $0x90] sm:$0xff]
        %v2083 = vld [vmem:[#allocation5 + $0x98] sm:$0xff]
        %v2084 = vld [vmem:[#allocation5 + $0xa0] sm:$0xff]
        %v2085 = vld [vmem:[#allocation5 + $0xa8] sm:$0xff]
        %v2086 = vld [vmem:[#allocation5 + $0xb0] sm:$0xff]
        %v2087 = vld [vmem:[#allocation5 + $0xb8] sm:$0xff]
        %v2088 = vld [vmem:[#allocation5 + $0xc0] sm:$0xff]
        %v2089 = vld [vmem:[#allocation5 + $0xc8] sm:$0xff]
        %v2090 = vld [vmem:[#allocation5 + $0xd0] sm:$0xff]
        %v2091 = vld [vmem:[#allocation5 + $0xd8] sm:$0xff]
        %v2092 = vld [vmem:[#allocation5 + $0xe0] sm:$0xff]
        %v2093 = vld [vmem:[#allocation5 + $0xe8] sm:$0xff]
        %v2094 = vld [vmem:[#allocation5 + $0xf0] sm:$0xff]
        %v2095 = vld [vmem:[#allocation5 + $0xf8] sm:$0xff]
        %v2096 = vld [vmem:[#allocation5 + $0x100] sm:$0xff]
        %v2097 = vld [vmem:[#allocation5 + $0x108] sm:$0xff]
        %v2098 = vld [vmem:[#allocation5 + $0x110] sm:$0xff]
        %v2099 = vld [vmem:[#allocation5 + $0x118] sm:$0xff]
        %v2100 = vld [vmem:[#allocation5 + $0x120] sm:$0xff]
        %v2101 = vld [vmem:[#allocation5 + $0x128] sm:$0xff]
        %v2102 = vld [vmem:[#allocation5 + $0x130] sm:$0xff]
        %v2103 = vld [vmem:[#allocation5 + $0x138] sm:$0xff]
        %v2104 = vld [vmem:[#allocation5 + $0x140] sm:$0xff]
        %v2105 = vld [vmem:[#allocation5 + $0x148] sm:$0xff]
        %v2106 = vld [vmem:[#allocation5 + $0x150] sm:$0xff]
        %v2107 = vld [vmem:[#allocation5 + $0x158] sm:$0xff]
        %v2108 = vld [vmem:[#allocation5 + $0x160] sm:$0xff]
        %v2109 = vld [vmem:[#allocation5 + $0x168] sm:$0xff]
        %v2110 = vld [vmem:[#allocation5 + $0x170] sm:$0xff]
        %v2111 = vld [vmem:[#allocation5 + $0x178] sm:$0xff]
        %v2112 = vld [vmem:[#allocation5 + $0x180] sm:$0xff]
        %v2113 = vld [vmem:[#allocation5 + $0x188] sm:$0xff]
        %v2114 = vld [vmem:[#allocation5 + $0x190] sm:$0xff]
        %v2115 = vld [vmem:[#allocation5 + $0x198] sm:$0xff]
        %v2116 = vld [vmem:[#allocation5 + $0x1a0] sm:$0xff]
        %v2117 = vld [vmem:[#allocation5 + $0x1a8] sm:$0xff]
        %v2118 = vld [vmem:[#allocation5 + $0x1b0] sm:$0xff]
        %v2119 = vld [vmem:[#allocation5 + $0x1b8] sm:$0xff]
        %v2120 = vld [vmem:[#allocation5 + $0x1c0] sm:$0xff]
        %v2121 = vld [vmem:[#allocation5 + $0x1c8] sm:$0xff]
        %v2122 = vld [vmem:[#allocation5 + $0x1d0] sm:$0xff]
        %v2123 = vld [vmem:[#allocation5 + $0x1d8] sm:$0xff]
        %v2124 = vld [vmem:[#allocation5 + $0x1e0] sm:$0xff]
        %v2125 = vld [vmem:[#allocation5 + $0x1e8] sm:$0xff]
        %v2126 = vld [vmem:[#allocation5 + $0x1f0] sm:$0xff]
        %v2127 = vld [vmem:[#allocation5 + $0x1f8] sm:$0xff]
        %v2128 = vld [vmem:[%s7] sm:$0xf]
        %v2130 = vperm.slane %v2128, 0
        %v2131 = vperm.slane %v2128, 1
        %v2132 = vperm.slane %v2128, 2
        %v2133 = vperm.slane %v2128, 3
        %v2202 = vunpack.c.l.b16 %v2064
        %v2203 = vunpack.c.h.b16 %v2064
        %v2204 = vunpack.c.l.b16 %v2065
        %v2205 = vunpack.c.h.b16 %v2065
        %v2206 = vunpack.c.l.b16 %v2066
        %v2207 = vunpack.c.h.b16 %v2066
        %v2208 = vunpack.c.l.b16 %v2067
        %v2209 = vunpack.c.h.b16 %v2067
        %v2210 = vunpack.c.l.b16 %v2068
        %v2211 = vunpack.c.h.b16 %v2068
        %v2212 = vunpack.c.l.b16 %v2069
        %v2213 = vunpack.c.h.b16 %v2069
        %v2214 = vunpack.c.l.b16 %v2070
        %v2215 = vunpack.c.h.b16 %v2070
        %v2216 = vunpack.c.l.b16 %v2071
        %v2217 = vunpack.c.h.b16 %v2071
        %v2218 = vunpack.c.l.b16 %v2072
        %v2219 = vunpack.c.h.b16 %v2072
        %v2220 = vunpack.c.l.b16 %v2073
        %v2221 = vunpack.c.h.b16 %v2073
        %v2222 = vunpack.c.l.b16 %v2074
        %v2223 = vunpack.c.h.b16 %v2074
        %v2224 = vunpack.c.l.b16 %v2075
        %v2225 = vunpack.c.h.b16 %v2075
        %v2226 = vunpack.c.l.b16 %v2076
        %v2227 = vunpack.c.h.b16 %v2076
        %v2228 = vunpack.c.l.b16 %v2077
        %v2229 = vunpack.c.h.b16 %v2077
        %v2230 = vunpack.c.l.b16 %v2078
        %v2231 = vunpack.c.h.b16 %v2078
        %v2232 = vunpack.c.l.b16 %v2079
        %v2233 = vunpack.c.h.b16 %v2079
        %v2234 = vunpack.c.l.b16 %v2080
        %v2235 = vunpack.c.h.b16 %v2080
        %v2236 = vunpack.c.l.b16 %v2081
        %v2237 = vunpack.c.h.b16 %v2081
        %v2238 = vunpack.c.l.b16 %v2082
        %v2239 = vunpack.c.h.b16 %v2082
        %v2240 = vunpack.c.l.b16 %v2083
        %v2241 = vunpack.c.h.b16 %v2083
        %v2242 = vunpack.c.l.b16 %v2084
        %v2243 = vunpack.c.h.b16 %v2084
        %v2244 = vunpack.c.l.b16 %v2085
        %v2245 = vunpack.c.h.b16 %v2085
        %v2246 = vunpack.c.l.b16 %v2086
        %v2247 = vunpack.c.h.b16 %v2086
        %v2248 = vunpack.c.l.b16 %v2087
        %v2249 = vunpack.c.h.b16 %v2087
        %v2250 = vunpack.c.l.b16 %v2088
        %v2251 = vunpack.c.h.b16 %v2088
        %v2252 = vunpack.c.l.b16 %v2089
        %v2253 = vunpack.c.h.b16 %v2089
        %v2254 = vunpack.c.l.b16 %v2090
        %v2255 = vunpack.c.h.b16 %v2090
        %v2256 = vunpack.c.l.b16 %v2091
        %v2257 = vunpack.c.h.b16 %v2091
        %v2258 = vunpack.c.l.b16 %v2092
        %v2259 = vunpack.c.h.b16 %v2092
        %v2260 = vunpack.c.l.b16 %v2093
        %v2261 = vunpack.c.h.b16 %v2093
        %v2262 = vunpack.c.l.b16 %v2094
        %v2263 = vunpack.c.h.b16 %v2094
        %v2264 = vunpack.c.l.b16 %v2095
        %v2265 = vunpack.c.h.b16 %v2095
        %v2266 = vunpack.c.l.b16 %v2096
        %v2267 = vunpack.c.h.b16 %v2096
        %v2268 = vunpack.c.l.b16 %v2097
        %v2269 = vunpack.c.h.b16 %v2097
        %v2270 = vunpack.c.l.b16 %v2098
        %v2271 = vunpack.c.h.b16 %v2098
        %v2272 = vunpack.c.l.b16 %v2099
        %v2273 = vunpack.c.h.b16 %v2099
        %v2274 = vunpack.c.l.b16 %v2100
        %v2275 = vunpack.c.h.b16 %v2100
        %v2276 = vunpack.c.l.b16 %v2101
        %v2277 = vunpack.c.h.b16 %v2101
        %v2278 = vunpack.c.l.b16 %v2102
        %v2279 = vunpack.c.h.b16 %v2102
        %v2280 = vunpack.c.l.b16 %v2103
        %v2281 = vunpack.c.h.b16 %v2103
        %v2282 = vunpack.c.l.b16 %v2104
        %v2283 = vunpack.c.h.b16 %v2104
        %v2284 = vunpack.c.l.b16 %v2105
        %v2285 = vunpack.c.h.b16 %v2105
        %v2286 = vunpack.c.l.b16 %v2106
        %v2287 = vunpack.c.h.b16 %v2106
        %v2288 = vunpack.c.l.b16 %v2107
        %v2289 = vunpack.c.h.b16 %v2107
        %v2290 = vunpack.c.l.b16 %v2108
        %v2291 = vunpack.c.h.b16 %v2108
        %v2292 = vunpack.c.l.b16 %v2109
        %v2293 = vunpack.c.h.b16 %v2109
        %v2294 = vunpack.c.l.b16 %v2110
        %v2295 = vunpack.c.h.b16 %v2110
        %v2296 = vunpack.c.l.b16 %v2111
        %v2297 = vunpack.c.h.b16 %v2111
        %v2298 = vunpack.c.l.b16 %v2112
        %v2299 = vunpack.c.h.b16 %v2112
        %v2300 = vunpack.c.l.b16 %v2113
        %v2301 = vunpack.c.h.b16 %v2113
        %v2302 = vunpack.c.l.b16 %v2114
        %v2303 = vunpack.c.h.b16 %v2114
        %v2304 = vunpack.c.l.b16 %v2115
        %v2305 = vunpack.c.h.b16 %v2115
        %v2306 = vunpack.c.l.b16 %v2116
        %v2307 = vunpack.c.h.b16 %v2116
        %v2308 = vunpack.c.l.b16 %v2117
        %v2309 = vunpack.c.h.b16 %v2117
        %v2310 = vunpack.c.l.b16 %v2118
        %v2311 = vunpack.c.h.b16 %v2118
        %v2312 = vunpack.c.l.b16 %v2119
        %v2313 = vunpack.c.h.b16 %v2119
        %v2314 = vunpack.c.l.b16 %v2120
        %v2315 = vunpack.c.h.b16 %v2120
        %v2316 = vunpack.c.l.b16 %v2121
        %v2317 = vunpack.c.h.b16 %v2121
        %v2318 = vunpack.c.l.b16 %v2122
        %v2319 = vunpack.c.h.b16 %v2122
        %v2320 = vunpack.c.l.b16 %v2123
        %v2321 = vunpack.c.h.b16 %v2123
        %v2322 = vunpack.c.l.b16 %v2124
        %v2323 = vunpack.c.h.b16 %v2124
        %v2324 = vunpack.c.l.b16 %v2125
        %v2325 = vunpack.c.h.b16 %v2125
        %v2326 = vunpack.c.l.b16 %v2126
        %v2327 = vunpack.c.h.b16 %v2126
        %v2328 = vunpack.c.l.b16 %v2127
        %v2329 = vunpack.c.h.b16 %v2127
        %v2330 = vpack.c.b16 %v2206, %v2202
        %v2331 = vpack.c.b16 %v2207, %v2203
        %v2332 = vpack.c.b16 %v2208, %v2204
        %v2333 = vpack.c.b16 %v2209, %v2205
        %v2334 = vpack.c.b16 %v2214, %v2210
        %v2335 = vpack.c.b16 %v2215, %v2211
        %v2336 = vpack.c.b16 %v2216, %v2212
        %v2337 = vpack.c.b16 %v2217, %v2213
        %v2338 = vpack.c.b16 %v2222, %v2218
        %v2339 = vpack.c.b16 %v2223, %v2219
        %v2340 = vpack.c.b16 %v2224, %v2220
        %v2341 = vpack.c.b16 %v2225, %v2221
        %v2342 = vpack.c.b16 %v2230, %v2226
        %v2343 = vpack.c.b16 %v2231, %v2227
        %v2344 = vpack.c.b16 %v2232, %v2228
        %v2345 = vpack.c.b16 %v2233, %v2229
        %v2346 = vpack.c.b16 %v2238, %v2234
        %v2347 = vpack.c.b16 %v2239, %v2235
        %v2348 = vpack.c.b16 %v2240, %v2236
        %v2349 = vpack.c.b16 %v2241, %v2237
        %v2350 = vpack.c.b16 %v2246, %v2242
        %v2351 = vpack.c.b16 %v2247, %v2243
        %v2352 = vpack.c.b16 %v2248, %v2244
        %v2353 = vpack.c.b16 %v2249, %v2245
        %v2354 = vpack.c.b16 %v2254, %v2250
        %v2355 = vpack.c.b16 %v2255, %v2251
        %v2356 = vpack.c.b16 %v2256, %v2252
        %v2357 = vpack.c.b16 %v2257, %v2253
        %v2358 = vpack.c.b16 %v2262, %v2258
        %v2359 = vpack.c.b16 %v2263, %v2259
        %v2360 = vpack.c.b16 %v2264, %v2260
        %v2361 = vpack.c.b16 %v2265, %v2261
        %v2362 = vpack.c.b16 %v2270, %v2266
        %v2363 = vpack.c.b16 %v2271, %v2267
        %v2364 = vpack.c.b16 %v2272, %v2268
        %v2365 = vpack.c.b16 %v2273, %v2269
        %v2366 = vpack.c.b16 %v2278, %v2274
        %v2367 = vpack.c.b16 %v2279, %v2275
        %v2368 = vpack.c.b16 %v2280, %v2276
        %v2369 = vpack.c.b16 %v2281, %v2277
        %v2370 = vpack.c.b16 %v2286, %v2282
        %v2371 = vpack.c.b16 %v2287, %v2283
        %v2372 = vpack.c.b16 %v2288, %v2284
        %v2373 = vpack.c.b16 %v2289, %v2285
        %v2374 = vpack.c.b16 %v2294, %v2290
        %v2375 = vpack.c.b16 %v2295, %v2291
        %v2376 = vpack.c.b16 %v2296, %v2292
        %v2377 = vpack.c.b16 %v2297, %v2293
        %v2378 = vpack.c.b16 %v2302, %v2298
        %v2379 = vpack.c.b16 %v2303, %v2299
        %v2380 = vpack.c.b16 %v2304, %v2300
        %v2381 = vpack.c.b16 %v2305, %v2301
        %v2382 = vpack.c.b16 %v2310, %v2306
        %v2383 = vpack.c.b16 %v2311, %v2307
        %v2384 = vpack.c.b16 %v2312, %v2308
        %v2385 = vpack.c.b16 %v2313, %v2309
        %v2386 = vpack.c.b16 %v2318, %v2314
        %v2387 = vpack.c.b16 %v2319, %v2315
        %v2388 = vpack.c.b16 %v2320, %v2316
        %v2389 = vpack.c.b16 %v2321, %v2317
        %v2390 = vpack.c.b16 %v2326, %v2322
        %v2391 = vpack.c.b16 %v2327, %v2323
        %v2392 = vpack.c.b16 %v2328, %v2324
        %v2393 = vpack.c.b16 %v2329, %v2325
        %2458 = vmatpush.bf16.msra.mxu0 %v2358
        %2459 = vmatpush.bf16.msra.mxu0 %v2354
        %2460 = vmatpush.bf16.msra.mxu0 %v2350
        %2461 = vmatpush.bf16.msra.mxu0 %v2346
        %2462 = vmatpush.bf16.msra.mxu0 %v2342
        %2463 = vmatpush.bf16.msra.mxu0 %v2338
        %2464 = vmatpush.bf16.msra.mxu0 %v2334
        %2465 = vmatpush.bf16.msra.mxu0 %v2330
        %2466 = vmatmul.bf16.gmra.mxu0 %v2056
        %v2467 = vpop.f32.mrf.mxu0
        %v2468 = vadd.f32 %v2130, %v2467
        %v2469 = vpop.f32.mrf.mxu0
        %v2470 = vadd.f32 %v2130, %v2469
        %2471 = vmatmul.bf16.gmra.mxu0 %v2058
        %v2472 = vpop.f32.mrf.mxu0
        %v2473 = vadd.f32 %v2130, %v2472
        %v2474 = vpop.f32.mrf.mxu0
        %v2475 = vadd.f32 %v2130, %v2474
        %2476 = vmatmul.bf16.gmra.mxu0 %v2060
        %v2477 = vpop.f32.mrf.mxu0
        %v2478 = vadd.f32 %v2130, %v2477
        %v2479 = vpop.f32.mrf.mxu0
        %v2480 = vadd.f32 %v2130, %v2479
        %2481 = vmatmul.bf16.gmra.mxu0 %v2062
        %v2482 = vpop.f32.mrf.mxu0
        %v2483 = vadd.f32 %v2130, %v2482
        %v2484 = vpop.f32.mrf.mxu0
        %v2485 = vadd.f32 %v2130, %v2484
        %2486 = vdwg.mxu0
        %2487 = vmatpush.bf16.msra.mxu0 %v2390
        %2488 = vmatpush.bf16.msra.mxu0 %v2386
        %2489 = vmatpush.bf16.msra.mxu0 %v2382
        %2490 = vmatpush.bf16.msra.mxu0 %v2378
        %2491 = vmatpush.bf16.msra.mxu0 %v2374
        %2492 = vmatpush.bf16.msra.mxu0 %v2370
        %2493 = vmatpush.bf16.msra.mxu0 %v2366
        %2494 = vmatpush.bf16.msra.mxu0 %v2362
        %2495 = vmatmul.bf16.gmra.mxu0 %v2057
        %v2496 = vpop.f32.mrf.mxu0
        %v2497 = vadd.f32 %v2468, %v2496
        %v2498 = vpop.f32.mrf.mxu0
        %v2499 = vadd.f32 %v2470, %v2498
        %2500 = vmatmul.bf16.gmra.mxu0 %v2059
        %v2501 = vpop.f32.mrf.mxu0
        %v2502 = vadd.f32 %v2473, %v2501
        %v2503 = vpop.f32.mrf.mxu0
        %v2504 = vadd.f32 %v2475, %v2503
        %2505 = vmatmul.bf16.gmra.mxu0 %v2061
        %v2506 = vpop.f32.mrf.mxu0
        %v2507 = vadd.f32 %v2478, %v2506
        %v2508 = vpop.f32.mrf.mxu0
        %v2509 = vadd.f32 %v2480, %v2508
        %2510 = vmatmul.bf16.gmra.mxu0 %v2063
        %v2511 = vpop.f32.mrf.mxu0
        %v2512 = vadd.f32 %v2483, %v2511
        %v2513 = vpop.f32.mrf.mxu0
        %v2514 = vadd.f32 %v2485, %v2513
        %2515 = vdwg.mxu0
        %2516 = vmatpush.bf16.msra.mxu0 %v2359
        %2517 = vmatpush.bf16.msra.mxu0 %v2355
        %2518 = vmatpush.bf16.msra.mxu0 %v2351
        %2519 = vmatpush.bf16.msra.mxu0 %v2347
        %2520 = vmatpush.bf16.msra.mxu0 %v2343
        %2521 = vmatpush.bf16.msra.mxu0 %v2339
        %2522 = vmatpush.bf16.msra.mxu0 %v2335
        %2523 = vmatpush.bf16.msra.mxu0 %v2331
        %2524 = vmatmul.bf16.gmra.mxu0 %v2056
        %v2525 = vpop.f32.mrf.mxu0
        %v2526 = vadd.f32 %v2131, %v2525
        %v2527 = vpop.f32.mrf.mxu0
        %v2528 = vadd.f32 %v2131, %v2527
        %2529 = vmatmul.bf16.gmra.mxu0 %v2058
        %v2530 = vpop.f32.mrf.mxu0
        %v2531 = vadd.f32 %v2131, %v2530
        %v2532 = vpop.f32.mrf.mxu0
        %v2533 = vadd.f32 %v2131, %v2532
        %2534 = vmatmul.bf16.gmra.mxu0 %v2060
        %v2535 = vpop.f32.mrf.mxu0
        %v2536 = vadd.f32 %v2131, %v2535
        %v2537 = vpop.f32.mrf.mxu0
        %v2538 = vadd.f32 %v2131, %v2537
        %2539 = vmatmul.bf16.gmra.mxu0 %v2062
        %v2540 = vpop.f32.mrf.mxu0
        %v2541 = vadd.f32 %v2131, %v2540
        %v2542 = vpop.f32.mrf.mxu0
        %v2543 = vadd.f32 %v2131, %v2542
        %2544 = vdwg.mxu0
        %2545 = vmatpush.bf16.msra.mxu0 %v2391
        %2546 = vmatpush.bf16.msra.mxu0 %v2387
        %2547 = vmatpush.bf16.msra.mxu0 %v2383
        %2548 = vmatpush.bf16.msra.mxu0 %v2379
        %2549 = vmatpush.bf16.msra.mxu0 %v2375
        %2550 = vmatpush.bf16.msra.mxu0 %v2371
        %2551 = vmatpush.bf16.msra.mxu0 %v2367
        %2552 = vmatpush.bf16.msra.mxu0 %v2363
        %2553 = vmatmul.bf16.gmra.mxu0 %v2057
        %v2554 = vpop.f32.mrf.mxu0
        %v2555 = vadd.f32 %v2526, %v2554
        %v2556 = vpop.f32.mrf.mxu0
        %v2557 = vadd.f32 %v2528, %v2556
        %2558 = vmatmul.bf16.gmra.mxu0 %v2059
        %v2559 = vpop.f32.mrf.mxu0
        %v2560 = vadd.f32 %v2531, %v2559
        %v2561 = vpop.f32.mrf.mxu0
        %v2562 = vadd.f32 %v2533, %v2561
        %2563 = vmatmul.bf16.gmra.mxu0 %v2061
        %v2564 = vpop.f32.mrf.mxu0
        %v2565 = vadd.f32 %v2536, %v2564
        %v2566 = vpop.f32.mrf.mxu0
        %v2567 = vadd.f32 %v2538, %v2566
        %2568 = vmatmul.bf16.gmra.mxu0 %v2063
        %v2569 = vpop.f32.mrf.mxu0
        %v2570 = vadd.f32 %v2541, %v2569
        %v2571 = vpop.f32.mrf.mxu0
        %v2572 = vadd.f32 %v2543, %v2571
        %2573 = vdwg.mxu0
        %2574 = vmatpush.bf16.msra.mxu0 %v2360
        %2575 = vmatpush.bf16.msra.mxu0 %v2356
        %2576 = vmatpush.bf16.msra.mxu0 %v2352
        %2577 = vmatpush.bf16.msra.mxu0 %v2348
        %2578 = vmatpush.bf16.msra.mxu0 %v2344
        %2579 = vmatpush.bf16.msra.mxu0 %v2340
        %2580 = vmatpush.bf16.msra.mxu0 %v2336
        %2581 = vmatpush.bf16.msra.mxu0 %v2332
        %2582 = vmatmul.bf16.gmra.mxu0 %v2056
        %v2583 = vpop.f32.mrf.mxu0
        %v2584 = vadd.f32 %v2132, %v2583
        %v2585 = vpop.f32.mrf.mxu0
        %v2586 = vadd.f32 %v2132, %v2585
        %2587 = vmatmul.bf16.gmra.mxu0 %v2058
        %v2588 = vpop.f32.mrf.mxu0
        %v2589 = vadd.f32 %v2132, %v2588
        %v2590 = vpop.f32.mrf.mxu0
        %v2591 = vadd.f32 %v2132, %v2590
        %2592 = vmatmul.bf16.gmra.mxu0 %v2060
        %v2593 = vpop.f32.mrf.mxu0
        %v2594 = vadd.f32 %v2132, %v2593
        %v2595 = vpop.f32.mrf.mxu0
        %v2596 = vadd.f32 %v2132, %v2595
        %2597 = vmatmul.bf16.gmra.mxu0 %v2062
        %v2598 = vpop.f32.mrf.mxu0
        %v2599 = vadd.f32 %v2132, %v2598
        %v2600 = vpop.f32.mrf.mxu0
        %v2601 = vadd.f32 %v2132, %v2600
        %2602 = vdwg.mxu0
        %2603 = vmatpush.bf16.msra.mxu0 %v2392
        %2604 = vmatpush.bf16.msra.mxu0 %v2388
        %2605 = vmatpush.bf16.msra.mxu0 %v2384
        %2606 = vmatpush.bf16.msra.mxu0 %v2380
        %2607 = vmatpush.bf16.msra.mxu0 %v2376
        %2608 = vmatpush.bf16.msra.mxu0 %v2372
        %2609 = vmatpush.bf16.msra.mxu0 %v2368
        %2610 = vmatpush.bf16.msra.mxu0 %v2364
        %2611 = vmatmul.bf16.gmra.mxu0 %v2057
        %v2612 = vpop.f32.mrf.mxu0
        %v2613 = vadd.f32 %v2584, %v2612
        %v2614 = vpop.f32.mrf.mxu0
        %v2615 = vadd.f32 %v2586, %v2614
        %2616 = vmatmul.bf16.gmra.mxu0 %v2059
        %v2617 = vpop.f32.mrf.mxu0
        %v2618 = vadd.f32 %v2589, %v2617
        %v2619 = vpop.f32.mrf.mxu0
        %v2620 = vadd.f32 %v2591, %v2619
        %2621 = vmatmul.bf16.gmra.mxu0 %v2061
        %v2622 = vpop.f32.mrf.mxu0
        %v2623 = vadd.f32 %v2594, %v2622
        %v2624 = vpop.f32.mrf.mxu0
        %v2625 = vadd.f32 %v2596, %v2624
        %2626 = vmatmul.bf16.gmra.mxu0 %v2063
        %v2627 = vpop.f32.mrf.mxu0
        %v2628 = vadd.f32 %v2599, %v2627
        %v2629 = vpop.f32.mrf.mxu0
        %v2630 = vadd.f32 %v2601, %v2629
        %2631 = vdwg.mxu0
        %2632 = vmatpush.bf16.msra.mxu0 %v2361
        %2633 = vmatpush.bf16.msra.mxu0 %v2357
        %2634 = vmatpush.bf16.msra.mxu0 %v2353
        %2635 = vmatpush.bf16.msra.mxu0 %v2349
        %2636 = vmatpush.bf16.msra.mxu0 %v2345
        %2637 = vmatpush.bf16.msra.mxu0 %v2341
        %2638 = vmatpush.bf16.msra.mxu0 %v2337
        %2639 = vmatpush.bf16.msra.mxu0 %v2333
        %2640 = vmatmul.bf16.gmra.mxu0 %v2056
        %v2641 = vpop.f32.mrf.mxu0
        %v2642 = vadd.f32 %v2133, %v2641
        %v2643 = vpop.f32.mrf.mxu0
        %v2644 = vadd.f32 %v2133, %v2643
        %2645 = vmatmul.bf16.gmra.mxu0 %v2058
        %v2646 = vpop.f32.mrf.mxu0
        %v2647 = vadd.f32 %v2133, %v2646
        %v2648 = vpop.f32.mrf.mxu0
        %v2649 = vadd.f32 %v2133, %v2648
        %2650 = vmatmul.bf16.gmra.mxu0 %v2060
        %v2651 = vpop.f32.mrf.mxu0
        %v2652 = vadd.f32 %v2133, %v2651
        %v2653 = vpop.f32.mrf.mxu0
        %v2654 = vadd.f32 %v2133, %v2653
        %2655 = vmatmul.bf16.gmra.mxu0 %v2062
        %v2656 = vpop.f32.mrf.mxu0
        %v2657 = vadd.f32 %v2133, %v2656
        %v2658 = vpop.f32.mrf.mxu0
        %v2659 = vadd.f32 %v2133, %v2658
        %2660 = vdwg.mxu0
        %2661 = vmatpush.bf16.msra.mxu0 %v2393
        %2662 = vmatpush.bf16.msra.mxu0 %v2389
        %2663 = vmatpush.bf16.msra.mxu0 %v2385
        %2664 = vmatpush.bf16.msra.mxu0 %v2381
        %2665 = vmatpush.bf16.msra.mxu0 %v2377
        %2666 = vmatpush.bf16.msra.mxu0 %v2373
        %2667 = vmatpush.bf16.msra.mxu0 %v2369
        %2668 = vmatpush.bf16.msra.mxu0 %v2365
        %2669 = vmatmul.bf16.gmra.mxu0 %v2057
        %v2670 = vpop.f32.mrf.mxu0
        %v2671 = vadd.f32 %v2642, %v2670
        %v2672 = vpop.f32.mrf.mxu0
        %v2673 = vadd.f32 %v2644, %v2672
        %2674 = vmatmul.bf16.gmra.mxu0 %v2059
        %v2675 = vpop.f32.mrf.mxu0
        %v2676 = vadd.f32 %v2647, %v2675
        %v2677 = vpop.f32.mrf.mxu0
        %v2678 = vadd.f32 %v2649, %v2677
        %2679 = vmatmul.bf16.gmra.mxu0 %v2061
        %v2680 = vpop.f32.mrf.mxu0
        %v2681 = vadd.f32 %v2652, %v2680
        %v2682 = vpop.f32.mrf.mxu0
        %v2683 = vadd.f32 %v2654, %v2682
        %2684 = vmatmul.bf16.gmra.mxu0 %v2063
        %v2685 = vpop.f32.mrf.mxu0
        %v2686 = vadd.f32 %v2657, %v2685
        %v2687 = vpop.f32.mrf.mxu0
        %v2688 = vadd.f32 %v2659, %v2687
        %2689 = vdwg.mxu0
        %v2690 = vmax.f32 %v2497, 0.0
        %v2691 = vmax.f32 %v2555, 0.0
        %v2692 = vmax.f32 %v2613, 0.0
        %v2693 = vmax.f32 %v2671, 0.0
        %v2694 = vmax.f32 %v2499, 0.0
        %v2695 = vmax.f32 %v2557, 0.0
        %v2696 = vmax.f32 %v2615, 0.0
        %v2697 = vmax.f32 %v2673, 0.0
        %v2698 = vmax.f32 %v2502, 0.0
        %v2699 = vmax.f32 %v2560, 0.0
        %v2700 = vmax.f32 %v2618, 0.0
        %v2701 = vmax.f32 %v2676, 0.0
        %v2702 = vmax.f32 %v2504, 0.0
        %v2703 = vmax.f32 %v2562, 0.0
        %v2704 = vmax.f32 %v2620, 0.0
        %v2705 = vmax.f32 %v2678, 0.0
        %v2706 = vmax.f32 %v2507, 0.0
        %v2707 = vmax.f32 %v2565, 0.0
        %v2708 = vmax.f32 %v2623, 0.0
        %v2709 = vmax.f32 %v2681, 0.0
        %v2710 = vmax.f32 %v2509, 0.0
        %v2711 = vmax.f32 %v2567, 0.0
        %v2712 = vmax.f32 %v2625, 0.0
        %v2713 = vmax.f32 %v2683, 0.0
        %v2714 = vmax.f32 %v2512, 0.0
        %v2715 = vmax.f32 %v2570, 0.0
        %v2716 = vmax.f32 %v2628, 0.0
        %v2717 = vmax.f32 %v2686, 0.0
        %v2718 = vmax.f32 %v2514, 0.0
        %v2719 = vmax.f32 %v2572, 0.0
        %v2720 = vmax.f32 %v2630, 0.0
        %v2721 = vmax.f32 %v2688, 0.0
        %v2722 = vpack.c.bf16 %v2694, %v2690
        %v2723 = vpack.c.bf16 %v2695, %v2691
        %v2724 = vpack.c.bf16 %v2696, %v2692
        %v2725 = vpack.c.bf16 %v2697, %v2693
        %v2726 = vpack.c.bf16 %v2702, %v2698
        %v2727 = vpack.c.bf16 %v2703, %v2699
        %v2728 = vpack.c.bf16 %v2704, %v2700
        %v2729 = vpack.c.bf16 %v2705, %v2701
        %v2730 = vpack.c.bf16 %v2710, %v2706
        %v2731 = vpack.c.bf16 %v2711, %v2707
        %v2732 = vpack.c.bf16 %v2712, %v2708
        %v2733 = vpack.c.bf16 %v2713, %v2709
        %v2734 = vpack.c.bf16 %v2718, %v2714
        %v2735 = vpack.c.bf16 %v2719, %v2715
        %v2736 = vpack.c.bf16 %v2720, %v2716
        %v2737 = vpack.c.bf16 %v2721, %v2717
        %v2738 = vld [vmem:[#allocation7] sm:$0xff]
        %v2739 = vld [vmem:[#allocation7 + $0x8] sm:$0xff]
        %v2740 = vld [vmem:[#allocation7 + $0x10] sm:$0xff]
        %v2741 = vld [vmem:[#allocation7 + $0x18] sm:$0xff]
        %v2742 = vld [vmem:[#allocation7 + $0x20] sm:$0xff]
        %v2743 = vld [vmem:[#allocation7 + $0x28] sm:$0xff]
        %v2744 = vld [vmem:[#allocation7 + $0x30] sm:$0xff]
        %v2745 = vld [vmem:[#allocation7 + $0x38] sm:$0xff]
        %v2746 = vld [vmem:[#allocation7 + $0x40] sm:$0xff]
        %v2747 = vld [vmem:[#allocation7 + $0x48] sm:$0xff]
        %v2748 = vld [vmem:[#allocation7 + $0x50] sm:$0xff]
        %v2749 = vld [vmem:[#allocation7 + $0x58] sm:$0xff]
        %v2750 = vld [vmem:[#allocation7 + $0x60] sm:$0xff]
        %v2751 = vld [vmem:[#allocation7 + $0x68] sm:$0xff]
        %v2752 = vld [vmem:[#allocation7 + $0x70] sm:$0xff]
        %v2753 = vld [vmem:[#allocation7 + $0x78] sm:$0xff]
        %v2754 = vld [vmem:[#allocation7 + $0x80] sm:$0xff]
        %v2755 = vld [vmem:[#allocation7 + $0x88] sm:$0xff]
        %v2756 = vld [vmem:[#allocation7 + $0x90] sm:$0xff]
        %v2757 = vld [vmem:[#allocation7 + $0x98] sm:$0xff]
        %v2758 = vld [vmem:[#allocation7 + $0xa0] sm:$0xff]
        %v2759 = vld [vmem:[#allocation7 + $0xa8] sm:$0xff]
        %v2760 = vld [vmem:[#allocation7 + $0xb0] sm:$0xff]
        %v2761 = vld [vmem:[#allocation7 + $0xb8] sm:$0xff]
        %v2762 = vld [vmem:[#allocation7 + $0xc0] sm:$0xff]
        %v2763 = vld [vmem:[#allocation7 + $0xc8] sm:$0xff]
        %v2764 = vld [vmem:[#allocation7 + $0xd0] sm:$0xff]
        %v2765 = vld [vmem:[#allocation7 + $0xd8] sm:$0xff]
        %v2766 = vld [vmem:[#allocation7 + $0xe0] sm:$0xff]
        %v2767 = vld [vmem:[#allocation7 + $0xe8] sm:$0xff]
        %v2768 = vld [vmem:[#allocation7 + $0xf0] sm:$0xff]
        %v2769 = vld [vmem:[#allocation7 + $0xf8] sm:$0xff]
        %v2770 = vld [vmem:[#allocation7 + $0x100] sm:$0xff]
        %v2771 = vld [vmem:[#allocation7 + $0x108] sm:$0xff]
        %v2772 = vld [vmem:[#allocation7 + $0x110] sm:$0xff]
        %v2773 = vld [vmem:[#allocation7 + $0x118] sm:$0xff]
        %v2774 = vld [vmem:[#allocation7 + $0x120] sm:$0xff]
        %v2775 = vld [vmem:[#allocation7 + $0x128] sm:$0xff]
        %v2776 = vld [vmem:[#allocation7 + $0x130] sm:$0xff]
        %v2777 = vld [vmem:[#allocation7 + $0x138] sm:$0xff]
        %v2778 = vld [vmem:[#allocation7 + $0x140] sm:$0xff]
        %v2779 = vld [vmem:[#allocation7 + $0x148] sm:$0xff]
        %v2780 = vld [vmem:[#allocation7 + $0x150] sm:$0xff]
        %v2781 = vld [vmem:[#allocation7 + $0x158] sm:$0xff]
        %v2782 = vld [vmem:[#allocation7 + $0x160] sm:$0xff]
        %v2783 = vld [vmem:[#allocation7 + $0x168] sm:$0xff]
        %v2784 = vld [vmem:[#allocation7 + $0x170] sm:$0xff]
        %v2785 = vld [vmem:[#allocation7 + $0x178] sm:$0xff]
        %v2786 = vld [vmem:[#allocation7 + $0x180] sm:$0xff]
        %v2787 = vld [vmem:[#allocation7 + $0x188] sm:$0xff]
        %v2788 = vld [vmem:[#allocation7 + $0x190] sm:$0xff]
        %v2789 = vld [vmem:[#allocation7 + $0x198] sm:$0xff]
        %v2790 = vld [vmem:[#allocation7 + $0x1a0] sm:$0xff]
        %v2791 = vld [vmem:[#allocation7 + $0x1a8] sm:$0xff]
        %v2792 = vld [vmem:[#allocation7 + $0x1b0] sm:$0xff]
        %v2793 = vld [vmem:[#allocation7 + $0x1b8] sm:$0xff]
        %v2794 = vld [vmem:[#allocation7 + $0x1c0] sm:$0xff]
        %v2795 = vld [vmem:[#allocation7 + $0x1c8] sm:$0xff]
        %v2796 = vld [vmem:[#allocation7 + $0x1d0] sm:$0xff]
        %v2797 = vld [vmem:[#allocation7 + $0x1d8] sm:$0xff]
        %v2798 = vld [vmem:[#allocation7 + $0x1e0] sm:$0xff]
        %v2799 = vld [vmem:[#allocation7 + $0x1e8] sm:$0xff]
        %v2800 = vld [vmem:[#allocation7 + $0x1f0] sm:$0xff]
        %v2801 = vld [vmem:[#allocation7 + $0x1f8] sm:$0xff]
        %v2802 = vld [vmem:[%s9] sm:$0x3]
        %v2804 = vperm.slane %v2802, 0
        %v2805 = vperm.slane %v2802, 1
        %v2872 = vunpack.c.l.b16 %v2738
        %v2873 = vunpack.c.h.b16 %v2738
        %v2874 = vunpack.c.l.b16 %v2739
        %v2875 = vunpack.c.h.b16 %v2739
        %v2876 = vunpack.c.l.b16 %v2740
        %v2877 = vunpack.c.h.b16 %v2740
        %v2878 = vunpack.c.l.b16 %v2741
        %v2879 = vunpack.c.h.b16 %v2741
        %v2880 = vunpack.c.l.b16 %v2742
        %v2881 = vunpack.c.h.b16 %v2742
        %v2882 = vunpack.c.l.b16 %v2743
        %v2883 = vunpack.c.h.b16 %v2743
        %v2884 = vunpack.c.l.b16 %v2744
        %v2885 = vunpack.c.h.b16 %v2744
        %v2886 = vunpack.c.l.b16 %v2745
        %v2887 = vunpack.c.h.b16 %v2745
        %v2888 = vunpack.c.l.b16 %v2746
        %v2889 = vunpack.c.h.b16 %v2746
        %v2890 = vunpack.c.l.b16 %v2747
        %v2891 = vunpack.c.h.b16 %v2747
        %v2892 = vunpack.c.l.b16 %v2748
        %v2893 = vunpack.c.h.b16 %v2748
        %v2894 = vunpack.c.l.b16 %v2749
        %v2895 = vunpack.c.h.b16 %v2749
        %v2896 = vunpack.c.l.b16 %v2750
        %v2897 = vunpack.c.h.b16 %v2750
        %v2898 = vunpack.c.l.b16 %v2751
        %v2899 = vunpack.c.h.b16 %v2751
        %v2900 = vunpack.c.l.b16 %v2752
        %v2901 = vunpack.c.h.b16 %v2752
        %v2902 = vunpack.c.l.b16 %v2753
        %v2903 = vunpack.c.h.b16 %v2753
        %v2904 = vunpack.c.l.b16 %v2754
        %v2905 = vunpack.c.h.b16 %v2754
        %v2906 = vunpack.c.l.b16 %v2755
        %v2907 = vunpack.c.h.b16 %v2755
        %v2908 = vunpack.c.l.b16 %v2756
        %v2909 = vunpack.c.h.b16 %v2756
        %v2910 = vunpack.c.l.b16 %v2757
        %v2911 = vunpack.c.h.b16 %v2757
        %v2912 = vunpack.c.l.b16 %v2758
        %v2913 = vunpack.c.h.b16 %v2758
        %v2914 = vunpack.c.l.b16 %v2759
        %v2915 = vunpack.c.h.b16 %v2759
        %v2916 = vunpack.c.l.b16 %v2760
        %v2917 = vunpack.c.h.b16 %v2760
        %v2918 = vunpack.c.l.b16 %v2761
        %v2919 = vunpack.c.h.b16 %v2761
        %v2920 = vunpack.c.l.b16 %v2762
        %v2921 = vunpack.c.h.b16 %v2762
        %v2922 = vunpack.c.l.b16 %v2763
        %v2923 = vunpack.c.h.b16 %v2763
        %v2924 = vunpack.c.l.b16 %v2764
        %v2925 = vunpack.c.h.b16 %v2764
        %v2926 = vunpack.c.l.b16 %v2765
        %v2927 = vunpack.c.h.b16 %v2765
        %v2928 = vunpack.c.l.b16 %v2766
        %v2929 = vunpack.c.h.b16 %v2766
        %v2930 = vunpack.c.l.b16 %v2767
        %v2931 = vunpack.c.h.b16 %v2767
        %v2932 = vunpack.c.l.b16 %v2768
        %v2933 = vunpack.c.h.b16 %v2768
        %v2934 = vunpack.c.l.b16 %v2769
        %v2935 = vunpack.c.h.b16 %v2769
        %v2936 = vunpack.c.l.b16 %v2770
        %v2937 = vunpack.c.h.b16 %v2770
        %v2938 = vunpack.c.l.b16 %v2771
        %v2939 = vunpack.c.h.b16 %v2771
        %v2940 = vunpack.c.l.b16 %v2772
        %v2941 = vunpack.c.h.b16 %v2772
        %v2942 = vunpack.c.l.b16 %v2773
        %v2943 = vunpack.c.h.b16 %v2773
        %v2944 = vunpack.c.l.b16 %v2774
        %v2945 = vunpack.c.h.b16 %v2774
        %v2946 = vunpack.c.l.b16 %v2775
        %v2947 = vunpack.c.h.b16 %v2775
        %v2948 = vunpack.c.l.b16 %v2776
        %v2949 = vunpack.c.h.b16 %v2776
        %v2950 = vunpack.c.l.b16 %v2777
        %v2951 = vunpack.c.h.b16 %v2777
        %v2952 = vunpack.c.l.b16 %v2778
        %v2953 = vunpack.c.h.b16 %v2778
        %v2954 = vunpack.c.l.b16 %v2779
        %v2955 = vunpack.c.h.b16 %v2779
        %v2956 = vunpack.c.l.b16 %v2780
        %v2957 = vunpack.c.h.b16 %v2780
        %v2958 = vunpack.c.l.b16 %v2781
        %v2959 = vunpack.c.h.b16 %v2781
        %v2960 = vunpack.c.l.b16 %v2782
        %v2961 = vunpack.c.h.b16 %v2782
        %v2962 = vunpack.c.l.b16 %v2783
        %v2963 = vunpack.c.h.b16 %v2783
        %v2964 = vunpack.c.l.b16 %v2784
        %v2965 = vunpack.c.h.b16 %v2784
        %v2966 = vunpack.c.l.b16 %v2785
        %v2967 = vunpack.c.h.b16 %v2785
        %v2968 = vunpack.c.l.b16 %v2786
        %v2969 = vunpack.c.h.b16 %v2786
        %v2970 = vunpack.c.l.b16 %v2787
        %v2971 = vunpack.c.h.b16 %v2787
        %v2972 = vunpack.c.l.b16 %v2788
        %v2973 = vunpack.c.h.b16 %v2788
        %v2974 = vunpack.c.l.b16 %v2789
        %v2975 = vunpack.c.h.b16 %v2789
        %v2976 = vunpack.c.l.b16 %v2790
        %v2977 = vunpack.c.h.b16 %v2790
        %v2978 = vunpack.c.l.b16 %v2791
        %v2979 = vunpack.c.h.b16 %v2791
        %v2980 = vunpack.c.l.b16 %v2792
        %v2981 = vunpack.c.h.b16 %v2792
        %v2982 = vunpack.c.l.b16 %v2793
        %v2983 = vunpack.c.h.b16 %v2793
        %v2984 = vunpack.c.l.b16 %v2794
        %v2985 = vunpack.c.h.b16 %v2794
        %v2986 = vunpack.c.l.b16 %v2795
        %v2987 = vunpack.c.h.b16 %v2795
        %v2988 = vunpack.c.l.b16 %v2796
        %v2989 = vunpack.c.h.b16 %v2796
        %v2990 = vunpack.c.l.b16 %v2797
        %v2991 = vunpack.c.h.b16 %v2797
        %v2992 = vunpack.c.l.b16 %v2798
        %v2993 = vunpack.c.h.b16 %v2798
        %v2994 = vunpack.c.l.b16 %v2799
        %v2995 = vunpack.c.h.b16 %v2799
        %v2996 = vunpack.c.l.b16 %v2800
        %v2997 = vunpack.c.h.b16 %v2800
        %v2998 = vunpack.c.l.b16 %v2801
        %v2999 = vunpack.c.h.b16 %v2801
        %v3000 = vpack.c.b16 %v2874, %v2872
        %v3001 = vpack.c.b16 %v2875, %v2873
        %v3002 = vpack.c.b16 %v2878, %v2876
        %v3003 = vpack.c.b16 %v2879, %v2877
        %v3004 = vpack.c.b16 %v2882, %v2880
        %v3005 = vpack.c.b16 %v2883, %v2881
        %v3006 = vpack.c.b16 %v2886, %v2884
        %v3007 = vpack.c.b16 %v2887, %v2885
        %v3008 = vpack.c.b16 %v2890, %v2888
        %v3009 = vpack.c.b16 %v2891, %v2889
        %v3010 = vpack.c.b16 %v2894, %v2892
        %v3011 = vpack.c.b16 %v2895, %v2893
        %v3012 = vpack.c.b16 %v2898, %v2896
        %v3013 = vpack.c.b16 %v2899, %v2897
        %v3014 = vpack.c.b16 %v2902, %v2900
        %v3015 = vpack.c.b16 %v2903, %v2901
        %v3016 = vpack.c.b16 %v2906, %v2904
        %v3017 = vpack.c.b16 %v2907, %v2905
        %v3018 = vpack.c.b16 %v2910, %v2908
        %v3019 = vpack.c.b16 %v2911, %v2909
        %v3020 = vpack.c.b16 %v2914, %v2912
        %v3021 = vpack.c.b16 %v2915, %v2913
        %v3022 = vpack.c.b16 %v2918, %v2916
        %v3023 = vpack.c.b16 %v2919, %v2917
        %v3024 = vpack.c.b16 %v2922, %v2920
        %v3025 = vpack.c.b16 %v2923, %v2921
        %v3026 = vpack.c.b16 %v2926, %v2924
        %v3027 = vpack.c.b16 %v2927, %v2925
        %v3028 = vpack.c.b16 %v2930, %v2928
        %v3029 = vpack.c.b16 %v2931, %v2929
        %v3030 = vpack.c.b16 %v2934, %v2932
        %v3031 = vpack.c.b16 %v2935, %v2933
        %v3032 = vpack.c.b16 %v2938, %v2936
        %v3033 = vpack.c.b16 %v2939, %v2937
        %v3034 = vpack.c.b16 %v2942, %v2940
        %v3035 = vpack.c.b16 %v2943, %v2941
        %v3036 = vpack.c.b16 %v2946, %v2944
        %v3037 = vpack.c.b16 %v2947, %v2945
        %v3038 = vpack.c.b16 %v2950, %v2948
        %v3039 = vpack.c.b16 %v2951, %v2949
        %v3040 = vpack.c.b16 %v2954, %v2952
        %v3041 = vpack.c.b16 %v2955, %v2953
        %v3042 = vpack.c.b16 %v2958, %v2956
        %v3043 = vpack.c.b16 %v2959, %v2957
        %v3044 = vpack.c.b16 %v2962, %v2960
        %v3045 = vpack.c.b16 %v2963, %v2961
        %v3046 = vpack.c.b16 %v2966, %v2964
        %v3047 = vpack.c.b16 %v2967, %v2965
        %v3048 = vpack.c.b16 %v2970, %v2968
        %v3049 = vpack.c.b16 %v2971, %v2969
        %v3050 = vpack.c.b16 %v2974, %v2972
        %v3051 = vpack.c.b16 %v2975, %v2973
        %v3052 = vpack.c.b16 %v2978, %v2976
        %v3053 = vpack.c.b16 %v2979, %v2977
        %v3054 = vpack.c.b16 %v2982, %v2980
        %v3055 = vpack.c.b16 %v2983, %v2981
        %v3056 = vpack.c.b16 %v2986, %v2984
        %v3057 = vpack.c.b16 %v2987, %v2985
        %v3058 = vpack.c.b16 %v2990, %v2988
        %v3059 = vpack.c.b16 %v2991, %v2989
        %v3060 = vpack.c.b16 %v2994, %v2992
        %v3061 = vpack.c.b16 %v2995, %v2993
        %v3062 = vpack.c.b16 %v2998, %v2996
        %v3063 = vpack.c.b16 %v2999, %v2997
        %3128 = vmatpush.bf16.msra.mxu0 %v3014
        %3129 = vmatpush.bf16.msra.mxu0 %v3012
        %3130 = vmatpush.bf16.msra.mxu0 %v3010
        %3131 = vmatpush.bf16.msra.mxu0 %v3008
        %3132 = vmatpush.bf16.msra.mxu0 %v3006
        %3133 = vmatpush.bf16.msra.mxu0 %v3004
        %3134 = vmatpush.bf16.msra.mxu0 %v3002
        %3135 = vmatpush.bf16.msra.mxu0 %v3000
        %3136 = vmatmul.bf16.gmra.mxu0 %v2722
        %v3137 = vpop.f32.mrf.mxu0
        %v3138 = vadd.f32 %v2804, %v3137
        %v3139 = vpop.f32.mrf.mxu0
        %v3140 = vadd.f32 %v2804, %v3139
        %3141 = vmatmul.bf16.gmra.mxu0 %v2726
        %v3142 = vpop.f32.mrf.mxu0
        %v3143 = vadd.f32 %v2804, %v3142
        %v3144 = vpop.f32.mrf.mxu0
        %v3145 = vadd.f32 %v2804, %v3144
        %3146 = vmatmul.bf16.gmra.mxu0 %v2730
        %v3147 = vpop.f32.mrf.mxu0
        %v3148 = vadd.f32 %v2804, %v3147
        %v3149 = vpop.f32.mrf.mxu0
        %v3150 = vadd.f32 %v2804, %v3149
        %3151 = vmatmul.bf16.gmra.mxu0 %v2734
        %v3152 = vpop.f32.mrf.mxu0
        %v3153 = vadd.f32 %v2804, %v3152
        %v3154 = vpop.f32.mrf.mxu0
        %v3155 = vadd.f32 %v2804, %v3154
        %3156 = vdwg.mxu0
        %3157 = vmatpush.bf16.msra.mxu0 %v3030
        %3158 = vmatpush.bf16.msra.mxu0 %v3028
        %3159 = vmatpush.bf16.msra.mxu0 %v3026
        %3160 = vmatpush.bf16.msra.mxu0 %v3024
        %3161 = vmatpush.bf16.msra.mxu0 %v3022
        %3162 = vmatpush.bf16.msra.mxu0 %v3020
        %3163 = vmatpush.bf16.msra.mxu0 %v3018
        %3164 = vmatpush.bf16.msra.mxu0 %v3016
        %3165 = vmatmul.bf16.gmra.mxu0 %v2723
        %v3166 = vpop.f32.mrf.mxu0
        %v3167 = vadd.f32 %v3138, %v3166
        %v3168 = vpop.f32.mrf.mxu0
        %v3169 = vadd.f32 %v3140, %v3168
        %3170 = vmatmul.bf16.gmra.mxu0 %v2727
        %v3171 = vpop.f32.mrf.mxu0
        %v3172 = vadd.f32 %v3143, %v3171
        %v3173 = vpop.f32.mrf.mxu0
        %v3174 = vadd.f32 %v3145, %v3173
        %3175 = vmatmul.bf16.gmra.mxu0 %v2731
        %v3176 = vpop.f32.mrf.mxu0
        %v3177 = vadd.f32 %v3148, %v3176
        %v3178 = vpop.f32.mrf.mxu0
        %v3179 = vadd.f32 %v3150, %v3178
        %3180 = vmatmul.bf16.gmra.mxu0 %v2735
        %v3181 = vpop.f32.mrf.mxu0
        %v3182 = vadd.f32 %v3153, %v3181
        %v3183 = vpop.f32.mrf.mxu0
        %v3184 = vadd.f32 %v3155, %v3183
        %3185 = vdwg.mxu0
        %3186 = vmatpush.bf16.msra.mxu0 %v3046
        %3187 = vmatpush.bf16.msra.mxu0 %v3044
        %3188 = vmatpush.bf16.msra.mxu0 %v3042
        %3189 = vmatpush.bf16.msra.mxu0 %v3040
        %3190 = vmatpush.bf16.msra.mxu0 %v3038
        %3191 = vmatpush.bf16.msra.mxu0 %v3036
        %3192 = vmatpush.bf16.msra.mxu0 %v3034
        %3193 = vmatpush.bf16.msra.mxu0 %v3032
        %3194 = vmatmul.bf16.gmra.mxu0 %v2724
        %v3195 = vpop.f32.mrf.mxu0
        %v3196 = vadd.f32 %v3167, %v3195
        %v3197 = vpop.f32.mrf.mxu0
        %v3198 = vadd.f32 %v3169, %v3197
        %3199 = vmatmul.bf16.gmra.mxu0 %v2728
        %v3200 = vpop.f32.mrf.mxu0
        %v3201 = vadd.f32 %v3172, %v3200
        %v3202 = vpop.f32.mrf.mxu0
        %v3203 = vadd.f32 %v3174, %v3202
        %3204 = vmatmul.bf16.gmra.mxu0 %v2732
        %v3205 = vpop.f32.mrf.mxu0
        %v3206 = vadd.f32 %v3177, %v3205
        %v3207 = vpop.f32.mrf.mxu0
        %v3208 = vadd.f32 %v3179, %v3207
        %3209 = vmatmul.bf16.gmra.mxu0 %v2736
        %v3210 = vpop.f32.mrf.mxu0
        %v3211 = vadd.f32 %v3182, %v3210
        %v3212 = vpop.f32.mrf.mxu0
        %v3213 = vadd.f32 %v3184, %v3212
        %3214 = vdwg.mxu0
        %3215 = vmatpush.bf16.msra.mxu0 %v3062
        %3216 = vmatpush.bf16.msra.mxu0 %v3060
        %3217 = vmatpush.bf16.msra.mxu0 %v3058
        %3218 = vmatpush.bf16.msra.mxu0 %v3056
        %3219 = vmatpush.bf16.msra.mxu0 %v3054
        %3220 = vmatpush.bf16.msra.mxu0 %v3052
        %3221 = vmatpush.bf16.msra.mxu0 %v3050
        %3222 = vmatpush.bf16.msra.mxu0 %v3048
        %3223 = vmatmul.bf16.gmra.mxu0 %v2725
        %v3224 = vpop.f32.mrf.mxu0
        %v3225 = vadd.f32 %v3196, %v3224
        %v3226 = vpop.f32.mrf.mxu0
        %v3227 = vadd.f32 %v3198, %v3226
        %3228 = vmatmul.bf16.gmra.mxu0 %v2729
        %v3229 = vpop.f32.mrf.mxu0
        %v3230 = vadd.f32 %v3201, %v3229
        %v3231 = vpop.f32.mrf.mxu0
        %v3232 = vadd.f32 %v3203, %v3231
        %3233 = vmatmul.bf16.gmra.mxu0 %v2733
        %v3234 = vpop.f32.mrf.mxu0
        %v3235 = vadd.f32 %v3206, %v3234
        %v3236 = vpop.f32.mrf.mxu0
        %v3237 = vadd.f32 %v3208, %v3236
        %3238 = vmatmul.bf16.gmra.mxu0 %v2737
        %v3239 = vpop.f32.mrf.mxu0
        %v3240 = vadd.f32 %v3211, %v3239
        %v3241 = vpop.f32.mrf.mxu0
        %v3242 = vadd.f32 %v3213, %v3241
        %3243 = vdwg.mxu0
        %3244 = vmatpush.bf16.msra.mxu0 %v3015
        %3245 = vmatpush.bf16.msra.mxu0 %v3013
        %3246 = vmatpush.bf16.msra.mxu0 %v3011
        %3247 = vmatpush.bf16.msra.mxu0 %v3009
        %3248 = vmatpush.bf16.msra.mxu0 %v3007
        %3249 = vmatpush.bf16.msra.mxu0 %v3005
        %3250 = vmatpush.bf16.msra.mxu0 %v3003
        %3251 = vmatpush.bf16.msra.mxu0 %v3001
        %3252 = vmatmul.bf16.gmra.mxu0 %v2722
        %v3253 = vpop.f32.mrf.mxu0
        %v3254 = vadd.f32 %v2805, %v3253
        %v3255 = vpop.f32.mrf.mxu0
        %v3256 = vadd.f32 %v2805, %v3255
        %3257 = vmatmul.bf16.gmra.mxu0 %v2726
        %v3258 = vpop.f32.mrf.mxu0
        %v3259 = vadd.f32 %v2805, %v3258
        %v3260 = vpop.f32.mrf.mxu0
        %v3261 = vadd.f32 %v2805, %v3260
        %3262 = vmatmul.bf16.gmra.mxu0 %v2730
        %v3263 = vpop.f32.mrf.mxu0
        %v3264 = vadd.f32 %v2805, %v3263
        %v3265 = vpop.f32.mrf.mxu0
        %v3266 = vadd.f32 %v2805, %v3265
        %3267 = vmatmul.bf16.gmra.mxu0 %v2734
        %v3268 = vpop.f32.mrf.mxu0
        %v3269 = vadd.f32 %v2805, %v3268
        %v3270 = vpop.f32.mrf.mxu0
        %v3271 = vadd.f32 %v2805, %v3270
        %3272 = vdwg.mxu0
        %3273 = vmatpush.bf16.msra.mxu0 %v3031
        %3274 = vmatpush.bf16.msra.mxu0 %v3029
        %3275 = vmatpush.bf16.msra.mxu0 %v3027
        %3276 = vmatpush.bf16.msra.mxu0 %v3025
        %3277 = vmatpush.bf16.msra.mxu0 %v3023
        %3278 = vmatpush.bf16.msra.mxu0 %v3021
        %3279 = vmatpush.bf16.msra.mxu0 %v3019
        %3280 = vmatpush.bf16.msra.mxu0 %v3017
        %3281 = vmatmul.bf16.gmra.mxu0 %v2723
        %v3282 = vpop.f32.mrf.mxu0
        %v3283 = vadd.f32 %v3254, %v3282
        %v3284 = vpop.f32.mrf.mxu0
        %v3285 = vadd.f32 %v3256, %v3284
        %3286 = vmatmul.bf16.gmra.mxu0 %v2727
        %v3287 = vpop.f32.mrf.mxu0
        %v3288 = vadd.f32 %v3259, %v3287
        %v3289 = vpop.f32.mrf.mxu0
        %v3290 = vadd.f32 %v3261, %v3289
        %3291 = vmatmul.bf16.gmra.mxu0 %v2731
        %v3292 = vpop.f32.mrf.mxu0
        %v3293 = vadd.f32 %v3264, %v3292
        %v3294 = vpop.f32.mrf.mxu0
        %v3295 = vadd.f32 %v3266, %v3294
        %3296 = vmatmul.bf16.gmra.mxu0 %v2735
        %v3297 = vpop.f32.mrf.mxu0
        %v3298 = vadd.f32 %v3269, %v3297
        %v3299 = vpop.f32.mrf.mxu0
        %v3300 = vadd.f32 %v3271, %v3299
        %3301 = vdwg.mxu0
        %3302 = vmatpush.bf16.msra.mxu0 %v3047
        %3303 = vmatpush.bf16.msra.mxu0 %v3045
        %3304 = vmatpush.bf16.msra.mxu0 %v3043
        %3305 = vmatpush.bf16.msra.mxu0 %v3041
        %3306 = vmatpush.bf16.msra.mxu0 %v3039
        %3307 = vmatpush.bf16.msra.mxu0 %v3037
        %3308 = vmatpush.bf16.msra.mxu0 %v3035
        %3309 = vmatpush.bf16.msra.mxu0 %v3033
        %3310 = vmatmul.bf16.gmra.mxu0 %v2724
        %v3311 = vpop.f32.mrf.mxu0
        %v3312 = vadd.f32 %v3283, %v3311
        %v3313 = vpop.f32.mrf.mxu0
        %v3314 = vadd.f32 %v3285, %v3313
        %3315 = vmatmul.bf16.gmra.mxu0 %v2728
        %v3316 = vpop.f32.mrf.mxu0
        %v3317 = vadd.f32 %v3288, %v3316
        %v3318 = vpop.f32.mrf.mxu0
        %v3319 = vadd.f32 %v3290, %v3318
        %3320 = vmatmul.bf16.gmra.mxu0 %v2732
        %v3321 = vpop.f32.mrf.mxu0
        %v3322 = vadd.f32 %v3293, %v3321
        %v3323 = vpop.f32.mrf.mxu0
        %v3324 = vadd.f32 %v3295, %v3323
        %3325 = vmatmul.bf16.gmra.mxu0 %v2736
        %v3326 = vpop.f32.mrf.mxu0
        %v3327 = vadd.f32 %v3298, %v3326
        %v3328 = vpop.f32.mrf.mxu0
        %v3329 = vadd.f32 %v3300, %v3328
        %3330 = vdwg.mxu0
        %3331 = vmatpush.bf16.msra.mxu0 %v3063
        %3332 = vmatpush.bf16.msra.mxu0 %v3061
        %3333 = vmatpush.bf16.msra.mxu0 %v3059
        %3334 = vmatpush.bf16.msra.mxu0 %v3057
        %3335 = vmatpush.bf16.msra.mxu0 %v3055
        %3336 = vmatpush.bf16.msra.mxu0 %v3053
        %3337 = vmatpush.bf16.msra.mxu0 %v3051
        %3338 = vmatpush.bf16.msra.mxu0 %v3049
        %3339 = vmatmul.bf16.gmra.mxu0 %v2725
        %v3340 = vpop.f32.mrf.mxu0
        %v3341 = vadd.f32 %v3312, %v3340
        %v3342 = vpop.f32.mrf.mxu0
        %v3343 = vadd.f32 %v3314, %v3342
        %3344 = vmatmul.bf16.gmra.mxu0 %v2729
        %v3345 = vpop.f32.mrf.mxu0
        %v3346 = vadd.f32 %v3317, %v3345
        %v3347 = vpop.f32.mrf.mxu0
        %v3348 = vadd.f32 %v3319, %v3347
        %3349 = vmatmul.bf16.gmra.mxu0 %v2733
        %v3350 = vpop.f32.mrf.mxu0
        %v3351 = vadd.f32 %v3322, %v3350
        %v3352 = vpop.f32.mrf.mxu0
        %v3353 = vadd.f32 %v3324, %v3352
        %3354 = vmatmul.bf16.gmra.mxu0 %v2737
        %v3355 = vpop.f32.mrf.mxu0
        %v3356 = vadd.f32 %v3327, %v3355
        %v3357 = vpop.f32.mrf.mxu0
        %v3358 = vadd.f32 %v3329, %v3357
        %3359 = vdwg.mxu0
        %v3360 = vmax.f32 %v3225, 0.0
        %v3361 = vmax.f32 %v3341, 0.0
        %v3362 = vmax.f32 %v3227, 0.0
        %v3363 = vmax.f32 %v3343, 0.0
        %v3364 = vmax.f32 %v3230, 0.0
        %v3365 = vmax.f32 %v3346, 0.0
        %v3366 = vmax.f32 %v3232, 0.0
        %v3367 = vmax.f32 %v3348, 0.0
        %v3368 = vmax.f32 %v3235, 0.0
        %v3369 = vmax.f32 %v3351, 0.0
        %v3370 = vmax.f32 %v3237, 0.0
        %v3371 = vmax.f32 %v3353, 0.0
        %v3372 = vmax.f32 %v3240, 0.0
        %v3373 = vmax.f32 %v3356, 0.0
        %v3374 = vmax.f32 %v3242, 0.0
        %v3375 = vmax.f32 %v3358, 0.0
        %v3376 = vpack.c.bf16 %v3361, %v3360
        %v3377 = vpack.c.bf16 %v3363, %v3362
        %v3378 = vpack.c.bf16 %v3365, %v3364
        %v3379 = vpack.c.bf16 %v3367, %v3366
        %v3380 = vpack.c.bf16 %v3369, %v3368
        %v3381 = vpack.c.bf16 %v3371, %v3370
        %v3382 = vpack.c.bf16 %v3373, %v3372
        %v3383 = vpack.c.bf16 %v3375, %v3374
        %s3384 = smul.addr %s1949, 4
        %s3385 = scalar_lea.vmem %s508, %s3384 [#allocation8]
        %3386 = vst [vmem:[%s3385] sm:$0xff] %v3376
        %3387 = vst [vmem:[%s3385 + $0x8] sm:$0xff] %v3377
        %3388 = vst [vmem:[%s3385 + $0x10] sm:$0xff] %v3378
        %3389 = vst [vmem:[%s3385 + $0x18] sm:$0xff] %v3379
        %3390 = vst [vmem:[%s3385 + $0x20] sm:$0xff] %v3380
        %3391 = vst [vmem:[%s3385 + $0x28] sm:$0xff] %v3381
        %3392 = vst [vmem:[%s3385 + $0x30] sm:$0xff] %v3382
        %3393 = vst [vmem:[%s3385 + $0x38] sm:$0xff] %v3383
        %v3394 = vpack.c.bf16 %v1930, %v1901
        %v3395 = vpack.c.bf16 %v1932, %v1903
        %v3396 = vpack.c.bf16 %v1935, %v1906
        %v3397 = vpack.c.bf16 %v1937, %v1908
        %v3398 = vpack.c.bf16 %v1940, %v1911
        %v3399 = vpack.c.bf16 %v1942, %v1913
        %v3400 = vpack.c.bf16 %v1945, %v1916
        %v3401 = vpack.c.bf16 %v1947, %v1918
        %s3402 = smul.addr %s1949, 4
        %s3403 = scalar_lea.vmem %s515, %s3402 [#allocation9]
        %3404 = vst [vmem:[%s3403] sm:$0xff] %v3394
        %3405 = vst [vmem:[%s3403 + $0x8] sm:$0xff] %v3395
        %3406 = vst [vmem:[%s3403 + $0x10] sm:$0xff] %v3396
        %3407 = vst [vmem:[%s3403 + $0x18] sm:$0xff] %v3397
        %3408 = vst [vmem:[%s3403 + $0x20] sm:$0xff] %v3398
        %3409 = vst [vmem:[%s3403 + $0x28] sm:$0xff] %v3399
        %3410 = vst [vmem:[%s3403 + $0x30] sm:$0xff] %v3400
        %3411 = vst [vmem:[%s3403 + $0x38] sm:$0xff] %v3401
        %v3412 = vpack.c.bf16 %v1700, %v1584
        %v3413 = vpack.c.bf16 %v1702, %v1586
        %v3414 = vpack.c.bf16 %v1705, %v1589
        %v3415 = vpack.c.bf16 %v1707, %v1591
        %v3416 = vpack.c.bf16 %v1710, %v1594
        %v3417 = vpack.c.bf16 %v1712, %v1596
        %v3418 = vpack.c.bf16 %v1715, %v1599
        %v3419 = vpack.c.bf16 %v1717, %v1601
        %s3420 = smul.addr %s1949, 4
        %s3421 = scalar_lea.vmem %s522, %s3420 [#allocation11]
        %3422 = vst [vmem:[%s3421] sm:$0xff] %v3412
        %3423 = vst [vmem:[%s3421 + $0x8] sm:$0xff] %v3413
        %3424 = vst [vmem:[%s3421 + $0x10] sm:$0xff] %v3414
        %3425 = vst [vmem:[%s3421 + $0x18] sm:$0xff] %v3415
        %3426 = vst [vmem:[%s3421 + $0x20] sm:$0xff] %v3416
        %3427 = vst [vmem:[%s3421 + $0x28] sm:$0xff] %v3417
        %3428 = vst [vmem:[%s3421 + $0x30] sm:$0xff] %v3418
        %3429 = vst [vmem:[%s3421 + $0x38] sm:$0xff] %v3419
        %s3430 = smul.u32 8, 4
        %s3431 = smul.addr %s3430, 4
        %s3432 = scalar_lea.vmem %s528, %s3431
        %v3433 = vld [vmem:[%s3432] sm:$0xff]
        %v3434 = vld [vmem:[%s3432 + $0x8] sm:$0xff]
        %v3435 = vld [vmem:[%s3432 + $0x10] sm:$0xff]
        %v3436 = vld [vmem:[%s3432 + $0x18] sm:$0xff]
        %v3437 = vld [vmem:[%s3432 + $0x20] sm:$0xff]
        %v3438 = vld [vmem:[%s3432 + $0x28] sm:$0xff]
        %v3439 = vld [vmem:[%s3432 + $0x30] sm:$0xff]
        %v3440 = vld [vmem:[%s3432 + $0x38] sm:$0xff]
        %v3441 = vld [vmem:[%s3432 + $0x40] sm:$0xff]
        %v3442 = vld [vmem:[%s3432 + $0x48] sm:$0xff]
        %v3443 = vld [vmem:[%s3432 + $0x50] sm:$0xff]
        %v3444 = vld [vmem:[%s3432 + $0x58] sm:$0xff]
        %v3445 = vld [vmem:[%s3432 + $0x60] sm:$0xff]
        %v3446 = vld [vmem:[%s3432 + $0x68] sm:$0xff]
        %v3447 = vld [vmem:[%s3432 + $0x70] sm:$0xff]
        %v3448 = vld [vmem:[%s3432 + $0x78] sm:$0xff]
        %v3449 = vunpack.c.l.bf16 %v3433
        %v3450 = vunpack.c.h.bf16 %v3433
        %v3451 = vunpack.c.l.bf16 %v3434
        %v3452 = vunpack.c.h.bf16 %v3434
        %v3453 = vunpack.c.l.bf16 %v3435
        %v3454 = vunpack.c.h.bf16 %v3435
        %v3455 = vunpack.c.l.bf16 %v3436
        %v3456 = vunpack.c.h.bf16 %v3436
        %v3457 = vunpack.c.l.bf16 %v3437
        %v3458 = vunpack.c.h.bf16 %v3437
        %v3459 = vunpack.c.l.bf16 %v3438
        %v3460 = vunpack.c.h.bf16 %v3438
        %v3461 = vunpack.c.l.bf16 %v3439
        %v3462 = vunpack.c.h.bf16 %v3439
        %v3463 = vunpack.c.l.bf16 %v3440
        %v3464 = vunpack.c.h.bf16 %v3440
        %v3465 = vunpack.c.l.bf16 %v3441
        %v3466 = vunpack.c.h.bf16 %v3441
        %v3467 = vunpack.c.l.bf16 %v3442
        %v3468 = vunpack.c.h.bf16 %v3442
        %v3469 = vunpack.c.l.bf16 %v3443
        %v3470 = vunpack.c.h.bf16 %v3443
        %v3471 = vunpack.c.l.bf16 %v3444
        %v3472 = vunpack.c.h.bf16 %v3444
        %v3473 = vunpack.c.l.bf16 %v3445
        %v3474 = vunpack.c.h.bf16 %v3445
        %v3475 = vunpack.c.l.bf16 %v3446
        %v3476 = vunpack.c.h.bf16 %v3446
        %v3477 = vunpack.c.l.bf16 %v3447
        %v3478 = vunpack.c.h.bf16 %v3447
        %v3479 = vunpack.c.l.bf16 %v3448
        %v3480 = vunpack.c.h.bf16 %v3448
        %v3481 = vld [vmem:[%s1] sm:$0xf]
        %v3483 = vperm.slane %v3481, 0
        %v3484 = vperm.slane %v3481, 1
        %v3485 = vperm.slane %v3481, 2
        %v3486 = vperm.slane %v3481, 3
        %v3491 = vmul.f32 %v3449, %v3483
        %v3492 = vmul.f32 %v3450, %v3484
        %v3493 = vmul.f32 %v3451, %v3485
        %v3494 = vmul.f32 %v3452, %v3486
        %v3495 = vmul.f32 %v3453, %v3483
        %v3496 = vmul.f32 %v3454, %v3484
        %v3497 = vmul.f32 %v3455, %v3485
        %v3498 = vmul.f32 %v3456, %v3486
        %v3499 = vmul.f32 %v3457, %v3483
        %v3500 = vmul.f32 %v3458, %v3484
        %v3501 = vmul.f32 %v3459, %v3485
        %v3502 = vmul.f32 %v3460, %v3486
        %v3503 = vmul.f32 %v3461, %v3483
        %v3504 = vmul.f32 %v3462, %v3484
        %v3505 = vmul.f32 %v3463, %v3485
        %v3506 = vmul.f32 %v3464, %v3486
        %v3507 = vmul.f32 %v3465, %v3483
        %v3508 = vmul.f32 %v3466, %v3484
        %v3509 = vmul.f32 %v3467, %v3485
        %v3510 = vmul.f32 %v3468, %v3486
        %v3511 = vmul.f32 %v3469, %v3483
        %v3512 = vmul.f32 %v3470, %v3484
        %v3513 = vmul.f32 %v3471, %v3485
        %v3514 = vmul.f32 %v3472, %v3486
        %v3515 = vmul.f32 %v3473, %v3483
        %v3516 = vmul.f32 %v3474, %v3484
        %v3517 = vmul.f32 %v3475, %v3485
        %v3518 = vmul.f32 %v3476, %v3486
        %v3519 = vmul.f32 %v3477, %v3483
        %v3520 = vmul.f32 %v3478, %v3484
        %v3521 = vmul.f32 %v3479, %v3485
        %v3522 = vmul.f32 %v3480, %v3486
        %v3523 = vld [vmem:[%s2] sm:$0xf]
        %v3525 = vperm.slane %v3523, 0
        %v3526 = vperm.slane %v3523, 1
        %v3527 = vperm.slane %v3523, 2
        %v3528 = vperm.slane %v3523, 3
        %v3533 = vadd.f32 %v3491, %v3525
        %v3534 = vadd.f32 %v3492, %v3526
        %v3535 = vadd.f32 %v3493, %v3527
        %v3536 = vadd.f32 %v3494, %v3528
        %v3537 = vadd.f32 %v3495, %v3525
        %v3538 = vadd.f32 %v3496, %v3526
        %v3539 = vadd.f32 %v3497, %v3527
        %v3540 = vadd.f32 %v3498, %v3528
        %v3541 = vadd.f32 %v3499, %v3525
        %v3542 = vadd.f32 %v3500, %v3526
        %v3543 = vadd.f32 %v3501, %v3527
        %v3544 = vadd.f32 %v3502, %v3528
        %v3545 = vadd.f32 %v3503, %v3525
        %v3546 = vadd.f32 %v3504, %v3526
        %v3547 = vadd.f32 %v3505, %v3527
        %v3548 = vadd.f32 %v3506, %v3528
        %v3549 = vadd.f32 %v3507, %v3525
        %v3550 = vadd.f32 %v3508, %v3526
        %v3551 = vadd.f32 %v3509, %v3527
        %v3552 = vadd.f32 %v3510, %v3528
        %v3553 = vadd.f32 %v3511, %v3525
        %v3554 = vadd.f32 %v3512, %v3526
        %v3555 = vadd.f32 %v3513, %v3527
        %v3556 = vadd.f32 %v3514, %v3528
        %v3557 = vadd.f32 %v3515, %v3525
        %v3558 = vadd.f32 %v3516, %v3526
        %v3559 = vadd.f32 %v3517, %v3527
        %v3560 = vadd.f32 %v3518, %v3528
        %v3561 = vadd.f32 %v3519, %v3525
        %v3562 = vadd.f32 %v3520, %v3526
        %v3563 = vadd.f32 %v3521, %v3527
        %v3564 = vadd.f32 %v3522, %v3528
        %v3565 = vmax.f32 %v3533, 0.0
        %v3566 = vmax.f32 %v3534, 0.0
        %v3567 = vmax.f32 %v3535, 0.0
        %v3568 = vmax.f32 %v3536, 0.0
        %v3569 = vmax.f32 %v3537, 0.0
        %v3570 = vmax.f32 %v3538, 0.0
        %v3571 = vmax.f32 %v3539, 0.0
        %v3572 = vmax.f32 %v3540, 0.0
        %v3573 = vmax.f32 %v3541, 0.0
        %v3574 = vmax.f32 %v3542, 0.0
        %v3575 = vmax.f32 %v3543, 0.0
        %v3576 = vmax.f32 %v3544, 0.0
        %v3577 = vmax.f32 %v3545, 0.0
        %v3578 = vmax.f32 %v3546, 0.0
        %v3579 = vmax.f32 %v3547, 0.0
        %v3580 = vmax.f32 %v3548, 0.0
        %v3581 = vmax.f32 %v3549, 0.0
        %v3582 = vmax.f32 %v3550, 0.0
        %v3583 = vmax.f32 %v3551, 0.0
        %v3584 = vmax.f32 %v3552, 0.0
        %v3585 = vmax.f32 %v3553, 0.0
        %v3586 = vmax.f32 %v3554, 0.0
        %v3587 = vmax.f32 %v3555, 0.0
        %v3588 = vmax.f32 %v3556, 0.0
        %v3589 = vmax.f32 %v3557, 0.0
        %v3590 = vmax.f32 %v3558, 0.0
        %v3591 = vmax.f32 %v3559, 0.0
        %v3592 = vmax.f32 %v3560, 0.0
        %v3593 = vmax.f32 %v3561, 0.0
        %v3594 = vmax.f32 %v3562, 0.0
        %v3595 = vmax.f32 %v3563, 0.0
        %v3596 = vmax.f32 %v3564, 0.0
        %v3597 = vpack.c.bf16 %v3569, %v3565
        %v3598 = vpack.c.bf16 %v3570, %v3566
        %v3599 = vpack.c.bf16 %v3571, %v3567
        %v3600 = vpack.c.bf16 %v3572, %v3568
        %v3601 = vpack.c.bf16 %v3577, %v3573
        %v3602 = vpack.c.bf16 %v3578, %v3574
        %v3603 = vpack.c.bf16 %v3579, %v3575
        %v3604 = vpack.c.bf16 %v3580, %v3576
        %v3605 = vpack.c.bf16 %v3585, %v3581
        %v3606 = vpack.c.bf16 %v3586, %v3582
        %v3607 = vpack.c.bf16 %v3587, %v3583
        %v3608 = vpack.c.bf16 %v3588, %v3584
        %v3609 = vpack.c.bf16 %v3593, %v3589
        %v3610 = vpack.c.bf16 %v3594, %v3590
        %v3611 = vpack.c.bf16 %v3595, %v3591
        %v3612 = vpack.c.bf16 %v3596, %v3592
        %v3613 = vld [vmem:[%s3] sm:$0xff]
        %v3614 = vld [vmem:[%s3 + $0x8] sm:$0xf]
        %v3615 = vld [vmem:[%s3 + $0xc] sm:$0xff]
        %v3616 = vld [vmem:[%s3 + $0x14] sm:$0xf]
        %v3617 = vld [vmem:[%s3 + $0x18] sm:$0xff]
        %v3618 = vld [vmem:[%s3 + $0x20] sm:$0xf]
        %v3619 = vld [vmem:[%s3 + $0x24] sm:$0xff]
        %v3620 = vld [vmem:[%s3 + $0x2c] sm:$0xf]
        %v3621 = vld [vmem:[%s3 + $0x30] sm:$0xff]
        %v3622 = vld [vmem:[%s3 + $0x38] sm:$0xf]
        %v3623 = vld [vmem:[%s3 + $0x3c] sm:$0xff]
        %v3624 = vld [vmem:[%s3 + $0x44] sm:$0xf]
        %v3625 = vld [vmem:[%s3 + $0x48] sm:$0xff]
        %v3626 = vld [vmem:[%s3 + $0x50] sm:$0xf]
        %v3627 = vld [vmem:[%s3 + $0x54] sm:$0xff]
        %v3628 = vld [vmem:[%s3 + $0x5c] sm:$0xf]
        %v3629 = vld [vmem:[%s3 + $0x60] sm:$0xff]
        %v3630 = vld [vmem:[%s3 + $0x68] sm:$0xf]
        %v3631 = vld [vmem:[%s3 + $0x6c] sm:$0xff]
        %v3632 = vld [vmem:[%s3 + $0x74] sm:$0xf]
        %v3633 = vld [vmem:[%s3 + $0x78] sm:$0xff]
        %v3634 = vld [vmem:[%s3 + $0x80] sm:$0xf]
        %v3635 = vld [vmem:[%s3 + $0x84] sm:$0xff]
        %v3636 = vld [vmem:[%s3 + $0x8c] sm:$0xf]
        %v3637 = vld [vmem:[%s3 + $0x90] sm:$0xff]
        %v3638 = vld [vmem:[%s3 + $0x98] sm:$0xf]
        %v3639 = vld [vmem:[%s3 + $0x9c] sm:$0xff]
        %v3640 = vld [vmem:[%s3 + $0xa4] sm:$0xf]
        %v3641 = vld [vmem:[%s3 + $0xa8] sm:$0xff]
        %v3642 = vld [vmem:[%s3 + $0xb0] sm:$0xf]
        %v3643 = vld [vmem:[%s3 + $0xb4] sm:$0xff]
        %v3644 = vld [vmem:[%s3 + $0xbc] sm:$0xf]
        %v3645 = vld [vmem:[%s3 + $0xc0] sm:$0xff]
        %v3646 = vld [vmem:[%s3 + $0xc8] sm:$0xf]
        %v3647 = vld [vmem:[%s3 + $0xcc] sm:$0xff]
        %v3648 = vld [vmem:[%s3 + $0xd4] sm:$0xf]
        %v3649 = vld [vmem:[%s3 + $0xd8] sm:$0xff]
        %v3650 = vld [vmem:[%s3 + $0xe0] sm:$0xf]
        %v3651 = vld [vmem:[%s3 + $0xe4] sm:$0xff]
        %v3652 = vld [vmem:[%s3 + $0xec] sm:$0xf]
        %v3653 = vld [vmem:[%s3 + $0xf0] sm:$0xff]
        %v3654 = vld [vmem:[%s3 + $0xf8] sm:$0xf]
        %v3655 = vld [vmem:[%s3 + $0xfc] sm:$0xff]
        %v3656 = vld [vmem:[%s3 + $0x104] sm:$0xf]
        %v3657 = vld [vmem:[%s3 + $0x108] sm:$0xff]
        %v3658 = vld [vmem:[%s3 + $0x110] sm:$0xf]
        %v3659 = vld [vmem:[%s3 + $0x114] sm:$0xff]
        %v3660 = vld [vmem:[%s3 + $0x11c] sm:$0xf]
        %v3661 = vld [vmem:[%s3 + $0x120] sm:$0xff]
        %v3662 = vld [vmem:[%s3 + $0x128] sm:$0xf]
        %v3663 = vld [vmem:[%s3 + $0x12c] sm:$0xff]
        %v3664 = vld [vmem:[%s3 + $0x134] sm:$0xf]
        %v3665 = vld [vmem:[%s3 + $0x138] sm:$0xff]
        %v3666 = vld [vmem:[%s3 + $0x140] sm:$0xf]
        %v3667 = vld [vmem:[%s3 + $0x144] sm:$0xff]
        %v3668 = vld [vmem:[%s3 + $0x14c] sm:$0xf]
        %v3669 = vld [vmem:[%s3 + $0x150] sm:$0xff]
        %v3670 = vld [vmem:[%s3 + $0x158] sm:$0xf]
        %v3671 = vld [vmem:[%s3 + $0x15c] sm:$0xff]
        %v3672 = vld [vmem:[%s3 + $0x164] sm:$0xf]
        %v3673 = vld [vmem:[%s3 + $0x168] sm:$0xff]
        %v3674 = vld [vmem:[%s3 + $0x170] sm:$0xf]
        %v3675 = vld [vmem:[%s3 + $0x174] sm:$0xff]
        %v3676 = vld [vmem:[%s3 + $0x17c] sm:$0xf]
        %v3677 = vld [vmem:[%s3 + $0x180] sm:$0xff]
        %v3678 = vld [vmem:[%s3 + $0x188] sm:$0xf]
        %v3679 = vld [vmem:[%s3 + $0x18c] sm:$0xff]
        %v3680 = vld [vmem:[%s3 + $0x194] sm:$0xf]
        %v3681 = vld [vmem:[%s3 + $0x198] sm:$0xff]
        %v3682 = vld [vmem:[%s3 + $0x1a0] sm:$0xf]
        %v3683 = vld [vmem:[%s3 + $0x1a4] sm:$0xff]
        %v3684 = vld [vmem:[%s3 + $0x1ac] sm:$0xf]
        %v3685 = vld [vmem:[%s3 + $0x1b0] sm:$0xff]
        %v3686 = vld [vmem:[%s3 + $0x1b8] sm:$0xf]
        %v3687 = vld [vmem:[%s3 + $0x1bc] sm:$0xff]
        %v3688 = vld [vmem:[%s3 + $0x1c4] sm:$0xf]
        %v3689 = vld [vmem:[%s3 + $0x1c8] sm:$0xff]
        %v3690 = vld [vmem:[%s3 + $0x1d0] sm:$0xf]
        %v3691 = vld [vmem:[%s3 + $0x1d4] sm:$0xff]
        %v3692 = vld [vmem:[%s3 + $0x1dc] sm:$0xf]
        %v3693 = vld [vmem:[%s3 + $0x1e0] sm:$0xff]
        %v3694 = vld [vmem:[%s3 + $0x1e8] sm:$0xf]
        %v3695 = vld [vmem:[%s3 + $0x1ec] sm:$0xff]
        %v3696 = vld [vmem:[%s3 + $0x1f4] sm:$0xf]
        %v3697 = vld [vmem:[%s3 + $0x1f8] sm:$0xff]
        %v3698 = vld [vmem:[%s3 + $0x200] sm:$0xf]
        %v3699 = vld [vmem:[%s3 + $0x204] sm:$0xff]
        %v3700 = vld [vmem:[%s3 + $0x20c] sm:$0xf]
        %v3701 = vld [vmem:[%s3 + $0x210] sm:$0xff]
        %v3702 = vld [vmem:[%s3 + $0x218] sm:$0xf]
        %v3703 = vld [vmem:[%s3 + $0x21c] sm:$0xff]
        %v3704 = vld [vmem:[%s3 + $0x224] sm:$0xf]
        %v3705 = vld [vmem:[%s3 + $0x228] sm:$0xff]
        %v3706 = vld [vmem:[%s3 + $0x230] sm:$0xf]
        %v3707 = vld [vmem:[%s3 + $0x234] sm:$0xff]
        %v3708 = vld [vmem:[%s3 + $0x23c] sm:$0xf]
        %v3709 = vld [vmem:[%s3 + $0x240] sm:$0xff]
        %v3710 = vld [vmem:[%s3 + $0x248] sm:$0xf]
        %v3711 = vld [vmem:[%s3 + $0x24c] sm:$0xff]
        %v3712 = vld [vmem:[%s3 + $0x254] sm:$0xf]
        %v3713 = vld [vmem:[%s3 + $0x258] sm:$0xff]
        %v3714 = vld [vmem:[%s3 + $0x260] sm:$0xf]
        %v3715 = vld [vmem:[%s3 + $0x264] sm:$0xff]
        %v3716 = vld [vmem:[%s3 + $0x26c] sm:$0xf]
        %v3717 = vld [vmem:[%s3 + $0x270] sm:$0xff]
        %v3718 = vld [vmem:[%s3 + $0x278] sm:$0xf]
        %v3719 = vld [vmem:[%s3 + $0x27c] sm:$0xff]
        %v3720 = vld [vmem:[%s3 + $0x284] sm:$0xf]
        %v3721 = vld [vmem:[%s3 + $0x288] sm:$0xff]
        %v3722 = vld [vmem:[%s3 + $0x290] sm:$0xf]
        %v3723 = vld [vmem:[%s3 + $0x294] sm:$0xff]
        %v3724 = vld [vmem:[%s3 + $0x29c] sm:$0xf]
        %v3725 = vld [vmem:[%s3 + $0x2a0] sm:$0xff]
        %v3726 = vld [vmem:[%s3 + $0x2a8] sm:$0xf]
        %v3727 = vld [vmem:[%s3 + $0x2ac] sm:$0xff]
        %v3728 = vld [vmem:[%s3 + $0x2b4] sm:$0xf]
        %v3729 = vld [vmem:[%s3 + $0x2b8] sm:$0xff]
        %v3730 = vld [vmem:[%s3 + $0x2c0] sm:$0xf]
        %v3731 = vld [vmem:[%s3 + $0x2c4] sm:$0xff]
        %v3732 = vld [vmem:[%s3 + $0x2cc] sm:$0xf]
        %v3733 = vld [vmem:[%s3 + $0x2d0] sm:$0xff]
        %v3734 = vld [vmem:[%s3 + $0x2d8] sm:$0xf]
        %v3735 = vld [vmem:[%s3 + $0x2dc] sm:$0xff]
        %v3736 = vld [vmem:[%s3 + $0x2e4] sm:$0xf]
        %v3737 = vld [vmem:[%s3 + $0x2e8] sm:$0xff]
        %v3738 = vld [vmem:[%s3 + $0x2f0] sm:$0xf]
        %v3739 = vld [vmem:[%s3 + $0x2f4] sm:$0xff]
        %v3740 = vld [vmem:[%s3 + $0x2fc] sm:$0xf]
        %v3741 = vld [vmem:[%s4] sm:$0x7]
        %v3743 = vperm.slane %v3741, 0
        %v3744 = vperm.slane %v3741, 1
        %v3745 = vperm.slane %v3741, 2
        %v3877 = vunpack.c.l.b16 %v3613
        %v3878 = vunpack.c.h.b16 %v3613
        %v3879 = vunpack.c.l.b16 %v3614
        %v3880 = vunpack.c.l.b16 %v3615
        %v3881 = vunpack.c.h.b16 %v3615
        %v3882 = vunpack.c.l.b16 %v3616
        %v3883 = vunpack.c.l.b16 %v3617
        %v3884 = vunpack.c.h.b16 %v3617
        %v3885 = vunpack.c.l.b16 %v3618
        %v3886 = vunpack.c.l.b16 %v3619
        %v3887 = vunpack.c.h.b16 %v3619
        %v3888 = vunpack.c.l.b16 %v3620
        %v3889 = vunpack.c.l.b16 %v3621
        %v3890 = vunpack.c.h.b16 %v3621
        %v3891 = vunpack.c.l.b16 %v3622
        %v3892 = vunpack.c.l.b16 %v3623
        %v3893 = vunpack.c.h.b16 %v3623
        %v3894 = vunpack.c.l.b16 %v3624
        %v3895 = vunpack.c.l.b16 %v3625
        %v3896 = vunpack.c.h.b16 %v3625
        %v3897 = vunpack.c.l.b16 %v3626
        %v3898 = vunpack.c.l.b16 %v3627
        %v3899 = vunpack.c.h.b16 %v3627
        %v3900 = vunpack.c.l.b16 %v3628
        %v3901 = vunpack.c.l.b16 %v3629
        %v3902 = vunpack.c.h.b16 %v3629
        %v3903 = vunpack.c.l.b16 %v3630
        %v3904 = vunpack.c.l.b16 %v3631
        %v3905 = vunpack.c.h.b16 %v3631
        %v3906 = vunpack.c.l.b16 %v3632
        %v3907 = vunpack.c.l.b16 %v3633
        %v3908 = vunpack.c.h.b16 %v3633
        %v3909 = vunpack.c.l.b16 %v3634
        %v3910 = vunpack.c.l.b16 %v3635
        %v3911 = vunpack.c.h.b16 %v3635
        %v3912 = vunpack.c.l.b16 %v3636
        %v3913 = vunpack.c.l.b16 %v3637
        %v3914 = vunpack.c.h.b16 %v3637
        %v3915 = vunpack.c.l.b16 %v3638
        %v3916 = vunpack.c.l.b16 %v3639
        %v3917 = vunpack.c.h.b16 %v3639
        %v3918 = vunpack.c.l.b16 %v3640
        %v3919 = vunpack.c.l.b16 %v3641
        %v3920 = vunpack.c.h.b16 %v3641
        %v3921 = vunpack.c.l.b16 %v3642
        %v3922 = vunpack.c.l.b16 %v3643
        %v3923 = vunpack.c.h.b16 %v3643
        %v3924 = vunpack.c.l.b16 %v3644
        %v3925 = vunpack.c.l.b16 %v3645
        %v3926 = vunpack.c.h.b16 %v3645
        %v3927 = vunpack.c.l.b16 %v3646
        %v3928 = vunpack.c.l.b16 %v3647
        %v3929 = vunpack.c.h.b16 %v3647
        %v3930 = vunpack.c.l.b16 %v3648
        %v3931 = vunpack.c.l.b16 %v3649
        %v3932 = vunpack.c.h.b16 %v3649
        %v3933 = vunpack.c.l.b16 %v3650
        %v3934 = vunpack.c.l.b16 %v3651
        %v3935 = vunpack.c.h.b16 %v3651
        %v3936 = vunpack.c.l.b16 %v3652
        %v3937 = vunpack.c.l.b16 %v3653
        %v3938 = vunpack.c.h.b16 %v3653
        %v3939 = vunpack.c.l.b16 %v3654
        %v3940 = vunpack.c.l.b16 %v3655
        %v3941 = vunpack.c.h.b16 %v3655
        %v3942 = vunpack.c.l.b16 %v3656
        %v3943 = vunpack.c.l.b16 %v3657
        %v3944 = vunpack.c.h.b16 %v3657
        %v3945 = vunpack.c.l.b16 %v3658
        %v3946 = vunpack.c.l.b16 %v3659
        %v3947 = vunpack.c.h.b16 %v3659
        %v3948 = vunpack.c.l.b16 %v3660
        %v3949 = vunpack.c.l.b16 %v3661
        %v3950 = vunpack.c.h.b16 %v3661
        %v3951 = vunpack.c.l.b16 %v3662
        %v3952 = vunpack.c.l.b16 %v3663
        %v3953 = vunpack.c.h.b16 %v3663
        %v3954 = vunpack.c.l.b16 %v3664
        %v3955 = vunpack.c.l.b16 %v3665
        %v3956 = vunpack.c.h.b16 %v3665
        %v3957 = vunpack.c.l.b16 %v3666
        %v3958 = vunpack.c.l.b16 %v3667
        %v3959 = vunpack.c.h.b16 %v3667
        %v3960 = vunpack.c.l.b16 %v3668
        %v3961 = vunpack.c.l.b16 %v3669
        %v3962 = vunpack.c.h.b16 %v3669
        %v3963 = vunpack.c.l.b16 %v3670
        %v3964 = vunpack.c.l.b16 %v3671
        %v3965 = vunpack.c.h.b16 %v3671
        %v3966 = vunpack.c.l.b16 %v3672
        %v3967 = vunpack.c.l.b16 %v3673
        %v3968 = vunpack.c.h.b16 %v3673
        %v3969 = vunpack.c.l.b16 %v3674
        %v3970 = vunpack.c.l.b16 %v3675
        %v3971 = vunpack.c.h.b16 %v3675
        %v3972 = vunpack.c.l.b16 %v3676
        %v3973 = vunpack.c.l.b16 %v3677
        %v3974 = vunpack.c.h.b16 %v3677
        %v3975 = vunpack.c.l.b16 %v3678
        %v3976 = vunpack.c.l.b16 %v3679
        %v3977 = vunpack.c.h.b16 %v3679
        %v3978 = vunpack.c.l.b16 %v3680
        %v3979 = vunpack.c.l.b16 %v3681
        %v3980 = vunpack.c.h.b16 %v3681
        %v3981 = vunpack.c.l.b16 %v3682
        %v3982 = vunpack.c.l.b16 %v3683
        %v3983 = vunpack.c.h.b16 %v3683
        %v3984 = vunpack.c.l.b16 %v3684
        %v3985 = vunpack.c.l.b16 %v3685
        %v3986 = vunpack.c.h.b16 %v3685
        %v3987 = vunpack.c.l.b16 %v3686
        %v3988 = vunpack.c.l.b16 %v3687
        %v3989 = vunpack.c.h.b16 %v3687
        %v3990 = vunpack.c.l.b16 %v3688
        %v3991 = vunpack.c.l.b16 %v3689
        %v3992 = vunpack.c.h.b16 %v3689
        %v3993 = vunpack.c.l.b16 %v3690
        %v3994 = vunpack.c.l.b16 %v3691
        %v3995 = vunpack.c.h.b16 %v3691
        %v3996 = vunpack.c.l.b16 %v3692
        %v3997 = vunpack.c.l.b16 %v3693
        %v3998 = vunpack.c.h.b16 %v3693
        %v3999 = vunpack.c.l.b16 %v3694
        %v4000 = vunpack.c.l.b16 %v3695
        %v4001 = vunpack.c.h.b16 %v3695
        %v4002 = vunpack.c.l.b16 %v3696
        %v4003 = vunpack.c.l.b16 %v3697
        %v4004 = vunpack.c.h.b16 %v3697
        %v4005 = vunpack.c.l.b16 %v3698
        %v4006 = vunpack.c.l.b16 %v3699
        %v4007 = vunpack.c.h.b16 %v3699
        %v4008 = vunpack.c.l.b16 %v3700
        %v4009 = vunpack.c.l.b16 %v3701
        %v4010 = vunpack.c.h.b16 %v3701
        %v4011 = vunpack.c.l.b16 %v3702
        %v4012 = vunpack.c.l.b16 %v3703
        %v4013 = vunpack.c.h.b16 %v3703
        %v4014 = vunpack.c.l.b16 %v3704
        %v4015 = vunpack.c.l.b16 %v3705
        %v4016 = vunpack.c.h.b16 %v3705
        %v4017 = vunpack.c.l.b16 %v3706
        %v4018 = vunpack.c.l.b16 %v3707
        %v4019 = vunpack.c.h.b16 %v3707
        %v4020 = vunpack.c.l.b16 %v3708
        %v4021 = vunpack.c.l.b16 %v3709
        %v4022 = vunpack.c.h.b16 %v3709
        %v4023 = vunpack.c.l.b16 %v3710
        %v4024 = vunpack.c.l.b16 %v3711
        %v4025 = vunpack.c.h.b16 %v3711
        %v4026 = vunpack.c.l.b16 %v3712
        %v4027 = vunpack.c.l.b16 %v3713
        %v4028 = vunpack.c.h.b16 %v3713
        %v4029 = vunpack.c.l.b16 %v3714
        %v4030 = vunpack.c.l.b16 %v3715
        %v4031 = vunpack.c.h.b16 %v3715
        %v4032 = vunpack.c.l.b16 %v3716
        %v4033 = vunpack.c.l.b16 %v3717
        %v4034 = vunpack.c.h.b16 %v3717
        %v4035 = vunpack.c.l.b16 %v3718
        %v4036 = vunpack.c.l.b16 %v3719
        %v4037 = vunpack.c.h.b16 %v3719
        %v4038 = vunpack.c.l.b16 %v3720
        %v4039 = vunpack.c.l.b16 %v3721
        %v4040 = vunpack.c.h.b16 %v3721
        %v4041 = vunpack.c.l.b16 %v3722
        %v4042 = vunpack.c.l.b16 %v3723
        %v4043 = vunpack.c.h.b16 %v3723
        %v4044 = vunpack.c.l.b16 %v3724
        %v4045 = vunpack.c.l.b16 %v3725
        %v4046 = vunpack.c.h.b16 %v3725
        %v4047 = vunpack.c.l.b16 %v3726
        %v4048 = vunpack.c.l.b16 %v3727
        %v4049 = vunpack.c.h.b16 %v3727
        %v4050 = vunpack.c.l.b16 %v3728
        %v4051 = vunpack.c.l.b16 %v3729
        %v4052 = vunpack.c.h.b16 %v3729
        %v4053 = vunpack.c.l.b16 %v3730
        %v4054 = vunpack.c.l.b16 %v3731
        %v4055 = vunpack.c.h.b16 %v3731
        %v4056 = vunpack.c.l.b16 %v3732
        %v4057 = vunpack.c.l.b16 %v3733
        %v4058 = vunpack.c.h.b16 %v3733
        %v4059 = vunpack.c.l.b16 %v3734
        %v4060 = vunpack.c.l.b16 %v3735
        %v4061 = vunpack.c.h.b16 %v3735
        %v4062 = vunpack.c.l.b16 %v3736
        %v4063 = vunpack.c.l.b16 %v3737
        %v4064 = vunpack.c.h.b16 %v3737
        %v4065 = vunpack.c.l.b16 %v3738
        %v4066 = vunpack.c.l.b16 %v3739
        %v4067 = vunpack.c.h.b16 %v3739
        %v4068 = vunpack.c.l.b16 %v3740
        %v4069 = vpack.c.b16 %v3880, %v3877
        %v4070 = vpack.c.b16 %v3881, %v3878
        %v4071 = vpack.c.b16 %v3882, %v3879
        %v4072 = vpack.c.b16 %v3886, %v3883
        %v4073 = vpack.c.b16 %v3887, %v3884
        %v4074 = vpack.c.b16 %v3888, %v3885
        %v4075 = vpack.c.b16 %v3892, %v3889
        %v4076 = vpack.c.b16 %v3893, %v3890
        %v4077 = vpack.c.b16 %v3894, %v3891
        %v4078 = vpack.c.b16 %v3898, %v3895
        %v4079 = vpack.c.b16 %v3899, %v3896
        %v4080 = vpack.c.b16 %v3900, %v3897
        %v4081 = vpack.c.b16 %v3904, %v3901
        %v4082 = vpack.c.b16 %v3905, %v3902
        %v4083 = vpack.c.b16 %v3906, %v3903
        %v4084 = vpack.c.b16 %v3910, %v3907
        %v4085 = vpack.c.b16 %v3911, %v3908
        %v4086 = vpack.c.b16 %v3912, %v3909
        %v4087 = vpack.c.b16 %v3916, %v3913
        %v4088 = vpack.c.b16 %v3917, %v3914
        %v4089 = vpack.c.b16 %v3918, %v3915
        %v4090 = vpack.c.b16 %v3922, %v3919
        %v4091 = vpack.c.b16 %v3923, %v3920
        %v4092 = vpack.c.b16 %v3924, %v3921
        %v4093 = vpack.c.b16 %v3928, %v3925
        %v4094 = vpack.c.b16 %v3929, %v3926
        %v4095 = vpack.c.b16 %v3930, %v3927
        %v4096 = vpack.c.b16 %v3934, %v3931
        %v4097 = vpack.c.b16 %v3935, %v3932
        %v4098 = vpack.c.b16 %v3936, %v3933
        %v4099 = vpack.c.b16 %v3940, %v3937
        %v4100 = vpack.c.b16 %v3941, %v3938
        %v4101 = vpack.c.b16 %v3942, %v3939
        %v4102 = vpack.c.b16 %v3946, %v3943
        %v4103 = vpack.c.b16 %v3947, %v3944
        %v4104 = vpack.c.b16 %v3948, %v3945
        %v4105 = vpack.c.b16 %v3952, %v3949
        %v4106 = vpack.c.b16 %v3953, %v3950
        %v4107 = vpack.c.b16 %v3954, %v3951
        %v4108 = vpack.c.b16 %v3958, %v3955
        %v4109 = vpack.c.b16 %v3959, %v3956
        %v4110 = vpack.c.b16 %v3960, %v3957
        %v4111 = vpack.c.b16 %v3964, %v3961
        %v4112 = vpack.c.b16 %v3965, %v3962
        %v4113 = vpack.c.b16 %v3966, %v3963
        %v4114 = vpack.c.b16 %v3970, %v3967
        %v4115 = vpack.c.b16 %v3971, %v3968
        %v4116 = vpack.c.b16 %v3972, %v3969
        %v4117 = vpack.c.b16 %v3976, %v3973
        %v4118 = vpack.c.b16 %v3977, %v3974
        %v4119 = vpack.c.b16 %v3978, %v3975
        %v4120 = vpack.c.b16 %v3982, %v3979
        %v4121 = vpack.c.b16 %v3983, %v3980
        %v4122 = vpack.c.b16 %v3984, %v3981
        %v4123 = vpack.c.b16 %v3988, %v3985
        %v4124 = vpack.c.b16 %v3989, %v3986
        %v4125 = vpack.c.b16 %v3990, %v3987
        %v4126 = vpack.c.b16 %v3994, %v3991
        %v4127 = vpack.c.b16 %v3995, %v3992
        %v4128 = vpack.c.b16 %v3996, %v3993
        %v4129 = vpack.c.b16 %v4000, %v3997
        %v4130 = vpack.c.b16 %v4001, %v3998
        %v4131 = vpack.c.b16 %v4002, %v3999
        %v4132 = vpack.c.b16 %v4006, %v4003
        %v4133 = vpack.c.b16 %v4007, %v4004
        %v4134 = vpack.c.b16 %v4008, %v4005
        %v4135 = vpack.c.b16 %v4012, %v4009
        %v4136 = vpack.c.b16 %v4013, %v4010
        %v4137 = vpack.c.b16 %v4014, %v4011
        %v4138 = vpack.c.b16 %v4018, %v4015
        %v4139 = vpack.c.b16 %v4019, %v4016
        %v4140 = vpack.c.b16 %v4020, %v4017
        %v4141 = vpack.c.b16 %v4024, %v4021
        %v4142 = vpack.c.b16 %v4025, %v4022
        %v4143 = vpack.c.b16 %v4026, %v4023
        %v4144 = vpack.c.b16 %v4030, %v4027
        %v4145 = vpack.c.b16 %v4031, %v4028
        %v4146 = vpack.c.b16 %v4032, %v4029
        %v4147 = vpack.c.b16 %v4036, %v4033
        %v4148 = vpack.c.b16 %v4037, %v4034
        %v4149 = vpack.c.b16 %v4038, %v4035
        %v4150 = vpack.c.b16 %v4042, %v4039
        %v4151 = vpack.c.b16 %v4043, %v4040
        %v4152 = vpack.c.b16 %v4044, %v4041
        %v4153 = vpack.c.b16 %v4048, %v4045
        %v4154 = vpack.c.b16 %v4049, %v4046
        %v4155 = vpack.c.b16 %v4050, %v4047
        %v4156 = vpack.c.b16 %v4054, %v4051
        %v4157 = vpack.c.b16 %v4055, %v4052
        %v4158 = vpack.c.b16 %v4056, %v4053
        %v4159 = vpack.c.b16 %v4060, %v4057
        %v4160 = vpack.c.b16 %v4061, %v4058
        %v4161 = vpack.c.b16 %v4062, %v4059
        %v4162 = vpack.c.b16 %v4066, %v4063
        %v4163 = vpack.c.b16 %v4067, %v4064
        %v4164 = vpack.c.b16 %v4068, %v4065
        %4261 = vmatpush.bf16.msra.mxu0 %v4090
        %4262 = vmatpush.bf16.msra.mxu0 %v4087
        %4263 = vmatpush.bf16.msra.mxu0 %v4084
        %4264 = vmatpush.bf16.msra.mxu0 %v4081
        %4265 = vmatpush.bf16.msra.mxu0 %v4078
        %4266 = vmatpush.bf16.msra.mxu0 %v4075
        %4267 = vmatpush.bf16.msra.mxu0 %v4072
        %4268 = vmatpush.bf16.msra.mxu0 %v4069
        %4269 = vmatmul.bf16.gmra.mxu0 %v3597
        %v4270 = vpop.f32.mrf.mxu0
        %v4271 = vadd.f32 %v3743, %v4270
        %v4272 = vpop.f32.mrf.mxu0
        %v4273 = vadd.f32 %v3743, %v4272
        %4274 = vmatmul.bf16.gmra.mxu0 %v3601
        %v4275 = vpop.f32.mrf.mxu0
        %v4276 = vadd.f32 %v3743, %v4275
        %v4277 = vpop.f32.mrf.mxu0
        %v4278 = vadd.f32 %v3743, %v4277
        %4279 = vmatmul.bf16.gmra.mxu0 %v3605
        %v4280 = vpop.f32.mrf.mxu0
        %v4281 = vadd.f32 %v3743, %v4280
        %v4282 = vpop.f32.mrf.mxu0
        %v4283 = vadd.f32 %v3743, %v4282
        %4284 = vmatmul.bf16.gmra.mxu0 %v3609
        %v4285 = vpop.f32.mrf.mxu0
        %v4286 = vadd.f32 %v3743, %v4285
        %v4287 = vpop.f32.mrf.mxu0
        %v4288 = vadd.f32 %v3743, %v4287
        %4289 = vdwg.mxu0
        %4290 = vmatpush.bf16.msra.mxu0 %v4114
        %4291 = vmatpush.bf16.msra.mxu0 %v4111
        %4292 = vmatpush.bf16.msra.mxu0 %v4108
        %4293 = vmatpush.bf16.msra.mxu0 %v4105
        %4294 = vmatpush.bf16.msra.mxu0 %v4102
        %4295 = vmatpush.bf16.msra.mxu0 %v4099
        %4296 = vmatpush.bf16.msra.mxu0 %v4096
        %4297 = vmatpush.bf16.msra.mxu0 %v4093
        %4298 = vmatmul.bf16.gmra.mxu0 %v3598
        %v4299 = vpop.f32.mrf.mxu0
        %v4300 = vadd.f32 %v4271, %v4299
        %v4301 = vpop.f32.mrf.mxu0
        %v4302 = vadd.f32 %v4273, %v4301
        %4303 = vmatmul.bf16.gmra.mxu0 %v3602
        %v4304 = vpop.f32.mrf.mxu0
        %v4305 = vadd.f32 %v4276, %v4304
        %v4306 = vpop.f32.mrf.mxu0
        %v4307 = vadd.f32 %v4278, %v4306
        %4308 = vmatmul.bf16.gmra.mxu0 %v3606
        %v4309 = vpop.f32.mrf.mxu0
        %v4310 = vadd.f32 %v4281, %v4309
        %v4311 = vpop.f32.mrf.mxu0
        %v4312 = vadd.f32 %v4283, %v4311
        %4313 = vmatmul.bf16.gmra.mxu0 %v3610
        %v4314 = vpop.f32.mrf.mxu0
        %v4315 = vadd.f32 %v4286, %v4314
        %v4316 = vpop.f32.mrf.mxu0
        %v4317 = vadd.f32 %v4288, %v4316
        %4318 = vdwg.mxu0
        %4319 = vmatpush.bf16.msra.mxu0 %v4138
        %4320 = vmatpush.bf16.msra.mxu0 %v4135
        %4321 = vmatpush.bf16.msra.mxu0 %v4132
        %4322 = vmatpush.bf16.msra.mxu0 %v4129
        %4323 = vmatpush.bf16.msra.mxu0 %v4126
        %4324 = vmatpush.bf16.msra.mxu0 %v4123
        %4325 = vmatpush.bf16.msra.mxu0 %v4120
        %4326 = vmatpush.bf16.msra.mxu0 %v4117
        %4327 = vmatmul.bf16.gmra.mxu0 %v3599
        %v4328 = vpop.f32.mrf.mxu0
        %v4329 = vadd.f32 %v4300, %v4328
        %v4330 = vpop.f32.mrf.mxu0
        %v4331 = vadd.f32 %v4302, %v4330
        %4332 = vmatmul.bf16.gmra.mxu0 %v3603
        %v4333 = vpop.f32.mrf.mxu0
        %v4334 = vadd.f32 %v4305, %v4333
        %v4335 = vpop.f32.mrf.mxu0
        %v4336 = vadd.f32 %v4307, %v4335
        %4337 = vmatmul.bf16.gmra.mxu0 %v3607
        %v4338 = vpop.f32.mrf.mxu0
        %v4339 = vadd.f32 %v4310, %v4338
        %v4340 = vpop.f32.mrf.mxu0
        %v4341 = vadd.f32 %v4312, %v4340
        %4342 = vmatmul.bf16.gmra.mxu0 %v3611
        %v4343 = vpop.f32.mrf.mxu0
        %v4344 = vadd.f32 %v4315, %v4343
        %v4345 = vpop.f32.mrf.mxu0
        %v4346 = vadd.f32 %v4317, %v4345
        %4347 = vdwg.mxu0
        %4348 = vmatpush.bf16.msra.mxu0 %v4162
        %4349 = vmatpush.bf16.msra.mxu0 %v4159
        %4350 = vmatpush.bf16.msra.mxu0 %v4156
        %4351 = vmatpush.bf16.msra.mxu0 %v4153
        %4352 = vmatpush.bf16.msra.mxu0 %v4150
        %4353 = vmatpush.bf16.msra.mxu0 %v4147
        %4354 = vmatpush.bf16.msra.mxu0 %v4144
        %4355 = vmatpush.bf16.msra.mxu0 %v4141
        %4356 = vmatmul.bf16.gmra.mxu0 %v3600
        %v4357 = vpop.f32.mrf.mxu0
        %v4358 = vadd.f32 %v4329, %v4357
        %v4359 = vpop.f32.mrf.mxu0
        %v4360 = vadd.f32 %v4331, %v4359
        %4361 = vmatmul.bf16.gmra.mxu0 %v3604
        %v4362 = vpop.f32.mrf.mxu0
        %v4363 = vadd.f32 %v4334, %v4362
        %v4364 = vpop.f32.mrf.mxu0
        %v4365 = vadd.f32 %v4336, %v4364
        %4366 = vmatmul.bf16.gmra.mxu0 %v3608
        %v4367 = vpop.f32.mrf.mxu0
        %v4368 = vadd.f32 %v4339, %v4367
        %v4369 = vpop.f32.mrf.mxu0
        %v4370 = vadd.f32 %v4341, %v4369
        %4371 = vmatmul.bf16.gmra.mxu0 %v3612
        %v4372 = vpop.f32.mrf.mxu0
        %v4373 = vadd.f32 %v4344, %v4372
        %v4374 = vpop.f32.mrf.mxu0
        %v4375 = vadd.f32 %v4346, %v4374
        %4376 = vdwg.mxu0
        %4377 = vmatpush.bf16.msra.mxu0 %v4091
        %4378 = vmatpush.bf16.msra.mxu0 %v4088
        %4379 = vmatpush.bf16.msra.mxu0 %v4085
        %4380 = vmatpush.bf16.msra.mxu0 %v4082
        %4381 = vmatpush.bf16.msra.mxu0 %v4079
        %4382 = vmatpush.bf16.msra.mxu0 %v4076
        %4383 = vmatpush.bf16.msra.mxu0 %v4073
        %4384 = vmatpush.bf16.msra.mxu0 %v4070
        %4385 = vmatmul.bf16.gmra.mxu0 %v3597
        %v4386 = vpop.f32.mrf.mxu0
        %v4387 = vadd.f32 %v3744, %v4386
        %v4388 = vpop.f32.mrf.mxu0
        %v4389 = vadd.f32 %v3744, %v4388
        %4390 = vmatmul.bf16.gmra.mxu0 %v3601
        %v4391 = vpop.f32.mrf.mxu0
        %v4392 = vadd.f32 %v3744, %v4391
        %v4393 = vpop.f32.mrf.mxu0
        %v4394 = vadd.f32 %v3744, %v4393
        %4395 = vmatmul.bf16.gmra.mxu0 %v3605
        %v4396 = vpop.f32.mrf.mxu0
        %v4397 = vadd.f32 %v3744, %v4396
        %v4398 = vpop.f32.mrf.mxu0
        %v4399 = vadd.f32 %v3744, %v4398
        %4400 = vmatmul.bf16.gmra.mxu0 %v3609
        %v4401 = vpop.f32.mrf.mxu0
        %v4402 = vadd.f32 %v3744, %v4401
        %v4403 = vpop.f32.mrf.mxu0
        %v4404 = vadd.f32 %v3744, %v4403
        %4405 = vdwg.mxu0
        %4406 = vmatpush.bf16.msra.mxu0 %v4115
        %4407 = vmatpush.bf16.msra.mxu0 %v4112
        %4408 = vmatpush.bf16.msra.mxu0 %v4109
        %4409 = vmatpush.bf16.msra.mxu0 %v4106
        %4410 = vmatpush.bf16.msra.mxu0 %v4103
        %4411 = vmatpush.bf16.msra.mxu0 %v4100
        %4412 = vmatpush.bf16.msra.mxu0 %v4097
        %4413 = vmatpush.bf16.msra.mxu0 %v4094
        %4414 = vmatmul.bf16.gmra.mxu0 %v3598
        %v4415 = vpop.f32.mrf.mxu0
        %v4416 = vadd.f32 %v4387, %v4415
        %v4417 = vpop.f32.mrf.mxu0
        %v4418 = vadd.f32 %v4389, %v4417
        %4419 = vmatmul.bf16.gmra.mxu0 %v3602
        %v4420 = vpop.f32.mrf.mxu0
        %v4421 = vadd.f32 %v4392, %v4420
        %v4422 = vpop.f32.mrf.mxu0
        %v4423 = vadd.f32 %v4394, %v4422
        %4424 = vmatmul.bf16.gmra.mxu0 %v3606
        %v4425 = vpop.f32.mrf.mxu0
        %v4426 = vadd.f32 %v4397, %v4425
        %v4427 = vpop.f32.mrf.mxu0
        %v4428 = vadd.f32 %v4399, %v4427
        %4429 = vmatmul.bf16.gmra.mxu0 %v3610
        %v4430 = vpop.f32.mrf.mxu0
        %v4431 = vadd.f32 %v4402, %v4430
        %v4432 = vpop.f32.mrf.mxu0
        %v4433 = vadd.f32 %v4404, %v4432
        %4434 = vdwg.mxu0
        %4435 = vmatpush.bf16.msra.mxu0 %v4139
        %4436 = vmatpush.bf16.msra.mxu0 %v4136
        %4437 = vmatpush.bf16.msra.mxu0 %v4133
        %4438 = vmatpush.bf16.msra.mxu0 %v4130
        %4439 = vmatpush.bf16.msra.mxu0 %v4127
        %4440 = vmatpush.bf16.msra.mxu0 %v4124
        %4441 = vmatpush.bf16.msra.mxu0 %v4121
        %4442 = vmatpush.bf16.msra.mxu0 %v4118
        %4443 = vmatmul.bf16.gmra.mxu0 %v3599
        %v4444 = vpop.f32.mrf.mxu0
        %v4445 = vadd.f32 %v4416, %v4444
        %v4446 = vpop.f32.mrf.mxu0
        %v4447 = vadd.f32 %v4418, %v4446
        %4448 = vmatmul.bf16.gmra.mxu0 %v3603
        %v4449 = vpop.f32.mrf.mxu0
        %v4450 = vadd.f32 %v4421, %v4449
        %v4451 = vpop.f32.mrf.mxu0
        %v4452 = vadd.f32 %v4423, %v4451
        %4453 = vmatmul.bf16.gmra.mxu0 %v3607
        %v4454 = vpop.f32.mrf.mxu0
        %v4455 = vadd.f32 %v4426, %v4454
        %v4456 = vpop.f32.mrf.mxu0
        %v4457 = vadd.f32 %v4428, %v4456
        %4458 = vmatmul.bf16.gmra.mxu0 %v3611
        %v4459 = vpop.f32.mrf.mxu0
        %v4460 = vadd.f32 %v4431, %v4459
        %v4461 = vpop.f32.mrf.mxu0
        %v4462 = vadd.f32 %v4433, %v4461
        %4463 = vdwg.mxu0
        %4464 = vmatpush.bf16.msra.mxu0 %v4163
        %4465 = vmatpush.bf16.msra.mxu0 %v4160
        %4466 = vmatpush.bf16.msra.mxu0 %v4157
        %4467 = vmatpush.bf16.msra.mxu0 %v4154
        %4468 = vmatpush.bf16.msra.mxu0 %v4151
        %4469 = vmatpush.bf16.msra.mxu0 %v4148
        %4470 = vmatpush.bf16.msra.mxu0 %v4145
        %4471 = vmatpush.bf16.msra.mxu0 %v4142
        %4472 = vmatmul.bf16.gmra.mxu0 %v3600
        %v4473 = vpop.f32.mrf.mxu0
        %v4474 = vadd.f32 %v4445, %v4473
        %v4475 = vpop.f32.mrf.mxu0
        %v4476 = vadd.f32 %v4447, %v4475
        %4477 = vmatmul.bf16.gmra.mxu0 %v3604
        %v4478 = vpop.f32.mrf.mxu0
        %v4479 = vadd.f32 %v4450, %v4478
        %v4480 = vpop.f32.mrf.mxu0
        %v4481 = vadd.f32 %v4452, %v4480
        %4482 = vmatmul.bf16.gmra.mxu0 %v3608
        %v4483 = vpop.f32.mrf.mxu0
        %v4484 = vadd.f32 %v4455, %v4483
        %v4485 = vpop.f32.mrf.mxu0
        %v4486 = vadd.f32 %v4457, %v4485
        %4487 = vmatmul.bf16.gmra.mxu0 %v3612
        %v4488 = vpop.f32.mrf.mxu0
        %v4489 = vadd.f32 %v4460, %v4488
        %v4490 = vpop.f32.mrf.mxu0
        %v4491 = vadd.f32 %v4462, %v4490
        %4492 = vdwg.mxu0
        %4493 = vmatpush.bf16.msra.mxu0 %v4092
        %4494 = vmatpush.bf16.msra.mxu0 %v4089
        %4495 = vmatpush.bf16.msra.mxu0 %v4086
        %4496 = vmatpush.bf16.msra.mxu0 %v4083
        %4497 = vmatpush.bf16.msra.mxu0 %v4080
        %4498 = vmatpush.bf16.msra.mxu0 %v4077
        %4499 = vmatpush.bf16.msra.mxu0 %v4074
        %4500 = vmatpush.bf16.msra.mxu0 %v4071
        %4501 = vmatmul.bf16.gmra.mxu0 %v3597
        %v4502 = vpop.f32.mrf.mxu0
        %v4503 = vadd.f32 %v3745, %v4502
        %v4504 = vpop.f32.mrf.mxu0
        %v4505 = vadd.f32 %v3745, %v4504
        %4506 = vmatmul.bf16.gmra.mxu0 %v3601
        %v4507 = vpop.f32.mrf.mxu0
        %v4508 = vadd.f32 %v3745, %v4507
        %v4509 = vpop.f32.mrf.mxu0
        %v4510 = vadd.f32 %v3745, %v4509
        %4511 = vmatmul.bf16.gmra.mxu0 %v3605
        %v4512 = vpop.f32.mrf.mxu0
        %v4513 = vadd.f32 %v3745, %v4512
        %v4514 = vpop.f32.mrf.mxu0
        %v4515 = vadd.f32 %v3745, %v4514
        %4516 = vmatmul.bf16.gmra.mxu0 %v3609
        %v4517 = vpop.f32.mrf.mxu0
        %v4518 = vadd.f32 %v3745, %v4517
        %v4519 = vpop.f32.mrf.mxu0
        %v4520 = vadd.f32 %v3745, %v4519
        %4521 = vdwg.mxu0
        %4522 = vmatpush.bf16.msra.mxu0 %v4116
        %4523 = vmatpush.bf16.msra.mxu0 %v4113
        %4524 = vmatpush.bf16.msra.mxu0 %v4110
        %4525 = vmatpush.bf16.msra.mxu0 %v4107
        %4526 = vmatpush.bf16.msra.mxu0 %v4104
        %4527 = vmatpush.bf16.msra.mxu0 %v4101
        %4528 = vmatpush.bf16.msra.mxu0 %v4098
        %4529 = vmatpush.bf16.msra.mxu0 %v4095
        %4530 = vmatmul.bf16.gmra.mxu0 %v3598
        %v4531 = vpop.f32.mrf.mxu0
        %v4532 = vadd.f32 %v4503, %v4531
        %v4533 = vpop.f32.mrf.mxu0
        %v4534 = vadd.f32 %v4505, %v4533
        %4535 = vmatmul.bf16.gmra.mxu0 %v3602
        %v4536 = vpop.f32.mrf.mxu0
        %v4537 = vadd.f32 %v4508, %v4536
        %v4538 = vpop.f32.mrf.mxu0
        %v4539 = vadd.f32 %v4510, %v4538
        %4540 = vmatmul.bf16.gmra.mxu0 %v3606
        %v4541 = vpop.f32.mrf.mxu0
        %v4542 = vadd.f32 %v4513, %v4541
        %v4543 = vpop.f32.mrf.mxu0
        %v4544 = vadd.f32 %v4515, %v4543
        %4545 = vmatmul.bf16.gmra.mxu0 %v3610
        %v4546 = vpop.f32.mrf.mxu0
        %v4547 = vadd.f32 %v4518, %v4546
        %v4548 = vpop.f32.mrf.mxu0
        %v4549 = vadd.f32 %v4520, %v4548
        %4550 = vdwg.mxu0
        %4551 = vmatpush.bf16.msra.mxu0 %v4140
        %4552 = vmatpush.bf16.msra.mxu0 %v4137
        %4553 = vmatpush.bf16.msra.mxu0 %v4134
        %4554 = vmatpush.bf16.msra.mxu0 %v4131
        %4555 = vmatpush.bf16.msra.mxu0 %v4128
        %4556 = vmatpush.bf16.msra.mxu0 %v4125
        %4557 = vmatpush.bf16.msra.mxu0 %v4122
        %4558 = vmatpush.bf16.msra.mxu0 %v4119
        %4559 = vmatmul.bf16.gmra.mxu0 %v3599
        %v4560 = vpop.f32.mrf.mxu0
        %v4561 = vadd.f32 %v4532, %v4560
        %v4562 = vpop.f32.mrf.mxu0
        %v4563 = vadd.f32 %v4534, %v4562
        %4564 = vmatmul.bf16.gmra.mxu0 %v3603
        %v4565 = vpop.f32.mrf.mxu0
        %v4566 = vadd.f32 %v4537, %v4565
        %v4567 = vpop.f32.mrf.mxu0
        %v4568 = vadd.f32 %v4539, %v4567
        %4569 = vmatmul.bf16.gmra.mxu0 %v3607
        %v4570 = vpop.f32.mrf.mxu0
        %v4571 = vadd.f32 %v4542, %v4570
        %v4572 = vpop.f32.mrf.mxu0
        %v4573 = vadd.f32 %v4544, %v4572
        %4574 = vmatmul.bf16.gmra.mxu0 %v3611
        %v4575 = vpop.f32.mrf.mxu0
        %v4576 = vadd.f32 %v4547, %v4575
        %v4577 = vpop.f32.mrf.mxu0
        %v4578 = vadd.f32 %v4549, %v4577
        %4579 = vdwg.mxu0
        %4580 = vmatpush.bf16.msra.mxu0 %v4164
        %4581 = vmatpush.bf16.msra.mxu0 %v4161
        %4582 = vmatpush.bf16.msra.mxu0 %v4158
        %4583 = vmatpush.bf16.msra.mxu0 %v4155
        %4584 = vmatpush.bf16.msra.mxu0 %v4152
        %4585 = vmatpush.bf16.msra.mxu0 %v4149
        %4586 = vmatpush.bf16.msra.mxu0 %v4146
        %4587 = vmatpush.bf16.msra.mxu0 %v4143
        %4588 = vmatmul.bf16.gmra.mxu0 %v3600
        %v4589 = vpop.f32.mrf.mxu0
        %v4590 = vadd.f32 %v4561, %v4589
        %v4591 = vpop.f32.mrf.mxu0
        %v4592 = vadd.f32 %v4563, %v4591
        %4593 = vmatmul.bf16.gmra.mxu0 %v3604
        %v4594 = vpop.f32.mrf.mxu0
        %v4595 = vadd.f32 %v4566, %v4594
        %v4596 = vpop.f32.mrf.mxu0
        %v4597 = vadd.f32 %v4568, %v4596
        %4598 = vmatmul.bf16.gmra.mxu0 %v3608
        %v4599 = vpop.f32.mrf.mxu0
        %v4600 = vadd.f32 %v4571, %v4599
        %v4601 = vpop.f32.mrf.mxu0
        %v4602 = vadd.f32 %v4573, %v4601
        %4603 = vmatmul.bf16.gmra.mxu0 %v3612
        %v4604 = vpop.f32.mrf.mxu0
        %v4605 = vadd.f32 %v4576, %v4604
        %v4606 = vpop.f32.mrf.mxu0
        %v4607 = vadd.f32 %v4578, %v4606
        %4608 = vdwg.mxu0
        %4609 = vmax.xlane.f32.xlu0 %v4358
        %v4610 = vpop.xlane.xlu0 %4609
        %4611 = vmax.xlane.f32.xlu0 %v4360
        %v4612 = vpop.xlane.xlu0 %4611
        %4613 = vmax.xlane.f32.xlu0 %v4363
        %v4614 = vpop.xlane.xlu0 %4613
        %4615 = vmax.xlane.f32.xlu0 %v4365
        %v4616 = vpop.xlane.xlu0 %4615
        %4617 = vmax.xlane.f32.xlu0 %v4368
        %v4618 = vpop.xlane.xlu0 %4617
        %4619 = vmax.xlane.f32.xlu0 %v4370
        %v4620 = vpop.xlane.xlu0 %4619
        %4621 = vmax.xlane.f32.xlu0 %v4373
        %v4622 = vpop.xlane.xlu0 %4621
        %4623 = vmax.xlane.f32.xlu0 %v4375
        %v4624 = vpop.xlane.xlu0 %4623
        %v4625 = vsub.f32 %v4358, %v4610
        %v4626 = vsub.f32 %v4360, %v4612
        %v4627 = vsub.f32 %v4363, %v4614
        %v4628 = vsub.f32 %v4365, %v4616
        %v4629 = vsub.f32 %v4368, %v4618
        %v4630 = vsub.f32 %v4370, %v4620
        %v4631 = vsub.f32 %v4373, %v4622
        %v4632 = vsub.f32 %v4375, %v4624
        %v4633 = vmul.f32 %v4625, 1.442695
        %v4634 = vpow.pop %v4633
        %v4635 = vmul.f32 %v4626, 1.442695
        %v4636 = vpow.pop %v4635
        %v4637 = vmul.f32 %v4627, 1.442695
        %v4638 = vpow.pop %v4637
        %v4639 = vmul.f32 %v4628, 1.442695
        %v4640 = vpow.pop %v4639
        %v4641 = vmul.f32 %v4629, 1.442695
        %v4642 = vpow.pop %v4641
        %v4643 = vmul.f32 %v4630, 1.442695
        %v4644 = vpow.pop %v4643
        %v4645 = vmul.f32 %v4631, 1.442695
        %v4646 = vpow.pop %v4645
        %v4647 = vmul.f32 %v4632, 1.442695
        %v4648 = vpow.pop %v4647
        %4649 = vadd.xlane.f32.xlu0 %v4634
        %v4650 = vpop.xlane.xlu0 %4649
        %4651 = vadd.xlane.f32.xlu0 %v4636
        %v4652 = vpop.xlane.xlu0 %4651
        %4653 = vadd.xlane.f32.xlu0 %v4638
        %v4654 = vpop.xlane.xlu0 %4653
        %4655 = vadd.xlane.f32.xlu0 %v4640
        %v4656 = vpop.xlane.xlu0 %4655
        %4657 = vadd.xlane.f32.xlu0 %v4642
        %v4658 = vpop.xlane.xlu0 %4657
        %4659 = vadd.xlane.f32.xlu0 %v4644
        %v4660 = vpop.xlane.xlu0 %4659
        %4661 = vadd.xlane.f32.xlu0 %v4646
        %v4662 = vpop.xlane.xlu0 %4661
        %4663 = vadd.xlane.f32.xlu0 %v4648
        %v4664 = vpop.xlane.xlu0 %4663
        %v4665 = vrcp.pop %v4650
        %v4666 = vrcp.pop %v4652
        %v4667 = vrcp.pop %v4654
        %v4668 = vrcp.pop %v4656
        %v4669 = vrcp.pop %v4658
        %v4670 = vrcp.pop %v4660
        %v4671 = vrcp.pop %v4662
        %v4672 = vrcp.pop %v4664
        %v4673 = vmul.f32 %v4634, %v4665
        %v4674 = vmul.f32 %v4636, %v4666
        %v4675 = vmul.f32 %v4638, %v4667
        %v4676 = vmul.f32 %v4640, %v4668
        %v4677 = vmul.f32 %v4642, %v4669
        %v4678 = vmul.f32 %v4644, %v4670
        %v4679 = vmul.f32 %v4646, %v4671
        %v4680 = vmul.f32 %v4648, %v4672
        %v4681 = vpack.c.bf16 %v4674, %v4673
        %v4682 = vpack.c.bf16 %v4676, %v4675
        %v4683 = vpack.c.bf16 %v4678, %v4677
        %v4684 = vpack.c.bf16 %v4680, %v4679
        %v4685 = vld [vmem:[#allocation2] sm:$0xff]
        %v4686 = vld [vmem:[#allocation2 + $0x8] sm:$0xff]
        %v4687 = vld [vmem:[#allocation2 + $0x10] sm:$0xff]
        %v4688 = vld [vmem:[#allocation2 + $0x18] sm:$0xff]
        %v4689 = vld [vmem:[#allocation2 + $0x20] sm:$0xff]
        %v4690 = vld [vmem:[#allocation2 + $0x28] sm:$0xff]
        %v4691 = vld [vmem:[#allocation2 + $0x30] sm:$0xff]
        %v4692 = vld [vmem:[#allocation2 + $0x38] sm:$0xff]
        %v4693 = vld [vmem:[#allocation2 + $0x40] sm:$0xff]
        %v4694 = vld [vmem:[#allocation2 + $0x48] sm:$0xff]
        %v4695 = vld [vmem:[#allocation2 + $0x50] sm:$0xff]
        %v4696 = vld [vmem:[#allocation2 + $0x58] sm:$0xff]
        %v4697 = vld [vmem:[#allocation2 + $0x60] sm:$0xff]
        %v4698 = vld [vmem:[#allocation2 + $0x68] sm:$0xff]
        %v4699 = vld [vmem:[#allocation2 + $0x70] sm:$0xff]
        %v4700 = vld [vmem:[#allocation2 + $0x78] sm:$0xff]
        %v4717 = vunpack.c.l.b16 %v4685
        %v4718 = vunpack.c.h.b16 %v4685
        %v4719 = vunpack.c.l.b16 %v4686
        %v4720 = vunpack.c.h.b16 %v4686
        %v4721 = vunpack.c.l.b16 %v4687
        %v4722 = vunpack.c.h.b16 %v4687
        %v4723 = vunpack.c.l.b16 %v4688
        %v4724 = vunpack.c.h.b16 %v4688
        %v4725 = vunpack.c.l.b16 %v4689
        %v4726 = vunpack.c.h.b16 %v4689
        %v4727 = vunpack.c.l.b16 %v4690
        %v4728 = vunpack.c.h.b16 %v4690
        %v4729 = vunpack.c.l.b16 %v4691
        %v4730 = vunpack.c.h.b16 %v4691
        %v4731 = vunpack.c.l.b16 %v4692
        %v4732 = vunpack.c.h.b16 %v4692
        %v4733 = vunpack.c.l.b16 %v4693
        %v4734 = vunpack.c.h.b16 %v4693
        %v4735 = vunpack.c.l.b16 %v4694
        %v4736 = vunpack.c.h.b16 %v4694
        %v4737 = vunpack.c.l.b16 %v4695
        %v4738 = vunpack.c.h.b16 %v4695
        %v4739 = vunpack.c.l.b16 %v4696
        %v4740 = vunpack.c.h.b16 %v4696
        %v4741 = vunpack.c.l.b16 %v4697
        %v4742 = vunpack.c.h.b16 %v4697
        %v4743 = vunpack.c.l.b16 %v4698
        %v4744 = vunpack.c.h.b16 %v4698
        %v4745 = vunpack.c.l.b16 %v4699
        %v4746 = vunpack.c.h.b16 %v4699
        %v4747 = vunpack.c.l.b16 %v4700
        %v4748 = vunpack.c.h.b16 %v4700
        %v4749 = vpack.c.b16 %v4719, %v4717
        %v4750 = vpack.c.b16 %v4720, %v4718
        %v4751 = vpack.c.b16 %v4723, %v4721
        %v4752 = vpack.c.b16 %v4724, %v4722
        %v4753 = vpack.c.b16 %v4727, %v4725
        %v4754 = vpack.c.b16 %v4728, %v4726
        %v4755 = vpack.c.b16 %v4731, %v4729
        %v4756 = vpack.c.b16 %v4732, %v4730
        %v4757 = vpack.c.b16 %v4735, %v4733
        %v4758 = vpack.c.b16 %v4736, %v4734
        %v4759 = vpack.c.b16 %v4739, %v4737
        %v4760 = vpack.c.b16 %v4740, %v4738
        %v4761 = vpack.c.b16 %v4743, %v4741
        %v4762 = vpack.c.b16 %v4744, %v4742
        %v4763 = vpack.c.b16 %v4747, %v4745
        %v4764 = vpack.c.b16 %v4748, %v4746
        %4781 = vmatpush.bf16.msra.mxu0 %v4763
        %4782 = vmatpush.bf16.msra.mxu0 %v4761
        %4783 = vmatpush.bf16.msra.mxu0 %v4759
        %4784 = vmatpush.bf16.msra.mxu0 %v4757
        %4785 = vmatpush.bf16.msra.mxu0 %v4755
        %4786 = vmatpush.bf16.msra.mxu0 %v4753
        %4787 = vmatpush.bf16.msra.mxu0 %v4751
        %4788 = vmatpush.bf16.msra.mxu0 %v4749
        %4789 = vmatmul.bf16.gmra.mxu0 %v4681
        %v4790 = vpop.f32.mrf.mxu0
        %v4791 = vadd.f32 1e-10, %v4790
        %v4792 = vpop.f32.mrf.mxu0
        %v4793 = vadd.f32 1e-10, %v4792
        %4794 = vmatmul.bf16.gmra.mxu0 %v4682
        %v4795 = vpop.f32.mrf.mxu0
        %v4796 = vadd.f32 1e-10, %v4795
        %v4797 = vpop.f32.mrf.mxu0
        %v4798 = vadd.f32 1e-10, %v4797
        %4799 = vmatmul.bf16.gmra.mxu0 %v4683
        %v4800 = vpop.f32.mrf.mxu0
        %v4801 = vadd.f32 1e-10, %v4800
        %v4802 = vpop.f32.mrf.mxu0
        %v4803 = vadd.f32 1e-10, %v4802
        %4804 = vmatmul.bf16.gmra.mxu0 %v4684
        %v4805 = vpop.f32.mrf.mxu0
        %v4806 = vadd.f32 1e-10, %v4805
        %v4807 = vpop.f32.mrf.mxu0
        %v4808 = vadd.f32 1e-10, %v4807
        %4809 = vdwg.mxu0
        %4810 = vmatpush.bf16.msra.mxu0 %v4764
        %4811 = vmatpush.bf16.msra.mxu0 %v4762
        %4812 = vmatpush.bf16.msra.mxu0 %v4760
        %4813 = vmatpush.bf16.msra.mxu0 %v4758
        %4814 = vmatpush.bf16.msra.mxu0 %v4756
        %4815 = vmatpush.bf16.msra.mxu0 %v4754
        %4816 = vmatpush.bf16.msra.mxu0 %v4752
        %4817 = vmatpush.bf16.msra.mxu0 %v4750
        %4818 = vmatmul.bf16.gmra.mxu0 %v4681
        %v4819 = vpop.f32.mrf.mxu0
        %v4820 = vadd.f32 1e-10, %v4819
        %v4821 = vpop.f32.mrf.mxu0
        %v4822 = vadd.f32 1e-10, %v4821
        %4823 = vmatmul.bf16.gmra.mxu0 %v4682
        %v4824 = vpop.f32.mrf.mxu0
        %v4825 = vadd.f32 1e-10, %v4824
        %v4826 = vpop.f32.mrf.mxu0
        %v4827 = vadd.f32 1e-10, %v4826
        %4828 = vmatmul.bf16.gmra.mxu0 %v4683
        %v4829 = vpop.f32.mrf.mxu0
        %v4830 = vadd.f32 1e-10, %v4829
        %v4831 = vpop.f32.mrf.mxu0
        %v4832 = vadd.f32 1e-10, %v4831
        %4833 = vmatmul.bf16.gmra.mxu0 %v4684
        %v4834 = vpop.f32.mrf.mxu0
        %v4835 = vadd.f32 1e-10, %v4834
        %v4836 = vpop.f32.mrf.mxu0
        %v4837 = vadd.f32 1e-10, %v4836
        %4838 = vdwg.mxu0
        %s4839 = smul.u32 8, 2
        %s4840 = smul.addr %s4839, 4
        %s4841 = scalar_lea.vmem %s535, %s4840
        %v4842 = vld [vmem:[%s4841] sm:$0xff]
        %v4843 = vld [vmem:[%s4841 + $0x8] sm:$0xff]
        %v4844 = vld [vmem:[%s4841 + $0x10] sm:$0xff]
        %v4845 = vld [vmem:[%s4841 + $0x18] sm:$0xff]
        %v4846 = vld [vmem:[%s4841 + $0x20] sm:$0xff]
        %v4847 = vld [vmem:[%s4841 + $0x28] sm:$0xff]
        %v4848 = vld [vmem:[%s4841 + $0x30] sm:$0xff]
        %v4849 = vld [vmem:[%s4841 + $0x38] sm:$0xff]
        %v4850 = vunpack.c.l.bf16 %v4842
        %v4851 = vunpack.c.h.bf16 %v4842
        %v4852 = vunpack.c.l.bf16 %v4843
        %v4853 = vunpack.c.h.bf16 %v4843
        %v4854 = vunpack.c.l.bf16 %v4844
        %v4855 = vunpack.c.h.bf16 %v4844
        %v4856 = vunpack.c.l.bf16 %v4845
        %v4857 = vunpack.c.h.bf16 %v4845
        %v4858 = vunpack.c.l.bf16 %v4846
        %v4859 = vunpack.c.h.bf16 %v4846
        %v4860 = vunpack.c.l.bf16 %v4847
        %v4861 = vunpack.c.h.bf16 %v4847
        %v4862 = vunpack.c.l.bf16 %v4848
        %v4863 = vunpack.c.h.bf16 %v4848
        %v4864 = vunpack.c.l.bf16 %v4849
        %v4865 = vunpack.c.h.bf16 %v4849
        %v4866 = vmul.f32 %v4474, 0.5
        %v4867 = vmul.f32 %v4590, 0.5
        %v4868 = vmul.f32 %v4476, 0.5
        %v4869 = vmul.f32 %v4592, 0.5
        %v4870 = vmul.f32 %v4479, 0.5
        %v4871 = vmul.f32 %v4595, 0.5
        %v4872 = vmul.f32 %v4481, 0.5
        %v4873 = vmul.f32 %v4597, 0.5
        %v4874 = vmul.f32 %v4484, 0.5
        %v4875 = vmul.f32 %v4600, 0.5
        %v4876 = vmul.f32 %v4486, 0.5
        %v4877 = vmul.f32 %v4602, 0.5
        %v4878 = vmul.f32 %v4489, 0.5
        %v4879 = vmul.f32 %v4605, 0.5
        %v4880 = vmul.f32 %v4491, 0.5
        %v4881 = vmul.f32 %v4607, 0.5
        %v4882 = vmul.f32 %v4866, 1.442695
        %v4883 = vpow.pop %v4882
        %v4884 = vmul.f32 %v4867, 1.442695
        %v4885 = vpow.pop %v4884
        %v4886 = vmul.f32 %v4868, 1.442695
        %v4887 = vpow.pop %v4886
        %v4888 = vmul.f32 %v4869, 1.442695
        %v4889 = vpow.pop %v4888
        %v4890 = vmul.f32 %v4870, 1.442695
        %v4891 = vpow.pop %v4890
        %v4892 = vmul.f32 %v4871, 1.442695
        %v4893 = vpow.pop %v4892
        %v4894 = vmul.f32 %v4872, 1.442695
        %v4895 = vpow.pop %v4894
        %v4896 = vmul.f32 %v4873, 1.442695
        %v4897 = vpow.pop %v4896
        %v4898 = vmul.f32 %v4874, 1.442695
        %v4899 = vpow.pop %v4898
        %v4900 = vmul.f32 %v4875, 1.442695
        %v4901 = vpow.pop %v4900
        %v4902 = vmul.f32 %v4876, 1.442695
        %v4903 = vpow.pop %v4902
        %v4904 = vmul.f32 %v4877, 1.442695
        %v4905 = vpow.pop %v4904
        %v4906 = vmul.f32 %v4878, 1.442695
        %v4907 = vpow.pop %v4906
        %v4908 = vmul.f32 %v4879, 1.442695
        %v4909 = vpow.pop %v4908
        %v4910 = vmul.f32 %v4880, 1.442695
        %v4911 = vpow.pop %v4910
        %v4912 = vmul.f32 %v4881, 1.442695
        %v4913 = vpow.pop %v4912
        %v4914 = vmul.f32 %v4850, %v4883
        %v4915 = vmul.f32 %v4851, %v4885
        %v4916 = vmul.f32 %v4852, %v4887
        %v4917 = vmul.f32 %v4853, %v4889
        %v4918 = vmul.f32 %v4854, %v4891
        %v4919 = vmul.f32 %v4855, %v4893
        %v4920 = vmul.f32 %v4856, %v4895
        %v4921 = vmul.f32 %v4857, %v4897
        %v4922 = vmul.f32 %v4858, %v4899
        %v4923 = vmul.f32 %v4859, %v4901
        %v4924 = vmul.f32 %v4860, %v4903
        %v4925 = vmul.f32 %v4861, %v4905
        %v4926 = vmul.f32 %v4862, %v4907
        %v4927 = vmul.f32 %v4863, %v4909
        %v4928 = vmul.f32 %v4864, %v4911
        %v4929 = vmul.f32 %v4865, %v4913
        %v4930 = vadd.f32 %v4914, %v4791
        %v4931 = vadd.f32 %v4915, %v4820
        %v4932 = vadd.f32 %v4916, %v4793
        %v4933 = vadd.f32 %v4917, %v4822
        %v4934 = vadd.f32 %v4918, %v4796
        %v4935 = vadd.f32 %v4919, %v4825
        %v4936 = vadd.f32 %v4920, %v4798
        %v4937 = vadd.f32 %v4921, %v4827
        %v4938 = vadd.f32 %v4922, %v4801
        %v4939 = vadd.f32 %v4923, %v4830
        %v4940 = vadd.f32 %v4924, %v4803
        %v4941 = vadd.f32 %v4925, %v4832
        %v4942 = vadd.f32 %v4926, %v4806
        %v4943 = vadd.f32 %v4927, %v4835
        %v4944 = vadd.f32 %v4928, %v4808
        %v4945 = vadd.f32 %v4929, %v4837
        %v4946 = vpack.c.bf16 %v4932, %v4930
        %v4947 = vpack.c.bf16 %v4933, %v4931
        %v4948 = vpack.c.bf16 %v4936, %v4934
        %v4949 = vpack.c.bf16 %v4937, %v4935
        %v4950 = vpack.c.bf16 %v4940, %v4938
        %v4951 = vpack.c.bf16 %v4941, %v4939
        %v4952 = vpack.c.bf16 %v4944, %v4942
        %v4953 = vpack.c.bf16 %v4945, %v4943
        %v4954 = vld [vmem:[#allocation5] sm:$0xff]
        %v4955 = vld [vmem:[#allocation5 + $0x8] sm:$0xff]
        %v4956 = vld [vmem:[#allocation5 + $0x10] sm:$0xff]
        %v4957 = vld [vmem:[#allocation5 + $0x18] sm:$0xff]
        %v4958 = vld [vmem:[#allocation5 + $0x20] sm:$0xff]
        %v4959 = vld [vmem:[#allocation5 + $0x28] sm:$0xff]
        %v4960 = vld [vmem:[#allocation5 + $0x30] sm:$0xff]
        %v4961 = vld [vmem:[#allocation5 + $0x38] sm:$0xff]
        %v4962 = vld [vmem:[#allocation5 + $0x40] sm:$0xff]
        %v4963 = vld [vmem:[#allocation5 + $0x48] sm:$0xff]
        %v4964 = vld [vmem:[#allocation5 + $0x50] sm:$0xff]
        %v4965 = vld [vmem:[#allocation5 + $0x58] sm:$0xff]
        %v4966 = vld [vmem:[#allocation5 + $0x60] sm:$0xff]
        %v4967 = vld [vmem:[#allocation5 + $0x68] sm:$0xff]
        %v4968 = vld [vmem:[#allocation5 + $0x70] sm:$0xff]
        %v4969 = vld [vmem:[#allocation5 + $0x78] sm:$0xff]
        %v4970 = vld [vmem:[#allocation5 + $0x80] sm:$0xff]
        %v4971 = vld [vmem:[#allocation5 + $0x88] sm:$0xff]
        %v4972 = vld [vmem:[#allocation5 + $0x90] sm:$0xff]
        %v4973 = vld [vmem:[#allocation5 + $0x98] sm:$0xff]
        %v4974 = vld [vmem:[#allocation5 + $0xa0] sm:$0xff]
        %v4975 = vld [vmem:[#allocation5 + $0xa8] sm:$0xff]
        %v4976 = vld [vmem:[#allocation5 + $0xb0] sm:$0xff]
        %v4977 = vld [vmem:[#allocation5 + $0xb8] sm:$0xff]
        %v4978 = vld [vmem:[#allocation5 + $0xc0] sm:$0xff]
        %v4979 = vld [vmem:[#allocation5 + $0xc8] sm:$0xff]
        %v4980 = vld [vmem:[#allocation5 + $0xd0] sm:$0xff]
        %v4981 = vld [vmem:[#allocation5 + $0xd8] sm:$0xff]
        %v4982 = vld [vmem:[#allocation5 + $0xe0] sm:$0xff]
        %v4983 = vld [vmem:[#allocation5 + $0xe8] sm:$0xff]
        %v4984 = vld [vmem:[#allocation5 + $0xf0] sm:$0xff]
        %v4985 = vld [vmem:[#allocation5 + $0xf8] sm:$0xff]
        %v4986 = vld [vmem:[#allocation5 + $0x100] sm:$0xff]
        %v4987 = vld [vmem:[#allocation5 + $0x108] sm:$0xff]
        %v4988 = vld [vmem:[#allocation5 + $0x110] sm:$0xff]
        %v4989 = vld [vmem:[#allocation5 + $0x118] sm:$0xff]
        %v4990 = vld [vmem:[#allocation5 + $0x120] sm:$0xff]
        %v4991 = vld [vmem:[#allocation5 + $0x128] sm:$0xff]
        %v4992 = vld [vmem:[#allocation5 + $0x130] sm:$0xff]
        %v4993 = vld [vmem:[#allocation5 + $0x138] sm:$0xff]
        %v4994 = vld [vmem:[#allocation5 + $0x140] sm:$0xff]
        %v4995 = vld [vmem:[#allocation5 + $0x148] sm:$0xff]
        %v4996 = vld [vmem:[#allocation5 + $0x150] sm:$0xff]
        %v4997 = vld [vmem:[#allocation5 + $0x158] sm:$0xff]
        %v4998 = vld [vmem:[#allocation5 + $0x160] sm:$0xff]
        %v4999 = vld [vmem:[#allocation5 + $0x168] sm:$0xff]
        %v5000 = vld [vmem:[#allocation5 + $0x170] sm:$0xff]
        %v5001 = vld [vmem:[#allocation5 + $0x178] sm:$0xff]
        %v5002 = vld [vmem:[#allocation5 + $0x180] sm:$0xff]
        %v5003 = vld [vmem:[#allocation5 + $0x188] sm:$0xff]
        %v5004 = vld [vmem:[#allocation5 + $0x190] sm:$0xff]
        %v5005 = vld [vmem:[#allocation5 + $0x198] sm:$0xff]
        %v5006 = vld [vmem:[#allocation5 + $0x1a0] sm:$0xff]
        %v5007 = vld [vmem:[#allocation5 + $0x1a8] sm:$0xff]
        %v5008 = vld [vmem:[#allocation5 + $0x1b0] sm:$0xff]
        %v5009 = vld [vmem:[#allocation5 + $0x1b8] sm:$0xff]
        %v5010 = vld [vmem:[#allocation5 + $0x1c0] sm:$0xff]
        %v5011 = vld [vmem:[#allocation5 + $0x1c8] sm:$0xff]
        %v5012 = vld [vmem:[#allocation5 + $0x1d0] sm:$0xff]
        %v5013 = vld [vmem:[#allocation5 + $0x1d8] sm:$0xff]
        %v5014 = vld [vmem:[#allocation5 + $0x1e0] sm:$0xff]
        %v5015 = vld [vmem:[#allocation5 + $0x1e8] sm:$0xff]
        %v5016 = vld [vmem:[#allocation5 + $0x1f0] sm:$0xff]
        %v5017 = vld [vmem:[#allocation5 + $0x1f8] sm:$0xff]
        %v5018 = vld [vmem:[%s7] sm:$0xf]
        %v5020 = vperm.slane %v5018, 0
        %v5021 = vperm.slane %v5018, 1
        %v5022 = vperm.slane %v5018, 2
        %v5023 = vperm.slane %v5018, 3
        %v5092 = vunpack.c.l.b16 %v4954
        %v5093 = vunpack.c.h.b16 %v4954
        %v5094 = vunpack.c.l.b16 %v4955
        %v5095 = vunpack.c.h.b16 %v4955
        %v5096 = vunpack.c.l.b16 %v4956
        %v5097 = vunpack.c.h.b16 %v4956
        %v5098 = vunpack.c.l.b16 %v4957
        %v5099 = vunpack.c.h.b16 %v4957
        %v5100 = vunpack.c.l.b16 %v4958
        %v5101 = vunpack.c.h.b16 %v4958
        %v5102 = vunpack.c.l.b16 %v4959
        %v5103 = vunpack.c.h.b16 %v4959
        %v5104 = vunpack.c.l.b16 %v4960
        %v5105 = vunpack.c.h.b16 %v4960
        %v5106 = vunpack.c.l.b16 %v4961
        %v5107 = vunpack.c.h.b16 %v4961
        %v5108 = vunpack.c.l.b16 %v4962
        %v5109 = vunpack.c.h.b16 %v4962
        %v5110 = vunpack.c.l.b16 %v4963
        %v5111 = vunpack.c.h.b16 %v4963
        %v5112 = vunpack.c.l.b16 %v4964
        %v5113 = vunpack.c.h.b16 %v4964
        %v5114 = vunpack.c.l.b16 %v4965
        %v5115 = vunpack.c.h.b16 %v4965
        %v5116 = vunpack.c.l.b16 %v4966
        %v5117 = vunpack.c.h.b16 %v4966
        %v5118 = vunpack.c.l.b16 %v4967
        %v5119 = vunpack.c.h.b16 %v4967
        %v5120 = vunpack.c.l.b16 %v4968
        %v5121 = vunpack.c.h.b16 %v4968
        %v5122 = vunpack.c.l.b16 %v4969
        %v5123 = vunpack.c.h.b16 %v4969
        %v5124 = vunpack.c.l.b16 %v4970
        %v5125 = vunpack.c.h.b16 %v4970
        %v5126 = vunpack.c.l.b16 %v4971
        %v5127 = vunpack.c.h.b16 %v4971
        %v5128 = vunpack.c.l.b16 %v4972
        %v5129 = vunpack.c.h.b16 %v4972
        %v5130 = vunpack.c.l.b16 %v4973
        %v5131 = vunpack.c.h.b16 %v4973
        %v5132 = vunpack.c.l.b16 %v4974
        %v5133 = vunpack.c.h.b16 %v4974
        %v5134 = vunpack.c.l.b16 %v4975
        %v5135 = vunpack.c.h.b16 %v4975
        %v5136 = vunpack.c.l.b16 %v4976
        %v5137 = vunpack.c.h.b16 %v4976
        %v5138 = vunpack.c.l.b16 %v4977
        %v5139 = vunpack.c.h.b16 %v4977
        %v5140 = vunpack.c.l.b16 %v4978
        %v5141 = vunpack.c.h.b16 %v4978
        %v5142 = vunpack.c.l.b16 %v4979
        %v5143 = vunpack.c.h.b16 %v4979
        %v5144 = vunpack.c.l.b16 %v4980
        %v5145 = vunpack.c.h.b16 %v4980
        %v5146 = vunpack.c.l.b16 %v4981
        %v5147 = vunpack.c.h.b16 %v4981
        %v5148 = vunpack.c.l.b16 %v4982
        %v5149 = vunpack.c.h.b16 %v4982
        %v5150 = vunpack.c.l.b16 %v4983
        %v5151 = vunpack.c.h.b16 %v4983
        %v5152 = vunpack.c.l.b16 %v4984
        %v5153 = vunpack.c.h.b16 %v4984
        %v5154 = vunpack.c.l.b16 %v4985
        %v5155 = vunpack.c.h.b16 %v4985
        %v5156 = vunpack.c.l.b16 %v4986
        %v5157 = vunpack.c.h.b16 %v4986
        %v5158 = vunpack.c.l.b16 %v4987
        %v5159 = vunpack.c.h.b16 %v4987
        %v5160 = vunpack.c.l.b16 %v4988
        %v5161 = vunpack.c.h.b16 %v4988
        %v5162 = vunpack.c.l.b16 %v4989
        %v5163 = vunpack.c.h.b16 %v4989
        %v5164 = vunpack.c.l.b16 %v4990
        %v5165 = vunpack.c.h.b16 %v4990
        %v5166 = vunpack.c.l.b16 %v4991
        %v5167 = vunpack.c.h.b16 %v4991
        %v5168 = vunpack.c.l.b16 %v4992
        %v5169 = vunpack.c.h.b16 %v4992
        %v5170 = vunpack.c.l.b16 %v4993
        %v5171 = vunpack.c.h.b16 %v4993
        %v5172 = vunpack.c.l.b16 %v4994
        %v5173 = vunpack.c.h.b16 %v4994
        %v5174 = vunpack.c.l.b16 %v4995
        %v5175 = vunpack.c.h.b16 %v4995
        %v5176 = vunpack.c.l.b16 %v4996
        %v5177 = vunpack.c.h.b16 %v4996
        %v5178 = vunpack.c.l.b16 %v4997
        %v5179 = vunpack.c.h.b16 %v4997
        %v5180 = vunpack.c.l.b16 %v4998
        %v5181 = vunpack.c.h.b16 %v4998
        %v5182 = vunpack.c.l.b16 %v4999
        %v5183 = vunpack.c.h.b16 %v4999
        %v5184 = vunpack.c.l.b16 %v5000
        %v5185 = vunpack.c.h.b16 %v5000
        %v5186 = vunpack.c.l.b16 %v5001
        %v5187 = vunpack.c.h.b16 %v5001
        %v5188 = vunpack.c.l.b16 %v5002
        %v5189 = vunpack.c.h.b16 %v5002
        %v5190 = vunpack.c.l.b16 %v5003
        %v5191 = vunpack.c.h.b16 %v5003
        %v5192 = vunpack.c.l.b16 %v5004
        %v5193 = vunpack.c.h.b16 %v5004
        %v5194 = vunpack.c.l.b16 %v5005
        %v5195 = vunpack.c.h.b16 %v5005
        %v5196 = vunpack.c.l.b16 %v5006
        %v5197 = vunpack.c.h.b16 %v5006
        %v5198 = vunpack.c.l.b16 %v5007
        %v5199 = vunpack.c.h.b16 %v5007
        %v5200 = vunpack.c.l.b16 %v5008
        %v5201 = vunpack.c.h.b16 %v5008
        %v5202 = vunpack.c.l.b16 %v5009
        %v5203 = vunpack.c.h.b16 %v5009
        %v5204 = vunpack.c.l.b16 %v5010
        %v5205 = vunpack.c.h.b16 %v5010
        %v5206 = vunpack.c.l.b16 %v5011
        %v5207 = vunpack.c.h.b16 %v5011
        %v5208 = vunpack.c.l.b16 %v5012
        %v5209 = vunpack.c.h.b16 %v5012
        %v5210 = vunpack.c.l.b16 %v5013
        %v5211 = vunpack.c.h.b16 %v5013
        %v5212 = vunpack.c.l.b16 %v5014
        %v5213 = vunpack.c.h.b16 %v5014
        %v5214 = vunpack.c.l.b16 %v5015
        %v5215 = vunpack.c.h.b16 %v5015
        %v5216 = vunpack.c.l.b16 %v5016
        %v5217 = vunpack.c.h.b16 %v5016
        %v5218 = vunpack.c.l.b16 %v5017
        %v5219 = vunpack.c.h.b16 %v5017
        %v5220 = vpack.c.b16 %v5096, %v5092
        %v5221 = vpack.c.b16 %v5097, %v5093
        %v5222 = vpack.c.b16 %v5098, %v5094
        %v5223 = vpack.c.b16 %v5099, %v5095
        %v5224 = vpack.c.b16 %v5104, %v5100
        %v5225 = vpack.c.b16 %v5105, %v5101
        %v5226 = vpack.c.b16 %v5106, %v5102
        %v5227 = vpack.c.b16 %v5107, %v5103
        %v5228 = vpack.c.b16 %v5112, %v5108
        %v5229 = vpack.c.b16 %v5113, %v5109
        %v5230 = vpack.c.b16 %v5114, %v5110
        %v5231 = vpack.c.b16 %v5115, %v5111
        %v5232 = vpack.c.b16 %v5120, %v5116
        %v5233 = vpack.c.b16 %v5121, %v5117
        %v5234 = vpack.c.b16 %v5122, %v5118
        %v5235 = vpack.c.b16 %v5123, %v5119
        %v5236 = vpack.c.b16 %v5128, %v5124
        %v5237 = vpack.c.b16 %v5129, %v5125
        %v5238 = vpack.c.b16 %v5130, %v5126
        %v5239 = vpack.c.b16 %v5131, %v5127
        %v5240 = vpack.c.b16 %v5136, %v5132
        %v5241 = vpack.c.b16 %v5137, %v5133
        %v5242 = vpack.c.b16 %v5138, %v5134
        %v5243 = vpack.c.b16 %v5139, %v5135
        %v5244 = vpack.c.b16 %v5144, %v5140
        %v5245 = vpack.c.b16 %v5145, %v5141
        %v5246 = vpack.c.b16 %v5146, %v5142
        %v5247 = vpack.c.b16 %v5147, %v5143
        %v5248 = vpack.c.b16 %v5152, %v5148
        %v5249 = vpack.c.b16 %v5153, %v5149
        %v5250 = vpack.c.b16 %v5154, %v5150
        %v5251 = vpack.c.b16 %v5155, %v5151
        %v5252 = vpack.c.b16 %v5160, %v5156
        %v5253 = vpack.c.b16 %v5161, %v5157
        %v5254 = vpack.c.b16 %v5162, %v5158
        %v5255 = vpack.c.b16 %v5163, %v5159
        %v5256 = vpack.c.b16 %v5168, %v5164
        %v5257 = vpack.c.b16 %v5169, %v5165
        %v5258 = vpack.c.b16 %v5170, %v5166
        %v5259 = vpack.c.b16 %v5171, %v5167
        %v5260 = vpack.c.b16 %v5176, %v5172
        %v5261 = vpack.c.b16 %v5177, %v5173
        %v5262 = vpack.c.b16 %v5178, %v5174
        %v5263 = vpack.c.b16 %v5179, %v5175
        %v5264 = vpack.c.b16 %v5184, %v5180
        %v5265 = vpack.c.b16 %v5185, %v5181
        %v5266 = vpack.c.b16 %v5186, %v5182
        %v5267 = vpack.c.b16 %v5187, %v5183
        %v5268 = vpack.c.b16 %v5192, %v5188
        %v5269 = vpack.c.b16 %v5193, %v5189
        %v5270 = vpack.c.b16 %v5194, %v5190
        %v5271 = vpack.c.b16 %v5195, %v5191
        %v5272 = vpack.c.b16 %v5200, %v5196
        %v5273 = vpack.c.b16 %v5201, %v5197
        %v5274 = vpack.c.b16 %v5202, %v5198
        %v5275 = vpack.c.b16 %v5203, %v5199
        %v5276 = vpack.c.b16 %v5208, %v5204
        %v5277 = vpack.c.b16 %v5209, %v5205
        %v5278 = vpack.c.b16 %v5210, %v5206
        %v5279 = vpack.c.b16 %v5211, %v5207
        %v5280 = vpack.c.b16 %v5216, %v5212
        %v5281 = vpack.c.b16 %v5217, %v5213
        %v5282 = vpack.c.b16 %v5218, %v5214
        %v5283 = vpack.c.b16 %v5219, %v5215
        %5348 = vmatpush.bf16.msra.mxu0 %v5248
        %5349 = vmatpush.bf16.msra.mxu0 %v5244
        %5350 = vmatpush.bf16.msra.mxu0 %v5240
        %5351 = vmatpush.bf16.msra.mxu0 %v5236
        %5352 = vmatpush.bf16.msra.mxu0 %v5232
        %5353 = vmatpush.bf16.msra.mxu0 %v5228
        %5354 = vmatpush.bf16.msra.mxu0 %v5224
        %5355 = vmatpush.bf16.msra.mxu0 %v5220
        %5356 = vmatmul.bf16.gmra.mxu0 %v4946
        %v5357 = vpop.f32.mrf.mxu0
        %v5358 = vadd.f32 %v5020, %v5357
        %v5359 = vpop.f32.mrf.mxu0
        %v5360 = vadd.f32 %v5020, %v5359
        %5361 = vmatmul.bf16.gmra.mxu0 %v4948
        %v5362 = vpop.f32.mrf.mxu0
        %v5363 = vadd.f32 %v5020, %v5362
        %v5364 = vpop.f32.mrf.mxu0
        %v5365 = vadd.f32 %v5020, %v5364
        %5366 = vmatmul.bf16.gmra.mxu0 %v4950
        %v5367 = vpop.f32.mrf.mxu0
        %v5368 = vadd.f32 %v5020, %v5367
        %v5369 = vpop.f32.mrf.mxu0
        %v5370 = vadd.f32 %v5020, %v5369
        %5371 = vmatmul.bf16.gmra.mxu0 %v4952
        %v5372 = vpop.f32.mrf.mxu0
        %v5373 = vadd.f32 %v5020, %v5372
        %v5374 = vpop.f32.mrf.mxu0
        %v5375 = vadd.f32 %v5020, %v5374
        %5376 = vdwg.mxu0
        %5377 = vmatpush.bf16.msra.mxu0 %v5280
        %5378 = vmatpush.bf16.msra.mxu0 %v5276
        %5379 = vmatpush.bf16.msra.mxu0 %v5272
        %5380 = vmatpush.bf16.msra.mxu0 %v5268
        %5381 = vmatpush.bf16.msra.mxu0 %v5264
        %5382 = vmatpush.bf16.msra.mxu0 %v5260
        %5383 = vmatpush.bf16.msra.mxu0 %v5256
        %5384 = vmatpush.bf16.msra.mxu0 %v5252
        %5385 = vmatmul.bf16.gmra.mxu0 %v4947
        %v5386 = vpop.f32.mrf.mxu0
        %v5387 = vadd.f32 %v5358, %v5386
        %v5388 = vpop.f32.mrf.mxu0
        %v5389 = vadd.f32 %v5360, %v5388
        %5390 = vmatmul.bf16.gmra.mxu0 %v4949
        %v5391 = vpop.f32.mrf.mxu0
        %v5392 = vadd.f32 %v5363, %v5391
        %v5393 = vpop.f32.mrf.mxu0
        %v5394 = vadd.f32 %v5365, %v5393
        %5395 = vmatmul.bf16.gmra.mxu0 %v4951
        %v5396 = vpop.f32.mrf.mxu0
        %v5397 = vadd.f32 %v5368, %v5396
        %v5398 = vpop.f32.mrf.mxu0
        %v5399 = vadd.f32 %v5370, %v5398
        %5400 = vmatmul.bf16.gmra.mxu0 %v4953
        %v5401 = vpop.f32.mrf.mxu0
        %v5402 = vadd.f32 %v5373, %v5401
        %v5403 = vpop.f32.mrf.mxu0
        %v5404 = vadd.f32 %v5375, %v5403
        %5405 = vdwg.mxu0
        %5406 = vmatpush.bf16.msra.mxu0 %v5249
        %5407 = vmatpush.bf16.msra.mxu0 %v5245
        %5408 = vmatpush.bf16.msra.mxu0 %v5241
        %5409 = vmatpush.bf16.msra.mxu0 %v5237
        %5410 = vmatpush.bf16.msra.mxu0 %v5233
        %5411 = vmatpush.bf16.msra.mxu0 %v5229
        %5412 = vmatpush.bf16.msra.mxu0 %v5225
        %5413 = vmatpush.bf16.msra.mxu0 %v5221
        %5414 = vmatmul.bf16.gmra.mxu0 %v4946
        %v5415 = vpop.f32.mrf.mxu0
        %v5416 = vadd.f32 %v5021, %v5415
        %v5417 = vpop.f32.mrf.mxu0
        %v5418 = vadd.f32 %v5021, %v5417
        %5419 = vmatmul.bf16.gmra.mxu0 %v4948
        %v5420 = vpop.f32.mrf.mxu0
        %v5421 = vadd.f32 %v5021, %v5420
        %v5422 = vpop.f32.mrf.mxu0
        %v5423 = vadd.f32 %v5021, %v5422
        %5424 = vmatmul.bf16.gmra.mxu0 %v4950
        %v5425 = vpop.f32.mrf.mxu0
        %v5426 = vadd.f32 %v5021, %v5425
        %v5427 = vpop.f32.mrf.mxu0
        %v5428 = vadd.f32 %v5021, %v5427
        %5429 = vmatmul.bf16.gmra.mxu0 %v4952
        %v5430 = vpop.f32.mrf.mxu0
        %v5431 = vadd.f32 %v5021, %v5430
        %v5432 = vpop.f32.mrf.mxu0
        %v5433 = vadd.f32 %v5021, %v5432
        %5434 = vdwg.mxu0
        %5435 = vmatpush.bf16.msra.mxu0 %v5281
        %5436 = vmatpush.bf16.msra.mxu0 %v5277
        %5437 = vmatpush.bf16.msra.mxu0 %v5273
        %5438 = vmatpush.bf16.msra.mxu0 %v5269
        %5439 = vmatpush.bf16.msra.mxu0 %v5265
        %5440 = vmatpush.bf16.msra.mxu0 %v5261
        %5441 = vmatpush.bf16.msra.mxu0 %v5257
        %5442 = vmatpush.bf16.msra.mxu0 %v5253
        %5443 = vmatmul.bf16.gmra.mxu0 %v4947
        %v5444 = vpop.f32.mrf.mxu0
        %v5445 = vadd.f32 %v5416, %v5444
        %v5446 = vpop.f32.mrf.mxu0
        %v5447 = vadd.f32 %v5418, %v5446
        %5448 = vmatmul.bf16.gmra.mxu0 %v4949
        %v5449 = vpop.f32.mrf.mxu0
        %v5450 = vadd.f32 %v5421, %v5449
        %v5451 = vpop.f32.mrf.mxu0
        %v5452 = vadd.f32 %v5423, %v5451
        %5453 = vmatmul.bf16.gmra.mxu0 %v4951
        %v5454 = vpop.f32.mrf.mxu0
        %v5455 = vadd.f32 %v5426, %v5454
        %v5456 = vpop.f32.mrf.mxu0
        %v5457 = vadd.f32 %v5428, %v5456
        %5458 = vmatmul.bf16.gmra.mxu0 %v4953
        %v5459 = vpop.f32.mrf.mxu0
        %v5460 = vadd.f32 %v5431, %v5459
        %v5461 = vpop.f32.mrf.mxu0
        %v5462 = vadd.f32 %v5433, %v5461
        %5463 = vdwg.mxu0
        %5464 = vmatpush.bf16.msra.mxu0 %v5250
        %5465 = vmatpush.bf16.msra.mxu0 %v5246
        %5466 = vmatpush.bf16.msra.mxu0 %v5242
        %5467 = vmatpush.bf16.msra.mxu0 %v5238
        %5468 = vmatpush.bf16.msra.mxu0 %v5234
        %5469 = vmatpush.bf16.msra.mxu0 %v5230
        %5470 = vmatpush.bf16.msra.mxu0 %v5226
        %5471 = vmatpush.bf16.msra.mxu0 %v5222
        %5472 = vmatmul.bf16.gmra.mxu0 %v4946
        %v5473 = vpop.f32.mrf.mxu0
        %v5474 = vadd.f32 %v5022, %v5473
        %v5475 = vpop.f32.mrf.mxu0
        %v5476 = vadd.f32 %v5022, %v5475
        %5477 = vmatmul.bf16.gmra.mxu0 %v4948
        %v5478 = vpop.f32.mrf.mxu0
        %v5479 = vadd.f32 %v5022, %v5478
        %v5480 = vpop.f32.mrf.mxu0
        %v5481 = vadd.f32 %v5022, %v5480
        %5482 = vmatmul.bf16.gmra.mxu0 %v4950
        %v5483 = vpop.f32.mrf.mxu0
        %v5484 = vadd.f32 %v5022, %v5483
        %v5485 = vpop.f32.mrf.mxu0
        %v5486 = vadd.f32 %v5022, %v5485
        %5487 = vmatmul.bf16.gmra.mxu0 %v4952
        %v5488 = vpop.f32.mrf.mxu0
        %v5489 = vadd.f32 %v5022, %v5488
        %v5490 = vpop.f32.mrf.mxu0
        %v5491 = vadd.f32 %v5022, %v5490
        %5492 = vdwg.mxu0
        %5493 = vmatpush.bf16.msra.mxu0 %v5282
        %5494 = vmatpush.bf16.msra.mxu0 %v5278
        %5495 = vmatpush.bf16.msra.mxu0 %v5274
        %5496 = vmatpush.bf16.msra.mxu0 %v5270
        %5497 = vmatpush.bf16.msra.mxu0 %v5266
        %5498 = vmatpush.bf16.msra.mxu0 %v5262
        %5499 = vmatpush.bf16.msra.mxu0 %v5258
        %5500 = vmatpush.bf16.msra.mxu0 %v5254
        %5501 = vmatmul.bf16.gmra.mxu0 %v4947
        %v5502 = vpop.f32.mrf.mxu0
        %v5503 = vadd.f32 %v5474, %v5502
        %v5504 = vpop.f32.mrf.mxu0
        %v5505 = vadd.f32 %v5476, %v5504
        %5506 = vmatmul.bf16.gmra.mxu0 %v4949
        %v5507 = vpop.f32.mrf.mxu0
        %v5508 = vadd.f32 %v5479, %v5507
        %v5509 = vpop.f32.mrf.mxu0
        %v5510 = vadd.f32 %v5481, %v5509
        %5511 = vmatmul.bf16.gmra.mxu0 %v4951
        %v5512 = vpop.f32.mrf.mxu0
        %v5513 = vadd.f32 %v5484, %v5512
        %v5514 = vpop.f32.mrf.mxu0
        %v5515 = vadd.f32 %v5486, %v5514
        %5516 = vmatmul.bf16.gmra.mxu0 %v4953
        %v5517 = vpop.f32.mrf.mxu0
        %v5518 = vadd.f32 %v5489, %v5517
        %v5519 = vpop.f32.mrf.mxu0
        %v5520 = vadd.f32 %v5491, %v5519
        %5521 = vdwg.mxu0
        %5522 = vmatpush.bf16.msra.mxu0 %v5251
        %5523 = vmatpush.bf16.msra.mxu0 %v5247
        %5524 = vmatpush.bf16.msra.mxu0 %v5243
        %5525 = vmatpush.bf16.msra.mxu0 %v5239
        %5526 = vmatpush.bf16.msra.mxu0 %v5235
        %5527 = vmatpush.bf16.msra.mxu0 %v5231
        %5528 = vmatpush.bf16.msra.mxu0 %v5227
        %5529 = vmatpush.bf16.msra.mxu0 %v5223
        %5530 = vmatmul.bf16.gmra.mxu0 %v4946
        %v5531 = vpop.f32.mrf.mxu0
        %v5532 = vadd.f32 %v5023, %v5531
        %v5533 = vpop.f32.mrf.mxu0
        %v5534 = vadd.f32 %v5023, %v5533
        %5535 = vmatmul.bf16.gmra.mxu0 %v4948
        %v5536 = vpop.f32.mrf.mxu0
        %v5537 = vadd.f32 %v5023, %v5536
        %v5538 = vpop.f32.mrf.mxu0
        %v5539 = vadd.f32 %v5023, %v5538
        %5540 = vmatmul.bf16.gmra.mxu0 %v4950
        %v5541 = vpop.f32.mrf.mxu0
        %v5542 = vadd.f32 %v5023, %v5541
        %v5543 = vpop.f32.mrf.mxu0
        %v5544 = vadd.f32 %v5023, %v5543
        %5545 = vmatmul.bf16.gmra.mxu0 %v4952
        %v5546 = vpop.f32.mrf.mxu0
        %v5547 = vadd.f32 %v5023, %v5546
        %v5548 = vpop.f32.mrf.mxu0
        %v5549 = vadd.f32 %v5023, %v5548
        %5550 = vdwg.mxu0
        %5551 = vmatpush.bf16.msra.mxu0 %v5283
        %5552 = vmatpush.bf16.msra.mxu0 %v5279
        %5553 = vmatpush.bf16.msra.mxu0 %v5275
        %5554 = vmatpush.bf16.msra.mxu0 %v5271
        %5555 = vmatpush.bf16.msra.mxu0 %v5267
        %5556 = vmatpush.bf16.msra.mxu0 %v5263
        %5557 = vmatpush.bf16.msra.mxu0 %v5259
        %5558 = vmatpush.bf16.msra.mxu0 %v5255
        %5559 = vmatmul.bf16.gmra.mxu0 %v4947
        %v5560 = vpop.f32.mrf.mxu0
        %v5561 = vadd.f32 %v5532, %v5560
        %v5562 = vpop.f32.mrf.mxu0
        %v5563 = vadd.f32 %v5534, %v5562
        %5564 = vmatmul.bf16.gmra.mxu0 %v4949
        %v5565 = vpop.f32.mrf.mxu0
        %v5566 = vadd.f32 %v5537, %v5565
        %v5567 = vpop.f32.mrf.mxu0
        %v5568 = vadd.f32 %v5539, %v5567
        %5569 = vmatmul.bf16.gmra.mxu0 %v4951
        %v5570 = vpop.f32.mrf.mxu0
        %v5571 = vadd.f32 %v5542, %v5570
        %v5572 = vpop.f32.mrf.mxu0
        %v5573 = vadd.f32 %v5544, %v5572
        %5574 = vmatmul.bf16.gmra.mxu0 %v4953
        %v5575 = vpop.f32.mrf.mxu0
        %v5576 = vadd.f32 %v5547, %v5575
        %v5577 = vpop.f32.mrf.mxu0
        %v5578 = vadd.f32 %v5549, %v5577
        %5579 = vdwg.mxu0
        %v5580 = vmax.f32 %v5387, 0.0
        %v5581 = vmax.f32 %v5445, 0.0
        %v5582 = vmax.f32 %v5503, 0.0
        %v5583 = vmax.f32 %v5561, 0.0
        %v5584 = vmax.f32 %v5389, 0.0
        %v5585 = vmax.f32 %v5447, 0.0
        %v5586 = vmax.f32 %v5505, 0.0
        %v5587 = vmax.f32 %v5563, 0.0
        %v5588 = vmax.f32 %v5392, 0.0
        %v5589 = vmax.f32 %v5450, 0.0
        %v5590 = vmax.f32 %v5508, 0.0
        %v5591 = vmax.f32 %v5566, 0.0
        %v5592 = vmax.f32 %v5394, 0.0
        %v5593 = vmax.f32 %v5452, 0.0
        %v5594 = vmax.f32 %v5510, 0.0
        %v5595 = vmax.f32 %v5568, 0.0
        %v5596 = vmax.f32 %v5397, 0.0
        %v5597 = vmax.f32 %v5455, 0.0
        %v5598 = vmax.f32 %v5513, 0.0
        %v5599 = vmax.f32 %v5571, 0.0
        %v5600 = vmax.f32 %v5399, 0.0
        %v5601 = vmax.f32 %v5457, 0.0
        %v5602 = vmax.f32 %v5515, 0.0
        %v5603 = vmax.f32 %v5573, 0.0
        %v5604 = vmax.f32 %v5402, 0.0
        %v5605 = vmax.f32 %v5460, 0.0
        %v5606 = vmax.f32 %v5518, 0.0
        %v5607 = vmax.f32 %v5576, 0.0
        %v5608 = vmax.f32 %v5404, 0.0
        %v5609 = vmax.f32 %v5462, 0.0
        %v5610 = vmax.f32 %v5520, 0.0
        %v5611 = vmax.f32 %v5578, 0.0
        %v5612 = vpack.c.bf16 %v5584, %v5580
        %v5613 = vpack.c.bf16 %v5585, %v5581
        %v5614 = vpack.c.bf16 %v5586, %v5582
        %v5615 = vpack.c.bf16 %v5587, %v5583
        %v5616 = vpack.c.bf16 %v5592, %v5588
        %v5617 = vpack.c.bf16 %v5593, %v5589
        %v5618 = vpack.c.bf16 %v5594, %v5590
        %v5619 = vpack.c.bf16 %v5595, %v5591
        %v5620 = vpack.c.bf16 %v5600, %v5596
        %v5621 = vpack.c.bf16 %v5601, %v5597
        %v5622 = vpack.c.bf16 %v5602, %v5598
        %v5623 = vpack.c.bf16 %v5603, %v5599
        %v5624 = vpack.c.bf16 %v5608, %v5604
        %v5625 = vpack.c.bf16 %v5609, %v5605
        %v5626 = vpack.c.bf16 %v5610, %v5606
        %v5627 = vpack.c.bf16 %v5611, %v5607
        %v5628 = vld [vmem:[#allocation7] sm:$0xff]
        %v5629 = vld [vmem:[#allocation7 + $0x8] sm:$0xff]
        %v5630 = vld [vmem:[#allocation7 + $0x10] sm:$0xff]
        %v5631 = vld [vmem:[#allocation7 + $0x18] sm:$0xff]
        %v5632 = vld [vmem:[#allocation7 + $0x20] sm:$0xff]
        %v5633 = vld [vmem:[#allocation7 + $0x28] sm:$0xff]
        %v5634 = vld [vmem:[#allocation7 + $0x30] sm:$0xff]
        %v5635 = vld [vmem:[#allocation7 + $0x38] sm:$0xff]
        %v5636 = vld [vmem:[#allocation7 + $0x40] sm:$0xff]
        %v5637 = vld [vmem:[#allocation7 + $0x48] sm:$0xff]
        %v5638 = vld [vmem:[#allocation7 + $0x50] sm:$0xff]
        %v5639 = vld [vmem:[#allocation7 + $0x58] sm:$0xff]
        %v5640 = vld [vmem:[#allocation7 + $0x60] sm:$0xff]
        %v5641 = vld [vmem:[#allocation7 + $0x68] sm:$0xff]
        %v5642 = vld [vmem:[#allocation7 + $0x70] sm:$0xff]
        %v5643 = vld [vmem:[#allocation7 + $0x78] sm:$0xff]
        %v5644 = vld [vmem:[#allocation7 + $0x80] sm:$0xff]
        %v5645 = vld [vmem:[#allocation7 + $0x88] sm:$0xff]
        %v5646 = vld [vmem:[#allocation7 + $0x90] sm:$0xff]
        %v5647 = vld [vmem:[#allocation7 + $0x98] sm:$0xff]
        %v5648 = vld [vmem:[#allocation7 + $0xa0] sm:$0xff]
        %v5649 = vld [vmem:[#allocation7 + $0xa8] sm:$0xff]
        %v5650 = vld [vmem:[#allocation7 + $0xb0] sm:$0xff]
        %v5651 = vld [vmem:[#allocation7 + $0xb8] sm:$0xff]
        %v5652 = vld [vmem:[#allocation7 + $0xc0] sm:$0xff]
        %v5653 = vld [vmem:[#allocation7 + $0xc8] sm:$0xff]
        %v5654 = vld [vmem:[#allocation7 + $0xd0] sm:$0xff]
        %v5655 = vld [vmem:[#allocation7 + $0xd8] sm:$0xff]
        %v5656 = vld [vmem:[#allocation7 + $0xe0] sm:$0xff]
        %v5657 = vld [vmem:[#allocation7 + $0xe8] sm:$0xff]
        %v5658 = vld [vmem:[#allocation7 + $0xf0] sm:$0xff]
        %v5659 = vld [vmem:[#allocation7 + $0xf8] sm:$0xff]
        %v5660 = vld [vmem:[#allocation7 + $0x100] sm:$0xff]
        %v5661 = vld [vmem:[#allocation7 + $0x108] sm:$0xff]
        %v5662 = vld [vmem:[#allocation7 + $0x110] sm:$0xff]
        %v5663 = vld [vmem:[#allocation7 + $0x118] sm:$0xff]
        %v5664 = vld [vmem:[#allocation7 + $0x120] sm:$0xff]
        %v5665 = vld [vmem:[#allocation7 + $0x128] sm:$0xff]
        %v5666 = vld [vmem:[#allocation7 + $0x130] sm:$0xff]
        %v5667 = vld [vmem:[#allocation7 + $0x138] sm:$0xff]
        %v5668 = vld [vmem:[#allocation7 + $0x140] sm:$0xff]
        %v5669 = vld [vmem:[#allocation7 + $0x148] sm:$0xff]
        %v5670 = vld [vmem:[#allocation7 + $0x150] sm:$0xff]
        %v5671 = vld [vmem:[#allocation7 + $0x158] sm:$0xff]
        %v5672 = vld [vmem:[#allocation7 + $0x160] sm:$0xff]
        %v5673 = vld [vmem:[#allocation7 + $0x168] sm:$0xff]
        %v5674 = vld [vmem:[#allocation7 + $0x170] sm:$0xff]
        %v5675 = vld [vmem:[#allocation7 + $0x178] sm:$0xff]
        %v5676 = vld [vmem:[#allocation7 + $0x180] sm:$0xff]
        %v5677 = vld [vmem:[#allocation7 + $0x188] sm:$0xff]
        %v5678 = vld [vmem:[#allocation7 + $0x190] sm:$0xff]
        %v5679 = vld [vmem:[#allocation7 + $0x198] sm:$0xff]
        %v5680 = vld [vmem:[#allocation7 + $0x1a0] sm:$0xff]
        %v5681 = vld [vmem:[#allocation7 + $0x1a8] sm:$0xff]
        %v5682 = vld [vmem:[#allocation7 + $0x1b0] sm:$0xff]
        %v5683 = vld [vmem:[#allocation7 + $0x1b8] sm:$0xff]
        %v5684 = vld [vmem:[#allocation7 + $0x1c0] sm:$0xff]
        %v5685 = vld [vmem:[#allocation7 + $0x1c8] sm:$0xff]
        %v5686 = vld [vmem:[#allocation7 + $0x1d0] sm:$0xff]
        %v5687 = vld [vmem:[#allocation7 + $0x1d8] sm:$0xff]
        %v5688 = vld [vmem:[#allocation7 + $0x1e0] sm:$0xff]
        %v5689 = vld [vmem:[#allocation7 + $0x1e8] sm:$0xff]
        %v5690 = vld [vmem:[#allocation7 + $0x1f0] sm:$0xff]
        %v5691 = vld [vmem:[#allocation7 + $0x1f8] sm:$0xff]
        %v5692 = vld [vmem:[%s9] sm:$0x3]
        %v5694 = vperm.slane %v5692, 0
        %v5695 = vperm.slane %v5692, 1
        %v5762 = vunpack.c.l.b16 %v5628
        %v5763 = vunpack.c.h.b16 %v5628
        %v5764 = vunpack.c.l.b16 %v5629
        %v5765 = vunpack.c.h.b16 %v5629
        %v5766 = vunpack.c.l.b16 %v5630
        %v5767 = vunpack.c.h.b16 %v5630
        %v5768 = vunpack.c.l.b16 %v5631
        %v5769 = vunpack.c.h.b16 %v5631
        %v5770 = vunpack.c.l.b16 %v5632
        %v5771 = vunpack.c.h.b16 %v5632
        %v5772 = vunpack.c.l.b16 %v5633
        %v5773 = vunpack.c.h.b16 %v5633
        %v5774 = vunpack.c.l.b16 %v5634
        %v5775 = vunpack.c.h.b16 %v5634
        %v5776 = vunpack.c.l.b16 %v5635
        %v5777 = vunpack.c.h.b16 %v5635
        %v5778 = vunpack.c.l.b16 %v5636
        %v5779 = vunpack.c.h.b16 %v5636
        %v5780 = vunpack.c.l.b16 %v5637
        %v5781 = vunpack.c.h.b16 %v5637
        %v5782 = vunpack.c.l.b16 %v5638
        %v5783 = vunpack.c.h.b16 %v5638
        %v5784 = vunpack.c.l.b16 %v5639
        %v5785 = vunpack.c.h.b16 %v5639
        %v5786 = vunpack.c.l.b16 %v5640
        %v5787 = vunpack.c.h.b16 %v5640
        %v5788 = vunpack.c.l.b16 %v5641
        %v5789 = vunpack.c.h.b16 %v5641
        %v5790 = vunpack.c.l.b16 %v5642
        %v5791 = vunpack.c.h.b16 %v5642
        %v5792 = vunpack.c.l.b16 %v5643
        %v5793 = vunpack.c.h.b16 %v5643
        %v5794 = vunpack.c.l.b16 %v5644
        %v5795 = vunpack.c.h.b16 %v5644
        %v5796 = vunpack.c.l.b16 %v5645
        %v5797 = vunpack.c.h.b16 %v5645
        %v5798 = vunpack.c.l.b16 %v5646
        %v5799 = vunpack.c.h.b16 %v5646
        %v5800 = vunpack.c.l.b16 %v5647
        %v5801 = vunpack.c.h.b16 %v5647
        %v5802 = vunpack.c.l.b16 %v5648
        %v5803 = vunpack.c.h.b16 %v5648
        %v5804 = vunpack.c.l.b16 %v5649
        %v5805 = vunpack.c.h.b16 %v5649
        %v5806 = vunpack.c.l.b16 %v5650
        %v5807 = vunpack.c.h.b16 %v5650
        %v5808 = vunpack.c.l.b16 %v5651
        %v5809 = vunpack.c.h.b16 %v5651
        %v5810 = vunpack.c.l.b16 %v5652
        %v5811 = vunpack.c.h.b16 %v5652
        %v5812 = vunpack.c.l.b16 %v5653
        %v5813 = vunpack.c.h.b16 %v5653
        %v5814 = vunpack.c.l.b16 %v5654
        %v5815 = vunpack.c.h.b16 %v5654
        %v5816 = vunpack.c.l.b16 %v5655
        %v5817 = vunpack.c.h.b16 %v5655
        %v5818 = vunpack.c.l.b16 %v5656
        %v5819 = vunpack.c.h.b16 %v5656
        %v5820 = vunpack.c.l.b16 %v5657
        %v5821 = vunpack.c.h.b16 %v5657
        %v5822 = vunpack.c.l.b16 %v5658
        %v5823 = vunpack.c.h.b16 %v5658
        %v5824 = vunpack.c.l.b16 %v5659
        %v5825 = vunpack.c.h.b16 %v5659
        %v5826 = vunpack.c.l.b16 %v5660
        %v5827 = vunpack.c.h.b16 %v5660
        %v5828 = vunpack.c.l.b16 %v5661
        %v5829 = vunpack.c.h.b16 %v5661
        %v5830 = vunpack.c.l.b16 %v5662
        %v5831 = vunpack.c.h.b16 %v5662
        %v5832 = vunpack.c.l.b16 %v5663
        %v5833 = vunpack.c.h.b16 %v5663
        %v5834 = vunpack.c.l.b16 %v5664
        %v5835 = vunpack.c.h.b16 %v5664
        %v5836 = vunpack.c.l.b16 %v5665
        %v5837 = vunpack.c.h.b16 %v5665
        %v5838 = vunpack.c.l.b16 %v5666
        %v5839 = vunpack.c.h.b16 %v5666
        %v5840 = vunpack.c.l.b16 %v5667
        %v5841 = vunpack.c.h.b16 %v5667
        %v5842 = vunpack.c.l.b16 %v5668
        %v5843 = vunpack.c.h.b16 %v5668
        %v5844 = vunpack.c.l.b16 %v5669
        %v5845 = vunpack.c.h.b16 %v5669
        %v5846 = vunpack.c.l.b16 %v5670
        %v5847 = vunpack.c.h.b16 %v5670
        %v5848 = vunpack.c.l.b16 %v5671
        %v5849 = vunpack.c.h.b16 %v5671
        %v5850 = vunpack.c.l.b16 %v5672
        %v5851 = vunpack.c.h.b16 %v5672
        %v5852 = vunpack.c.l.b16 %v5673
        %v5853 = vunpack.c.h.b16 %v5673
        %v5854 = vunpack.c.l.b16 %v5674
        %v5855 = vunpack.c.h.b16 %v5674
        %v5856 = vunpack.c.l.b16 %v5675
        %v5857 = vunpack.c.h.b16 %v5675
        %v5858 = vunpack.c.l.b16 %v5676
        %v5859 = vunpack.c.h.b16 %v5676
        %v5860 = vunpack.c.l.b16 %v5677
        %v5861 = vunpack.c.h.b16 %v5677
        %v5862 = vunpack.c.l.b16 %v5678
        %v5863 = vunpack.c.h.b16 %v5678
        %v5864 = vunpack.c.l.b16 %v5679
        %v5865 = vunpack.c.h.b16 %v5679
        %v5866 = vunpack.c.l.b16 %v5680
        %v5867 = vunpack.c.h.b16 %v5680
        %v5868 = vunpack.c.l.b16 %v5681
        %v5869 = vunpack.c.h.b16 %v5681
        %v5870 = vunpack.c.l.b16 %v5682
        %v5871 = vunpack.c.h.b16 %v5682
        %v5872 = vunpack.c.l.b16 %v5683
        %v5873 = vunpack.c.h.b16 %v5683
        %v5874 = vunpack.c.l.b16 %v5684
        %v5875 = vunpack.c.h.b16 %v5684
        %v5876 = vunpack.c.l.b16 %v5685
        %v5877 = vunpack.c.h.b16 %v5685
        %v5878 = vunpack.c.l.b16 %v5686
        %v5879 = vunpack.c.h.b16 %v5686
        %v5880 = vunpack.c.l.b16 %v5687
        %v5881 = vunpack.c.h.b16 %v5687
        %v5882 = vunpack.c.l.b16 %v5688
        %v5883 = vunpack.c.h.b16 %v5688
        %v5884 = vunpack.c.l.b16 %v5689
        %v5885 = vunpack.c.h.b16 %v5689
        %v5886 = vunpack.c.l.b16 %v5690
        %v5887 = vunpack.c.h.b16 %v5690
        %v5888 = vunpack.c.l.b16 %v5691
        %v5889 = vunpack.c.h.b16 %v5691
        %v5890 = vpack.c.b16 %v5764, %v5762
        %v5891 = vpack.c.b16 %v5765, %v5763
        %v5892 = vpack.c.b16 %v5768, %v5766
        %v5893 = vpack.c.b16 %v5769, %v5767
        %v5894 = vpack.c.b16 %v5772, %v5770
        %v5895 = vpack.c.b16 %v5773, %v5771
        %v5896 = vpack.c.b16 %v5776, %v5774
        %v5897 = vpack.c.b16 %v5777, %v5775
        %v5898 = vpack.c.b16 %v5780, %v5778
        %v5899 = vpack.c.b16 %v5781, %v5779
        %v5900 = vpack.c.b16 %v5784, %v5782
        %v5901 = vpack.c.b16 %v5785, %v5783
        %v5902 = vpack.c.b16 %v5788, %v5786
        %v5903 = vpack.c.b16 %v5789, %v5787
        %v5904 = vpack.c.b16 %v5792, %v5790
        %v5905 = vpack.c.b16 %v5793, %v5791
        %v5906 = vpack.c.b16 %v5796, %v5794
        %v5907 = vpack.c.b16 %v5797, %v5795
        %v5908 = vpack.c.b16 %v5800, %v5798
        %v5909 = vpack.c.b16 %v5801, %v5799
        %v5910 = vpack.c.b16 %v5804, %v5802
        %v5911 = vpack.c.b16 %v5805, %v5803
        %v5912 = vpack.c.b16 %v5808, %v5806
        %v5913 = vpack.c.b16 %v5809, %v5807
        %v5914 = vpack.c.b16 %v5812, %v5810
        %v5915 = vpack.c.b16 %v5813, %v5811
        %v5916 = vpack.c.b16 %v5816, %v5814
        %v5917 = vpack.c.b16 %v5817, %v5815
        %v5918 = vpack.c.b16 %v5820, %v5818
        %v5919 = vpack.c.b16 %v5821, %v5819
        %v5920 = vpack.c.b16 %v5824, %v5822
        %v5921 = vpack.c.b16 %v5825, %v5823
        %v5922 = vpack.c.b16 %v5828, %v5826
        %v5923 = vpack.c.b16 %v5829, %v5827
        %v5924 = vpack.c.b16 %v5832, %v5830
        %v5925 = vpack.c.b16 %v5833, %v5831
        %v5926 = vpack.c.b16 %v5836, %v5834
        %v5927 = vpack.c.b16 %v5837, %v5835
        %v5928 = vpack.c.b16 %v5840, %v5838
        %v5929 = vpack.c.b16 %v5841, %v5839
        %v5930 = vpack.c.b16 %v5844, %v5842
        %v5931 = vpack.c.b16 %v5845, %v5843
        %v5932 = vpack.c.b16 %v5848, %v5846
        %v5933 = vpack.c.b16 %v5849, %v5847
        %v5934 = vpack.c.b16 %v5852, %v5850
        %v5935 = vpack.c.b16 %v5853, %v5851
        %v5936 = vpack.c.b16 %v5856, %v5854
        %v5937 = vpack.c.b16 %v5857, %v5855
        %v5938 = vpack.c.b16 %v5860, %v5858
        %v5939 = vpack.c.b16 %v5861, %v5859
        %v5940 = vpack.c.b16 %v5864, %v5862
        %v5941 = vpack.c.b16 %v5865, %v5863
        %v5942 = vpack.c.b16 %v5868, %v5866
        %v5943 = vpack.c.b16 %v5869, %v5867
        %v5944 = vpack.c.b16 %v5872, %v5870
        %v5945 = vpack.c.b16 %v5873, %v5871
        %v5946 = vpack.c.b16 %v5876, %v5874
        %v5947 = vpack.c.b16 %v5877, %v5875
        %v5948 = vpack.c.b16 %v5880, %v5878
        %v5949 = vpack.c.b16 %v5881, %v5879
        %v5950 = vpack.c.b16 %v5884, %v5882
        %v5951 = vpack.c.b16 %v5885, %v5883
        %v5952 = vpack.c.b16 %v5888, %v5886
        %v5953 = vpack.c.b16 %v5889, %v5887
        %6018 = vmatpush.bf16.msra.mxu0 %v5904
        %6019 = vmatpush.bf16.msra.mxu0 %v5902
        %6020 = vmatpush.bf16.msra.mxu0 %v5900
        %6021 = vmatpush.bf16.msra.mxu0 %v5898
        %6022 = vmatpush.bf16.msra.mxu0 %v5896
        %6023 = vmatpush.bf16.msra.mxu0 %v5894
        %6024 = vmatpush.bf16.msra.mxu0 %v5892
        %6025 = vmatpush.bf16.msra.mxu0 %v5890
        %6026 = vmatmul.bf16.gmra.mxu0 %v5612
        %v6027 = vpop.f32.mrf.mxu0
        %v6028 = vadd.f32 %v5694, %v6027
        %v6029 = vpop.f32.mrf.mxu0
        %v6030 = vadd.f32 %v5694, %v6029
        %6031 = vmatmul.bf16.gmra.mxu0 %v5616
        %v6032 = vpop.f32.mrf.mxu0
        %v6033 = vadd.f32 %v5694, %v6032
        %v6034 = vpop.f32.mrf.mxu0
        %v6035 = vadd.f32 %v5694, %v6034
        %6036 = vmatmul.bf16.gmra.mxu0 %v5620
        %v6037 = vpop.f32.mrf.mxu0
        %v6038 = vadd.f32 %v5694, %v6037
        %v6039 = vpop.f32.mrf.mxu0
        %v6040 = vadd.f32 %v5694, %v6039
        %6041 = vmatmul.bf16.gmra.mxu0 %v5624
        %v6042 = vpop.f32.mrf.mxu0
        %v6043 = vadd.f32 %v5694, %v6042
        %v6044 = vpop.f32.mrf.mxu0
        %v6045 = vadd.f32 %v5694, %v6044
        %6046 = vdwg.mxu0
        %6047 = vmatpush.bf16.msra.mxu0 %v5920
        %6048 = vmatpush.bf16.msra.mxu0 %v5918
        %6049 = vmatpush.bf16.msra.mxu0 %v5916
        %6050 = vmatpush.bf16.msra.mxu0 %v5914
        %6051 = vmatpush.bf16.msra.mxu0 %v5912
        %6052 = vmatpush.bf16.msra.mxu0 %v5910
        %6053 = vmatpush.bf16.msra.mxu0 %v5908
        %6054 = vmatpush.bf16.msra.mxu0 %v5906
        %6055 = vmatmul.bf16.gmra.mxu0 %v5613
        %v6056 = vpop.f32.mrf.mxu0
        %v6057 = vadd.f32 %v6028, %v6056
        %v6058 = vpop.f32.mrf.mxu0
        %v6059 = vadd.f32 %v6030, %v6058
        %6060 = vmatmul.bf16.gmra.mxu0 %v5617
        %v6061 = vpop.f32.mrf.mxu0
        %v6062 = vadd.f32 %v6033, %v6061
        %v6063 = vpop.f32.mrf.mxu0
        %v6064 = vadd.f32 %v6035, %v6063
        %6065 = vmatmul.bf16.gmra.mxu0 %v5621
        %v6066 = vpop.f32.mrf.mxu0
        %v6067 = vadd.f32 %v6038, %v6066
        %v6068 = vpop.f32.mrf.mxu0
        %v6069 = vadd.f32 %v6040, %v6068
        %6070 = vmatmul.bf16.gmra.mxu0 %v5625
        %v6071 = vpop.f32.mrf.mxu0
        %v6072 = vadd.f32 %v6043, %v6071
        %v6073 = vpop.f32.mrf.mxu0
        %v6074 = vadd.f32 %v6045, %v6073
        %6075 = vdwg.mxu0
        %6076 = vmatpush.bf16.msra.mxu0 %v5936
        %6077 = vmatpush.bf16.msra.mxu0 %v5934
        %6078 = vmatpush.bf16.msra.mxu0 %v5932
        %6079 = vmatpush.bf16.msra.mxu0 %v5930
        %6080 = vmatpush.bf16.msra.mxu0 %v5928
        %6081 = vmatpush.bf16.msra.mxu0 %v5926
        %6082 = vmatpush.bf16.msra.mxu0 %v5924
        %6083 = vmatpush.bf16.msra.mxu0 %v5922
        %6084 = vmatmul.bf16.gmra.mxu0 %v5614
        %v6085 = vpop.f32.mrf.mxu0
        %v6086 = vadd.f32 %v6057, %v6085
        %v6087 = vpop.f32.mrf.mxu0
        %v6088 = vadd.f32 %v6059, %v6087
        %6089 = vmatmul.bf16.gmra.mxu0 %v5618
        %v6090 = vpop.f32.mrf.mxu0
        %v6091 = vadd.f32 %v6062, %v6090
        %v6092 = vpop.f32.mrf.mxu0
        %v6093 = vadd.f32 %v6064, %v6092
        %6094 = vmatmul.bf16.gmra.mxu0 %v5622
        %v6095 = vpop.f32.mrf.mxu0
        %v6096 = vadd.f32 %v6067, %v6095
        %v6097 = vpop.f32.mrf.mxu0
        %v6098 = vadd.f32 %v6069, %v6097
        %6099 = vmatmul.bf16.gmra.mxu0 %v5626
        %v6100 = vpop.f32.mrf.mxu0
        %v6101 = vadd.f32 %v6072, %v6100
        %v6102 = vpop.f32.mrf.mxu0
        %v6103 = vadd.f32 %v6074, %v6102
        %6104 = vdwg.mxu0
        %6105 = vmatpush.bf16.msra.mxu0 %v5952
        %6106 = vmatpush.bf16.msra.mxu0 %v5950
        %6107 = vmatpush.bf16.msra.mxu0 %v5948
        %6108 = vmatpush.bf16.msra.mxu0 %v5946
        %6109 = vmatpush.bf16.msra.mxu0 %v5944
        %6110 = vmatpush.bf16.msra.mxu0 %v5942
        %6111 = vmatpush.bf16.msra.mxu0 %v5940
        %6112 = vmatpush.bf16.msra.mxu0 %v5938
        %6113 = vmatmul.bf16.gmra.mxu0 %v5615
        %v6114 = vpop.f32.mrf.mxu0
        %v6115 = vadd.f32 %v6086, %v6114
        %v6116 = vpop.f32.mrf.mxu0
        %v6117 = vadd.f32 %v6088, %v6116
        %6118 = vmatmul.bf16.gmra.mxu0 %v5619
        %v6119 = vpop.f32.mrf.mxu0
        %v6120 = vadd.f32 %v6091, %v6119
        %v6121 = vpop.f32.mrf.mxu0
        %v6122 = vadd.f32 %v6093, %v6121
        %6123 = vmatmul.bf16.gmra.mxu0 %v5623
        %v6124 = vpop.f32.mrf.mxu0
        %v6125 = vadd.f32 %v6096, %v6124
        %v6126 = vpop.f32.mrf.mxu0
        %v6127 = vadd.f32 %v6098, %v6126
        %6128 = vmatmul.bf16.gmra.mxu0 %v5627
        %v6129 = vpop.f32.mrf.mxu0
        %v6130 = vadd.f32 %v6101, %v6129
        %v6131 = vpop.f32.mrf.mxu0
        %v6132 = vadd.f32 %v6103, %v6131
        %6133 = vdwg.mxu0
        %6134 = vmatpush.bf16.msra.mxu0 %v5905
        %6135 = vmatpush.bf16.msra.mxu0 %v5903
        %6136 = vmatpush.bf16.msra.mxu0 %v5901
        %6137 = vmatpush.bf16.msra.mxu0 %v5899
        %6138 = vmatpush.bf16.msra.mxu0 %v5897
        %6139 = vmatpush.bf16.msra.mxu0 %v5895
        %6140 = vmatpush.bf16.msra.mxu0 %v5893
        %6141 = vmatpush.bf16.msra.mxu0 %v5891
        %6142 = vmatmul.bf16.gmra.mxu0 %v5612
        %v6143 = vpop.f32.mrf.mxu0
        %v6144 = vadd.f32 %v5695, %v6143
        %v6145 = vpop.f32.mrf.mxu0
        %v6146 = vadd.f32 %v5695, %v6145
        %6147 = vmatmul.bf16.gmra.mxu0 %v5616
        %v6148 = vpop.f32.mrf.mxu0
        %v6149 = vadd.f32 %v5695, %v6148
        %v6150 = vpop.f32.mrf.mxu0
        %v6151 = vadd.f32 %v5695, %v6150
        %6152 = vmatmul.bf16.gmra.mxu0 %v5620
        %v6153 = vpop.f32.mrf.mxu0
        %v6154 = vadd.f32 %v5695, %v6153
        %v6155 = vpop.f32.mrf.mxu0
        %v6156 = vadd.f32 %v5695, %v6155
        %6157 = vmatmul.bf16.gmra.mxu0 %v5624
        %v6158 = vpop.f32.mrf.mxu0
        %v6159 = vadd.f32 %v5695, %v6158
        %v6160 = vpop.f32.mrf.mxu0
        %v6161 = vadd.f32 %v5695, %v6160
        %6162 = vdwg.mxu0
        %6163 = vmatpush.bf16.msra.mxu0 %v5921
        %6164 = vmatpush.bf16.msra.mxu0 %v5919
        %6165 = vmatpush.bf16.msra.mxu0 %v5917
        %6166 = vmatpush.bf16.msra.mxu0 %v5915
        %6167 = vmatpush.bf16.msra.mxu0 %v5913
        %6168 = vmatpush.bf16.msra.mxu0 %v5911
        %6169 = vmatpush.bf16.msra.mxu0 %v5909
        %6170 = vmatpush.bf16.msra.mxu0 %v5907
        %6171 = vmatmul.bf16.gmra.mxu0 %v5613
        %v6172 = vpop.f32.mrf.mxu0
        %v6173 = vadd.f32 %v6144, %v6172
        %v6174 = vpop.f32.mrf.mxu0
        %v6175 = vadd.f32 %v6146, %v6174
        %6176 = vmatmul.bf16.gmra.mxu0 %v5617
        %v6177 = vpop.f32.mrf.mxu0
        %v6178 = vadd.f32 %v6149, %v6177
        %v6179 = vpop.f32.mrf.mxu0
        %v6180 = vadd.f32 %v6151, %v6179
        %6181 = vmatmul.bf16.gmra.mxu0 %v5621
        %v6182 = vpop.f32.mrf.mxu0
        %v6183 = vadd.f32 %v6154, %v6182
        %v6184 = vpop.f32.mrf.mxu0
        %v6185 = vadd.f32 %v6156, %v6184
        %6186 = vmatmul.bf16.gmra.mxu0 %v5625
        %v6187 = vpop.f32.mrf.mxu0
        %v6188 = vadd.f32 %v6159, %v6187
        %v6189 = vpop.f32.mrf.mxu0
        %v6190 = vadd.f32 %v6161, %v6189
        %6191 = vdwg.mxu0
        %6192 = vmatpush.bf16.msra.mxu0 %v5937
        %6193 = vmatpush.bf16.msra.mxu0 %v5935
        %6194 = vmatpush.bf16.msra.mxu0 %v5933
        %6195 = vmatpush.bf16.msra.mxu0 %v5931
        %6196 = vmatpush.bf16.msra.mxu0 %v5929
        %6197 = vmatpush.bf16.msra.mxu0 %v5927
        %6198 = vmatpush.bf16.msra.mxu0 %v5925
        %6199 = vmatpush.bf16.msra.mxu0 %v5923
        %6200 = vmatmul.bf16.gmra.mxu0 %v5614
        %v6201 = vpop.f32.mrf.mxu0
        %v6202 = vadd.f32 %v6173, %v6201
        %v6203 = vpop.f32.mrf.mxu0
        %v6204 = vadd.f32 %v6175, %v6203
        %6205 = vmatmul.bf16.gmra.mxu0 %v5618
        %v6206 = vpop.f32.mrf.mxu0
        %v6207 = vadd.f32 %v6178, %v6206
        %v6208 = vpop.f32.mrf.mxu0
        %v6209 = vadd.f32 %v6180, %v6208
        %6210 = vmatmul.bf16.gmra.mxu0 %v5622
        %v6211 = vpop.f32.mrf.mxu0
        %v6212 = vadd.f32 %v6183, %v6211
        %v6213 = vpop.f32.mrf.mxu0
        %v6214 = vadd.f32 %v6185, %v6213
        %6215 = vmatmul.bf16.gmra.mxu0 %v5626
        %v6216 = vpop.f32.mrf.mxu0
        %v6217 = vadd.f32 %v6188, %v6216
        %v6218 = vpop.f32.mrf.mxu0
        %v6219 = vadd.f32 %v6190, %v6218
        %6220 = vdwg.mxu0
        %6221 = vmatpush.bf16.msra.mxu0 %v5953
        %6222 = vmatpush.bf16.msra.mxu0 %v5951
        %6223 = vmatpush.bf16.msra.mxu0 %v5949
        %6224 = vmatpush.bf16.msra.mxu0 %v5947
        %6225 = vmatpush.bf16.msra.mxu0 %v5945
        %6226 = vmatpush.bf16.msra.mxu0 %v5943
        %6227 = vmatpush.bf16.msra.mxu0 %v5941
        %6228 = vmatpush.bf16.msra.mxu0 %v5939
        %6229 = vmatmul.bf16.gmra.mxu0 %v5615
        %v6230 = vpop.f32.mrf.mxu0
        %v6231 = vadd.f32 %v6202, %v6230
        %v6232 = vpop.f32.mrf.mxu0
        %v6233 = vadd.f32 %v6204, %v6232
        %6234 = vmatmul.bf16.gmra.mxu0 %v5619
        %v6235 = vpop.f32.mrf.mxu0
        %v6236 = vadd.f32 %v6207, %v6235
        %v6237 = vpop.f32.mrf.mxu0
        %v6238 = vadd.f32 %v6209, %v6237
        %6239 = vmatmul.bf16.gmra.mxu0 %v5623
        %v6240 = vpop.f32.mrf.mxu0
        %v6241 = vadd.f32 %v6212, %v6240
        %v6242 = vpop.f32.mrf.mxu0
        %v6243 = vadd.f32 %v6214, %v6242
        %6244 = vmatmul.bf16.gmra.mxu0 %v5627
        %v6245 = vpop.f32.mrf.mxu0
        %v6246 = vadd.f32 %v6217, %v6245
        %v6247 = vpop.f32.mrf.mxu0
        %v6248 = vadd.f32 %v6219, %v6247
        %6249 = vdwg.mxu0
        %v6250 = vmax.f32 %v6115, 0.0
        %v6251 = vmax.f32 %v6231, 0.0
        %v6252 = vmax.f32 %v6117, 0.0
        %v6253 = vmax.f32 %v6233, 0.0
        %v6254 = vmax.f32 %v6120, 0.0
        %v6255 = vmax.f32 %v6236, 0.0
        %v6256 = vmax.f32 %v6122, 0.0
        %v6257 = vmax.f32 %v6238, 0.0
        %v6258 = vmax.f32 %v6125, 0.0
        %v6259 = vmax.f32 %v6241, 0.0
        %v6260 = vmax.f32 %v6127, 0.0
        %v6261 = vmax.f32 %v6243, 0.0
        %v6262 = vmax.f32 %v6130, 0.0
        %v6263 = vmax.f32 %v6246, 0.0
        %v6264 = vmax.f32 %v6132, 0.0
        %v6265 = vmax.f32 %v6248, 0.0
        %v6266 = vpack.c.bf16 %v6251, %v6250
        %v6267 = vpack.c.bf16 %v6253, %v6252
        %v6268 = vpack.c.bf16 %v6255, %v6254
        %v6269 = vpack.c.bf16 %v6257, %v6256
        %v6270 = vpack.c.bf16 %v6259, %v6258
        %v6271 = vpack.c.bf16 %v6261, %v6260
        %v6272 = vpack.c.bf16 %v6263, %v6262
        %v6273 = vpack.c.bf16 %v6265, %v6264
        %s6274 = smul.addr %s4839, 4
        %s6275 = scalar_lea.vmem %s508, %s6274 [#allocation8]
        %6276 = vst [vmem:[%s6275] sm:$0xff] %v6266
        %6277 = vst [vmem:[%s6275 + $0x8] sm:$0xff] %v6267
        %6278 = vst [vmem:[%s6275 + $0x10] sm:$0xff] %v6268
        %6279 = vst [vmem:[%s6275 + $0x18] sm:$0xff] %v6269
        %6280 = vst [vmem:[%s6275 + $0x20] sm:$0xff] %v6270
        %6281 = vst [vmem:[%s6275 + $0x28] sm:$0xff] %v6271
        %6282 = vst [vmem:[%s6275 + $0x30] sm:$0xff] %v6272
        %6283 = vst [vmem:[%s6275 + $0x38] sm:$0xff] %v6273
        %v6284 = vpack.c.bf16 %v4820, %v4791
        %v6285 = vpack.c.bf16 %v4822, %v4793
        %v6286 = vpack.c.bf16 %v4825, %v4796
        %v6287 = vpack.c.bf16 %v4827, %v4798
        %v6288 = vpack.c.bf16 %v4830, %v4801
        %v6289 = vpack.c.bf16 %v4832, %v4803
        %v6290 = vpack.c.bf16 %v4835, %v4806
        %v6291 = vpack.c.bf16 %v4837, %v4808
        %s6292 = smul.addr %s4839, 4
        %s6293 = scalar_lea.vmem %s515, %s6292 [#allocation9]
        %6294 = vst [vmem:[%s6293] sm:$0xff] %v6284
        %6295 = vst [vmem:[%s6293 + $0x8] sm:$0xff] %v6285
        %6296 = vst [vmem:[%s6293 + $0x10] sm:$0xff] %v6286
        %6297 = vst [vmem:[%s6293 + $0x18] sm:$0xff] %v6287
        %6298 = vst [vmem:[%s6293 + $0x20] sm:$0xff] %v6288
        %6299 = vst [vmem:[%s6293 + $0x28] sm:$0xff] %v6289
        %6300 = vst [vmem:[%s6293 + $0x30] sm:$0xff] %v6290
        %6301 = vst [vmem:[%s6293 + $0x38] sm:$0xff] %v6291
        %v6302 = vpack.c.bf16 %v4590, %v4474
        %v6303 = vpack.c.bf16 %v4592, %v4476
        %v6304 = vpack.c.bf16 %v4595, %v4479
        %v6305 = vpack.c.bf16 %v4597, %v4481
        %v6306 = vpack.c.bf16 %v4600, %v4484
        %v6307 = vpack.c.bf16 %v4602, %v4486
        %v6308 = vpack.c.bf16 %v4605, %v4489
        %v6309 = vpack.c.bf16 %v4607, %v4491
        %s6310 = smul.addr %s4839, 4
        %s6311 = scalar_lea.vmem %s522, %s6310 [#allocation11]
        %6312 = vst [vmem:[%s6311] sm:$0xff] %v6302
        %6313 = vst [vmem:[%s6311 + $0x8] sm:$0xff] %v6303
        %6314 = vst [vmem:[%s6311 + $0x10] sm:$0xff] %v6304
        %6315 = vst [vmem:[%s6311 + $0x18] sm:$0xff] %v6305
        %6316 = vst [vmem:[%s6311 + $0x20] sm:$0xff] %v6306
        %6317 = vst [vmem:[%s6311 + $0x28] sm:$0xff] %v6307
        %6318 = vst [vmem:[%s6311 + $0x30] sm:$0xff] %v6308
        %6319 = vst [vmem:[%s6311 + $0x38] sm:$0xff] %v6309
        %s6320 = sand.u32 %s282, 1
        %s6321 = scalar_lea.sflag [#allocation4], %s6320
        %s6322 = sand.u32 %s282, 1
        %s6323 = smul.addr %s6322, 128
        %s6324 = scalar_lea.vmem [#allocation8], %s6323
        %s6325 = sand.u32 %s33, 1
        %s6326 = scalar_lea.sflag [#allocation10], %s6325
        %s6327 = sand.u32 %s308, 1
        %s6328 = smul.addr %s6327, 128
        %s6329 = scalar_lea.vmem [#allocation9], %s6328
        %s6330 = sand.u32 %s33, 1
        %s6331 = scalar_lea.sflag [#allocation10], %s6330
        %s6332 = sand.u32 %s334, 1
        %s6333 = smul.addr %s6332, 128
        %s6334 = scalar_lea.vmem [#allocation11], %s6333
        // Predicated region
        $region77: #{uncurlnet_forward.3} parent=63 // pred_check
          %p6335 = pneg %p292
        $region78: #{uncurlnet_forward.3} parent=63 // pred_check_branch
          %6337 = sbr.rel (%p6335) target = $region80
        $region79: #{uncurlnet_forward.3} parent=63 // pred_region
          %s6338 = smul.u32 16, %s33
          %6340 = vsyncadd %s6321, 0
          %s6341 = smul.addr %s6338, 2
          %s6342 = smul.addr %s6341, 4
          %s6343 = scalar_lea.hbm %s11, %s6342
          %s6344 = sshll.u32 %s6324, 4
          %s6345 = int_to_ptr.vmem [resolvable:$true] %s6344
          %s6346 = sshll.u32 %s6343, 4
          %s6347 = int_to_ptr.hbm [resolvable:$true] %s6346
          %6352 = dma.vmem_to_hbm [thread:$0]  %s6345, 2048, %s6347, %s6321, 128, 128, 8
        $region80: #{uncurlnet_forward.3} parent=63 // pred_fallthru
          _
        // Predicated region
        $region81: #{uncurlnet_forward.3} parent=63 // pred_check
          %p6353 = pneg %p318
        $region82: #{uncurlnet_forward.3} parent=63 // pred_check_branch
          %6355 = sbr.rel (%p6353) target = $region84
        $region83: #{uncurlnet_forward.3} parent=63 // pred_region
          %s6356 = smul.u32 16, %s33
          %6358 = vsyncadd %s6326, 0
          %s6359 = smul.addr %s6356, 2
          %s6360 = smul.addr %s6359, 4
          %s6361 = scalar_lea.hbm %s12, %s6360
          %s6362 = sshll.u32 %s6329, 4
          %s6363 = int_to_ptr.vmem [resolvable:$true] %s6362
          %s6364 = sshll.u32 %s6361, 4
          %s6365 = int_to_ptr.hbm [resolvable:$true] %s6364
          %6370 = dma.vmem_to_hbm [thread:$0]  %s6363, 2048, %s6365, %s6326, 128, 128, 8
        $region84: #{uncurlnet_forward.3} parent=63 // pred_fallthru
          _
        // Predicated region
        $region85: #{uncurlnet_forward.3} parent=63 // pred_check
          %p6371 = pneg %p344
        $region86: #{uncurlnet_forward.3} parent=63 // pred_check_branch
          %6373 = sbr.rel (%p6371) target = $region88
        $region87: #{uncurlnet_forward.3} parent=63 // pred_region
          %s6374 = smul.u32 16, %s33
          %6376 = vsyncadd %s6331, 0
          %s6377 = smul.addr %s6374, 2
          %s6378 = smul.addr %s6377, 4
          %s6379 = scalar_lea.hbm %s13, %s6378
          %s6380 = sshll.u32 %s6334, 4
          %s6381 = int_to_ptr.vmem [resolvable:$true] %s6380
          %s6382 = sshll.u32 %s6379, 4
          %s6383 = int_to_ptr.hbm [resolvable:$true] %s6382
          %6388 = dma.vmem_to_hbm [thread:$0]  %s6381, 2048, %s6383, %s6331, 128, 128, 8
        $region88: #{uncurlnet_forward.3} parent=63 // pred_fallthru
          _
      $region64: #{uncurlnet_forward.3} parent=5 // pred_fallthru
        _
      %p6389 = scmp.le.s32.totalorder 2, %s28
      // Predicated region
      $region89: #{uncurlnet_forward.3} parent=5 // pred_check
        %p6390 = pneg %p6389
      $region90: #{uncurlnet_forward.3} parent=5 // pred_check_branch
        %6392 = sbr.rel (%p6390) target = $region92
      $region91: #{uncurlnet_forward.3} parent=5 // pred_region
        %s6393 = ssub.s32 %s28, 2
        // Predicated region
        $region93: #{uncurlnet_forward.3} parent=91 // pred_check
          %p6394 = pneg %p298
        $region94: #{uncurlnet_forward.3} parent=91 // pred_check_branch
          %6396 = sbr.rel (%p6394) target = $region96
        $region95: #{uncurlnet_forward.3} parent=91 // pred_region
          %s6397 = sand.u32 %s283, 1
          %s6398 = scalar_lea.sflag [#allocation4], %s6397
          %s6399 = sand.u32 %s283, 1
          %s6400 = smul.addr %s6399, 128
          %s6401 = scalar_lea.vmem [#allocation8], %s6400
          %6403 = dma.done %s6398, 2048
        $region96: #{uncurlnet_forward.3} parent=91 // pred_fallthru
          _
        // Predicated region
        $region97: #{uncurlnet_forward.3} parent=91 // pred_check
          %p6404 = pneg %p324
        $region98: #{uncurlnet_forward.3} parent=91 // pred_check_branch
          %6406 = sbr.rel (%p6404) target = $region100
        $region99: #{uncurlnet_forward.3} parent=91 // pred_region
          %s6407 = sand.u32 %s34, 1
          %s6408 = scalar_lea.sflag [#allocation10], %s6407
          %s6409 = sand.u32 %s309, 1
          %s6410 = smul.addr %s6409, 128
          %s6411 = scalar_lea.vmem [#allocation9], %s6410
          %6413 = dma.done %s6408, 2048
        $region100: #{uncurlnet_forward.3} parent=91 // pred_fallthru
          _
        // Predicated region
        $region101: #{uncurlnet_forward.3} parent=91 // pred_check
          %p6414 = pneg %p350
        $region102: #{uncurlnet_forward.3} parent=91 // pred_check_branch
          %6416 = sbr.rel (%p6414) target = $region104
        $region103: #{uncurlnet_forward.3} parent=91 // pred_region
          %s6417 = sand.u32 %s34, 1
          %s6418 = scalar_lea.sflag [#allocation10], %s6417
          %s6419 = sand.u32 %s335, 1
          %s6420 = smul.addr %s6419, 128
          %s6421 = scalar_lea.vmem [#allocation11], %s6420
          %6423 = dma.done %s6418, 2048
        $region104: #{uncurlnet_forward.3} parent=91 // pred_fallthru
          _
      $region92: #{uncurlnet_forward.3} parent=5 // pred_fallthru
        _
    $region6: #{uncurlnet_forward.3} parent=1 // loop_footer
      %s32 = sadd.s32 1, %s28
    $region7: #{uncurlnet_forward.3} parent=1 // loop_footer_branch
      %27 = sbr.rel target = $region3
    $region8: #{uncurlnet_forward.3} parent=1 // loop_exit
      _
    %6424 = vsyncpa [#allocation3], 1
    %s6425 = scalar_lea.sflag [#allocation3], 1
    %6426 = vsyncpa %s6425, 1
    %6427 = vsyncpa [#allocation6], 1
    %6428 = vsyncpa [#allocation4], 1
    %s6429 = scalar_lea.sflag [#allocation4], 1
    %6430 = vsyncpa %s6429, 1
    %6431 = vsyncpa [#allocation10], 1
    %s6432 = scalar_lea.sflag [#allocation10], 1
    %6433 = vsyncpa %s6432, 1

</llo_original>
